<compile_context>
chip_gen: v5e
topology: v5e:2x2
jax: 0.10.0
libtpu: 0.0.40
codegen_flags: <defaults>
</compile_context>

<pallas_src>
import math
import functools

import jax
import jax.numpy as jnp
from jax import lax
from jax.experimental import pallas as pl
from jax.experimental.pallas import tpu as pltpu


# ----------------------------- Pallas kernel -----------------------------

def _deconv_kernel(xp_ref, w_ref, b_ref, o_ref, *, H, W, Cin, Nout):
    """One batch element of the fused sub-pixel transposed conv.

    xp_ref : (1, H+2, W+2, Cin)  zero-padded NHWC input tile (VMEM)
    w_ref  : (9, Cin, Nout)      phase-packed taps, Nout = 4*Cout
    b_ref  : (1, Nout)           phase-packed bias
    o_ref  : (1, H*W, Nout)      all four output phases, lane-dense (Nout=4*Cout)
    """
    acc = jnp.zeros((H * W, Nout), jnp.float32)
    # 3x3 window over the padded tile; patches stay in VMEM (static slices,
    # channel/lane dim untouched -> no lane-offset relayouts, no HBM im2col).
    for u in range(3):
        for v in range(3):
            sl = xp_ref[0, u:u + H, v:v + W, :].reshape(H * W, Cin)
            acc = acc + jnp.dot(sl, w_ref[3 * u + v],
                                preferred_element_type=jnp.float32)
    o_ref[0] = acc + b_ref[...]


# ----------------------------- wrapper -----------------------------

# (r, u) -> ky tap of the 4x4 transposed-conv kernel that contributes to output
# row 2*p + r from padded input row p + u.  (Same table for columns (s, v).)
_TAP = {(0, 0): 3, (0, 1): 1, (1, 1): 2, (1, 2): 0}


def _pack_phase_weights(w):
    """w: (Cin, Cout, 4, 4) torch ConvTranspose2d layout -> (9, Cin, 4*Cout)."""
    Cin, Cout = w.shape[0], w.shape[1]
    zero = jnp.zeros((Cin, Cout), w.dtype)
    blocks = []
    for u in range(3):
        for v in range(3):
            phases = []
            for r in range(2):
                for s in range(2):
                    ky = _TAP.get((r, u))
                    kx = _TAP.get((s, v))
                    phases.append(zero if (ky is None or kx is None)
                                  else w[:, :, ky, kx])
            blocks.append(jnp.concatenate(phases, axis=1))    # (Cin, 4*Cout)
    return jnp.stack(blocks, axis=0)                          # (9, Cin, 4*Cout)


def upsample(x_nchw, t, sentence_embedding, weight, bias):
    """Forward of Upsample: ConvTranspose2d(C, C, (4,4), (2,2), (1,1))(x).

    `t` and `sentence_embedding` are accepted and ignored, matching the
    PyTorch forward (`_ = t; _ = sentence_embedding`).
    """
    del t, sentence_embedding
    B, Cin, H, W = x_nchw.shape
    Cout = weight.shape[1]
    Nout = 4 * Cout

    # Layout glue (NCHW -> padded NHWC); all conv arithmetic is in-kernel.
    x_nhwc = jnp.transpose(x_nchw, (0, 2, 3, 1))
    xpad = jnp.pad(x_nhwc, ((0, 0), (1, 1), (1, 1), (0, 0)))
    w9 = _pack_phase_weights(weight)                  # (9, Cin, 4*Cout)
    b4 = jnp.tile(bias, 4).reshape(1, Nout)           # bias per (phase, co)

    kernel = functools.partial(_deconv_kernel, H=H, W=W, Cin=Cin, Nout=Nout)
    out = pl.pallas_call(
        kernel,
        out_shape=jax.ShapeDtypeStruct((B, H * W, Nout), jnp.float32),
        grid=(B,),
        in_specs=[
            pl.BlockSpec((1, H + 2, W + 2, Cin), lambda b: (b, 0, 0, 0)),
            pl.BlockSpec((9, Cin, Nout), lambda b: (0, 0, 0)),
            pl.BlockSpec((1, Nout), lambda b: (0, 0)),
        ],
        out_specs=pl.BlockSpec((1, H * W, Nout), lambda b: (b, 0, 0)),
        compiler_params=pltpu.CompilerParams(
            dimension_semantics=("parallel",)),       # shard batch across TCs on v7x
    )(xpad, w9, b4)

    # Pixel-shuffle the four phases back to NCHW (pure layout glue).
    y = out.reshape(B, H, W, 2, 2, Cout)              # (b, p, q, r, s, co)
    y = jnp.transpose(y, (0, 5, 1, 3, 2, 4))          # (b, co, p, r, q, s)
    return y.reshape(B, Cout, 2 * H, 2 * W)


# ----------------------------- pure-JAX reference -----------------------------

def ref_upsample(x_nchw, weight, bias):
    # ConvTranspose2d(k=4, s=2, p=1) == dilate input by 2, pad 2, conv with the
    # spatially-flipped kernel (in/out channels swapped to OIHW).
    w_f = weight[:, :, ::-1, ::-1]
    w_oihw = jnp.transpose(w_f, (1, 0, 2, 3))
    y = lax.conv_general_dilated(
        x_nchw, w_oihw,
        window_strides=(1, 1),
        padding=((2, 2), (2, 2)),
        lhs_dilation=(2, 2),
        dimension_numbers=("NCHW", "OIHW", "NCHW"),
        precision=lax.Precision.HIGHEST)
    return y + bias.reshape(1, -1, 1, 1)


# ----------------------------- main -----------------------------

if __name__ == "__main__":
    jax.config.update("jax_default_matmul_precision", "highest")

    B, C, H, W, Tc = 2, 32, 16, 16, 64
    key = jax.random.PRNGKey(0)
    kx_, kw, kb, kt, ks = jax.random.split(key, 5)

    x = jax.random.normal(kx_, (B, C, H, W), jnp.float32)           # NCHW input
    t = jax.random.normal(kt, (B, Tc), jnp.float32)                 # ignored
    semb = jax.random.normal(ks, (B, C, 1, 1), jnp.float32)         # ignored

    # ConvTranspose2d(C, C, 4, 2, 1) parameters (torch layout / init scale).
    bound = 1.0 / math.sqrt(C * 4 * 4)
    w = jax.random.uniform(kw, (C, C, 4, 4), jnp.float32, -bound, bound)
    b = jax.random.uniform(kb, (C,), jnp.float32, -bound, bound)

    fwd = jax.jit(upsample)
    out = jax.block_until_ready(fwd(x, t, semb, w, b))
    assert out.shape == (B, C, 2 * H, 2 * W), out.shape

    ref = ref_upsample(x, w, b)
    max_err = float(jnp.max(jnp.abs(out - ref)))
    assert jnp.allclose(out, ref, atol=1e-3, rtol=1e-3), f"max_err={max_err}"
    print("KERNEL_OK")
</pallas_src>

<mosaic_0001>
module attributes {stable_mosaic.version = 11 : i64} {
  func.func @_deconv_kernel(%arg0: i32, %arg1: memref<1x18x18x32xf32, #tpu.memory_space<vmem>>, %arg2: memref<9x32x128xf32, #tpu.memory_space<vmem>>, %arg3: memref<1x128xf32, #tpu.memory_space<vmem>>, %arg4: memref<1x256x128xf32, #tpu.memory_space<vmem>>) attributes {dimension_semantics = [#tpu.dimension_semantics<parallel>], iteration_bounds = array<i64: 2>, scalar_prefetch = 0 : i64, scratch_operands = 0 : i64, tpu.core_type = #tpu.core_type<tc>, window_params = [{transform_indices = @transform_0, window_bounds = array<i64: 1, 18, 18, 32>}, {pipeline_mode = #tpu.pipeline_mode<synchronous>, transform_indices = @transform_1, window_bounds = array<i64: 9, 32, 128>}, {pipeline_mode = #tpu.pipeline_mode<synchronous>, transform_indices = @transform_2, window_bounds = array<i64: 1, 128>}, {transform_indices = @transform_3, window_bounds = array<i64: 1, 256, 128>}]} {
    %cst = arith.constant 0.000000e+00 : f32
    %0 = vector.broadcast %cst : f32 to vector<256x128xf32>
    %c0 = arith.constant 0 : index
    %c0_0 = arith.constant 0 : index
    %c0_1 = arith.constant 0 : index
    %c0_2 = arith.constant 0 : index
    %1 = vector.load %arg1[%c0, %c0_0, %c0_1, %c0_2] : memref<1x18x18x32xf32, #tpu.memory_space<vmem>>, vector<1x16x16x32xf32>
    %2 = vector.shape_cast %1 : vector<1x16x16x32xf32> to vector<16x16x32xf32>
    %3 = vector.shape_cast %2 : vector<16x16x32xf32> to vector<256x32xf32>
    %c0_3 = arith.constant 0 : index
    %c0_4 = arith.constant 0 : index
    %c0_5 = arith.constant 0 : index
    %4 = vector.load %arg2[%c0_3, %c0_4, %c0_5] : memref<9x32x128xf32, #tpu.memory_space<vmem>>, vector<1x32x128xf32>
    %5 = vector.shape_cast %4 : vector<1x32x128xf32> to vector<32x128xf32>
    %cst_6 = arith.constant dense<0.000000e+00> : vector<256x128xf32>
    %6 = tpu.matmul %3, %5, %cst_6 {dimension_numbers = #tpu.dot_dimension_numbers<[1], [0], [0], [1], [0, 0, 1, 1], [], []>, precision = #tpu.contract_precision<fp32>} : vector<256x32xf32>, vector<32x128xf32>, vector<256x128xf32> -> vector<256x128xf32>
    %7 = arith.addf %0, %6 : vector<256x128xf32>
    %c0_7 = arith.constant 0 : index
    %c0_8 = arith.constant 0 : index
    %c1 = arith.constant 1 : index
    %c0_9 = arith.constant 0 : index
    %8 = vector.load %arg1[%c0_7, %c0_8, %c1, %c0_9] : memref<1x18x18x32xf32, #tpu.memory_space<vmem>>, vector<1x16x16x32xf32>
    %9 = vector.shape_cast %8 : vector<1x16x16x32xf32> to vector<16x16x32xf32>
    %10 = vector.shape_cast %9 : vector<16x16x32xf32> to vector<256x32xf32>
    %c1_10 = arith.constant 1 : index
    %c0_11 = arith.constant 0 : index
    %c0_12 = arith.constant 0 : index
    %11 = vector.load %arg2[%c1_10, %c0_11, %c0_12] : memref<9x32x128xf32, #tpu.memory_space<vmem>>, vector<1x32x128xf32>
    %12 = vector.shape_cast %11 : vector<1x32x128xf32> to vector<32x128xf32>
    %cst_13 = arith.constant dense<0.000000e+00> : vector<256x128xf32>
    %13 = tpu.matmul %10, %12, %cst_13 {dimension_numbers = #tpu.dot_dimension_numbers<[1], [0], [0], [1], [0, 0, 1, 1], [], []>, precision = #tpu.contract_precision<fp32>} : vector<256x32xf32>, vector<32x128xf32>, vector<256x128xf32> -> vector<256x128xf32>
    %14 = arith.addf %7, %13 : vector<256x128xf32>
    %c0_14 = arith.constant 0 : index
    %c0_15 = arith.constant 0 : index
    %c2 = arith.constant 2 : index
    %c0_16 = arith.constant 0 : index
    %15 = vector.load %arg1[%c0_14, %c0_15, %c2, %c0_16] : memref<1x18x18x32xf32, #tpu.memory_space<vmem>>, vector<1x16x16x32xf32>
    %16 = vector.shape_cast %15 : vector<1x16x16x32xf32> to vector<16x16x32xf32>
    %17 = vector.shape_cast %16 : vector<16x16x32xf32> to vector<256x32xf32>
    %c2_17 = arith.constant 2 : index
    %c0_18 = arith.constant 0 : index
    %c0_19 = arith.constant 0 : index
    %18 = vector.load %arg2[%c2_17, %c0_18, %c0_19] : memref<9x32x128xf32, #tpu.memory_space<vmem>>, vector<1x32x128xf32>
    %19 = vector.shape_cast %18 : vector<1x32x128xf32> to vector<32x128xf32>
    %cst_20 = arith.constant dense<0.000000e+00> : vector<256x128xf32>
    %20 = tpu.matmul %17, %19, %cst_20 {dimension_numbers = #tpu.dot_dimension_numbers<[1], [0], [0], [1], [0, 0, 1, 1], [], []>, precision = #tpu.contract_precision<fp32>} : vector<256x32xf32>, vector<32x128xf32>, vector<256x128xf32> -> vector<256x128xf32>
    %21 = arith.addf %14, %20 : vector<256x128xf32>
    %c0_21 = arith.constant 0 : index
    %c1_22 = arith.constant 1 : index
    %c0_23 = arith.constant 0 : index
    %c0_24 = arith.constant 0 : index
    %22 = vector.load %arg1[%c0_21, %c1_22, %c0_23, %c0_24] : memref<1x18x18x32xf32, #tpu.memory_space<vmem>>, vector<1x16x16x32xf32>
    %23 = vector.shape_cast %22 : vector<1x16x16x32xf32> to vector<16x16x32xf32>
    %24 = vector.shape_cast %23 : vector<16x16x32xf32> to vector<256x32xf32>
    %c3 = arith.constant 3 : index
    %c0_25 = arith.constant 0 : index
    %c0_26 = arith.constant 0 : index
    %25 = vector.load %arg2[%c3, %c0_25, %c0_26] : memref<9x32x128xf32, #tpu.memory_space<vmem>>, vector<1x32x128xf32>
    %26 = vector.shape_cast %25 : vector<1x32x128xf32> to vector<32x128xf32>
    %cst_27 = arith.constant dense<0.000000e+00> : vector<256x128xf32>
    %27 = tpu.matmul %24, %26, %cst_27 {dimension_numbers = #tpu.dot_dimension_numbers<[1], [0], [0], [1], [0, 0, 1, 1], [], []>, precision = #tpu.contract_precision<fp32>} : vector<256x32xf32>, vector<32x128xf32>, vector<256x128xf32> -> vector<256x128xf32>
    %28 = arith.addf %21, %27 : vector<256x128xf32>
    %c0_28 = arith.constant 0 : index
    %c1_29 = arith.constant 1 : index
    %c1_30 = arith.constant 1 : index
    %c0_31 = arith.constant 0 : index
    %29 = vector.load %arg1[%c0_28, %c1_29, %c1_30, %c0_31] : memref<1x18x18x32xf32, #tpu.memory_space<vmem>>, vector<1x16x16x32xf32>
    %30 = vector.shape_cast %29 : vector<1x16x16x32xf32> to vector<16x16x32xf32>
    %31 = vector.shape_cast %30 : vector<16x16x32xf32> to vector<256x32xf32>
    %c4 = arith.constant 4 : index
    %c0_32 = arith.constant 0 : index
    %c0_33 = arith.constant 0 : index
    %32 = vector.load %arg2[%c4, %c0_32, %c0_33] : memref<9x32x128xf32, #tpu.memory_space<vmem>>, vector<1x32x128xf32>
    %33 = vector.shape_cast %32 : vector<1x32x128xf32> to vector<32x128xf32>
    %cst_34 = arith.constant dense<0.000000e+00> : vector<256x128xf32>
    %34 = tpu.matmul %31, %33, %cst_34 {dimension_numbers = #tpu.dot_dimension_numbers<[1], [0], [0], [1], [0, 0, 1, 1], [], []>, precision = #tpu.contract_precision<fp32>} : vector<256x32xf32>, vector<32x128xf32>, vector<256x128xf32> -> vector<256x128xf32>
    %35 = arith.addf %28, %34 : vector<256x128xf32>
    %c0_35 = arith.constant 0 : index
    %c1_36 = arith.constant 1 : index
    %c2_37 = arith.constant 2 : index
    %c0_38 = arith.constant 0 : index
    %36 = vector.load %arg1[%c0_35, %c1_36, %c2_37, %c0_38] : memref<1x18x18x32xf32, #tpu.memory_space<vmem>>, vector<1x16x16x32xf32>
    %37 = vector.shape_cast %36 : vector<1x16x16x32xf32> to vector<16x16x32xf32>
    %38 = vector.shape_cast %37 : vector<16x16x32xf32> to vector<256x32xf32>
    %c5 = arith.constant 5 : index
    %c0_39 = arith.constant 0 : index
    %c0_40 = arith.constant 0 : index
    %39 = vector.load %arg2[%c5, %c0_39, %c0_40] : memref<9x32x128xf32, #tpu.memory_space<vmem>>, vector<1x32x128xf32>
    %40 = vector.shape_cast %39 : vector<1x32x128xf32> to vector<32x128xf32>
    %cst_41 = arith.constant dense<0.000000e+00> : vector<256x128xf32>
    %41 = tpu.matmul %38, %40, %cst_41 {dimension_numbers = #tpu.dot_dimension_numbers<[1], [0], [0], [1], [0, 0, 1, 1], [], []>, precision = #tpu.contract_precision<fp32>} : vector<256x32xf32>, vector<32x128xf32>, vector<256x128xf32> -> vector<256x128xf32>
    %42 = arith.addf %35, %41 : vector<256x128xf32>
    %c0_42 = arith.constant 0 : index
    %c2_43 = arith.constant 2 : index
    %c0_44 = arith.constant 0 : index
    %c0_45 = arith.constant 0 : index
    %43 = vector.load %arg1[%c0_42, %c2_43, %c0_44, %c0_45] : memref<1x18x18x32xf32, #tpu.memory_space<vmem>>, vector<1x16x16x32xf32>
    %44 = vector.shape_cast %43 : vector<1x16x16x32xf32> to vector<16x16x32xf32>
    %45 = vector.shape_cast %44 : vector<16x16x32xf32> to vector<256x32xf32>
    %c6 = arith.constant 6 : index
    %c0_46 = arith.constant 0 : index
    %c0_47 = arith.constant 0 : index
    %46 = vector.load %arg2[%c6, %c0_46, %c0_47] : memref<9x32x128xf32, #tpu.memory_space<vmem>>, vector<1x32x128xf32>
    %47 = vector.shape_cast %46 : vector<1x32x128xf32> to vector<32x128xf32>
    %cst_48 = arith.constant dense<0.000000e+00> : vector<256x128xf32>
    %48 = tpu.matmul %45, %47, %cst_48 {dimension_numbers = #tpu.dot_dimension_numbers<[1], [0], [0], [1], [0, 0, 1, 1], [], []>, precision = #tpu.contract_precision<fp32>} : vector<256x32xf32>, vector<32x128xf32>, vector<256x128xf32> -> vector<256x128xf32>
    %49 = arith.addf %42, %48 : vector<256x128xf32>
    %c0_49 = arith.constant 0 : index
    %c2_50 = arith.constant 2 : index
    %c1_51 = arith.constant 1 : index
    %c0_52 = arith.constant 0 : index
    %50 = vector.load %arg1[%c0_49, %c2_50, %c1_51, %c0_52] : memref<1x18x18x32xf32, #tpu.memory_space<vmem>>, vector<1x16x16x32xf32>
    %51 = vector.shape_cast %50 : vector<1x16x16x32xf32> to vector<16x16x32xf32>
    %52 = vector.shape_cast %51 : vector<16x16x32xf32> to vector<256x32xf32>
    %c7 = arith.constant 7 : index
    %c0_53 = arith.constant 0 : index
    %c0_54 = arith.constant 0 : index
    %53 = vector.load %arg2[%c7, %c0_53, %c0_54] : memref<9x32x128xf32, #tpu.memory_space<vmem>>, vector<1x32x128xf32>
    %54 = vector.shape_cast %53 : vector<1x32x128xf32> to vector<32x128xf32>
    %cst_55 = arith.constant dense<0.000000e+00> : vector<256x128xf32>
    %55 = tpu.matmul %52, %54, %cst_55 {dimension_numbers = #tpu.dot_dimension_numbers<[1], [0], [0], [1], [0, 0, 1, 1], [], []>, precision = #tpu.contract_precision<fp32>} : vector<256x32xf32>, vector<32x128xf32>, vector<256x128xf32> -> vector<256x128xf32>
    %56 = arith.addf %49, %55 : vector<256x128xf32>
    %c0_56 = arith.constant 0 : index
    %c2_57 = arith.constant 2 : index
    %c2_58 = arith.constant 2 : index
    %c0_59 = arith.constant 0 : index
    %57 = vector.load %arg1[%c0_56, %c2_57, %c2_58, %c0_59] : memref<1x18x18x32xf32, #tpu.memory_space<vmem>>, vector<1x16x16x32xf32>
    %58 = vector.shape_cast %57 : vector<1x16x16x32xf32> to vector<16x16x32xf32>
    %59 = vector.shape_cast %58 : vector<16x16x32xf32> to vector<256x32xf32>
    %c8 = arith.constant 8 : index
    %c0_60 = arith.constant 0 : index
    %c0_61 = arith.constant 0 : index
    %60 = vector.load %arg2[%c8, %c0_60, %c0_61] : memref<9x32x128xf32, #tpu.memory_space<vmem>>, vector<1x32x128xf32>
    %61 = vector.shape_cast %60 : vector<1x32x128xf32> to vector<32x128xf32>
    %cst_62 = arith.constant dense<0.000000e+00> : vector<256x128xf32>
    %62 = tpu.matmul %59, %61, %cst_62 {dimension_numbers = #tpu.dot_dimension_numbers<[1], [0], [0], [1], [0, 0, 1, 1], [], []>, precision = #tpu.contract_precision<fp32>} : vector<256x32xf32>, vector<32x128xf32>, vector<256x128xf32> -> vector<256x128xf32>
    %63 = arith.addf %56, %62 : vector<256x128xf32>
    %c0_63 = arith.constant 0 : index
    %c0_64 = arith.constant 0 : index
    %64 = vector.load %arg3[%c0_63, %c0_64] : memref<1x128xf32, #tpu.memory_space<vmem>>, vector<1x128xf32>
    %65 = vector.broadcast %64 : vector<1x128xf32> to vector<256x128xf32>
    %66 = arith.addf %63, %65 : vector<256x128xf32>
    %c0_65 = arith.constant 0 : index
    %c0_66 = arith.constant 0 : index
    %c0_67 = arith.constant 0 : index
    %67 = vector.load %arg4[%c0_65, %c0_66, %c0_67] : memref<1x256x128xf32, #tpu.memory_space<vmem>>, vector<1x256x128xf32>
    %68 = vector.shape_cast %67 : vector<1x256x128xf32> to vector<256x128xf32>
    %69 = vector.shape_cast %66 : vector<256x128xf32> to vector<1x256x128xf32>
    tpu.vector_store %arg4[%c0_65, %c0_66, %c0_67], %69 {strides = array<i32>} : memref<1x256x128xf32, #tpu.memory_space<vmem>>, vector<1x256x128xf32>,
    return
  }
  func.func @transform_0(%arg0: i32) -> (i32, i32, i32, i32) {
    %c0_i32 = arith.constant 0 : i32
    %c0_i32_0 = arith.constant 0 : i32
    %c0_i32_1 = arith.constant 0 : i32
    %c0_i32_2 = arith.constant 0 : i32
    return %arg0, %c0_i32, %c0_i32_0, %c0_i32_1 : i32, i32, i32, i32
  }
  func.func @transform_1(%arg0: i32) -> (i32, i32, i32) {
    %c0_i32 = arith.constant 0 : i32
    %c0_i32_0 = arith.constant 0 : i32
    %c0_i32_1 = arith.constant 0 : i32
    %c0_i32_2 = arith.constant 0 : i32
    return %c0_i32, %c0_i32_0, %c0_i32_1 : i32, i32, i32
  }
  func.func @transform_2(%arg0: i32) -> (i32, i32) {
    %c0_i32 = arith.constant 0 : i32
    %c0_i32_0 = arith.constant 0 : i32
    %c0_i32_1 = arith.constant 0 : i32
    return %c0_i32, %c0_i32_0 : i32, i32
  }
  func.func @transform_3(%arg0: i32) -> (i32, i32, i32) {
    %c0_i32 = arith.constant 0 : i32
    %c0_i32_0 = arith.constant 0 : i32
    %c0_i32_1 = arith.constant 0 : i32
    return %arg0, %c0_i32, %c0_i32_0 : i32, i32, i32
  }
}

</mosaic_0001>

<llo_original>
// kernel: tile.8
$region0: #{tile.8}
  #allocation0 [shape = 's32[1]{0}', space=sflag, size = 0x4, scoped, tag = 'scoped memory for tile.8']
  %s0 = inlined_call_operand.vmem [shape: f32[32], index: 0, kind: input, shape index: {}]
  %s1 = inlined_call_operand.vmem [shape: f32[4,32], index: 1, kind: output, shape index: {}]
  // Predicated region
  $region2: #{tile.8} parent=0 // pred_check
    _
  $region3: #{tile.8} parent=0 // pred_check_branch
    %3 = sbr.rel (0) target = $region5
  $region4: #{tile.8} parent=0 // pred_region
    _
  $region5: #{tile.8} parent=0 // pred_fallthru
    _
  %v4 = vld [vmem:[%s0] ss:$0 sm:$0xff]
  %5 = vst [vmem:[%s1] sm:$0xf] %v4

// kernel: tile.9
$region0: #{tile.9}
  %s0 = inlined_call_operand.vmem [shape: f32[4,32], index: 0, kind: input, shape index: {}]
  %s1 = inlined_call_operand.vmem [shape: f32[1,128], index: 1, kind: output, shape index: {}]
  $region1: #{tile.9} parent=0
    #allocation0 [shape = 'u8[4096]{0}', space=vmem, size = 0x1000, scoped, tag = 'scoped mem for output reshape']
    #allocation1 [shape = 'u8[4096]{0}', space=vmem, size = 0x1000, scoped, tag = 'scoped mem for input reshape']
    %s3 = ssub.s32 16, 1
    %v4 = vld [vmem:[%s0] sm:%s3]
    %5 = vst [vmem:[#allocation1] sm:%s3] %v4
    %v6 = vld [vmem:[#allocation1] sm:$0x1]
    %vm7 = vcmask 261120
    %8 = vst.msk [vmem:[#allocation0] sm:$0x1] %vm7, %v6
    %s9 = scalar_lea.vmem [#allocation1], 3
    %v10 = vld [vmem:[%s9] sm:$0x1]
    %11 = vrot.lane.b32.xlu0 %v10, 96
    %v12 = vpop.permute.xlu0 %11
    %vm13 = vcmask 1048320
    %14 = vst.msk [vmem:[#allocation0] sm:$0x1] %vm13, %v12
    %s15 = scalar_lea.vmem [#allocation1], 2
    %v16 = vld [vmem:[%s15] sm:$0x1]
    %17 = vrot.lane.b32.xlu0 %v16, 64
    %v18 = vpop.permute.xlu0 %17
    %vm19 = vcmask 785920
    %20 = vst.msk [vmem:[#allocation0] sm:$0x1] %vm19, %v18
    %s21 = scalar_lea.vmem [#allocation1], 1
    %v22 = vld [vmem:[%s21] sm:$0x1]
    %23 = vrot.lane.b32.xlu0 %v22, 32
    %v24 = vpop.permute.xlu0 %23
    %vm25 = vcmask 523520
    %26 = vst.msk [vmem:[#allocation0] sm:$0x1] %vm25, %v24
    %s28 = ssub.s32 2, 1
    %v29 = vld [vmem:[#allocation0] sm:%s28]
    %s31 = ssub.s32 2, 1
    %32 = vst [vmem:[%s1] sm:%s31] %v29

// kernel: upsample.1
$region0: #{upsample.1}
  #allocation0 [shape = 'u32[]', space=smem, size = 0x4, offset = 0x4, fixed_abs, tag = 'smem constant byte address 0x4 - core index']
  #allocation1 [shape = 'u32[72,128]{1,0:T(1,128)}', space=vmem, size = 0x9000, scoped, tag = 'internal scratch']
  %s0 = inlined_call_operand.vmem [shape: f32[2,18,18,32], index: 0, kind: input, shape index: {}]
  %s1 = inlined_call_operand.vmem [shape: f32[9,32,128], index: 1, kind: input, shape index: {}]
  %s2 = inlined_call_operand.vmem [shape: f32[1,128], index: 2, kind: input, shape index: {}]
  %s3 = inlined_call_operand.vmem [shape: f32[2,256,128], index: 3, kind: output, shape index: {}]
  %s4 = sld [smem:[#allocation0]]
  $region45: #{upsample.1} parent=0
    _
  %s6 = ssub.s32 1, %s4
  %s7 = scalar_select 0, %s6, %s4
  loop: start=0, step=1, limit=4
  $region2: #{upsample.1} parent=0 // loop_pre_header
    _
  $region3: #{upsample.1} parent=0 // loop_header
    %s9 = sphi 0, %s13
    %p10 = scmp.ge.s32.totalorder %s9, 4
    %s19 = sphi 0, %s21
    %s22 = sphi 0, %s19
    %s23 = sphi 0, %s22
    %s39 = sphi 0, %s23
    %s43 = sphi 0, %s43
    %s45 = sphi 0, %s43
    %s46 = sphi 0, %s45
    %s60 = sphi 0, %s46
    %s64 = sphi 0, %s64
    %s66 = sphi 0, %s64
    %s67 = sphi 0, %s66
    %s81 = sphi 0, %s67
    %s87 = sphi 0, %s89
    %s90 = sphi 0, %s87
    %s91 = sphi 0, %s90
    %s107 = sphi 0, %s91
  $region4: #{upsample.1} parent=0 // loop_header_branch
    %12 = sbr.rel (%p10) target = $region8
  $region5: #{upsample.1} parent=0 // loop_body
    %s14 = ssub.s32 %s9, 1
    %s15 = ssub.s32 %s9, 2
    %s16 = sadd.s32 %s9, 1
    %s17 = ssub.s32 %s9, %s16
    %p18 = scmp.eq.s32.totalorder %s17, 0
    %s20 = sadd.s32 %s19, 1
    %s21 = scalar_select %p18, %s19, %s20
    %p24 = pneg %p18
    %p25 = scmp.eq.s32.totalorder %s9, 1
    %p26 = por %p24, %p25
    %p27 = scmp.ne.s32.totalorder %s19, %s22
    %p28 = scmp.eq.s32.totalorder %s9, 0
    %p29 = por %p27, %p28
    %p30 = scmp.ne.s32.totalorder %s19, %s22
    %p31 = scmp.eq.s32.totalorder %s14, 1
    %p32 = por %p30, %p31
    %p33 = scmp.ne.s32.totalorder %s22, %s23
    %p34 = scmp.eq.s32.totalorder %s14, 0
    %p35 = por %p33, %p34
    %p36 = scmp.ne.s32.totalorder %s22, %s23
    %p37 = scmp.eq.s32.totalorder %s15, 1
    %p38 = por %p36, %p37
    %p40 = scmp.ne.s32.totalorder %s23, %s39
    %p41 = scmp.eq.s32.totalorder %s15, 0
    %p42 = por %p40, %p41
    %s44 = sadd.s32 %s43, 1
    %p47 = scmp.eq.s32.totalorder %s9, 1
    %p48 = scmp.ne.s32.totalorder %s43, %s45
    %p49 = scmp.eq.s32.totalorder %s9, 0
    %p50 = por %p48, %p49
    %p51 = scmp.ne.s32.totalorder %s43, %s45
    %p52 = scmp.eq.s32.totalorder %s14, 1
    %p53 = por %p51, %p52
    %p54 = scmp.ne.s32.totalorder %s45, %s46
    %p55 = scmp.eq.s32.totalorder %s14, 0
    %p56 = por %p54, %p55
    %p57 = scmp.ne.s32.totalorder %s45, %s46
    %p58 = scmp.eq.s32.totalorder %s15, 1
    %p59 = por %p57, %p58
    %p61 = scmp.ne.s32.totalorder %s46, %s60
    %p62 = scmp.eq.s32.totalorder %s15, 0
    %p63 = por %p61, %p62
    %s65 = sadd.s32 %s64, 1
    %p68 = scmp.eq.s32.totalorder %s9, 1
    %p69 = scmp.ne.s32.totalorder %s64, %s66
    %p70 = scmp.eq.s32.totalorder %s9, 0
    %p71 = por %p69, %p70
    %p72 = scmp.ne.s32.totalorder %s64, %s66
    %p73 = scmp.eq.s32.totalorder %s14, 1
    %p74 = por %p72, %p73
    %p75 = scmp.ne.s32.totalorder %s66, %s67
    %p76 = scmp.eq.s32.totalorder %s14, 0
    %p77 = por %p75, %p76
    %p78 = scmp.ne.s32.totalorder %s66, %s67
    %p79 = scmp.eq.s32.totalorder %s15, 1
    %p80 = por %p78, %p79
    %p82 = scmp.ne.s32.totalorder %s67, %s81
    %p83 = scmp.eq.s32.totalorder %s15, 0
    %p84 = por %p82, %p83
    %s85 = ssub.s32 %s9, %s16
    %p86 = scmp.eq.s32.totalorder %s85, 0
    %s88 = sadd.s32 %s87, 1
    %s89 = scalar_select %p86, %s87, %s88
    %p92 = pneg %p86
    %p93 = scmp.eq.s32.totalorder %s9, 1
    %p94 = por %p92, %p93
    %p95 = scmp.ne.s32.totalorder %s87, %s90
    %p96 = scmp.eq.s32.totalorder %s9, 0
    %p97 = por %p95, %p96
    %p98 = scmp.ne.s32.totalorder %s87, %s90
    %p99 = scmp.eq.s32.totalorder %s14, 1
    %p100 = por %p98, %p99
    %p101 = scmp.ne.s32.totalorder %s90, %s91
    %p102 = scmp.eq.s32.totalorder %s14, 0
    %p103 = por %p101, %p102
    %p104 = scmp.ne.s32.totalorder %s90, %s91
    %p105 = scmp.eq.s32.totalorder %s15, 1
    %p106 = por %p104, %p105
    %p108 = scmp.ne.s32.totalorder %s91, %s107
    %p109 = scmp.eq.s32.totalorder %s15, 0
    %p110 = por %p108, %p109
    %p111 = scmp.le.s32.totalorder 1, %s9
    %p112 = scmp.lt.s32.totalorder %s9, 3
    %p113 = pnand %p111, %p112
    %p114 = pneg %p113
    // Predicated region
    $region9: #{upsample.1} parent=5 // pred_check
      _
    $region10: #{upsample.1} parent=5 // pred_check_branch
      %116 = sbr.rel (%p113) target = $region12
    $region11: #{upsample.1} parent=5 // pred_region
      %s117 = ssub.s32 %s9, 1
      // Predicated region
      $region13: #{upsample.1} parent=11 // pred_check
        %p118 = pneg %p56
      $region14: #{upsample.1} parent=11 // pred_check_branch
        %120 = sbr.rel (%p118) target = $region16
      $region15: #{upsample.1} parent=11 // pred_region
        _
      $region16: #{upsample.1} parent=11 // pred_fallthru
        _
      // Predicated region
      $region17: #{upsample.1} parent=11 // pred_check
        %p121 = pneg %p77
      $region18: #{upsample.1} parent=11 // pred_check_branch
        %123 = sbr.rel (%p121) target = $region20
      $region19: #{upsample.1} parent=11 // pred_region
        _
      $region20: #{upsample.1} parent=11 // pred_fallthru
        _
    $region12: #{upsample.1} parent=5 // pred_fallthru
      _
    %p124 = scmp.lt.s32.totalorder %s9, 2
    // Predicated region
    $region21: #{upsample.1} parent=5 // pred_check
      %p125 = pneg %p124
    $region22: #{upsample.1} parent=5 // pred_check_branch
      %127 = sbr.rel (%p125) target = $region24
    $region23: #{upsample.1} parent=5 // pred_region
      // Predicated region
      $region25: #{upsample.1} parent=23 // pred_check
        %p128 = pneg %p29
      $region26: #{upsample.1} parent=23 // pred_check_branch
        %130 = sbr.rel (%p128) target = $region28
      $region27: #{upsample.1} parent=23 // pred_region
        %p131 = scmp.lt.s32.totalorder %s9, 1
        %s132 = scalar_select %p131, %s9, 1
        %s133 = smul.addr %s132, 54
        %s134 = smul.addr %s133, 8
        %s135 = scalar_lea.vmem %s0, %s134
      $region28: #{upsample.1} parent=23 // pred_fallthru
        _
    $region24: #{upsample.1} parent=5 // pred_fallthru
      _
    %p136 = scmp.le.s32.totalorder 1, %s9
    %p137 = scmp.lt.s32.totalorder %s9, 3
    %p138 = pnand %p136, %p137
    %p139 = pneg %p138
    // Predicated region
    $region29: #{upsample.1} parent=5 // pred_check
      _
    $region30: #{upsample.1} parent=5 // pred_check_branch
      %141 = sbr.rel (%p138) target = $region32
    $region31: #{upsample.1} parent=5 // pred_region
      %s142 = ssub.s32 %s9, 1
      %p143 = scmp.lt.s32.totalorder %s14, 1
      %s144 = scalar_select %p143, %s14, 1
      %s145 = smul.addr %s144, 54
      %s146 = smul.addr %s145, 8
      %s147 = scalar_lea.vmem %s0, %s146
      %p148 = pneg %p35
      %p149 = pneg %p32
      %p150 = pneg %p56
      %p151 = pneg %p53
      %p152 = pneg %p77
      %p153 = pneg %p74
      %p154 = pneg %p103
      %p155 = pneg %p100
      %p156 = scmp.lt.s32.totalorder %s14, 1
      %s157 = scalar_select %p156, %s14, 1
      %s158 = smul.addr %s157, 32
      %s159 = smul.addr %s158, 8
      %s160 = scalar_lea.vmem %s3, %s159
      %p161 = scmp.lt.s32.totalorder %s14, 1
      %s162 = scalar_select %p161, %s14, 1
      %s163 = smul.addr %s162, 54
      %s164 = smul.addr %s163, 8
      %s165 = scalar_lea.vmem %s0, %s164
      %p166 = scmp.lt.s32.totalorder %s14, 1
      %s167 = scalar_select %p166, %s14, 1
      %s168 = smul.addr %s167, 32
      %s169 = smul.addr %s168, 8
      %s170 = scalar_lea.vmem %s3, %s169
      %v171 = vld [vmem:[%s165] sm:$0xff]
      %v172 = vld [vmem:[%s165 + $0x8] sm:$0xff]
      %v173 = vld [vmem:[%s165 + $0x18] sm:$0xff]
      %v174 = vld [vmem:[%s165 + $0x20] sm:$0xff]
      %v175 = vld [vmem:[%s165 + $0x30] sm:$0xff]
      %v176 = vld [vmem:[%s165 + $0x38] sm:$0xff]
      %v177 = vld [vmem:[%s165 + $0x48] sm:$0xff]
      %v178 = vld [vmem:[%s165 + $0x50] sm:$0xff]
      %v179 = vld [vmem:[%s165 + $0x60] sm:$0xff]
      %v180 = vld [vmem:[%s165 + $0x68] sm:$0xff]
      %v181 = vld [vmem:[%s165 + $0x78] sm:$0xff]
      %v182 = vld [vmem:[%s165 + $0x80] sm:$0xff]
      %v183 = vld [vmem:[%s165 + $0x90] sm:$0xff]
      %v184 = vld [vmem:[%s165 + $0x98] sm:$0xff]
      %v185 = vld [vmem:[%s165 + $0xa8] sm:$0xff]
      %v186 = vld [vmem:[%s165 + $0xb0] sm:$0xff]
      %v187 = vld [vmem:[%s165 + $0xc0] sm:$0xff]
      %v188 = vld [vmem:[%s165 + $0xc8] sm:$0xff]
      %v189 = vld [vmem:[%s165 + $0xd8] sm:$0xff]
      %v190 = vld [vmem:[%s165 + $0xe0] sm:$0xff]
      %v191 = vld [vmem:[%s165 + $0xf0] sm:$0xff]
      %v192 = vld [vmem:[%s165 + $0xf8] sm:$0xff]
      %v193 = vld [vmem:[%s165 + $0x108] sm:$0xff]
      %v194 = vld [vmem:[%s165 + $0x110] sm:$0xff]
      %v195 = vld [vmem:[%s165 + $0x120] sm:$0xff]
      %v196 = vld [vmem:[%s165 + $0x128] sm:$0xff]
      %v197 = vld [vmem:[%s165 + $0x138] sm:$0xff]
      %v198 = vld [vmem:[%s165 + $0x140] sm:$0xff]
      %v199 = vld [vmem:[%s165 + $0x150] sm:$0xff]
      %v200 = vld [vmem:[%s165 + $0x158] sm:$0xff]
      %v201 = vld [vmem:[%s165 + $0x168] sm:$0xff]
      %v202 = vld [vmem:[%s165 + $0x170] sm:$0xff]
      %v203 = vld [vmem:[%s1] sm:$0xff]
      %v204 = vld [vmem:[%s1 + $0x8] sm:$0xff]
      %v205 = vld [vmem:[%s1 + $0x10] sm:$0xff]
      %v206 = vld [vmem:[%s1 + $0x18] sm:$0xff]
      %v207 = vld [vmem:[%s165 + $0x1] sm:$0xff]
      %v208 = vld [vmem:[%s165 + $0x9] sm:$0xff]
      %v209 = vld [vmem:[%s165 + $0x19] sm:$0xff]
      %v210 = vld [vmem:[%s165 + $0x21] sm:$0xff]
      %v211 = vld [vmem:[%s165 + $0x31] sm:$0xff]
      %v212 = vld [vmem:[%s165 + $0x39] sm:$0xff]
      %v213 = vld [vmem:[%s165 + $0x49] sm:$0xff]
      %v214 = vld [vmem:[%s165 + $0x51] sm:$0xff]
      %v215 = vld [vmem:[%s165 + $0x61] sm:$0xff]
      %v216 = vld [vmem:[%s165 + $0x69] sm:$0xff]
      %v217 = vld [vmem:[%s165 + $0x79] sm:$0xff]
      %v218 = vld [vmem:[%s165 + $0x81] sm:$0xff]
      %v219 = vld [vmem:[%s165 + $0x91] sm:$0xff]
      %v220 = vld [vmem:[%s165 + $0x99] sm:$0xff]
      %v221 = vld [vmem:[%s165 + $0xa9] sm:$0xff]
      %v222 = vld [vmem:[%s165 + $0xb1] sm:$0xff]
      %v223 = vld [vmem:[%s165 + $0xc1] sm:$0xff]
      %v224 = vld [vmem:[%s165 + $0xc9] sm:$0xff]
      %v225 = vld [vmem:[%s165 + $0xd9] sm:$0xff]
      %v226 = vld [vmem:[%s165 + $0xe1] sm:$0xff]
      %v227 = vld [vmem:[%s165 + $0xf1] sm:$0xff]
      %v228 = vld [vmem:[%s165 + $0xf9] sm:$0xff]
      %v229 = vld [vmem:[%s165 + $0x109] sm:$0xff]
      %v230 = vld [vmem:[%s165 + $0x111] sm:$0xff]
      %v231 = vld [vmem:[%s165 + $0x121] sm:$0xff]
      %v232 = vld [vmem:[%s165 + $0x129] sm:$0xff]
      %v233 = vld [vmem:[%s165 + $0x139] sm:$0xff]
      %v234 = vld [vmem:[%s165 + $0x141] sm:$0xff]
      %v235 = vld [vmem:[%s165 + $0x151] sm:$0xff]
      %v236 = vld [vmem:[%s165 + $0x159] sm:$0xff]
      %v237 = vld [vmem:[%s165 + $0x169] sm:$0xff]
      %v238 = vld [vmem:[%s165 + $0x171] sm:$0xff]
      %s239 = scalar_lea.vmem %s1, 32
      %v240 = vld [vmem:[%s239] sm:$0xff]
      %v241 = vld [vmem:[%s239 + $0x8] sm:$0xff]
      %v242 = vld [vmem:[%s239 + $0x10] sm:$0xff]
      %v243 = vld [vmem:[%s239 + $0x18] sm:$0xff]
      %vm244 = vcmask 261120
      %v246 = vsel %vm244, %v207, 0
      %v249 = vsel %vm244, %v208, 0
      %v252 = vsel %vm244, %v209, 0
      %v255 = vsel %vm244, %v210, 0
      %v258 = vsel %vm244, %v211, 0
      %v261 = vsel %vm244, %v212, 0
      %v264 = vsel %vm244, %v213, 0
      %v267 = vsel %vm244, %v214, 0
      %v270 = vsel %vm244, %v215, 0
      %v273 = vsel %vm244, %v216, 0
      %v276 = vsel %vm244, %v217, 0
      %v279 = vsel %vm244, %v218, 0
      %v282 = vsel %vm244, %v219, 0
      %v285 = vsel %vm244, %v220, 0
      %v288 = vsel %vm244, %v221, 0
      %v291 = vsel %vm244, %v222, 0
      %v294 = vsel %vm244, %v223, 0
      %v297 = vsel %vm244, %v224, 0
      %v300 = vsel %vm244, %v225, 0
      %v303 = vsel %vm244, %v226, 0
      %v306 = vsel %vm244, %v227, 0
      %v309 = vsel %vm244, %v228, 0
      %v312 = vsel %vm244, %v229, 0
      %v315 = vsel %vm244, %v230, 0
      %v318 = vsel %vm244, %v231, 0
      %v321 = vsel %vm244, %v232, 0
      %v324 = vsel %vm244, %v233, 0
      %v327 = vsel %vm244, %v234, 0
      %v330 = vsel %vm244, %v235, 0
      %v333 = vsel %vm244, %v236, 0
      %v336 = vsel %vm244, %v237, 0
      %v339 = vsel %vm244, %v238, 0
      %341 = vmatpush.msra.mxu0 0.0
      %342 = vmatpush.msra.mxu0 0.0
      %343 = vmatpush.msra.mxu0 0.0
      %344 = vmatpush.msra.mxu0 0.0
      %345 = vmatpush.msra.mxu0 0.0
      %346 = vmatpush.msra.mxu0 0.0
      %347 = vmatpush.msra.mxu0 0.0
      %348 = vmatpush.msra.mxu0 0.0
      %349 = vmatpush.msra.mxu0 0.0
      %350 = vmatpush.msra.mxu0 0.0
      %351 = vmatpush.msra.mxu0 0.0
      %352 = vmatpush.msra.mxu0 0.0
      %v353 = vand.u32 %v243, 4294901760
      %354 = vmatpush.msra.mxu0 %v353
      %v355 = vand.u32 %v242, 4294901760
      %356 = vmatpush.msra.mxu0 %v355
      %v357 = vand.u32 %v241, 4294901760
      %358 = vmatpush.msra.mxu0 %v357
      %v359 = vand.u32 %v240, 4294901760
      %360 = vmatpush.msra.mxu0 %v359
      %v361 = vand.u32 %v246, 4294901760
      %v362 = vsub.f32 %v246, %v361
      %v363 = vand.u32 %v362, 4294901760
      %v364 = vsub.f32 %v362, %v363
      %v365 = vand.u32 %v364, 4294901760
      %366 = vmatmul.f32.gmra.mxu0 %v365
      %v367 = vpop.f32.mrf.mxu0
      %v368 = vadd.f32 0.0, %v367
      %v369 = vand.u32 %v249, 4294901760
      %v370 = vsub.f32 %v249, %v369
      %v371 = vand.u32 %v370, 4294901760
      %v372 = vsub.f32 %v370, %v371
      %v373 = vand.u32 %v372, 4294901760
      %374 = vmatmul.f32.gmra.mxu0 %v373
      %v375 = vpop.f32.mrf.mxu0
      %v376 = vadd.f32 0.0, %v375
      %v377 = vand.u32 %v252, 4294901760
      %v378 = vsub.f32 %v252, %v377
      %v379 = vand.u32 %v378, 4294901760
      %v380 = vsub.f32 %v378, %v379
      %v381 = vand.u32 %v380, 4294901760
      %382 = vmatmul.f32.gmra.mxu0 %v381
      %v383 = vpop.f32.mrf.mxu0
      %v384 = vadd.f32 0.0, %v383
      %v385 = vand.u32 %v255, 4294901760
      %v386 = vsub.f32 %v255, %v385
      %v387 = vand.u32 %v386, 4294901760
      %v388 = vsub.f32 %v386, %v387
      %v389 = vand.u32 %v388, 4294901760
      %390 = vmatmul.f32.gmra.mxu0 %v389
      %v391 = vpop.f32.mrf.mxu0
      %v392 = vadd.f32 0.0, %v391
      %v393 = vand.u32 %v258, 4294901760
      %v394 = vsub.f32 %v258, %v393
      %v395 = vand.u32 %v394, 4294901760
      %v396 = vsub.f32 %v394, %v395
      %v397 = vand.u32 %v396, 4294901760
      %398 = vmatmul.f32.gmra.mxu0 %v397
      %v399 = vpop.f32.mrf.mxu0
      %v400 = vadd.f32 0.0, %v399
      %v401 = vand.u32 %v261, 4294901760
      %v402 = vsub.f32 %v261, %v401
      %v403 = vand.u32 %v402, 4294901760
      %v404 = vsub.f32 %v402, %v403
      %v405 = vand.u32 %v404, 4294901760
      %406 = vmatmul.f32.gmra.mxu0 %v405
      %v407 = vpop.f32.mrf.mxu0
      %v408 = vadd.f32 0.0, %v407
      %v409 = vand.u32 %v264, 4294901760
      %v410 = vsub.f32 %v264, %v409
      %v411 = vand.u32 %v410, 4294901760
      %v412 = vsub.f32 %v410, %v411
      %v413 = vand.u32 %v412, 4294901760
      %414 = vmatmul.f32.gmra.mxu0 %v413
      %v415 = vpop.f32.mrf.mxu0
      %v416 = vadd.f32 0.0, %v415
      %v417 = vand.u32 %v267, 4294901760
      %v418 = vsub.f32 %v267, %v417
      %v419 = vand.u32 %v418, 4294901760
      %v420 = vsub.f32 %v418, %v419
      %v421 = vand.u32 %v420, 4294901760
      %422 = vmatmul.f32.gmra.mxu0 %v421
      %v423 = vpop.f32.mrf.mxu0
      %v424 = vadd.f32 0.0, %v423
      %v425 = vand.u32 %v270, 4294901760
      %v426 = vsub.f32 %v270, %v425
      %v427 = vand.u32 %v426, 4294901760
      %v428 = vsub.f32 %v426, %v427
      %v429 = vand.u32 %v428, 4294901760
      %430 = vmatmul.f32.gmra.mxu0 %v429
      %v431 = vpop.f32.mrf.mxu0
      %v432 = vadd.f32 0.0, %v431
      %v433 = vand.u32 %v273, 4294901760
      %v434 = vsub.f32 %v273, %v433
      %v435 = vand.u32 %v434, 4294901760
      %v436 = vsub.f32 %v434, %v435
      %v437 = vand.u32 %v436, 4294901760
      %438 = vmatmul.f32.gmra.mxu0 %v437
      %v439 = vpop.f32.mrf.mxu0
      %v440 = vadd.f32 0.0, %v439
      %v441 = vand.u32 %v276, 4294901760
      %v442 = vsub.f32 %v276, %v441
      %v443 = vand.u32 %v442, 4294901760
      %v444 = vsub.f32 %v442, %v443
      %v445 = vand.u32 %v444, 4294901760
      %446 = vmatmul.f32.gmra.mxu0 %v445
      %v447 = vpop.f32.mrf.mxu0
      %v448 = vadd.f32 0.0, %v447
      %v449 = vand.u32 %v279, 4294901760
      %v450 = vsub.f32 %v279, %v449
      %v451 = vand.u32 %v450, 4294901760
      %v452 = vsub.f32 %v450, %v451
      %v453 = vand.u32 %v452, 4294901760
      %454 = vmatmul.f32.gmra.mxu0 %v453
      %v455 = vpop.f32.mrf.mxu0
      %v456 = vadd.f32 0.0, %v455
      %v457 = vand.u32 %v282, 4294901760
      %v458 = vsub.f32 %v282, %v457
      %v459 = vand.u32 %v458, 4294901760
      %v460 = vsub.f32 %v458, %v459
      %v461 = vand.u32 %v460, 4294901760
      %462 = vmatmul.f32.gmra.mxu0 %v461
      %v463 = vpop.f32.mrf.mxu0
      %v464 = vadd.f32 0.0, %v463
      %v465 = vand.u32 %v285, 4294901760
      %v466 = vsub.f32 %v285, %v465
      %v467 = vand.u32 %v466, 4294901760
      %v468 = vsub.f32 %v466, %v467
      %v469 = vand.u32 %v468, 4294901760
      %470 = vmatmul.f32.gmra.mxu0 %v469
      %v471 = vpop.f32.mrf.mxu0
      %v472 = vadd.f32 0.0, %v471
      %v473 = vand.u32 %v288, 4294901760
      %v474 = vsub.f32 %v288, %v473
      %v475 = vand.u32 %v474, 4294901760
      %v476 = vsub.f32 %v474, %v475
      %v477 = vand.u32 %v476, 4294901760
      %478 = vmatmul.f32.gmra.mxu0 %v477
      %v479 = vpop.f32.mrf.mxu0
      %v480 = vadd.f32 0.0, %v479
      %v481 = vand.u32 %v291, 4294901760
      %v482 = vsub.f32 %v291, %v481
      %v483 = vand.u32 %v482, 4294901760
      %v484 = vsub.f32 %v482, %v483
      %v485 = vand.u32 %v484, 4294901760
      %486 = vmatmul.f32.gmra.mxu0 %v485
      %v487 = vpop.f32.mrf.mxu0
      %v488 = vadd.f32 0.0, %v487
      %v489 = vand.u32 %v294, 4294901760
      %v490 = vsub.f32 %v294, %v489
      %v491 = vand.u32 %v490, 4294901760
      %v492 = vsub.f32 %v490, %v491
      %v493 = vand.u32 %v492, 4294901760
      %494 = vmatmul.f32.gmra.mxu0 %v493
      %v495 = vpop.f32.mrf.mxu0
      %v496 = vadd.f32 0.0, %v495
      %v497 = vand.u32 %v297, 4294901760
      %v498 = vsub.f32 %v297, %v497
      %v499 = vand.u32 %v498, 4294901760
      %v500 = vsub.f32 %v498, %v499
      %v501 = vand.u32 %v500, 4294901760
      %502 = vmatmul.f32.gmra.mxu0 %v501
      %v503 = vpop.f32.mrf.mxu0
      %v504 = vadd.f32 0.0, %v503
      %v505 = vand.u32 %v300, 4294901760
      %v506 = vsub.f32 %v300, %v505
      %v507 = vand.u32 %v506, 4294901760
      %v508 = vsub.f32 %v506, %v507
      %v509 = vand.u32 %v508, 4294901760
      %510 = vmatmul.f32.gmra.mxu0 %v509
      %v511 = vpop.f32.mrf.mxu0
      %v512 = vadd.f32 0.0, %v511
      %v513 = vand.u32 %v303, 4294901760
      %v514 = vsub.f32 %v303, %v513
      %v515 = vand.u32 %v514, 4294901760
      %v516 = vsub.f32 %v514, %v515
      %v517 = vand.u32 %v516, 4294901760
      %518 = vmatmul.f32.gmra.mxu0 %v517
      %v519 = vpop.f32.mrf.mxu0
      %v520 = vadd.f32 0.0, %v519
      %v521 = vand.u32 %v306, 4294901760
      %v522 = vsub.f32 %v306, %v521
      %v523 = vand.u32 %v522, 4294901760
      %v524 = vsub.f32 %v522, %v523
      %v525 = vand.u32 %v524, 4294901760
      %526 = vmatmul.f32.gmra.mxu0 %v525
      %v527 = vpop.f32.mrf.mxu0
      %v528 = vadd.f32 0.0, %v527
      %v529 = vand.u32 %v309, 4294901760
      %v530 = vsub.f32 %v309, %v529
      %v531 = vand.u32 %v530, 4294901760
      %v532 = vsub.f32 %v530, %v531
      %v533 = vand.u32 %v532, 4294901760
      %534 = vmatmul.f32.gmra.mxu0 %v533
      %v535 = vpop.f32.mrf.mxu0
      %v536 = vadd.f32 0.0, %v535
      %v537 = vand.u32 %v312, 4294901760
      %v538 = vsub.f32 %v312, %v537
      %v539 = vand.u32 %v538, 4294901760
      %v540 = vsub.f32 %v538, %v539
      %v541 = vand.u32 %v540, 4294901760
      %542 = vmatmul.f32.gmra.mxu0 %v541
      %v543 = vpop.f32.mrf.mxu0
      %v544 = vadd.f32 0.0, %v543
      %v545 = vand.u32 %v315, 4294901760
      %v546 = vsub.f32 %v315, %v545
      %v547 = vand.u32 %v546, 4294901760
      %v548 = vsub.f32 %v546, %v547
      %v549 = vand.u32 %v548, 4294901760
      %550 = vmatmul.f32.gmra.mxu0 %v549
      %v551 = vpop.f32.mrf.mxu0
      %v552 = vadd.f32 0.0, %v551
      %v553 = vand.u32 %v318, 4294901760
      %v554 = vsub.f32 %v318, %v553
      %v555 = vand.u32 %v554, 4294901760
      %v556 = vsub.f32 %v554, %v555
      %v557 = vand.u32 %v556, 4294901760
      %558 = vmatmul.f32.gmra.mxu0 %v557
      %v559 = vpop.f32.mrf.mxu0
      %v560 = vadd.f32 0.0, %v559
      %v561 = vand.u32 %v321, 4294901760
      %v562 = vsub.f32 %v321, %v561
      %v563 = vand.u32 %v562, 4294901760
      %v564 = vsub.f32 %v562, %v563
      %v565 = vand.u32 %v564, 4294901760
      %566 = vmatmul.f32.gmra.mxu0 %v565
      %v567 = vpop.f32.mrf.mxu0
      %v568 = vadd.f32 0.0, %v567
      %v569 = vand.u32 %v324, 4294901760
      %v570 = vsub.f32 %v324, %v569
      %v571 = vand.u32 %v570, 4294901760
      %v572 = vsub.f32 %v570, %v571
      %v573 = vand.u32 %v572, 4294901760
      %574 = vmatmul.f32.gmra.mxu0 %v573
      %v575 = vpop.f32.mrf.mxu0
      %v576 = vadd.f32 0.0, %v575
      %v577 = vand.u32 %v327, 4294901760
      %v578 = vsub.f32 %v327, %v577
      %v579 = vand.u32 %v578, 4294901760
      %v580 = vsub.f32 %v578, %v579
      %v581 = vand.u32 %v580, 4294901760
      %582 = vmatmul.f32.gmra.mxu0 %v581
      %v583 = vpop.f32.mrf.mxu0
      %v584 = vadd.f32 0.0, %v583
      %v585 = vand.u32 %v330, 4294901760
      %v586 = vsub.f32 %v330, %v585
      %v587 = vand.u32 %v586, 4294901760
      %v588 = vsub.f32 %v586, %v587
      %v589 = vand.u32 %v588, 4294901760
      %590 = vmatmul.f32.gmra.mxu0 %v589
      %v591 = vpop.f32.mrf.mxu0
      %v592 = vadd.f32 0.0, %v591
      %v593 = vand.u32 %v333, 4294901760
      %v594 = vsub.f32 %v333, %v593
      %v595 = vand.u32 %v594, 4294901760
      %v596 = vsub.f32 %v594, %v595
      %v597 = vand.u32 %v596, 4294901760
      %598 = vmatmul.f32.gmra.mxu0 %v597
      %v599 = vpop.f32.mrf.mxu0
      %v600 = vadd.f32 0.0, %v599
      %v601 = vand.u32 %v336, 4294901760
      %v602 = vsub.f32 %v336, %v601
      %v603 = vand.u32 %v602, 4294901760
      %v604 = vsub.f32 %v602, %v603
      %v605 = vand.u32 %v604, 4294901760
      %606 = vmatmul.f32.gmra.mxu0 %v605
      %v607 = vpop.f32.mrf.mxu0
      %v608 = vadd.f32 0.0, %v607
      %v609 = vand.u32 %v339, 4294901760
      %v610 = vsub.f32 %v339, %v609
      %v611 = vand.u32 %v610, 4294901760
      %v612 = vsub.f32 %v610, %v611
      %v613 = vand.u32 %v612, 4294901760
      %614 = vmatmul.f32.gmra.mxu0 %v613
      %v615 = vpop.f32.mrf.mxu0
      %v616 = vadd.f32 0.0, %v615
      %617 = vdwg.mxu0
      %618 = vmatpush.msra.mxu0 0.0
      %619 = vmatpush.msra.mxu0 0.0
      %620 = vmatpush.msra.mxu0 0.0
      %621 = vmatpush.msra.mxu0 0.0
      %622 = vmatpush.msra.mxu0 0.0
      %623 = vmatpush.msra.mxu0 0.0
      %624 = vmatpush.msra.mxu0 0.0
      %625 = vmatpush.msra.mxu0 0.0
      %626 = vmatpush.msra.mxu0 0.0
      %627 = vmatpush.msra.mxu0 0.0
      %628 = vmatpush.msra.mxu0 0.0
      %629 = vmatpush.msra.mxu0 0.0
      %v630 = vand.u32 %v243, 4294901760
      %v631 = vsub.f32 %v243, %v630
      %v632 = vand.u32 %v631, 4294901760
      %v633 = vsub.f32 %v631, %v632
      %v634 = vand.u32 %v633, 4294901760
      %635 = vmatpush.msra.mxu0 %v634
      %v636 = vand.u32 %v242, 4294901760
      %v637 = vsub.f32 %v242, %v636
      %v638 = vand.u32 %v637, 4294901760
      %v639 = vsub.f32 %v637, %v638
      %v640 = vand.u32 %v639, 4294901760
      %641 = vmatpush.msra.mxu0 %v640
      %v642 = vand.u32 %v241, 4294901760
      %v643 = vsub.f32 %v241, %v642
      %v644 = vand.u32 %v643, 4294901760
      %v645 = vsub.f32 %v643, %v644
      %v646 = vand.u32 %v645, 4294901760
      %647 = vmatpush.msra.mxu0 %v646
      %v648 = vand.u32 %v240, 4294901760
      %v649 = vsub.f32 %v240, %v648
      %v650 = vand.u32 %v649, 4294901760
      %v651 = vsub.f32 %v649, %v650
      %v652 = vand.u32 %v651, 4294901760
      %653 = vmatpush.msra.mxu0 %v652
      %v654 = vand.u32 %v246, 4294901760
      %655 = vmatmul.f32.gmra.mxu0 %v654
      %v656 = vpop.f32.mrf.mxu0
      %v657 = vadd.f32 %v368, %v656
      %v658 = vand.u32 %v249, 4294901760
      %659 = vmatmul.f32.gmra.mxu0 %v658
      %v660 = vpop.f32.mrf.mxu0
      %v661 = vadd.f32 %v376, %v660
      %v662 = vand.u32 %v252, 4294901760
      %663 = vmatmul.f32.gmra.mxu0 %v662
      %v664 = vpop.f32.mrf.mxu0
      %v665 = vadd.f32 %v384, %v664
      %v666 = vand.u32 %v255, 4294901760
      %667 = vmatmul.f32.gmra.mxu0 %v666
      %v668 = vpop.f32.mrf.mxu0
      %v669 = vadd.f32 %v392, %v668
      %v670 = vand.u32 %v258, 4294901760
      %671 = vmatmul.f32.gmra.mxu0 %v670
      %v672 = vpop.f32.mrf.mxu0
      %v673 = vadd.f32 %v400, %v672
      %v674 = vand.u32 %v261, 4294901760
      %675 = vmatmul.f32.gmra.mxu0 %v674
      %v676 = vpop.f32.mrf.mxu0
      %v677 = vadd.f32 %v408, %v676
      %v678 = vand.u32 %v264, 4294901760
      %679 = vmatmul.f32.gmra.mxu0 %v678
      %v680 = vpop.f32.mrf.mxu0
      %v681 = vadd.f32 %v416, %v680
      %v682 = vand.u32 %v267, 4294901760
      %683 = vmatmul.f32.gmra.mxu0 %v682
      %v684 = vpop.f32.mrf.mxu0
      %v685 = vadd.f32 %v424, %v684
      %v686 = vand.u32 %v270, 4294901760
      %687 = vmatmul.f32.gmra.mxu0 %v686
      %v688 = vpop.f32.mrf.mxu0
      %v689 = vadd.f32 %v432, %v688
      %v690 = vand.u32 %v273, 4294901760
      %691 = vmatmul.f32.gmra.mxu0 %v690
      %v692 = vpop.f32.mrf.mxu0
      %v693 = vadd.f32 %v440, %v692
      %v694 = vand.u32 %v276, 4294901760
      %695 = vmatmul.f32.gmra.mxu0 %v694
      %v696 = vpop.f32.mrf.mxu0
      %v697 = vadd.f32 %v448, %v696
      %v698 = vand.u32 %v279, 4294901760
      %699 = vmatmul.f32.gmra.mxu0 %v698
      %v700 = vpop.f32.mrf.mxu0
      %v701 = vadd.f32 %v456, %v700
      %v702 = vand.u32 %v282, 4294901760
      %703 = vmatmul.f32.gmra.mxu0 %v702
      %v704 = vpop.f32.mrf.mxu0
      %v705 = vadd.f32 %v464, %v704
      %v706 = vand.u32 %v285, 4294901760
      %707 = vmatmul.f32.gmra.mxu0 %v706
      %v708 = vpop.f32.mrf.mxu0
      %v709 = vadd.f32 %v472, %v708
      %v710 = vand.u32 %v288, 4294901760
      %711 = vmatmul.f32.gmra.mxu0 %v710
      %v712 = vpop.f32.mrf.mxu0
      %v713 = vadd.f32 %v480, %v712
      %v714 = vand.u32 %v291, 4294901760
      %715 = vmatmul.f32.gmra.mxu0 %v714
      %v716 = vpop.f32.mrf.mxu0
      %v717 = vadd.f32 %v488, %v716
      %v718 = vand.u32 %v294, 4294901760
      %719 = vmatmul.f32.gmra.mxu0 %v718
      %v720 = vpop.f32.mrf.mxu0
      %v721 = vadd.f32 %v496, %v720
      %v722 = vand.u32 %v297, 4294901760
      %723 = vmatmul.f32.gmra.mxu0 %v722
      %v724 = vpop.f32.mrf.mxu0
      %v725 = vadd.f32 %v504, %v724
      %v726 = vand.u32 %v300, 4294901760
      %727 = vmatmul.f32.gmra.mxu0 %v726
      %v728 = vpop.f32.mrf.mxu0
      %v729 = vadd.f32 %v512, %v728
      %v730 = vand.u32 %v303, 4294901760
      %731 = vmatmul.f32.gmra.mxu0 %v730
      %v732 = vpop.f32.mrf.mxu0
      %v733 = vadd.f32 %v520, %v732
      %v734 = vand.u32 %v306, 4294901760
      %735 = vmatmul.f32.gmra.mxu0 %v734
      %v736 = vpop.f32.mrf.mxu0
      %v737 = vadd.f32 %v528, %v736
      %v738 = vand.u32 %v309, 4294901760
      %739 = vmatmul.f32.gmra.mxu0 %v738
      %v740 = vpop.f32.mrf.mxu0
      %v741 = vadd.f32 %v536, %v740
      %v742 = vand.u32 %v312, 4294901760
      %743 = vmatmul.f32.gmra.mxu0 %v742
      %v744 = vpop.f32.mrf.mxu0
      %v745 = vadd.f32 %v544, %v744
      %v746 = vand.u32 %v315, 4294901760
      %747 = vmatmul.f32.gmra.mxu0 %v746
      %v748 = vpop.f32.mrf.mxu0
      %v749 = vadd.f32 %v552, %v748
      %v750 = vand.u32 %v318, 4294901760
      %751 = vmatmul.f32.gmra.mxu0 %v750
      %v752 = vpop.f32.mrf.mxu0
      %v753 = vadd.f32 %v560, %v752
      %v754 = vand.u32 %v321, 4294901760
      %755 = vmatmul.f32.gmra.mxu0 %v754
      %v756 = vpop.f32.mrf.mxu0
      %v757 = vadd.f32 %v568, %v756
      %v758 = vand.u32 %v324, 4294901760
      %759 = vmatmul.f32.gmra.mxu0 %v758
      %v760 = vpop.f32.mrf.mxu0
      %v761 = vadd.f32 %v576, %v760
      %v762 = vand.u32 %v327, 4294901760
      %763 = vmatmul.f32.gmra.mxu0 %v762
      %v764 = vpop.f32.mrf.mxu0
      %v765 = vadd.f32 %v584, %v764
      %v766 = vand.u32 %v330, 4294901760
      %767 = vmatmul.f32.gmra.mxu0 %v766
      %v768 = vpop.f32.mrf.mxu0
      %v769 = vadd.f32 %v592, %v768
      %v770 = vand.u32 %v333, 4294901760
      %771 = vmatmul.f32.gmra.mxu0 %v770
      %v772 = vpop.f32.mrf.mxu0
      %v773 = vadd.f32 %v600, %v772
      %v774 = vand.u32 %v336, 4294901760
      %775 = vmatmul.f32.gmra.mxu0 %v774
      %v776 = vpop.f32.mrf.mxu0
      %v777 = vadd.f32 %v608, %v776
      %v778 = vand.u32 %v339, 4294901760
      %779 = vmatmul.f32.gmra.mxu0 %v778
      %v780 = vpop.f32.mrf.mxu0
      %v781 = vadd.f32 %v616, %v780
      %782 = vdwg.mxu0
      %783 = vmatpush.msra.mxu0 0.0
      %784 = vmatpush.msra.mxu0 0.0
      %785 = vmatpush.msra.mxu0 0.0
      %786 = vmatpush.msra.mxu0 0.0
      %787 = vmatpush.msra.mxu0 0.0
      %788 = vmatpush.msra.mxu0 0.0
      %789 = vmatpush.msra.mxu0 0.0
      %790 = vmatpush.msra.mxu0 0.0
      %791 = vmatpush.msra.mxu0 0.0
      %792 = vmatpush.msra.mxu0 0.0
      %793 = vmatpush.msra.mxu0 0.0
      %794 = vmatpush.msra.mxu0 0.0
      %v795 = vand.u32 %v243, 4294901760
      %v796 = vsub.f32 %v243, %v795
      %797 = vmatpush.msra.mxu0 %v796
      %v798 = vand.u32 %v242, 4294901760
      %v799 = vsub.f32 %v242, %v798
      %800 = vmatpush.msra.mxu0 %v799
      %v801 = vand.u32 %v241, 4294901760
      %v802 = vsub.f32 %v241, %v801
      %803 = vmatpush.msra.mxu0 %v802
      %v804 = vand.u32 %v240, 4294901760
      %v805 = vsub.f32 %v240, %v804
      %806 = vmatpush.msra.mxu0 %v805
      %v807 = vand.u32 %v246, 4294901760
      %v808 = vsub.f32 %v246, %v807
      %809 = vmatmul.f32.gmra.mxu0 %v808
      %v810 = vpop.f32.mrf.mxu0
      %v811 = vadd.f32 %v657, %v810
      %v812 = vand.u32 %v249, 4294901760
      %v813 = vsub.f32 %v249, %v812
      %814 = vmatmul.f32.gmra.mxu0 %v813
      %v815 = vpop.f32.mrf.mxu0
      %v816 = vadd.f32 %v661, %v815
      %v817 = vand.u32 %v252, 4294901760
      %v818 = vsub.f32 %v252, %v817
      %819 = vmatmul.f32.gmra.mxu0 %v818
      %v820 = vpop.f32.mrf.mxu0
      %v821 = vadd.f32 %v665, %v820
      %v822 = vand.u32 %v255, 4294901760
      %v823 = vsub.f32 %v255, %v822
      %824 = vmatmul.f32.gmra.mxu0 %v823
      %v825 = vpop.f32.mrf.mxu0
      %v826 = vadd.f32 %v669, %v825
      %v827 = vand.u32 %v258, 4294901760
      %v828 = vsub.f32 %v258, %v827
      %829 = vmatmul.f32.gmra.mxu0 %v828
      %v830 = vpop.f32.mrf.mxu0
      %v831 = vadd.f32 %v673, %v830
      %v832 = vand.u32 %v261, 4294901760
      %v833 = vsub.f32 %v261, %v832
      %834 = vmatmul.f32.gmra.mxu0 %v833
      %v835 = vpop.f32.mrf.mxu0
      %v836 = vadd.f32 %v677, %v835
      %v837 = vand.u32 %v264, 4294901760
      %v838 = vsub.f32 %v264, %v837
      %839 = vmatmul.f32.gmra.mxu0 %v838
      %v840 = vpop.f32.mrf.mxu0
      %v841 = vadd.f32 %v681, %v840
      %v842 = vand.u32 %v267, 4294901760
      %v843 = vsub.f32 %v267, %v842
      %844 = vmatmul.f32.gmra.mxu0 %v843
      %v845 = vpop.f32.mrf.mxu0
      %v846 = vadd.f32 %v685, %v845
      %v847 = vand.u32 %v270, 4294901760
      %v848 = vsub.f32 %v270, %v847
      %849 = vmatmul.f32.gmra.mxu0 %v848
      %v850 = vpop.f32.mrf.mxu0
      %v851 = vadd.f32 %v689, %v850
      %v852 = vand.u32 %v273, 4294901760
      %v853 = vsub.f32 %v273, %v852
      %854 = vmatmul.f32.gmra.mxu0 %v853
      %v855 = vpop.f32.mrf.mxu0
      %v856 = vadd.f32 %v693, %v855
      %v857 = vand.u32 %v276, 4294901760
      %v858 = vsub.f32 %v276, %v857
      %859 = vmatmul.f32.gmra.mxu0 %v858
      %v860 = vpop.f32.mrf.mxu0
      %v861 = vadd.f32 %v697, %v860
      %v862 = vand.u32 %v279, 4294901760
      %v863 = vsub.f32 %v279, %v862
      %864 = vmatmul.f32.gmra.mxu0 %v863
      %v865 = vpop.f32.mrf.mxu0
      %v866 = vadd.f32 %v701, %v865
      %v867 = vand.u32 %v282, 4294901760
      %v868 = vsub.f32 %v282, %v867
      %869 = vmatmul.f32.gmra.mxu0 %v868
      %v870 = vpop.f32.mrf.mxu0
      %v871 = vadd.f32 %v705, %v870
      %v872 = vand.u32 %v285, 4294901760
      %v873 = vsub.f32 %v285, %v872
      %874 = vmatmul.f32.gmra.mxu0 %v873
      %v875 = vpop.f32.mrf.mxu0
      %v876 = vadd.f32 %v709, %v875
      %v877 = vand.u32 %v288, 4294901760
      %v878 = vsub.f32 %v288, %v877
      %879 = vmatmul.f32.gmra.mxu0 %v878
      %v880 = vpop.f32.mrf.mxu0
      %v881 = vadd.f32 %v713, %v880
      %v882 = vand.u32 %v291, 4294901760
      %v883 = vsub.f32 %v291, %v882
      %884 = vmatmul.f32.gmra.mxu0 %v883
      %v885 = vpop.f32.mrf.mxu0
      %v886 = vadd.f32 %v717, %v885
      %v887 = vand.u32 %v294, 4294901760
      %v888 = vsub.f32 %v294, %v887
      %889 = vmatmul.f32.gmra.mxu0 %v888
      %v890 = vpop.f32.mrf.mxu0
      %v891 = vadd.f32 %v721, %v890
      %v892 = vand.u32 %v297, 4294901760
      %v893 = vsub.f32 %v297, %v892
      %894 = vmatmul.f32.gmra.mxu0 %v893
      %v895 = vpop.f32.mrf.mxu0
      %v896 = vadd.f32 %v725, %v895
      %v897 = vand.u32 %v300, 4294901760
      %v898 = vsub.f32 %v300, %v897
      %899 = vmatmul.f32.gmra.mxu0 %v898
      %v900 = vpop.f32.mrf.mxu0
      %v901 = vadd.f32 %v729, %v900
      %v902 = vand.u32 %v303, 4294901760
      %v903 = vsub.f32 %v303, %v902
      %904 = vmatmul.f32.gmra.mxu0 %v903
      %v905 = vpop.f32.mrf.mxu0
      %v906 = vadd.f32 %v733, %v905
      %v907 = vand.u32 %v306, 4294901760
      %v908 = vsub.f32 %v306, %v907
      %909 = vmatmul.f32.gmra.mxu0 %v908
      %v910 = vpop.f32.mrf.mxu0
      %v911 = vadd.f32 %v737, %v910
      %v912 = vand.u32 %v309, 4294901760
      %v913 = vsub.f32 %v309, %v912
      %914 = vmatmul.f32.gmra.mxu0 %v913
      %v915 = vpop.f32.mrf.mxu0
      %v916 = vadd.f32 %v741, %v915
      %v917 = vand.u32 %v312, 4294901760
      %v918 = vsub.f32 %v312, %v917
      %919 = vmatmul.f32.gmra.mxu0 %v918
      %v920 = vpop.f32.mrf.mxu0
      %v921 = vadd.f32 %v745, %v920
      %v922 = vand.u32 %v315, 4294901760
      %v923 = vsub.f32 %v315, %v922
      %924 = vmatmul.f32.gmra.mxu0 %v923
      %v925 = vpop.f32.mrf.mxu0
      %v926 = vadd.f32 %v749, %v925
      %v927 = vand.u32 %v318, 4294901760
      %v928 = vsub.f32 %v318, %v927
      %929 = vmatmul.f32.gmra.mxu0 %v928
      %v930 = vpop.f32.mrf.mxu0
      %v931 = vadd.f32 %v753, %v930
      %v932 = vand.u32 %v321, 4294901760
      %v933 = vsub.f32 %v321, %v932
      %934 = vmatmul.f32.gmra.mxu0 %v933
      %v935 = vpop.f32.mrf.mxu0
      %v936 = vadd.f32 %v757, %v935
      %v937 = vand.u32 %v324, 4294901760
      %v938 = vsub.f32 %v324, %v937
      %939 = vmatmul.f32.gmra.mxu0 %v938
      %v940 = vpop.f32.mrf.mxu0
      %v941 = vadd.f32 %v761, %v940
      %v942 = vand.u32 %v327, 4294901760
      %v943 = vsub.f32 %v327, %v942
      %944 = vmatmul.f32.gmra.mxu0 %v943
      %v945 = vpop.f32.mrf.mxu0
      %v946 = vadd.f32 %v765, %v945
      %v947 = vand.u32 %v330, 4294901760
      %v948 = vsub.f32 %v330, %v947
      %949 = vmatmul.f32.gmra.mxu0 %v948
      %v950 = vpop.f32.mrf.mxu0
      %v951 = vadd.f32 %v769, %v950
      %v952 = vand.u32 %v333, 4294901760
      %v953 = vsub.f32 %v333, %v952
      %954 = vmatmul.f32.gmra.mxu0 %v953
      %v955 = vpop.f32.mrf.mxu0
      %v956 = vadd.f32 %v773, %v955
      %v957 = vand.u32 %v336, 4294901760
      %v958 = vsub.f32 %v336, %v957
      %959 = vmatmul.f32.gmra.mxu0 %v958
      %v960 = vpop.f32.mrf.mxu0
      %v961 = vadd.f32 %v777, %v960
      %v962 = vand.u32 %v339, 4294901760
      %v963 = vsub.f32 %v339, %v962
      %964 = vmatmul.f32.gmra.mxu0 %v963
      %v965 = vpop.f32.mrf.mxu0
      %v966 = vadd.f32 %v781, %v965
      %967 = vdwg.mxu0
      %968 = vmatpush.msra.mxu0 0.0
      %969 = vmatpush.msra.mxu0 0.0
      %970 = vmatpush.msra.mxu0 0.0
      %971 = vmatpush.msra.mxu0 0.0
      %972 = vmatpush.msra.mxu0 0.0
      %973 = vmatpush.msra.mxu0 0.0
      %974 = vmatpush.msra.mxu0 0.0
      %975 = vmatpush.msra.mxu0 0.0
      %976 = vmatpush.msra.mxu0 0.0
      %977 = vmatpush.msra.mxu0 0.0
      %978 = vmatpush.msra.mxu0 0.0
      %979 = vmatpush.msra.mxu0 0.0
      %v980 = vand.u32 %v243, 4294901760
      %981 = vmatpush.msra.mxu0 %v980
      %v982 = vand.u32 %v242, 4294901760
      %983 = vmatpush.msra.mxu0 %v982
      %v984 = vand.u32 %v241, 4294901760
      %985 = vmatpush.msra.mxu0 %v984
      %v986 = vand.u32 %v240, 4294901760
      %987 = vmatpush.msra.mxu0 %v986
      %v988 = vand.u32 %v246, 4294901760
      %v989 = vsub.f32 %v246, %v988
      %v990 = vand.u32 %v989, 4294901760
      %991 = vmatmul.f32.gmra.mxu0 %v990
      %v992 = vpop.f32.mrf.mxu0
      %v993 = vadd.f32 %v811, %v992
      %v994 = vand.u32 %v249, 4294901760
      %v995 = vsub.f32 %v249, %v994
      %v996 = vand.u32 %v995, 4294901760
      %997 = vmatmul.f32.gmra.mxu0 %v996
      %v998 = vpop.f32.mrf.mxu0
      %v999 = vadd.f32 %v816, %v998
      %v1000 = vand.u32 %v252, 4294901760
      %v1001 = vsub.f32 %v252, %v1000
      %v1002 = vand.u32 %v1001, 4294901760
      %1003 = vmatmul.f32.gmra.mxu0 %v1002
      %v1004 = vpop.f32.mrf.mxu0
      %v1005 = vadd.f32 %v821, %v1004
      %v1006 = vand.u32 %v255, 4294901760
      %v1007 = vsub.f32 %v255, %v1006
      %v1008 = vand.u32 %v1007, 4294901760
      %1009 = vmatmul.f32.gmra.mxu0 %v1008
      %v1010 = vpop.f32.mrf.mxu0
      %v1011 = vadd.f32 %v826, %v1010
      %v1012 = vand.u32 %v258, 4294901760
      %v1013 = vsub.f32 %v258, %v1012
      %v1014 = vand.u32 %v1013, 4294901760
      %1015 = vmatmul.f32.gmra.mxu0 %v1014
      %v1016 = vpop.f32.mrf.mxu0
      %v1017 = vadd.f32 %v831, %v1016
      %v1018 = vand.u32 %v261, 4294901760
      %v1019 = vsub.f32 %v261, %v1018
      %v1020 = vand.u32 %v1019, 4294901760
      %1021 = vmatmul.f32.gmra.mxu0 %v1020
      %v1022 = vpop.f32.mrf.mxu0
      %v1023 = vadd.f32 %v836, %v1022
      %v1024 = vand.u32 %v264, 4294901760
      %v1025 = vsub.f32 %v264, %v1024
      %v1026 = vand.u32 %v1025, 4294901760
      %1027 = vmatmul.f32.gmra.mxu0 %v1026
      %v1028 = vpop.f32.mrf.mxu0
      %v1029 = vadd.f32 %v841, %v1028
      %v1030 = vand.u32 %v267, 4294901760
      %v1031 = vsub.f32 %v267, %v1030
      %v1032 = vand.u32 %v1031, 4294901760
      %1033 = vmatmul.f32.gmra.mxu0 %v1032
      %v1034 = vpop.f32.mrf.mxu0
      %v1035 = vadd.f32 %v846, %v1034
      %v1036 = vand.u32 %v270, 4294901760
      %v1037 = vsub.f32 %v270, %v1036
      %v1038 = vand.u32 %v1037, 4294901760
      %1039 = vmatmul.f32.gmra.mxu0 %v1038
      %v1040 = vpop.f32.mrf.mxu0
      %v1041 = vadd.f32 %v851, %v1040
      %v1042 = vand.u32 %v273, 4294901760
      %v1043 = vsub.f32 %v273, %v1042
      %v1044 = vand.u32 %v1043, 4294901760
      %1045 = vmatmul.f32.gmra.mxu0 %v1044
      %v1046 = vpop.f32.mrf.mxu0
      %v1047 = vadd.f32 %v856, %v1046
      %v1048 = vand.u32 %v276, 4294901760
      %v1049 = vsub.f32 %v276, %v1048
      %v1050 = vand.u32 %v1049, 4294901760
      %1051 = vmatmul.f32.gmra.mxu0 %v1050
      %v1052 = vpop.f32.mrf.mxu0
      %v1053 = vadd.f32 %v861, %v1052
      %v1054 = vand.u32 %v279, 4294901760
      %v1055 = vsub.f32 %v279, %v1054
      %v1056 = vand.u32 %v1055, 4294901760
      %1057 = vmatmul.f32.gmra.mxu0 %v1056
      %v1058 = vpop.f32.mrf.mxu0
      %v1059 = vadd.f32 %v866, %v1058
      %v1060 = vand.u32 %v282, 4294901760
      %v1061 = vsub.f32 %v282, %v1060
      %v1062 = vand.u32 %v1061, 4294901760
      %1063 = vmatmul.f32.gmra.mxu0 %v1062
      %v1064 = vpop.f32.mrf.mxu0
      %v1065 = vadd.f32 %v871, %v1064
      %v1066 = vand.u32 %v285, 4294901760
      %v1067 = vsub.f32 %v285, %v1066
      %v1068 = vand.u32 %v1067, 4294901760
      %1069 = vmatmul.f32.gmra.mxu0 %v1068
      %v1070 = vpop.f32.mrf.mxu0
      %v1071 = vadd.f32 %v876, %v1070
      %v1072 = vand.u32 %v288, 4294901760
      %v1073 = vsub.f32 %v288, %v1072
      %v1074 = vand.u32 %v1073, 4294901760
      %1075 = vmatmul.f32.gmra.mxu0 %v1074
      %v1076 = vpop.f32.mrf.mxu0
      %v1077 = vadd.f32 %v881, %v1076
      %v1078 = vand.u32 %v291, 4294901760
      %v1079 = vsub.f32 %v291, %v1078
      %v1080 = vand.u32 %v1079, 4294901760
      %1081 = vmatmul.f32.gmra.mxu0 %v1080
      %v1082 = vpop.f32.mrf.mxu0
      %v1083 = vadd.f32 %v886, %v1082
      %v1084 = vand.u32 %v294, 4294901760
      %v1085 = vsub.f32 %v294, %v1084
      %v1086 = vand.u32 %v1085, 4294901760
      %1087 = vmatmul.f32.gmra.mxu0 %v1086
      %v1088 = vpop.f32.mrf.mxu0
      %v1089 = vadd.f32 %v891, %v1088
      %v1090 = vand.u32 %v297, 4294901760
      %v1091 = vsub.f32 %v297, %v1090
      %v1092 = vand.u32 %v1091, 4294901760
      %1093 = vmatmul.f32.gmra.mxu0 %v1092
      %v1094 = vpop.f32.mrf.mxu0
      %v1095 = vadd.f32 %v896, %v1094
      %v1096 = vand.u32 %v300, 4294901760
      %v1097 = vsub.f32 %v300, %v1096
      %v1098 = vand.u32 %v1097, 4294901760
      %1099 = vmatmul.f32.gmra.mxu0 %v1098
      %v1100 = vpop.f32.mrf.mxu0
      %v1101 = vadd.f32 %v901, %v1100
      %v1102 = vand.u32 %v303, 4294901760
      %v1103 = vsub.f32 %v303, %v1102
      %v1104 = vand.u32 %v1103, 4294901760
      %1105 = vmatmul.f32.gmra.mxu0 %v1104
      %v1106 = vpop.f32.mrf.mxu0
      %v1107 = vadd.f32 %v906, %v1106
      %v1108 = vand.u32 %v306, 4294901760
      %v1109 = vsub.f32 %v306, %v1108
      %v1110 = vand.u32 %v1109, 4294901760
      %1111 = vmatmul.f32.gmra.mxu0 %v1110
      %v1112 = vpop.f32.mrf.mxu0
      %v1113 = vadd.f32 %v911, %v1112
      %v1114 = vand.u32 %v309, 4294901760
      %v1115 = vsub.f32 %v309, %v1114
      %v1116 = vand.u32 %v1115, 4294901760
      %1117 = vmatmul.f32.gmra.mxu0 %v1116
      %v1118 = vpop.f32.mrf.mxu0
      %v1119 = vadd.f32 %v916, %v1118
      %v1120 = vand.u32 %v312, 4294901760
      %v1121 = vsub.f32 %v312, %v1120
      %v1122 = vand.u32 %v1121, 4294901760
      %1123 = vmatmul.f32.gmra.mxu0 %v1122
      %v1124 = vpop.f32.mrf.mxu0
      %v1125 = vadd.f32 %v921, %v1124
      %v1126 = vand.u32 %v315, 4294901760
      %v1127 = vsub.f32 %v315, %v1126
      %v1128 = vand.u32 %v1127, 4294901760
      %1129 = vmatmul.f32.gmra.mxu0 %v1128
      %v1130 = vpop.f32.mrf.mxu0
      %v1131 = vadd.f32 %v926, %v1130
      %v1132 = vand.u32 %v318, 4294901760
      %v1133 = vsub.f32 %v318, %v1132
      %v1134 = vand.u32 %v1133, 4294901760
      %1135 = vmatmul.f32.gmra.mxu0 %v1134
      %v1136 = vpop.f32.mrf.mxu0
      %v1137 = vadd.f32 %v931, %v1136
      %v1138 = vand.u32 %v321, 4294901760
      %v1139 = vsub.f32 %v321, %v1138
      %v1140 = vand.u32 %v1139, 4294901760
      %1141 = vmatmul.f32.gmra.mxu0 %v1140
      %v1142 = vpop.f32.mrf.mxu0
      %v1143 = vadd.f32 %v936, %v1142
      %v1144 = vand.u32 %v324, 4294901760
      %v1145 = vsub.f32 %v324, %v1144
      %v1146 = vand.u32 %v1145, 4294901760
      %1147 = vmatmul.f32.gmra.mxu0 %v1146
      %v1148 = vpop.f32.mrf.mxu0
      %v1149 = vadd.f32 %v941, %v1148
      %v1150 = vand.u32 %v327, 4294901760
      %v1151 = vsub.f32 %v327, %v1150
      %v1152 = vand.u32 %v1151, 4294901760
      %1153 = vmatmul.f32.gmra.mxu0 %v1152
      %v1154 = vpop.f32.mrf.mxu0
      %v1155 = vadd.f32 %v946, %v1154
      %v1156 = vand.u32 %v330, 4294901760
      %v1157 = vsub.f32 %v330, %v1156
      %v1158 = vand.u32 %v1157, 4294901760
      %1159 = vmatmul.f32.gmra.mxu0 %v1158
      %v1160 = vpop.f32.mrf.mxu0
      %v1161 = vadd.f32 %v951, %v1160
      %v1162 = vand.u32 %v333, 4294901760
      %v1163 = vsub.f32 %v333, %v1162
      %v1164 = vand.u32 %v1163, 4294901760
      %1165 = vmatmul.f32.gmra.mxu0 %v1164
      %v1166 = vpop.f32.mrf.mxu0
      %v1167 = vadd.f32 %v956, %v1166
      %v1168 = vand.u32 %v336, 4294901760
      %v1169 = vsub.f32 %v336, %v1168
      %v1170 = vand.u32 %v1169, 4294901760
      %1171 = vmatmul.f32.gmra.mxu0 %v1170
      %v1172 = vpop.f32.mrf.mxu0
      %v1173 = vadd.f32 %v961, %v1172
      %v1174 = vand.u32 %v339, 4294901760
      %v1175 = vsub.f32 %v339, %v1174
      %v1176 = vand.u32 %v1175, 4294901760
      %1177 = vmatmul.f32.gmra.mxu0 %v1176
      %v1178 = vpop.f32.mrf.mxu0
      %v1179 = vadd.f32 %v966, %v1178
      %1180 = vdwg.mxu0
      %1181 = vmatpush.msra.mxu0 0.0
      %1182 = vmatpush.msra.mxu0 0.0
      %1183 = vmatpush.msra.mxu0 0.0
      %1184 = vmatpush.msra.mxu0 0.0
      %1185 = vmatpush.msra.mxu0 0.0
      %1186 = vmatpush.msra.mxu0 0.0
      %1187 = vmatpush.msra.mxu0 0.0
      %1188 = vmatpush.msra.mxu0 0.0
      %1189 = vmatpush.msra.mxu0 0.0
      %1190 = vmatpush.msra.mxu0 0.0
      %1191 = vmatpush.msra.mxu0 0.0
      %1192 = vmatpush.msra.mxu0 0.0
      %v1193 = vand.u32 %v243, 4294901760
      %v1194 = vsub.f32 %v243, %v1193
      %v1195 = vand.u32 %v1194, 4294901760
      %1196 = vmatpush.msra.mxu0 %v1195
      %v1197 = vand.u32 %v242, 4294901760
      %v1198 = vsub.f32 %v242, %v1197
      %v1199 = vand.u32 %v1198, 4294901760
      %1200 = vmatpush.msra.mxu0 %v1199
      %v1201 = vand.u32 %v241, 4294901760
      %v1202 = vsub.f32 %v241, %v1201
      %v1203 = vand.u32 %v1202, 4294901760
      %1204 = vmatpush.msra.mxu0 %v1203
      %v1205 = vand.u32 %v240, 4294901760
      %v1206 = vsub.f32 %v240, %v1205
      %v1207 = vand.u32 %v1206, 4294901760
      %1208 = vmatpush.msra.mxu0 %v1207
      %v1209 = vand.u32 %v246, 4294901760
      %1210 = vmatmul.f32.gmra.mxu0 %v1209
      %v1211 = vpop.f32.mrf.mxu0
      %v1212 = vadd.f32 %v993, %v1211
      %v1213 = vand.u32 %v249, 4294901760
      %1214 = vmatmul.f32.gmra.mxu0 %v1213
      %v1215 = vpop.f32.mrf.mxu0
      %v1216 = vadd.f32 %v999, %v1215
      %v1217 = vand.u32 %v252, 4294901760
      %1218 = vmatmul.f32.gmra.mxu0 %v1217
      %v1219 = vpop.f32.mrf.mxu0
      %v1220 = vadd.f32 %v1005, %v1219
      %v1221 = vand.u32 %v255, 4294901760
      %1222 = vmatmul.f32.gmra.mxu0 %v1221
      %v1223 = vpop.f32.mrf.mxu0
      %v1224 = vadd.f32 %v1011, %v1223
      %v1225 = vand.u32 %v258, 4294901760
      %1226 = vmatmul.f32.gmra.mxu0 %v1225
      %v1227 = vpop.f32.mrf.mxu0
      %v1228 = vadd.f32 %v1017, %v1227
      %v1229 = vand.u32 %v261, 4294901760
      %1230 = vmatmul.f32.gmra.mxu0 %v1229
      %v1231 = vpop.f32.mrf.mxu0
      %v1232 = vadd.f32 %v1023, %v1231
      %v1233 = vand.u32 %v264, 4294901760
      %1234 = vmatmul.f32.gmra.mxu0 %v1233
      %v1235 = vpop.f32.mrf.mxu0
      %v1236 = vadd.f32 %v1029, %v1235
      %v1237 = vand.u32 %v267, 4294901760
      %1238 = vmatmul.f32.gmra.mxu0 %v1237
      %v1239 = vpop.f32.mrf.mxu0
      %v1240 = vadd.f32 %v1035, %v1239
      %v1241 = vand.u32 %v270, 4294901760
      %1242 = vmatmul.f32.gmra.mxu0 %v1241
      %v1243 = vpop.f32.mrf.mxu0
      %v1244 = vadd.f32 %v1041, %v1243
      %v1245 = vand.u32 %v273, 4294901760
      %1246 = vmatmul.f32.gmra.mxu0 %v1245
      %v1247 = vpop.f32.mrf.mxu0
      %v1248 = vadd.f32 %v1047, %v1247
      %v1249 = vand.u32 %v276, 4294901760
      %1250 = vmatmul.f32.gmra.mxu0 %v1249
      %v1251 = vpop.f32.mrf.mxu0
      %v1252 = vadd.f32 %v1053, %v1251
      %v1253 = vand.u32 %v279, 4294901760
      %1254 = vmatmul.f32.gmra.mxu0 %v1253
      %v1255 = vpop.f32.mrf.mxu0
      %v1256 = vadd.f32 %v1059, %v1255
      %v1257 = vand.u32 %v282, 4294901760
      %1258 = vmatmul.f32.gmra.mxu0 %v1257
      %v1259 = vpop.f32.mrf.mxu0
      %v1260 = vadd.f32 %v1065, %v1259
      %v1261 = vand.u32 %v285, 4294901760
      %1262 = vmatmul.f32.gmra.mxu0 %v1261
      %v1263 = vpop.f32.mrf.mxu0
      %v1264 = vadd.f32 %v1071, %v1263
      %v1265 = vand.u32 %v288, 4294901760
      %1266 = vmatmul.f32.gmra.mxu0 %v1265
      %v1267 = vpop.f32.mrf.mxu0
      %v1268 = vadd.f32 %v1077, %v1267
      %v1269 = vand.u32 %v291, 4294901760
      %1270 = vmatmul.f32.gmra.mxu0 %v1269
      %v1271 = vpop.f32.mrf.mxu0
      %v1272 = vadd.f32 %v1083, %v1271
      %v1273 = vand.u32 %v294, 4294901760
      %1274 = vmatmul.f32.gmra.mxu0 %v1273
      %v1275 = vpop.f32.mrf.mxu0
      %v1276 = vadd.f32 %v1089, %v1275
      %v1277 = vand.u32 %v297, 4294901760
      %1278 = vmatmul.f32.gmra.mxu0 %v1277
      %v1279 = vpop.f32.mrf.mxu0
      %v1280 = vadd.f32 %v1095, %v1279
      %v1281 = vand.u32 %v300, 4294901760
      %1282 = vmatmul.f32.gmra.mxu0 %v1281
      %v1283 = vpop.f32.mrf.mxu0
      %v1284 = vadd.f32 %v1101, %v1283
      %v1285 = vand.u32 %v303, 4294901760
      %1286 = vmatmul.f32.gmra.mxu0 %v1285
      %v1287 = vpop.f32.mrf.mxu0
      %v1288 = vadd.f32 %v1107, %v1287
      %v1289 = vand.u32 %v306, 4294901760
      %1290 = vmatmul.f32.gmra.mxu0 %v1289
      %v1291 = vpop.f32.mrf.mxu0
      %v1292 = vadd.f32 %v1113, %v1291
      %v1293 = vand.u32 %v309, 4294901760
      %1294 = vmatmul.f32.gmra.mxu0 %v1293
      %v1295 = vpop.f32.mrf.mxu0
      %v1296 = vadd.f32 %v1119, %v1295
      %v1297 = vand.u32 %v312, 4294901760
      %1298 = vmatmul.f32.gmra.mxu0 %v1297
      %v1299 = vpop.f32.mrf.mxu0
      %v1300 = vadd.f32 %v1125, %v1299
      %v1301 = vand.u32 %v315, 4294901760
      %1302 = vmatmul.f32.gmra.mxu0 %v1301
      %v1303 = vpop.f32.mrf.mxu0
      %v1304 = vadd.f32 %v1131, %v1303
      %v1305 = vand.u32 %v318, 4294901760
      %1306 = vmatmul.f32.gmra.mxu0 %v1305
      %v1307 = vpop.f32.mrf.mxu0
      %v1308 = vadd.f32 %v1137, %v1307
      %v1309 = vand.u32 %v321, 4294901760
      %1310 = vmatmul.f32.gmra.mxu0 %v1309
      %v1311 = vpop.f32.mrf.mxu0
      %v1312 = vadd.f32 %v1143, %v1311
      %v1313 = vand.u32 %v324, 4294901760
      %1314 = vmatmul.f32.gmra.mxu0 %v1313
      %v1315 = vpop.f32.mrf.mxu0
      %v1316 = vadd.f32 %v1149, %v1315
      %v1317 = vand.u32 %v327, 4294901760
      %1318 = vmatmul.f32.gmra.mxu0 %v1317
      %v1319 = vpop.f32.mrf.mxu0
      %v1320 = vadd.f32 %v1155, %v1319
      %v1321 = vand.u32 %v330, 4294901760
      %1322 = vmatmul.f32.gmra.mxu0 %v1321
      %v1323 = vpop.f32.mrf.mxu0
      %v1324 = vadd.f32 %v1161, %v1323
      %v1325 = vand.u32 %v333, 4294901760
      %1326 = vmatmul.f32.gmra.mxu0 %v1325
      %v1327 = vpop.f32.mrf.mxu0
      %v1328 = vadd.f32 %v1167, %v1327
      %v1329 = vand.u32 %v336, 4294901760
      %1330 = vmatmul.f32.gmra.mxu0 %v1329
      %v1331 = vpop.f32.mrf.mxu0
      %v1332 = vadd.f32 %v1173, %v1331
      %v1333 = vand.u32 %v339, 4294901760
      %1334 = vmatmul.f32.gmra.mxu0 %v1333
      %v1335 = vpop.f32.mrf.mxu0
      %v1336 = vadd.f32 %v1179, %v1335
      %1337 = vdwg.mxu0
      %1338 = vmatpush.msra.mxu0 0.0
      %1339 = vmatpush.msra.mxu0 0.0
      %1340 = vmatpush.msra.mxu0 0.0
      %1341 = vmatpush.msra.mxu0 0.0
      %1342 = vmatpush.msra.mxu0 0.0
      %1343 = vmatpush.msra.mxu0 0.0
      %1344 = vmatpush.msra.mxu0 0.0
      %1345 = vmatpush.msra.mxu0 0.0
      %1346 = vmatpush.msra.mxu0 0.0
      %1347 = vmatpush.msra.mxu0 0.0
      %1348 = vmatpush.msra.mxu0 0.0
      %1349 = vmatpush.msra.mxu0 0.0
      %v1350 = vand.u32 %v243, 4294901760
      %1351 = vmatpush.msra.mxu0 %v1350
      %v1352 = vand.u32 %v242, 4294901760
      %1353 = vmatpush.msra.mxu0 %v1352
      %v1354 = vand.u32 %v241, 4294901760
      %1355 = vmatpush.msra.mxu0 %v1354
      %v1356 = vand.u32 %v240, 4294901760
      %1357 = vmatpush.msra.mxu0 %v1356
      %v1358 = vand.u32 %v246, 4294901760
      %1359 = vmatmul.f32.gmra.mxu0 %v1358
      %v1360 = vpop.f32.mrf.mxu0
      %v1361 = vadd.f32 %v1212, %v1360
      %v1362 = vand.u32 %v249, 4294901760
      %1363 = vmatmul.f32.gmra.mxu0 %v1362
      %v1364 = vpop.f32.mrf.mxu0
      %v1365 = vadd.f32 %v1216, %v1364
      %v1366 = vand.u32 %v252, 4294901760
      %1367 = vmatmul.f32.gmra.mxu0 %v1366
      %v1368 = vpop.f32.mrf.mxu0
      %v1369 = vadd.f32 %v1220, %v1368
      %v1370 = vand.u32 %v255, 4294901760
      %1371 = vmatmul.f32.gmra.mxu0 %v1370
      %v1372 = vpop.f32.mrf.mxu0
      %v1373 = vadd.f32 %v1224, %v1372
      %v1374 = vand.u32 %v258, 4294901760
      %1375 = vmatmul.f32.gmra.mxu0 %v1374
      %v1376 = vpop.f32.mrf.mxu0
      %v1377 = vadd.f32 %v1228, %v1376
      %v1378 = vand.u32 %v261, 4294901760
      %1379 = vmatmul.f32.gmra.mxu0 %v1378
      %v1380 = vpop.f32.mrf.mxu0
      %v1381 = vadd.f32 %v1232, %v1380
      %v1382 = vand.u32 %v264, 4294901760
      %1383 = vmatmul.f32.gmra.mxu0 %v1382
      %v1384 = vpop.f32.mrf.mxu0
      %v1385 = vadd.f32 %v1236, %v1384
      %v1386 = vand.u32 %v267, 4294901760
      %1387 = vmatmul.f32.gmra.mxu0 %v1386
      %v1388 = vpop.f32.mrf.mxu0
      %v1389 = vadd.f32 %v1240, %v1388
      %v1390 = vand.u32 %v270, 4294901760
      %1391 = vmatmul.f32.gmra.mxu0 %v1390
      %v1392 = vpop.f32.mrf.mxu0
      %v1393 = vadd.f32 %v1244, %v1392
      %v1394 = vand.u32 %v273, 4294901760
      %1395 = vmatmul.f32.gmra.mxu0 %v1394
      %v1396 = vpop.f32.mrf.mxu0
      %v1397 = vadd.f32 %v1248, %v1396
      %v1398 = vand.u32 %v276, 4294901760
      %1399 = vmatmul.f32.gmra.mxu0 %v1398
      %v1400 = vpop.f32.mrf.mxu0
      %v1401 = vadd.f32 %v1252, %v1400
      %v1402 = vand.u32 %v279, 4294901760
      %1403 = vmatmul.f32.gmra.mxu0 %v1402
      %v1404 = vpop.f32.mrf.mxu0
      %v1405 = vadd.f32 %v1256, %v1404
      %v1406 = vand.u32 %v282, 4294901760
      %1407 = vmatmul.f32.gmra.mxu0 %v1406
      %v1408 = vpop.f32.mrf.mxu0
      %v1409 = vadd.f32 %v1260, %v1408
      %v1410 = vand.u32 %v285, 4294901760
      %1411 = vmatmul.f32.gmra.mxu0 %v1410
      %v1412 = vpop.f32.mrf.mxu0
      %v1413 = vadd.f32 %v1264, %v1412
      %v1414 = vand.u32 %v288, 4294901760
      %1415 = vmatmul.f32.gmra.mxu0 %v1414
      %v1416 = vpop.f32.mrf.mxu0
      %v1417 = vadd.f32 %v1268, %v1416
      %v1418 = vand.u32 %v291, 4294901760
      %1419 = vmatmul.f32.gmra.mxu0 %v1418
      %v1420 = vpop.f32.mrf.mxu0
      %v1421 = vadd.f32 %v1272, %v1420
      %v1422 = vand.u32 %v294, 4294901760
      %1423 = vmatmul.f32.gmra.mxu0 %v1422
      %v1424 = vpop.f32.mrf.mxu0
      %v1425 = vadd.f32 %v1276, %v1424
      %v1426 = vand.u32 %v297, 4294901760
      %1427 = vmatmul.f32.gmra.mxu0 %v1426
      %v1428 = vpop.f32.mrf.mxu0
      %v1429 = vadd.f32 %v1280, %v1428
      %v1430 = vand.u32 %v300, 4294901760
      %1431 = vmatmul.f32.gmra.mxu0 %v1430
      %v1432 = vpop.f32.mrf.mxu0
      %v1433 = vadd.f32 %v1284, %v1432
      %v1434 = vand.u32 %v303, 4294901760
      %1435 = vmatmul.f32.gmra.mxu0 %v1434
      %v1436 = vpop.f32.mrf.mxu0
      %v1437 = vadd.f32 %v1288, %v1436
      %v1438 = vand.u32 %v306, 4294901760
      %1439 = vmatmul.f32.gmra.mxu0 %v1438
      %v1440 = vpop.f32.mrf.mxu0
      %v1441 = vadd.f32 %v1292, %v1440
      %v1442 = vand.u32 %v309, 4294901760
      %1443 = vmatmul.f32.gmra.mxu0 %v1442
      %v1444 = vpop.f32.mrf.mxu0
      %v1445 = vadd.f32 %v1296, %v1444
      %v1446 = vand.u32 %v312, 4294901760
      %1447 = vmatmul.f32.gmra.mxu0 %v1446
      %v1448 = vpop.f32.mrf.mxu0
      %v1449 = vadd.f32 %v1300, %v1448
      %v1450 = vand.u32 %v315, 4294901760
      %1451 = vmatmul.f32.gmra.mxu0 %v1450
      %v1452 = vpop.f32.mrf.mxu0
      %v1453 = vadd.f32 %v1304, %v1452
      %v1454 = vand.u32 %v318, 4294901760
      %1455 = vmatmul.f32.gmra.mxu0 %v1454
      %v1456 = vpop.f32.mrf.mxu0
      %v1457 = vadd.f32 %v1308, %v1456
      %v1458 = vand.u32 %v321, 4294901760
      %1459 = vmatmul.f32.gmra.mxu0 %v1458
      %v1460 = vpop.f32.mrf.mxu0
      %v1461 = vadd.f32 %v1312, %v1460
      %v1462 = vand.u32 %v324, 4294901760
      %1463 = vmatmul.f32.gmra.mxu0 %v1462
      %v1464 = vpop.f32.mrf.mxu0
      %v1465 = vadd.f32 %v1316, %v1464
      %v1466 = vand.u32 %v327, 4294901760
      %1467 = vmatmul.f32.gmra.mxu0 %v1466
      %v1468 = vpop.f32.mrf.mxu0
      %v1469 = vadd.f32 %v1320, %v1468
      %v1470 = vand.u32 %v330, 4294901760
      %1471 = vmatmul.f32.gmra.mxu0 %v1470
      %v1472 = vpop.f32.mrf.mxu0
      %v1473 = vadd.f32 %v1324, %v1472
      %v1474 = vand.u32 %v333, 4294901760
      %1475 = vmatmul.f32.gmra.mxu0 %v1474
      %v1476 = vpop.f32.mrf.mxu0
      %v1477 = vadd.f32 %v1328, %v1476
      %v1478 = vand.u32 %v336, 4294901760
      %1479 = vmatmul.f32.gmra.mxu0 %v1478
      %v1480 = vpop.f32.mrf.mxu0
      %v1481 = vadd.f32 %v1332, %v1480
      %v1482 = vand.u32 %v339, 4294901760
      %1483 = vmatmul.f32.gmra.mxu0 %v1482
      %v1484 = vpop.f32.mrf.mxu0
      %v1485 = vadd.f32 %v1336, %v1484
      %1486 = vdwg.mxu0
      %v1488 = vsel %vm244, %v171, 0
      %v1491 = vsel %vm244, %v172, 0
      %v1494 = vsel %vm244, %v173, 0
      %v1497 = vsel %vm244, %v174, 0
      %v1500 = vsel %vm244, %v175, 0
      %v1503 = vsel %vm244, %v176, 0
      %v1506 = vsel %vm244, %v177, 0
      %v1509 = vsel %vm244, %v178, 0
      %v1512 = vsel %vm244, %v179, 0
      %v1515 = vsel %vm244, %v180, 0
      %v1518 = vsel %vm244, %v181, 0
      %v1521 = vsel %vm244, %v182, 0
      %v1524 = vsel %vm244, %v183, 0
      %v1527 = vsel %vm244, %v184, 0
      %v1530 = vsel %vm244, %v185, 0
      %v1533 = vsel %vm244, %v186, 0
      %v1536 = vsel %vm244, %v187, 0
      %v1539 = vsel %vm244, %v188, 0
      %v1542 = vsel %vm244, %v189, 0
      %v1545 = vsel %vm244, %v190, 0
      %v1548 = vsel %vm244, %v191, 0
      %v1551 = vsel %vm244, %v192, 0
      %v1554 = vsel %vm244, %v193, 0
      %v1557 = vsel %vm244, %v194, 0
      %v1560 = vsel %vm244, %v195, 0
      %v1563 = vsel %vm244, %v196, 0
      %v1566 = vsel %vm244, %v197, 0
      %v1569 = vsel %vm244, %v198, 0
      %v1572 = vsel %vm244, %v199, 0
      %v1575 = vsel %vm244, %v200, 0
      %v1578 = vsel %vm244, %v201, 0
      %v1581 = vsel %vm244, %v202, 0
      %1583 = vmatpush.msra.mxu0 0.0
      %1584 = vmatpush.msra.mxu0 0.0
      %1585 = vmatpush.msra.mxu0 0.0
      %1586 = vmatpush.msra.mxu0 0.0
      %1587 = vmatpush.msra.mxu0 0.0
      %1588 = vmatpush.msra.mxu0 0.0
      %1589 = vmatpush.msra.mxu0 0.0
      %1590 = vmatpush.msra.mxu0 0.0
      %1591 = vmatpush.msra.mxu0 0.0
      %1592 = vmatpush.msra.mxu0 0.0
      %1593 = vmatpush.msra.mxu0 0.0
      %1594 = vmatpush.msra.mxu0 0.0
      %v1595 = vand.u32 %v206, 4294901760
      %1596 = vmatpush.msra.mxu0 %v1595
      %v1597 = vand.u32 %v205, 4294901760
      %1598 = vmatpush.msra.mxu0 %v1597
      %v1599 = vand.u32 %v204, 4294901760
      %1600 = vmatpush.msra.mxu0 %v1599
      %v1601 = vand.u32 %v203, 4294901760
      %1602 = vmatpush.msra.mxu0 %v1601
      %v1603 = vand.u32 %v1488, 4294901760
      %v1604 = vsub.f32 %v1488, %v1603
      %v1605 = vand.u32 %v1604, 4294901760
      %v1606 = vsub.f32 %v1604, %v1605
      %v1607 = vand.u32 %v1606, 4294901760
      %1608 = vmatmul.f32.gmra.mxu0 %v1607
      %v1609 = vpop.f32.mrf.mxu0
      %v1610 = vadd.f32 %v1361, %v1609
      %v1611 = vand.u32 %v1491, 4294901760
      %v1612 = vsub.f32 %v1491, %v1611
      %v1613 = vand.u32 %v1612, 4294901760
      %v1614 = vsub.f32 %v1612, %v1613
      %v1615 = vand.u32 %v1614, 4294901760
      %1616 = vmatmul.f32.gmra.mxu0 %v1615
      %v1617 = vpop.f32.mrf.mxu0
      %v1618 = vadd.f32 %v1365, %v1617
      %v1619 = vand.u32 %v1494, 4294901760
      %v1620 = vsub.f32 %v1494, %v1619
      %v1621 = vand.u32 %v1620, 4294901760
      %v1622 = vsub.f32 %v1620, %v1621
      %v1623 = vand.u32 %v1622, 4294901760
      %1624 = vmatmul.f32.gmra.mxu0 %v1623
      %v1625 = vpop.f32.mrf.mxu0
      %v1626 = vadd.f32 %v1369, %v1625
      %v1627 = vand.u32 %v1497, 4294901760
      %v1628 = vsub.f32 %v1497, %v1627
      %v1629 = vand.u32 %v1628, 4294901760
      %v1630 = vsub.f32 %v1628, %v1629
      %v1631 = vand.u32 %v1630, 4294901760
      %1632 = vmatmul.f32.gmra.mxu0 %v1631
      %v1633 = vpop.f32.mrf.mxu0
      %v1634 = vadd.f32 %v1373, %v1633
      %v1635 = vand.u32 %v1500, 4294901760
      %v1636 = vsub.f32 %v1500, %v1635
      %v1637 = vand.u32 %v1636, 4294901760
      %v1638 = vsub.f32 %v1636, %v1637
      %v1639 = vand.u32 %v1638, 4294901760
      %1640 = vmatmul.f32.gmra.mxu0 %v1639
      %v1641 = vpop.f32.mrf.mxu0
      %v1642 = vadd.f32 %v1377, %v1641
      %v1643 = vand.u32 %v1503, 4294901760
      %v1644 = vsub.f32 %v1503, %v1643
      %v1645 = vand.u32 %v1644, 4294901760
      %v1646 = vsub.f32 %v1644, %v1645
      %v1647 = vand.u32 %v1646, 4294901760
      %1648 = vmatmul.f32.gmra.mxu0 %v1647
      %v1649 = vpop.f32.mrf.mxu0
      %v1650 = vadd.f32 %v1381, %v1649
      %v1651 = vand.u32 %v1506, 4294901760
      %v1652 = vsub.f32 %v1506, %v1651
      %v1653 = vand.u32 %v1652, 4294901760
      %v1654 = vsub.f32 %v1652, %v1653
      %v1655 = vand.u32 %v1654, 4294901760
      %1656 = vmatmul.f32.gmra.mxu0 %v1655
      %v1657 = vpop.f32.mrf.mxu0
      %v1658 = vadd.f32 %v1385, %v1657
      %v1659 = vand.u32 %v1509, 4294901760
      %v1660 = vsub.f32 %v1509, %v1659
      %v1661 = vand.u32 %v1660, 4294901760
      %v1662 = vsub.f32 %v1660, %v1661
      %v1663 = vand.u32 %v1662, 4294901760
      %1664 = vmatmul.f32.gmra.mxu0 %v1663
      %v1665 = vpop.f32.mrf.mxu0
      %v1666 = vadd.f32 %v1389, %v1665
      %v1667 = vand.u32 %v1512, 4294901760
      %v1668 = vsub.f32 %v1512, %v1667
      %v1669 = vand.u32 %v1668, 4294901760
      %v1670 = vsub.f32 %v1668, %v1669
      %v1671 = vand.u32 %v1670, 4294901760
      %1672 = vmatmul.f32.gmra.mxu0 %v1671
      %v1673 = vpop.f32.mrf.mxu0
      %v1674 = vadd.f32 %v1393, %v1673
      %v1675 = vand.u32 %v1515, 4294901760
      %v1676 = vsub.f32 %v1515, %v1675
      %v1677 = vand.u32 %v1676, 4294901760
      %v1678 = vsub.f32 %v1676, %v1677
      %v1679 = vand.u32 %v1678, 4294901760
      %1680 = vmatmul.f32.gmra.mxu0 %v1679
      %v1681 = vpop.f32.mrf.mxu0
      %v1682 = vadd.f32 %v1397, %v1681
      %v1683 = vand.u32 %v1518, 4294901760
      %v1684 = vsub.f32 %v1518, %v1683
      %v1685 = vand.u32 %v1684, 4294901760
      %v1686 = vsub.f32 %v1684, %v1685
      %v1687 = vand.u32 %v1686, 4294901760
      %1688 = vmatmul.f32.gmra.mxu0 %v1687
      %v1689 = vpop.f32.mrf.mxu0
      %v1690 = vadd.f32 %v1401, %v1689
      %v1691 = vand.u32 %v1521, 4294901760
      %v1692 = vsub.f32 %v1521, %v1691
      %v1693 = vand.u32 %v1692, 4294901760
      %v1694 = vsub.f32 %v1692, %v1693
      %v1695 = vand.u32 %v1694, 4294901760
      %1696 = vmatmul.f32.gmra.mxu0 %v1695
      %v1697 = vpop.f32.mrf.mxu0
      %v1698 = vadd.f32 %v1405, %v1697
      %v1699 = vand.u32 %v1524, 4294901760
      %v1700 = vsub.f32 %v1524, %v1699
      %v1701 = vand.u32 %v1700, 4294901760
      %v1702 = vsub.f32 %v1700, %v1701
      %v1703 = vand.u32 %v1702, 4294901760
      %1704 = vmatmul.f32.gmra.mxu0 %v1703
      %v1705 = vpop.f32.mrf.mxu0
      %v1706 = vadd.f32 %v1409, %v1705
      %v1707 = vand.u32 %v1527, 4294901760
      %v1708 = vsub.f32 %v1527, %v1707
      %v1709 = vand.u32 %v1708, 4294901760
      %v1710 = vsub.f32 %v1708, %v1709
      %v1711 = vand.u32 %v1710, 4294901760
      %1712 = vmatmul.f32.gmra.mxu0 %v1711
      %v1713 = vpop.f32.mrf.mxu0
      %v1714 = vadd.f32 %v1413, %v1713
      %v1715 = vand.u32 %v1530, 4294901760
      %v1716 = vsub.f32 %v1530, %v1715
      %v1717 = vand.u32 %v1716, 4294901760
      %v1718 = vsub.f32 %v1716, %v1717
      %v1719 = vand.u32 %v1718, 4294901760
      %1720 = vmatmul.f32.gmra.mxu0 %v1719
      %v1721 = vpop.f32.mrf.mxu0
      %v1722 = vadd.f32 %v1417, %v1721
      %v1723 = vand.u32 %v1533, 4294901760
      %v1724 = vsub.f32 %v1533, %v1723
      %v1725 = vand.u32 %v1724, 4294901760
      %v1726 = vsub.f32 %v1724, %v1725
      %v1727 = vand.u32 %v1726, 4294901760
      %1728 = vmatmul.f32.gmra.mxu0 %v1727
      %v1729 = vpop.f32.mrf.mxu0
      %v1730 = vadd.f32 %v1421, %v1729
      %v1731 = vand.u32 %v1536, 4294901760
      %v1732 = vsub.f32 %v1536, %v1731
      %v1733 = vand.u32 %v1732, 4294901760
      %v1734 = vsub.f32 %v1732, %v1733
      %v1735 = vand.u32 %v1734, 4294901760
      %1736 = vmatmul.f32.gmra.mxu0 %v1735
      %v1737 = vpop.f32.mrf.mxu0
      %v1738 = vadd.f32 %v1425, %v1737
      %v1739 = vand.u32 %v1539, 4294901760
      %v1740 = vsub.f32 %v1539, %v1739
      %v1741 = vand.u32 %v1740, 4294901760
      %v1742 = vsub.f32 %v1740, %v1741
      %v1743 = vand.u32 %v1742, 4294901760
      %1744 = vmatmul.f32.gmra.mxu0 %v1743
      %v1745 = vpop.f32.mrf.mxu0
      %v1746 = vadd.f32 %v1429, %v1745
      %v1747 = vand.u32 %v1542, 4294901760
      %v1748 = vsub.f32 %v1542, %v1747
      %v1749 = vand.u32 %v1748, 4294901760
      %v1750 = vsub.f32 %v1748, %v1749
      %v1751 = vand.u32 %v1750, 4294901760
      %1752 = vmatmul.f32.gmra.mxu0 %v1751
      %v1753 = vpop.f32.mrf.mxu0
      %v1754 = vadd.f32 %v1433, %v1753
      %v1755 = vand.u32 %v1545, 4294901760
      %v1756 = vsub.f32 %v1545, %v1755
      %v1757 = vand.u32 %v1756, 4294901760
      %v1758 = vsub.f32 %v1756, %v1757
      %v1759 = vand.u32 %v1758, 4294901760
      %1760 = vmatmul.f32.gmra.mxu0 %v1759
      %v1761 = vpop.f32.mrf.mxu0
      %v1762 = vadd.f32 %v1437, %v1761
      %v1763 = vand.u32 %v1548, 4294901760
      %v1764 = vsub.f32 %v1548, %v1763
      %v1765 = vand.u32 %v1764, 4294901760
      %v1766 = vsub.f32 %v1764, %v1765
      %v1767 = vand.u32 %v1766, 4294901760
      %1768 = vmatmul.f32.gmra.mxu0 %v1767
      %v1769 = vpop.f32.mrf.mxu0
      %v1770 = vadd.f32 %v1441, %v1769
      %v1771 = vand.u32 %v1551, 4294901760
      %v1772 = vsub.f32 %v1551, %v1771
      %v1773 = vand.u32 %v1772, 4294901760
      %v1774 = vsub.f32 %v1772, %v1773
      %v1775 = vand.u32 %v1774, 4294901760
      %1776 = vmatmul.f32.gmra.mxu0 %v1775
      %v1777 = vpop.f32.mrf.mxu0
      %v1778 = vadd.f32 %v1445, %v1777
      %v1779 = vand.u32 %v1554, 4294901760
      %v1780 = vsub.f32 %v1554, %v1779
      %v1781 = vand.u32 %v1780, 4294901760
      %v1782 = vsub.f32 %v1780, %v1781
      %v1783 = vand.u32 %v1782, 4294901760
      %1784 = vmatmul.f32.gmra.mxu0 %v1783
      %v1785 = vpop.f32.mrf.mxu0
      %v1786 = vadd.f32 %v1449, %v1785
      %v1787 = vand.u32 %v1557, 4294901760
      %v1788 = vsub.f32 %v1557, %v1787
      %v1789 = vand.u32 %v1788, 4294901760
      %v1790 = vsub.f32 %v1788, %v1789
      %v1791 = vand.u32 %v1790, 4294901760
      %1792 = vmatmul.f32.gmra.mxu0 %v1791
      %v1793 = vpop.f32.mrf.mxu0
      %v1794 = vadd.f32 %v1453, %v1793
      %v1795 = vand.u32 %v1560, 4294901760
      %v1796 = vsub.f32 %v1560, %v1795
      %v1797 = vand.u32 %v1796, 4294901760
      %v1798 = vsub.f32 %v1796, %v1797
      %v1799 = vand.u32 %v1798, 4294901760
      %1800 = vmatmul.f32.gmra.mxu0 %v1799
      %v1801 = vpop.f32.mrf.mxu0
      %v1802 = vadd.f32 %v1457, %v1801
      %v1803 = vand.u32 %v1563, 4294901760
      %v1804 = vsub.f32 %v1563, %v1803
      %v1805 = vand.u32 %v1804, 4294901760
      %v1806 = vsub.f32 %v1804, %v1805
      %v1807 = vand.u32 %v1806, 4294901760
      %1808 = vmatmul.f32.gmra.mxu0 %v1807
      %v1809 = vpop.f32.mrf.mxu0
      %v1810 = vadd.f32 %v1461, %v1809
      %v1811 = vand.u32 %v1566, 4294901760
      %v1812 = vsub.f32 %v1566, %v1811
      %v1813 = vand.u32 %v1812, 4294901760
      %v1814 = vsub.f32 %v1812, %v1813
      %v1815 = vand.u32 %v1814, 4294901760
      %1816 = vmatmul.f32.gmra.mxu0 %v1815
      %v1817 = vpop.f32.mrf.mxu0
      %v1818 = vadd.f32 %v1465, %v1817
      %v1819 = vand.u32 %v1569, 4294901760
      %v1820 = vsub.f32 %v1569, %v1819
      %v1821 = vand.u32 %v1820, 4294901760
      %v1822 = vsub.f32 %v1820, %v1821
      %v1823 = vand.u32 %v1822, 4294901760
      %1824 = vmatmul.f32.gmra.mxu0 %v1823
      %v1825 = vpop.f32.mrf.mxu0
      %v1826 = vadd.f32 %v1469, %v1825
      %v1827 = vand.u32 %v1572, 4294901760
      %v1828 = vsub.f32 %v1572, %v1827
      %v1829 = vand.u32 %v1828, 4294901760
      %v1830 = vsub.f32 %v1828, %v1829
      %v1831 = vand.u32 %v1830, 4294901760
      %1832 = vmatmul.f32.gmra.mxu0 %v1831
      %v1833 = vpop.f32.mrf.mxu0
      %v1834 = vadd.f32 %v1473, %v1833
      %v1835 = vand.u32 %v1575, 4294901760
      %v1836 = vsub.f32 %v1575, %v1835
      %v1837 = vand.u32 %v1836, 4294901760
      %v1838 = vsub.f32 %v1836, %v1837
      %v1839 = vand.u32 %v1838, 4294901760
      %1840 = vmatmul.f32.gmra.mxu0 %v1839
      %v1841 = vpop.f32.mrf.mxu0
      %v1842 = vadd.f32 %v1477, %v1841
      %v1843 = vand.u32 %v1578, 4294901760
      %v1844 = vsub.f32 %v1578, %v1843
      %v1845 = vand.u32 %v1844, 4294901760
      %v1846 = vsub.f32 %v1844, %v1845
      %v1847 = vand.u32 %v1846, 4294901760
      %1848 = vmatmul.f32.gmra.mxu0 %v1847
      %v1849 = vpop.f32.mrf.mxu0
      %v1850 = vadd.f32 %v1481, %v1849
      %v1851 = vand.u32 %v1581, 4294901760
      %v1852 = vsub.f32 %v1581, %v1851
      %v1853 = vand.u32 %v1852, 4294901760
      %v1854 = vsub.f32 %v1852, %v1853
      %v1855 = vand.u32 %v1854, 4294901760
      %1856 = vmatmul.f32.gmra.mxu0 %v1855
      %v1857 = vpop.f32.mrf.mxu0
      %v1858 = vadd.f32 %v1485, %v1857
      %1859 = vdwg.mxu0
      %1860 = vmatpush.msra.mxu0 0.0
      %1861 = vmatpush.msra.mxu0 0.0
      %1862 = vmatpush.msra.mxu0 0.0
      %1863 = vmatpush.msra.mxu0 0.0
      %1864 = vmatpush.msra.mxu0 0.0
      %1865 = vmatpush.msra.mxu0 0.0
      %1866 = vmatpush.msra.mxu0 0.0
      %1867 = vmatpush.msra.mxu0 0.0
      %1868 = vmatpush.msra.mxu0 0.0
      %1869 = vmatpush.msra.mxu0 0.0
      %1870 = vmatpush.msra.mxu0 0.0
      %1871 = vmatpush.msra.mxu0 0.0
      %v1872 = vand.u32 %v206, 4294901760
      %v1873 = vsub.f32 %v206, %v1872
      %v1874 = vand.u32 %v1873, 4294901760
      %v1875 = vsub.f32 %v1873, %v1874
      %v1876 = vand.u32 %v1875, 4294901760
      %1877 = vmatpush.msra.mxu0 %v1876
      %v1878 = vand.u32 %v205, 4294901760
      %v1879 = vsub.f32 %v205, %v1878
      %v1880 = vand.u32 %v1879, 4294901760
      %v1881 = vsub.f32 %v1879, %v1880
      %v1882 = vand.u32 %v1881, 4294901760
      %1883 = vmatpush.msra.mxu0 %v1882
      %v1884 = vand.u32 %v204, 4294901760
      %v1885 = vsub.f32 %v204, %v1884
      %v1886 = vand.u32 %v1885, 4294901760
      %v1887 = vsub.f32 %v1885, %v1886
      %v1888 = vand.u32 %v1887, 4294901760
      %1889 = vmatpush.msra.mxu0 %v1888
      %v1890 = vand.u32 %v203, 4294901760
      %v1891 = vsub.f32 %v203, %v1890
      %v1892 = vand.u32 %v1891, 4294901760
      %v1893 = vsub.f32 %v1891, %v1892
      %v1894 = vand.u32 %v1893, 4294901760
      %1895 = vmatpush.msra.mxu0 %v1894
      %v1896 = vand.u32 %v1488, 4294901760
      %1897 = vmatmul.f32.gmra.mxu0 %v1896
      %v1898 = vpop.f32.mrf.mxu0
      %v1899 = vadd.f32 %v1610, %v1898
      %v1900 = vand.u32 %v1491, 4294901760
      %1901 = vmatmul.f32.gmra.mxu0 %v1900
      %v1902 = vpop.f32.mrf.mxu0
      %v1903 = vadd.f32 %v1618, %v1902
      %v1904 = vand.u32 %v1494, 4294901760
      %1905 = vmatmul.f32.gmra.mxu0 %v1904
      %v1906 = vpop.f32.mrf.mxu0
      %v1907 = vadd.f32 %v1626, %v1906
      %v1908 = vand.u32 %v1497, 4294901760
      %1909 = vmatmul.f32.gmra.mxu0 %v1908
      %v1910 = vpop.f32.mrf.mxu0
      %v1911 = vadd.f32 %v1634, %v1910
      %v1912 = vand.u32 %v1500, 4294901760
      %1913 = vmatmul.f32.gmra.mxu0 %v1912
      %v1914 = vpop.f32.mrf.mxu0
      %v1915 = vadd.f32 %v1642, %v1914
      %v1916 = vand.u32 %v1503, 4294901760
      %1917 = vmatmul.f32.gmra.mxu0 %v1916
      %v1918 = vpop.f32.mrf.mxu0
      %v1919 = vadd.f32 %v1650, %v1918
      %v1920 = vand.u32 %v1506, 4294901760
      %1921 = vmatmul.f32.gmra.mxu0 %v1920
      %v1922 = vpop.f32.mrf.mxu0
      %v1923 = vadd.f32 %v1658, %v1922
      %v1924 = vand.u32 %v1509, 4294901760
      %1925 = vmatmul.f32.gmra.mxu0 %v1924
      %v1926 = vpop.f32.mrf.mxu0
      %v1927 = vadd.f32 %v1666, %v1926
      %v1928 = vand.u32 %v1512, 4294901760
      %1929 = vmatmul.f32.gmra.mxu0 %v1928
      %v1930 = vpop.f32.mrf.mxu0
      %v1931 = vadd.f32 %v1674, %v1930
      %v1932 = vand.u32 %v1515, 4294901760
      %1933 = vmatmul.f32.gmra.mxu0 %v1932
      %v1934 = vpop.f32.mrf.mxu0
      %v1935 = vadd.f32 %v1682, %v1934
      %v1936 = vand.u32 %v1518, 4294901760
      %1937 = vmatmul.f32.gmra.mxu0 %v1936
      %v1938 = vpop.f32.mrf.mxu0
      %v1939 = vadd.f32 %v1690, %v1938
      %v1940 = vand.u32 %v1521, 4294901760
      %1941 = vmatmul.f32.gmra.mxu0 %v1940
      %v1942 = vpop.f32.mrf.mxu0
      %v1943 = vadd.f32 %v1698, %v1942
      %v1944 = vand.u32 %v1524, 4294901760
      %1945 = vmatmul.f32.gmra.mxu0 %v1944
      %v1946 = vpop.f32.mrf.mxu0
      %v1947 = vadd.f32 %v1706, %v1946
      %v1948 = vand.u32 %v1527, 4294901760
      %1949 = vmatmul.f32.gmra.mxu0 %v1948
      %v1950 = vpop.f32.mrf.mxu0
      %v1951 = vadd.f32 %v1714, %v1950
      %v1952 = vand.u32 %v1530, 4294901760
      %1953 = vmatmul.f32.gmra.mxu0 %v1952
      %v1954 = vpop.f32.mrf.mxu0
      %v1955 = vadd.f32 %v1722, %v1954
      %v1956 = vand.u32 %v1533, 4294901760
      %1957 = vmatmul.f32.gmra.mxu0 %v1956
      %v1958 = vpop.f32.mrf.mxu0
      %v1959 = vadd.f32 %v1730, %v1958
      %v1960 = vand.u32 %v1536, 4294901760
      %1961 = vmatmul.f32.gmra.mxu0 %v1960
      %v1962 = vpop.f32.mrf.mxu0
      %v1963 = vadd.f32 %v1738, %v1962
      %v1964 = vand.u32 %v1539, 4294901760
      %1965 = vmatmul.f32.gmra.mxu0 %v1964
      %v1966 = vpop.f32.mrf.mxu0
      %v1967 = vadd.f32 %v1746, %v1966
      %v1968 = vand.u32 %v1542, 4294901760
      %1969 = vmatmul.f32.gmra.mxu0 %v1968
      %v1970 = vpop.f32.mrf.mxu0
      %v1971 = vadd.f32 %v1754, %v1970
      %v1972 = vand.u32 %v1545, 4294901760
      %1973 = vmatmul.f32.gmra.mxu0 %v1972
      %v1974 = vpop.f32.mrf.mxu0
      %v1975 = vadd.f32 %v1762, %v1974
      %v1976 = vand.u32 %v1548, 4294901760
      %1977 = vmatmul.f32.gmra.mxu0 %v1976
      %v1978 = vpop.f32.mrf.mxu0
      %v1979 = vadd.f32 %v1770, %v1978
      %v1980 = vand.u32 %v1551, 4294901760
      %1981 = vmatmul.f32.gmra.mxu0 %v1980
      %v1982 = vpop.f32.mrf.mxu0
      %v1983 = vadd.f32 %v1778, %v1982
      %v1984 = vand.u32 %v1554, 4294901760
      %1985 = vmatmul.f32.gmra.mxu0 %v1984
      %v1986 = vpop.f32.mrf.mxu0
      %v1987 = vadd.f32 %v1786, %v1986
      %v1988 = vand.u32 %v1557, 4294901760
      %1989 = vmatmul.f32.gmra.mxu0 %v1988
      %v1990 = vpop.f32.mrf.mxu0
      %v1991 = vadd.f32 %v1794, %v1990
      %v1992 = vand.u32 %v1560, 4294901760
      %1993 = vmatmul.f32.gmra.mxu0 %v1992
      %v1994 = vpop.f32.mrf.mxu0
      %v1995 = vadd.f32 %v1802, %v1994
      %v1996 = vand.u32 %v1563, 4294901760
      %1997 = vmatmul.f32.gmra.mxu0 %v1996
      %v1998 = vpop.f32.mrf.mxu0
      %v1999 = vadd.f32 %v1810, %v1998
      %v2000 = vand.u32 %v1566, 4294901760
      %2001 = vmatmul.f32.gmra.mxu0 %v2000
      %v2002 = vpop.f32.mrf.mxu0
      %v2003 = vadd.f32 %v1818, %v2002
      %v2004 = vand.u32 %v1569, 4294901760
      %2005 = vmatmul.f32.gmra.mxu0 %v2004
      %v2006 = vpop.f32.mrf.mxu0
      %v2007 = vadd.f32 %v1826, %v2006
      %v2008 = vand.u32 %v1572, 4294901760
      %2009 = vmatmul.f32.gmra.mxu0 %v2008
      %v2010 = vpop.f32.mrf.mxu0
      %v2011 = vadd.f32 %v1834, %v2010
      %v2012 = vand.u32 %v1575, 4294901760
      %2013 = vmatmul.f32.gmra.mxu0 %v2012
      %v2014 = vpop.f32.mrf.mxu0
      %v2015 = vadd.f32 %v1842, %v2014
      %v2016 = vand.u32 %v1578, 4294901760
      %2017 = vmatmul.f32.gmra.mxu0 %v2016
      %v2018 = vpop.f32.mrf.mxu0
      %v2019 = vadd.f32 %v1850, %v2018
      %v2020 = vand.u32 %v1581, 4294901760
      %2021 = vmatmul.f32.gmra.mxu0 %v2020
      %v2022 = vpop.f32.mrf.mxu0
      %v2023 = vadd.f32 %v1858, %v2022
      %2024 = vdwg.mxu0
      %2025 = vmatpush.msra.mxu0 0.0
      %2026 = vmatpush.msra.mxu0 0.0
      %2027 = vmatpush.msra.mxu0 0.0
      %2028 = vmatpush.msra.mxu0 0.0
      %2029 = vmatpush.msra.mxu0 0.0
      %2030 = vmatpush.msra.mxu0 0.0
      %2031 = vmatpush.msra.mxu0 0.0
      %2032 = vmatpush.msra.mxu0 0.0
      %2033 = vmatpush.msra.mxu0 0.0
      %2034 = vmatpush.msra.mxu0 0.0
      %2035 = vmatpush.msra.mxu0 0.0
      %2036 = vmatpush.msra.mxu0 0.0
      %v2037 = vand.u32 %v206, 4294901760
      %v2038 = vsub.f32 %v206, %v2037
      %2039 = vmatpush.msra.mxu0 %v2038
      %v2040 = vand.u32 %v205, 4294901760
      %v2041 = vsub.f32 %v205, %v2040
      %2042 = vmatpush.msra.mxu0 %v2041
      %v2043 = vand.u32 %v204, 4294901760
      %v2044 = vsub.f32 %v204, %v2043
      %2045 = vmatpush.msra.mxu0 %v2044
      %v2046 = vand.u32 %v203, 4294901760
      %v2047 = vsub.f32 %v203, %v2046
      %2048 = vmatpush.msra.mxu0 %v2047
      %v2049 = vand.u32 %v1488, 4294901760
      %v2050 = vsub.f32 %v1488, %v2049
      %2051 = vmatmul.f32.gmra.mxu0 %v2050
      %v2052 = vpop.f32.mrf.mxu0
      %v2053 = vadd.f32 %v1899, %v2052
      %v2054 = vand.u32 %v1491, 4294901760
      %v2055 = vsub.f32 %v1491, %v2054
      %2056 = vmatmul.f32.gmra.mxu0 %v2055
      %v2057 = vpop.f32.mrf.mxu0
      %v2058 = vadd.f32 %v1903, %v2057
      %v2059 = vand.u32 %v1494, 4294901760
      %v2060 = vsub.f32 %v1494, %v2059
      %2061 = vmatmul.f32.gmra.mxu0 %v2060
      %v2062 = vpop.f32.mrf.mxu0
      %v2063 = vadd.f32 %v1907, %v2062
      %v2064 = vand.u32 %v1497, 4294901760
      %v2065 = vsub.f32 %v1497, %v2064
      %2066 = vmatmul.f32.gmra.mxu0 %v2065
      %v2067 = vpop.f32.mrf.mxu0
      %v2068 = vadd.f32 %v1911, %v2067
      %v2069 = vand.u32 %v1500, 4294901760
      %v2070 = vsub.f32 %v1500, %v2069
      %2071 = vmatmul.f32.gmra.mxu0 %v2070
      %v2072 = vpop.f32.mrf.mxu0
      %v2073 = vadd.f32 %v1915, %v2072
      %v2074 = vand.u32 %v1503, 4294901760
      %v2075 = vsub.f32 %v1503, %v2074
      %2076 = vmatmul.f32.gmra.mxu0 %v2075
      %v2077 = vpop.f32.mrf.mxu0
      %v2078 = vadd.f32 %v1919, %v2077
      %v2079 = vand.u32 %v1506, 4294901760
      %v2080 = vsub.f32 %v1506, %v2079
      %2081 = vmatmul.f32.gmra.mxu0 %v2080
      %v2082 = vpop.f32.mrf.mxu0
      %v2083 = vadd.f32 %v1923, %v2082
      %v2084 = vand.u32 %v1509, 4294901760
      %v2085 = vsub.f32 %v1509, %v2084
      %2086 = vmatmul.f32.gmra.mxu0 %v2085
      %v2087 = vpop.f32.mrf.mxu0
      %v2088 = vadd.f32 %v1927, %v2087
      %v2089 = vand.u32 %v1512, 4294901760
      %v2090 = vsub.f32 %v1512, %v2089
      %2091 = vmatmul.f32.gmra.mxu0 %v2090
      %v2092 = vpop.f32.mrf.mxu0
      %v2093 = vadd.f32 %v1931, %v2092
      %v2094 = vand.u32 %v1515, 4294901760
      %v2095 = vsub.f32 %v1515, %v2094
      %2096 = vmatmul.f32.gmra.mxu0 %v2095
      %v2097 = vpop.f32.mrf.mxu0
      %v2098 = vadd.f32 %v1935, %v2097
      %v2099 = vand.u32 %v1518, 4294901760
      %v2100 = vsub.f32 %v1518, %v2099
      %2101 = vmatmul.f32.gmra.mxu0 %v2100
      %v2102 = vpop.f32.mrf.mxu0
      %v2103 = vadd.f32 %v1939, %v2102
      %v2104 = vand.u32 %v1521, 4294901760
      %v2105 = vsub.f32 %v1521, %v2104
      %2106 = vmatmul.f32.gmra.mxu0 %v2105
      %v2107 = vpop.f32.mrf.mxu0
      %v2108 = vadd.f32 %v1943, %v2107
      %v2109 = vand.u32 %v1524, 4294901760
      %v2110 = vsub.f32 %v1524, %v2109
      %2111 = vmatmul.f32.gmra.mxu0 %v2110
      %v2112 = vpop.f32.mrf.mxu0
      %v2113 = vadd.f32 %v1947, %v2112
      %v2114 = vand.u32 %v1527, 4294901760
      %v2115 = vsub.f32 %v1527, %v2114
      %2116 = vmatmul.f32.gmra.mxu0 %v2115
      %v2117 = vpop.f32.mrf.mxu0
      %v2118 = vadd.f32 %v1951, %v2117
      %v2119 = vand.u32 %v1530, 4294901760
      %v2120 = vsub.f32 %v1530, %v2119
      %2121 = vmatmul.f32.gmra.mxu0 %v2120
      %v2122 = vpop.f32.mrf.mxu0
      %v2123 = vadd.f32 %v1955, %v2122
      %v2124 = vand.u32 %v1533, 4294901760
      %v2125 = vsub.f32 %v1533, %v2124
      %2126 = vmatmul.f32.gmra.mxu0 %v2125
      %v2127 = vpop.f32.mrf.mxu0
      %v2128 = vadd.f32 %v1959, %v2127
      %v2129 = vand.u32 %v1536, 4294901760
      %v2130 = vsub.f32 %v1536, %v2129
      %2131 = vmatmul.f32.gmra.mxu0 %v2130
      %v2132 = vpop.f32.mrf.mxu0
      %v2133 = vadd.f32 %v1963, %v2132
      %v2134 = vand.u32 %v1539, 4294901760
      %v2135 = vsub.f32 %v1539, %v2134
      %2136 = vmatmul.f32.gmra.mxu0 %v2135
      %v2137 = vpop.f32.mrf.mxu0
      %v2138 = vadd.f32 %v1967, %v2137
      %v2139 = vand.u32 %v1542, 4294901760
      %v2140 = vsub.f32 %v1542, %v2139
      %2141 = vmatmul.f32.gmra.mxu0 %v2140
      %v2142 = vpop.f32.mrf.mxu0
      %v2143 = vadd.f32 %v1971, %v2142
      %v2144 = vand.u32 %v1545, 4294901760
      %v2145 = vsub.f32 %v1545, %v2144
      %2146 = vmatmul.f32.gmra.mxu0 %v2145
      %v2147 = vpop.f32.mrf.mxu0
      %v2148 = vadd.f32 %v1975, %v2147
      %v2149 = vand.u32 %v1548, 4294901760
      %v2150 = vsub.f32 %v1548, %v2149
      %2151 = vmatmul.f32.gmra.mxu0 %v2150
      %v2152 = vpop.f32.mrf.mxu0
      %v2153 = vadd.f32 %v1979, %v2152
      %v2154 = vand.u32 %v1551, 4294901760
      %v2155 = vsub.f32 %v1551, %v2154
      %2156 = vmatmul.f32.gmra.mxu0 %v2155
      %v2157 = vpop.f32.mrf.mxu0
      %v2158 = vadd.f32 %v1983, %v2157
      %v2159 = vand.u32 %v1554, 4294901760
      %v2160 = vsub.f32 %v1554, %v2159
      %2161 = vmatmul.f32.gmra.mxu0 %v2160
      %v2162 = vpop.f32.mrf.mxu0
      %v2163 = vadd.f32 %v1987, %v2162
      %v2164 = vand.u32 %v1557, 4294901760
      %v2165 = vsub.f32 %v1557, %v2164
      %2166 = vmatmul.f32.gmra.mxu0 %v2165
      %v2167 = vpop.f32.mrf.mxu0
      %v2168 = vadd.f32 %v1991, %v2167
      %v2169 = vand.u32 %v1560, 4294901760
      %v2170 = vsub.f32 %v1560, %v2169
      %2171 = vmatmul.f32.gmra.mxu0 %v2170
      %v2172 = vpop.f32.mrf.mxu0
      %v2173 = vadd.f32 %v1995, %v2172
      %v2174 = vand.u32 %v1563, 4294901760
      %v2175 = vsub.f32 %v1563, %v2174
      %2176 = vmatmul.f32.gmra.mxu0 %v2175
      %v2177 = vpop.f32.mrf.mxu0
      %v2178 = vadd.f32 %v1999, %v2177
      %v2179 = vand.u32 %v1566, 4294901760
      %v2180 = vsub.f32 %v1566, %v2179
      %2181 = vmatmul.f32.gmra.mxu0 %v2180
      %v2182 = vpop.f32.mrf.mxu0
      %v2183 = vadd.f32 %v2003, %v2182
      %v2184 = vand.u32 %v1569, 4294901760
      %v2185 = vsub.f32 %v1569, %v2184
      %2186 = vmatmul.f32.gmra.mxu0 %v2185
      %v2187 = vpop.f32.mrf.mxu0
      %v2188 = vadd.f32 %v2007, %v2187
      %v2189 = vand.u32 %v1572, 4294901760
      %v2190 = vsub.f32 %v1572, %v2189
      %2191 = vmatmul.f32.gmra.mxu0 %v2190
      %v2192 = vpop.f32.mrf.mxu0
      %v2193 = vadd.f32 %v2011, %v2192
      %v2194 = vand.u32 %v1575, 4294901760
      %v2195 = vsub.f32 %v1575, %v2194
      %2196 = vmatmul.f32.gmra.mxu0 %v2195
      %v2197 = vpop.f32.mrf.mxu0
      %v2198 = vadd.f32 %v2015, %v2197
      %v2199 = vand.u32 %v1578, 4294901760
      %v2200 = vsub.f32 %v1578, %v2199
      %2201 = vmatmul.f32.gmra.mxu0 %v2200
      %v2202 = vpop.f32.mrf.mxu0
      %v2203 = vadd.f32 %v2019, %v2202
      %v2204 = vand.u32 %v1581, 4294901760
      %v2205 = vsub.f32 %v1581, %v2204
      %2206 = vmatmul.f32.gmra.mxu0 %v2205
      %v2207 = vpop.f32.mrf.mxu0
      %v2208 = vadd.f32 %v2023, %v2207
      %2209 = vdwg.mxu0
      %2210 = vmatpush.msra.mxu0 0.0
      %2211 = vmatpush.msra.mxu0 0.0
      %2212 = vmatpush.msra.mxu0 0.0
      %2213 = vmatpush.msra.mxu0 0.0
      %2214 = vmatpush.msra.mxu0 0.0
      %2215 = vmatpush.msra.mxu0 0.0
      %2216 = vmatpush.msra.mxu0 0.0
      %2217 = vmatpush.msra.mxu0 0.0
      %2218 = vmatpush.msra.mxu0 0.0
      %2219 = vmatpush.msra.mxu0 0.0
      %2220 = vmatpush.msra.mxu0 0.0
      %2221 = vmatpush.msra.mxu0 0.0
      %v2222 = vand.u32 %v206, 4294901760
      %2223 = vmatpush.msra.mxu0 %v2222
      %v2224 = vand.u32 %v205, 4294901760
      %2225 = vmatpush.msra.mxu0 %v2224
      %v2226 = vand.u32 %v204, 4294901760
      %2227 = vmatpush.msra.mxu0 %v2226
      %v2228 = vand.u32 %v203, 4294901760
      %2229 = vmatpush.msra.mxu0 %v2228
      %v2230 = vand.u32 %v1488, 4294901760
      %v2231 = vsub.f32 %v1488, %v2230
      %v2232 = vand.u32 %v2231, 4294901760
      %2233 = vmatmul.f32.gmra.mxu0 %v2232
      %v2234 = vpop.f32.mrf.mxu0
      %v2235 = vadd.f32 %v2053, %v2234
      %v2236 = vand.u32 %v1491, 4294901760
      %v2237 = vsub.f32 %v1491, %v2236
      %v2238 = vand.u32 %v2237, 4294901760
      %2239 = vmatmul.f32.gmra.mxu0 %v2238
      %v2240 = vpop.f32.mrf.mxu0
      %v2241 = vadd.f32 %v2058, %v2240
      %v2242 = vand.u32 %v1494, 4294901760
      %v2243 = vsub.f32 %v1494, %v2242
      %v2244 = vand.u32 %v2243, 4294901760
      %2245 = vmatmul.f32.gmra.mxu0 %v2244
      %v2246 = vpop.f32.mrf.mxu0
      %v2247 = vadd.f32 %v2063, %v2246
      %v2248 = vand.u32 %v1497, 4294901760
      %v2249 = vsub.f32 %v1497, %v2248
      %v2250 = vand.u32 %v2249, 4294901760
      %2251 = vmatmul.f32.gmra.mxu0 %v2250
      %v2252 = vpop.f32.mrf.mxu0
      %v2253 = vadd.f32 %v2068, %v2252
      %v2254 = vand.u32 %v1500, 4294901760
      %v2255 = vsub.f32 %v1500, %v2254
      %v2256 = vand.u32 %v2255, 4294901760
      %2257 = vmatmul.f32.gmra.mxu0 %v2256
      %v2258 = vpop.f32.mrf.mxu0
      %v2259 = vadd.f32 %v2073, %v2258
      %v2260 = vand.u32 %v1503, 4294901760
      %v2261 = vsub.f32 %v1503, %v2260
      %v2262 = vand.u32 %v2261, 4294901760
      %2263 = vmatmul.f32.gmra.mxu0 %v2262
      %v2264 = vpop.f32.mrf.mxu0
      %v2265 = vadd.f32 %v2078, %v2264
      %v2266 = vand.u32 %v1506, 4294901760
      %v2267 = vsub.f32 %v1506, %v2266
      %v2268 = vand.u32 %v2267, 4294901760
      %2269 = vmatmul.f32.gmra.mxu0 %v2268
      %v2270 = vpop.f32.mrf.mxu0
      %v2271 = vadd.f32 %v2083, %v2270
      %v2272 = vand.u32 %v1509, 4294901760
      %v2273 = vsub.f32 %v1509, %v2272
      %v2274 = vand.u32 %v2273, 4294901760
      %2275 = vmatmul.f32.gmra.mxu0 %v2274
      %v2276 = vpop.f32.mrf.mxu0
      %v2277 = vadd.f32 %v2088, %v2276
      %v2278 = vand.u32 %v1512, 4294901760
      %v2279 = vsub.f32 %v1512, %v2278
      %v2280 = vand.u32 %v2279, 4294901760
      %2281 = vmatmul.f32.gmra.mxu0 %v2280
      %v2282 = vpop.f32.mrf.mxu0
      %v2283 = vadd.f32 %v2093, %v2282
      %v2284 = vand.u32 %v1515, 4294901760
      %v2285 = vsub.f32 %v1515, %v2284
      %v2286 = vand.u32 %v2285, 4294901760
      %2287 = vmatmul.f32.gmra.mxu0 %v2286
      %v2288 = vpop.f32.mrf.mxu0
      %v2289 = vadd.f32 %v2098, %v2288
      %v2290 = vand.u32 %v1518, 4294901760
      %v2291 = vsub.f32 %v1518, %v2290
      %v2292 = vand.u32 %v2291, 4294901760
      %2293 = vmatmul.f32.gmra.mxu0 %v2292
      %v2294 = vpop.f32.mrf.mxu0
      %v2295 = vadd.f32 %v2103, %v2294
      %v2296 = vand.u32 %v1521, 4294901760
      %v2297 = vsub.f32 %v1521, %v2296
      %v2298 = vand.u32 %v2297, 4294901760
      %2299 = vmatmul.f32.gmra.mxu0 %v2298
      %v2300 = vpop.f32.mrf.mxu0
      %v2301 = vadd.f32 %v2108, %v2300
      %v2302 = vand.u32 %v1524, 4294901760
      %v2303 = vsub.f32 %v1524, %v2302
      %v2304 = vand.u32 %v2303, 4294901760
      %2305 = vmatmul.f32.gmra.mxu0 %v2304
      %v2306 = vpop.f32.mrf.mxu0
      %v2307 = vadd.f32 %v2113, %v2306
      %v2308 = vand.u32 %v1527, 4294901760
      %v2309 = vsub.f32 %v1527, %v2308
      %v2310 = vand.u32 %v2309, 4294901760
      %2311 = vmatmul.f32.gmra.mxu0 %v2310
      %v2312 = vpop.f32.mrf.mxu0
      %v2313 = vadd.f32 %v2118, %v2312
      %v2314 = vand.u32 %v1530, 4294901760
      %v2315 = vsub.f32 %v1530, %v2314
      %v2316 = vand.u32 %v2315, 4294901760
      %2317 = vmatmul.f32.gmra.mxu0 %v2316
      %v2318 = vpop.f32.mrf.mxu0
      %v2319 = vadd.f32 %v2123, %v2318
      %v2320 = vand.u32 %v1533, 4294901760
      %v2321 = vsub.f32 %v1533, %v2320
      %v2322 = vand.u32 %v2321, 4294901760
      %2323 = vmatmul.f32.gmra.mxu0 %v2322
      %v2324 = vpop.f32.mrf.mxu0
      %v2325 = vadd.f32 %v2128, %v2324
      %v2326 = vand.u32 %v1536, 4294901760
      %v2327 = vsub.f32 %v1536, %v2326
      %v2328 = vand.u32 %v2327, 4294901760
      %2329 = vmatmul.f32.gmra.mxu0 %v2328
      %v2330 = vpop.f32.mrf.mxu0
      %v2331 = vadd.f32 %v2133, %v2330
      %v2332 = vand.u32 %v1539, 4294901760
      %v2333 = vsub.f32 %v1539, %v2332
      %v2334 = vand.u32 %v2333, 4294901760
      %2335 = vmatmul.f32.gmra.mxu0 %v2334
      %v2336 = vpop.f32.mrf.mxu0
      %v2337 = vadd.f32 %v2138, %v2336
      %v2338 = vand.u32 %v1542, 4294901760
      %v2339 = vsub.f32 %v1542, %v2338
      %v2340 = vand.u32 %v2339, 4294901760
      %2341 = vmatmul.f32.gmra.mxu0 %v2340
      %v2342 = vpop.f32.mrf.mxu0
      %v2343 = vadd.f32 %v2143, %v2342
      %v2344 = vand.u32 %v1545, 4294901760
      %v2345 = vsub.f32 %v1545, %v2344
      %v2346 = vand.u32 %v2345, 4294901760
      %2347 = vmatmul.f32.gmra.mxu0 %v2346
      %v2348 = vpop.f32.mrf.mxu0
      %v2349 = vadd.f32 %v2148, %v2348
      %v2350 = vand.u32 %v1548, 4294901760
      %v2351 = vsub.f32 %v1548, %v2350
      %v2352 = vand.u32 %v2351, 4294901760
      %2353 = vmatmul.f32.gmra.mxu0 %v2352
      %v2354 = vpop.f32.mrf.mxu0
      %v2355 = vadd.f32 %v2153, %v2354
      %v2356 = vand.u32 %v1551, 4294901760
      %v2357 = vsub.f32 %v1551, %v2356
      %v2358 = vand.u32 %v2357, 4294901760
      %2359 = vmatmul.f32.gmra.mxu0 %v2358
      %v2360 = vpop.f32.mrf.mxu0
      %v2361 = vadd.f32 %v2158, %v2360
      %v2362 = vand.u32 %v1554, 4294901760
      %v2363 = vsub.f32 %v1554, %v2362
      %v2364 = vand.u32 %v2363, 4294901760
      %2365 = vmatmul.f32.gmra.mxu0 %v2364
      %v2366 = vpop.f32.mrf.mxu0
      %v2367 = vadd.f32 %v2163, %v2366
      %v2368 = vand.u32 %v1557, 4294901760
      %v2369 = vsub.f32 %v1557, %v2368
      %v2370 = vand.u32 %v2369, 4294901760
      %2371 = vmatmul.f32.gmra.mxu0 %v2370
      %v2372 = vpop.f32.mrf.mxu0
      %v2373 = vadd.f32 %v2168, %v2372
      %v2374 = vand.u32 %v1560, 4294901760
      %v2375 = vsub.f32 %v1560, %v2374
      %v2376 = vand.u32 %v2375, 4294901760
      %2377 = vmatmul.f32.gmra.mxu0 %v2376
      %v2378 = vpop.f32.mrf.mxu0
      %v2379 = vadd.f32 %v2173, %v2378
      %v2380 = vand.u32 %v1563, 4294901760
      %v2381 = vsub.f32 %v1563, %v2380
      %v2382 = vand.u32 %v2381, 4294901760
      %2383 = vmatmul.f32.gmra.mxu0 %v2382
      %v2384 = vpop.f32.mrf.mxu0
      %v2385 = vadd.f32 %v2178, %v2384
      %v2386 = vand.u32 %v1566, 4294901760
      %v2387 = vsub.f32 %v1566, %v2386
      %v2388 = vand.u32 %v2387, 4294901760
      %2389 = vmatmul.f32.gmra.mxu0 %v2388
      %v2390 = vpop.f32.mrf.mxu0
      %v2391 = vadd.f32 %v2183, %v2390
      %v2392 = vand.u32 %v1569, 4294901760
      %v2393 = vsub.f32 %v1569, %v2392
      %v2394 = vand.u32 %v2393, 4294901760
      %2395 = vmatmul.f32.gmra.mxu0 %v2394
      %v2396 = vpop.f32.mrf.mxu0
      %v2397 = vadd.f32 %v2188, %v2396
      %v2398 = vand.u32 %v1572, 4294901760
      %v2399 = vsub.f32 %v1572, %v2398
      %v2400 = vand.u32 %v2399, 4294901760
      %2401 = vmatmul.f32.gmra.mxu0 %v2400
      %v2402 = vpop.f32.mrf.mxu0
      %v2403 = vadd.f32 %v2193, %v2402
      %v2404 = vand.u32 %v1575, 4294901760
      %v2405 = vsub.f32 %v1575, %v2404
      %v2406 = vand.u32 %v2405, 4294901760
      %2407 = vmatmul.f32.gmra.mxu0 %v2406
      %v2408 = vpop.f32.mrf.mxu0
      %v2409 = vadd.f32 %v2198, %v2408
      %v2410 = vand.u32 %v1578, 4294901760
      %v2411 = vsub.f32 %v1578, %v2410
      %v2412 = vand.u32 %v2411, 4294901760
      %2413 = vmatmul.f32.gmra.mxu0 %v2412
      %v2414 = vpop.f32.mrf.mxu0
      %v2415 = vadd.f32 %v2203, %v2414
      %v2416 = vand.u32 %v1581, 4294901760
      %v2417 = vsub.f32 %v1581, %v2416
      %v2418 = vand.u32 %v2417, 4294901760
      %2419 = vmatmul.f32.gmra.mxu0 %v2418
      %v2420 = vpop.f32.mrf.mxu0
      %v2421 = vadd.f32 %v2208, %v2420
      %2422 = vdwg.mxu0
      %2423 = vmatpush.msra.mxu0 0.0
      %2424 = vmatpush.msra.mxu0 0.0
      %2425 = vmatpush.msra.mxu0 0.0
      %2426 = vmatpush.msra.mxu0 0.0
      %2427 = vmatpush.msra.mxu0 0.0
      %2428 = vmatpush.msra.mxu0 0.0
      %2429 = vmatpush.msra.mxu0 0.0
      %2430 = vmatpush.msra.mxu0 0.0
      %2431 = vmatpush.msra.mxu0 0.0
      %2432 = vmatpush.msra.mxu0 0.0
      %2433 = vmatpush.msra.mxu0 0.0
      %2434 = vmatpush.msra.mxu0 0.0
      %v2435 = vand.u32 %v206, 4294901760
      %v2436 = vsub.f32 %v206, %v2435
      %v2437 = vand.u32 %v2436, 4294901760
      %2438 = vmatpush.msra.mxu0 %v2437
      %v2439 = vand.u32 %v205, 4294901760
      %v2440 = vsub.f32 %v205, %v2439
      %v2441 = vand.u32 %v2440, 4294901760
      %2442 = vmatpush.msra.mxu0 %v2441
      %v2443 = vand.u32 %v204, 4294901760
      %v2444 = vsub.f32 %v204, %v2443
      %v2445 = vand.u32 %v2444, 4294901760
      %2446 = vmatpush.msra.mxu0 %v2445
      %v2447 = vand.u32 %v203, 4294901760
      %v2448 = vsub.f32 %v203, %v2447
      %v2449 = vand.u32 %v2448, 4294901760
      %2450 = vmatpush.msra.mxu0 %v2449
      %v2451 = vand.u32 %v1488, 4294901760
      %2452 = vmatmul.f32.gmra.mxu0 %v2451
      %v2453 = vpop.f32.mrf.mxu0
      %v2454 = vadd.f32 %v2235, %v2453
      %v2455 = vand.u32 %v1491, 4294901760
      %2456 = vmatmul.f32.gmra.mxu0 %v2455
      %v2457 = vpop.f32.mrf.mxu0
      %v2458 = vadd.f32 %v2241, %v2457
      %v2459 = vand.u32 %v1494, 4294901760
      %2460 = vmatmul.f32.gmra.mxu0 %v2459
      %v2461 = vpop.f32.mrf.mxu0
      %v2462 = vadd.f32 %v2247, %v2461
      %v2463 = vand.u32 %v1497, 4294901760
      %2464 = vmatmul.f32.gmra.mxu0 %v2463
      %v2465 = vpop.f32.mrf.mxu0
      %v2466 = vadd.f32 %v2253, %v2465
      %v2467 = vand.u32 %v1500, 4294901760
      %2468 = vmatmul.f32.gmra.mxu0 %v2467
      %v2469 = vpop.f32.mrf.mxu0
      %v2470 = vadd.f32 %v2259, %v2469
      %v2471 = vand.u32 %v1503, 4294901760
      %2472 = vmatmul.f32.gmra.mxu0 %v2471
      %v2473 = vpop.f32.mrf.mxu0
      %v2474 = vadd.f32 %v2265, %v2473
      %v2475 = vand.u32 %v1506, 4294901760
      %2476 = vmatmul.f32.gmra.mxu0 %v2475
      %v2477 = vpop.f32.mrf.mxu0
      %v2478 = vadd.f32 %v2271, %v2477
      %v2479 = vand.u32 %v1509, 4294901760
      %2480 = vmatmul.f32.gmra.mxu0 %v2479
      %v2481 = vpop.f32.mrf.mxu0
      %v2482 = vadd.f32 %v2277, %v2481
      %v2483 = vand.u32 %v1512, 4294901760
      %2484 = vmatmul.f32.gmra.mxu0 %v2483
      %v2485 = vpop.f32.mrf.mxu0
      %v2486 = vadd.f32 %v2283, %v2485
      %v2487 = vand.u32 %v1515, 4294901760
      %2488 = vmatmul.f32.gmra.mxu0 %v2487
      %v2489 = vpop.f32.mrf.mxu0
      %v2490 = vadd.f32 %v2289, %v2489
      %v2491 = vand.u32 %v1518, 4294901760
      %2492 = vmatmul.f32.gmra.mxu0 %v2491
      %v2493 = vpop.f32.mrf.mxu0
      %v2494 = vadd.f32 %v2295, %v2493
      %v2495 = vand.u32 %v1521, 4294901760
      %2496 = vmatmul.f32.gmra.mxu0 %v2495
      %v2497 = vpop.f32.mrf.mxu0
      %v2498 = vadd.f32 %v2301, %v2497
      %v2499 = vand.u32 %v1524, 4294901760
      %2500 = vmatmul.f32.gmra.mxu0 %v2499
      %v2501 = vpop.f32.mrf.mxu0
      %v2502 = vadd.f32 %v2307, %v2501
      %v2503 = vand.u32 %v1527, 4294901760
      %2504 = vmatmul.f32.gmra.mxu0 %v2503
      %v2505 = vpop.f32.mrf.mxu0
      %v2506 = vadd.f32 %v2313, %v2505
      %v2507 = vand.u32 %v1530, 4294901760
      %2508 = vmatmul.f32.gmra.mxu0 %v2507
      %v2509 = vpop.f32.mrf.mxu0
      %v2510 = vadd.f32 %v2319, %v2509
      %v2511 = vand.u32 %v1533, 4294901760
      %2512 = vmatmul.f32.gmra.mxu0 %v2511
      %v2513 = vpop.f32.mrf.mxu0
      %v2514 = vadd.f32 %v2325, %v2513
      %v2515 = vand.u32 %v1536, 4294901760
      %2516 = vmatmul.f32.gmra.mxu0 %v2515
      %v2517 = vpop.f32.mrf.mxu0
      %v2518 = vadd.f32 %v2331, %v2517
      %v2519 = vand.u32 %v1539, 4294901760
      %2520 = vmatmul.f32.gmra.mxu0 %v2519
      %v2521 = vpop.f32.mrf.mxu0
      %v2522 = vadd.f32 %v2337, %v2521
      %v2523 = vand.u32 %v1542, 4294901760
      %2524 = vmatmul.f32.gmra.mxu0 %v2523
      %v2525 = vpop.f32.mrf.mxu0
      %v2526 = vadd.f32 %v2343, %v2525
      %v2527 = vand.u32 %v1545, 4294901760
      %2528 = vmatmul.f32.gmra.mxu0 %v2527
      %v2529 = vpop.f32.mrf.mxu0
      %v2530 = vadd.f32 %v2349, %v2529
      %v2531 = vand.u32 %v1548, 4294901760
      %2532 = vmatmul.f32.gmra.mxu0 %v2531
      %v2533 = vpop.f32.mrf.mxu0
      %v2534 = vadd.f32 %v2355, %v2533
      %v2535 = vand.u32 %v1551, 4294901760
      %2536 = vmatmul.f32.gmra.mxu0 %v2535
      %v2537 = vpop.f32.mrf.mxu0
      %v2538 = vadd.f32 %v2361, %v2537
      %v2539 = vand.u32 %v1554, 4294901760
      %2540 = vmatmul.f32.gmra.mxu0 %v2539
      %v2541 = vpop.f32.mrf.mxu0
      %v2542 = vadd.f32 %v2367, %v2541
      %v2543 = vand.u32 %v1557, 4294901760
      %2544 = vmatmul.f32.gmra.mxu0 %v2543
      %v2545 = vpop.f32.mrf.mxu0
      %v2546 = vadd.f32 %v2373, %v2545
      %v2547 = vand.u32 %v1560, 4294901760
      %2548 = vmatmul.f32.gmra.mxu0 %v2547
      %v2549 = vpop.f32.mrf.mxu0
      %v2550 = vadd.f32 %v2379, %v2549
      %v2551 = vand.u32 %v1563, 4294901760
      %2552 = vmatmul.f32.gmra.mxu0 %v2551
      %v2553 = vpop.f32.mrf.mxu0
      %v2554 = vadd.f32 %v2385, %v2553
      %v2555 = vand.u32 %v1566, 4294901760
      %2556 = vmatmul.f32.gmra.mxu0 %v2555
      %v2557 = vpop.f32.mrf.mxu0
      %v2558 = vadd.f32 %v2391, %v2557
      %v2559 = vand.u32 %v1569, 4294901760
      %2560 = vmatmul.f32.gmra.mxu0 %v2559
      %v2561 = vpop.f32.mrf.mxu0
      %v2562 = vadd.f32 %v2397, %v2561
      %v2563 = vand.u32 %v1572, 4294901760
      %2564 = vmatmul.f32.gmra.mxu0 %v2563
      %v2565 = vpop.f32.mrf.mxu0
      %v2566 = vadd.f32 %v2403, %v2565
      %v2567 = vand.u32 %v1575, 4294901760
      %2568 = vmatmul.f32.gmra.mxu0 %v2567
      %v2569 = vpop.f32.mrf.mxu0
      %v2570 = vadd.f32 %v2409, %v2569
      %v2571 = vand.u32 %v1578, 4294901760
      %2572 = vmatmul.f32.gmra.mxu0 %v2571
      %v2573 = vpop.f32.mrf.mxu0
      %v2574 = vadd.f32 %v2415, %v2573
      %v2575 = vand.u32 %v1581, 4294901760
      %2576 = vmatmul.f32.gmra.mxu0 %v2575
      %v2577 = vpop.f32.mrf.mxu0
      %v2578 = vadd.f32 %v2421, %v2577
      %2579 = vdwg.mxu0
      %2580 = vmatpush.msra.mxu0 0.0
      %2581 = vmatpush.msra.mxu0 0.0
      %2582 = vmatpush.msra.mxu0 0.0
      %2583 = vmatpush.msra.mxu0 0.0
      %2584 = vmatpush.msra.mxu0 0.0
      %2585 = vmatpush.msra.mxu0 0.0
      %2586 = vmatpush.msra.mxu0 0.0
      %2587 = vmatpush.msra.mxu0 0.0
      %2588 = vmatpush.msra.mxu0 0.0
      %2589 = vmatpush.msra.mxu0 0.0
      %2590 = vmatpush.msra.mxu0 0.0
      %2591 = vmatpush.msra.mxu0 0.0
      %v2592 = vand.u32 %v206, 4294901760
      %2593 = vmatpush.msra.mxu0 %v2592
      %v2594 = vand.u32 %v205, 4294901760
      %2595 = vmatpush.msra.mxu0 %v2594
      %v2596 = vand.u32 %v204, 4294901760
      %2597 = vmatpush.msra.mxu0 %v2596
      %v2598 = vand.u32 %v203, 4294901760
      %2599 = vmatpush.msra.mxu0 %v2598
      %v2600 = vand.u32 %v1488, 4294901760
      %2601 = vmatmul.f32.gmra.mxu0 %v2600
      %v2602 = vpop.f32.mrf.mxu0
      %v2603 = vadd.f32 %v2454, %v2602
      %v2604 = vand.u32 %v1491, 4294901760
      %2605 = vmatmul.f32.gmra.mxu0 %v2604
      %v2606 = vpop.f32.mrf.mxu0
      %v2607 = vadd.f32 %v2458, %v2606
      %v2608 = vand.u32 %v1494, 4294901760
      %2609 = vmatmul.f32.gmra.mxu0 %v2608
      %v2610 = vpop.f32.mrf.mxu0
      %v2611 = vadd.f32 %v2462, %v2610
      %v2612 = vand.u32 %v1497, 4294901760
      %2613 = vmatmul.f32.gmra.mxu0 %v2612
      %v2614 = vpop.f32.mrf.mxu0
      %v2615 = vadd.f32 %v2466, %v2614
      %v2616 = vand.u32 %v1500, 4294901760
      %2617 = vmatmul.f32.gmra.mxu0 %v2616
      %v2618 = vpop.f32.mrf.mxu0
      %v2619 = vadd.f32 %v2470, %v2618
      %v2620 = vand.u32 %v1503, 4294901760
      %2621 = vmatmul.f32.gmra.mxu0 %v2620
      %v2622 = vpop.f32.mrf.mxu0
      %v2623 = vadd.f32 %v2474, %v2622
      %v2624 = vand.u32 %v1506, 4294901760
      %2625 = vmatmul.f32.gmra.mxu0 %v2624
      %v2626 = vpop.f32.mrf.mxu0
      %v2627 = vadd.f32 %v2478, %v2626
      %v2628 = vand.u32 %v1509, 4294901760
      %2629 = vmatmul.f32.gmra.mxu0 %v2628
      %v2630 = vpop.f32.mrf.mxu0
      %v2631 = vadd.f32 %v2482, %v2630
      %v2632 = vand.u32 %v1512, 4294901760
      %2633 = vmatmul.f32.gmra.mxu0 %v2632
      %v2634 = vpop.f32.mrf.mxu0
      %v2635 = vadd.f32 %v2486, %v2634
      %v2636 = vand.u32 %v1515, 4294901760
      %2637 = vmatmul.f32.gmra.mxu0 %v2636
      %v2638 = vpop.f32.mrf.mxu0
      %v2639 = vadd.f32 %v2490, %v2638
      %v2640 = vand.u32 %v1518, 4294901760
      %2641 = vmatmul.f32.gmra.mxu0 %v2640
      %v2642 = vpop.f32.mrf.mxu0
      %v2643 = vadd.f32 %v2494, %v2642
      %v2644 = vand.u32 %v1521, 4294901760
      %2645 = vmatmul.f32.gmra.mxu0 %v2644
      %v2646 = vpop.f32.mrf.mxu0
      %v2647 = vadd.f32 %v2498, %v2646
      %v2648 = vand.u32 %v1524, 4294901760
      %2649 = vmatmul.f32.gmra.mxu0 %v2648
      %v2650 = vpop.f32.mrf.mxu0
      %v2651 = vadd.f32 %v2502, %v2650
      %v2652 = vand.u32 %v1527, 4294901760
      %2653 = vmatmul.f32.gmra.mxu0 %v2652
      %v2654 = vpop.f32.mrf.mxu0
      %v2655 = vadd.f32 %v2506, %v2654
      %v2656 = vand.u32 %v1530, 4294901760
      %2657 = vmatmul.f32.gmra.mxu0 %v2656
      %v2658 = vpop.f32.mrf.mxu0
      %v2659 = vadd.f32 %v2510, %v2658
      %v2660 = vand.u32 %v1533, 4294901760
      %2661 = vmatmul.f32.gmra.mxu0 %v2660
      %v2662 = vpop.f32.mrf.mxu0
      %v2663 = vadd.f32 %v2514, %v2662
      %v2664 = vand.u32 %v1536, 4294901760
      %2665 = vmatmul.f32.gmra.mxu0 %v2664
      %v2666 = vpop.f32.mrf.mxu0
      %v2667 = vadd.f32 %v2518, %v2666
      %v2668 = vand.u32 %v1539, 4294901760
      %2669 = vmatmul.f32.gmra.mxu0 %v2668
      %v2670 = vpop.f32.mrf.mxu0
      %v2671 = vadd.f32 %v2522, %v2670
      %v2672 = vand.u32 %v1542, 4294901760
      %2673 = vmatmul.f32.gmra.mxu0 %v2672
      %v2674 = vpop.f32.mrf.mxu0
      %v2675 = vadd.f32 %v2526, %v2674
      %v2676 = vand.u32 %v1545, 4294901760
      %2677 = vmatmul.f32.gmra.mxu0 %v2676
      %v2678 = vpop.f32.mrf.mxu0
      %v2679 = vadd.f32 %v2530, %v2678
      %v2680 = vand.u32 %v1548, 4294901760
      %2681 = vmatmul.f32.gmra.mxu0 %v2680
      %v2682 = vpop.f32.mrf.mxu0
      %v2683 = vadd.f32 %v2534, %v2682
      %v2684 = vand.u32 %v1551, 4294901760
      %2685 = vmatmul.f32.gmra.mxu0 %v2684
      %v2686 = vpop.f32.mrf.mxu0
      %v2687 = vadd.f32 %v2538, %v2686
      %v2688 = vand.u32 %v1554, 4294901760
      %2689 = vmatmul.f32.gmra.mxu0 %v2688
      %v2690 = vpop.f32.mrf.mxu0
      %v2691 = vadd.f32 %v2542, %v2690
      %v2692 = vand.u32 %v1557, 4294901760
      %2693 = vmatmul.f32.gmra.mxu0 %v2692
      %v2694 = vpop.f32.mrf.mxu0
      %v2695 = vadd.f32 %v2546, %v2694
      %v2696 = vand.u32 %v1560, 4294901760
      %2697 = vmatmul.f32.gmra.mxu0 %v2696
      %v2698 = vpop.f32.mrf.mxu0
      %v2699 = vadd.f32 %v2550, %v2698
      %v2700 = vand.u32 %v1563, 4294901760
      %2701 = vmatmul.f32.gmra.mxu0 %v2700
      %v2702 = vpop.f32.mrf.mxu0
      %v2703 = vadd.f32 %v2554, %v2702
      %v2704 = vand.u32 %v1566, 4294901760
      %2705 = vmatmul.f32.gmra.mxu0 %v2704
      %v2706 = vpop.f32.mrf.mxu0
      %v2707 = vadd.f32 %v2558, %v2706
      %v2708 = vand.u32 %v1569, 4294901760
      %2709 = vmatmul.f32.gmra.mxu0 %v2708
      %v2710 = vpop.f32.mrf.mxu0
      %v2711 = vadd.f32 %v2562, %v2710
      %v2712 = vand.u32 %v1572, 4294901760
      %2713 = vmatmul.f32.gmra.mxu0 %v2712
      %v2714 = vpop.f32.mrf.mxu0
      %v2715 = vadd.f32 %v2566, %v2714
      %v2716 = vand.u32 %v1575, 4294901760
      %2717 = vmatmul.f32.gmra.mxu0 %v2716
      %v2718 = vpop.f32.mrf.mxu0
      %v2719 = vadd.f32 %v2570, %v2718
      %v2720 = vand.u32 %v1578, 4294901760
      %2721 = vmatmul.f32.gmra.mxu0 %v2720
      %v2722 = vpop.f32.mrf.mxu0
      %v2723 = vadd.f32 %v2574, %v2722
      %v2724 = vand.u32 %v1581, 4294901760
      %2725 = vmatmul.f32.gmra.mxu0 %v2724
      %v2726 = vpop.f32.mrf.mxu0
      %v2727 = vadd.f32 %v2578, %v2726
      %2728 = vdwg.mxu0
      %v2729 = vld [vmem:[%s165 + $0x2] sm:$0xff]
      %v2730 = vld [vmem:[%s165 + $0xa] sm:$0xff]
      %v2731 = vld [vmem:[%s165 + $0x1a] sm:$0xff]
      %v2732 = vld [vmem:[%s165 + $0x22] sm:$0xff]
      %v2733 = vld [vmem:[%s165 + $0x32] sm:$0xff]
      %v2734 = vld [vmem:[%s165 + $0x3a] sm:$0xff]
      %v2735 = vld [vmem:[%s165 + $0x4a] sm:$0xff]
      %v2736 = vld [vmem:[%s165 + $0x52] sm:$0xff]
      %v2737 = vld [vmem:[%s165 + $0x62] sm:$0xff]
      %v2738 = vld [vmem:[%s165 + $0x6a] sm:$0xff]
      %v2739 = vld [vmem:[%s165 + $0x7a] sm:$0xff]
      %v2740 = vld [vmem:[%s165 + $0x82] sm:$0xff]
      %v2741 = vld [vmem:[%s165 + $0x92] sm:$0xff]
      %v2742 = vld [vmem:[%s165 + $0x9a] sm:$0xff]
      %v2743 = vld [vmem:[%s165 + $0xaa] sm:$0xff]
      %v2744 = vld [vmem:[%s165 + $0xb2] sm:$0xff]
      %v2745 = vld [vmem:[%s165 + $0xc2] sm:$0xff]
      %v2746 = vld [vmem:[%s165 + $0xca] sm:$0xff]
      %v2747 = vld [vmem:[%s165 + $0xda] sm:$0xff]
      %v2748 = vld [vmem:[%s165 + $0xe2] sm:$0xff]
      %v2749 = vld [vmem:[%s165 + $0xf2] sm:$0xff]
      %v2750 = vld [vmem:[%s165 + $0xfa] sm:$0xff]
      %v2751 = vld [vmem:[%s165 + $0x10a] sm:$0xff]
      %v2752 = vld [vmem:[%s165 + $0x112] sm:$0xff]
      %v2753 = vld [vmem:[%s165 + $0x122] sm:$0xff]
      %v2754 = vld [vmem:[%s165 + $0x12a] sm:$0xff]
      %v2755 = vld [vmem:[%s165 + $0x13a] sm:$0xff]
      %v2756 = vld [vmem:[%s165 + $0x142] sm:$0xff]
      %v2757 = vld [vmem:[%s165 + $0x152] sm:$0xff]
      %v2758 = vld [vmem:[%s165 + $0x15a] sm:$0xff]
      %v2759 = vld [vmem:[%s165 + $0x16a] sm:$0xff]
      %v2760 = vld [vmem:[%s165 + $0x172] sm:$0xff]
      %s2761 = scalar_lea.vmem %s1, 64
      %v2762 = vld [vmem:[%s2761] sm:$0xff]
      %v2763 = vld [vmem:[%s2761 + $0x8] sm:$0xff]
      %v2764 = vld [vmem:[%s2761 + $0x10] sm:$0xff]
      %v2765 = vld [vmem:[%s2761 + $0x18] sm:$0xff]
      %v2767 = vsel %vm244, %v2729, 0
      %v2770 = vsel %vm244, %v2730, 0
      %v2773 = vsel %vm244, %v2731, 0
      %v2776 = vsel %vm244, %v2732, 0
      %v2779 = vsel %vm244, %v2733, 0
      %v2782 = vsel %vm244, %v2734, 0
      %v2785 = vsel %vm244, %v2735, 0
      %v2788 = vsel %vm244, %v2736, 0
      %v2791 = vsel %vm244, %v2737, 0
      %v2794 = vsel %vm244, %v2738, 0
      %v2797 = vsel %vm244, %v2739, 0
      %v2800 = vsel %vm244, %v2740, 0
      %v2803 = vsel %vm244, %v2741, 0
      %v2806 = vsel %vm244, %v2742, 0
      %v2809 = vsel %vm244, %v2743, 0
      %v2812 = vsel %vm244, %v2744, 0
      %v2815 = vsel %vm244, %v2745, 0
      %v2818 = vsel %vm244, %v2746, 0
      %v2821 = vsel %vm244, %v2747, 0
      %v2824 = vsel %vm244, %v2748, 0
      %v2827 = vsel %vm244, %v2749, 0
      %v2830 = vsel %vm244, %v2750, 0
      %v2833 = vsel %vm244, %v2751, 0
      %v2836 = vsel %vm244, %v2752, 0
      %v2839 = vsel %vm244, %v2753, 0
      %v2842 = vsel %vm244, %v2754, 0
      %v2845 = vsel %vm244, %v2755, 0
      %v2848 = vsel %vm244, %v2756, 0
      %v2851 = vsel %vm244, %v2757, 0
      %v2854 = vsel %vm244, %v2758, 0
      %v2857 = vsel %vm244, %v2759, 0
      %v2860 = vsel %vm244, %v2760, 0
      %2862 = vmatpush.msra.mxu0 0.0
      %2863 = vmatpush.msra.mxu0 0.0
      %2864 = vmatpush.msra.mxu0 0.0
      %2865 = vmatpush.msra.mxu0 0.0
      %2866 = vmatpush.msra.mxu0 0.0
      %2867 = vmatpush.msra.mxu0 0.0
      %2868 = vmatpush.msra.mxu0 0.0
      %2869 = vmatpush.msra.mxu0 0.0
      %2870 = vmatpush.msra.mxu0 0.0
      %2871 = vmatpush.msra.mxu0 0.0
      %2872 = vmatpush.msra.mxu0 0.0
      %2873 = vmatpush.msra.mxu0 0.0
      %v2874 = vand.u32 %v2765, 4294901760
      %2875 = vmatpush.msra.mxu0 %v2874
      %v2876 = vand.u32 %v2764, 4294901760
      %2877 = vmatpush.msra.mxu0 %v2876
      %v2878 = vand.u32 %v2763, 4294901760
      %2879 = vmatpush.msra.mxu0 %v2878
      %v2880 = vand.u32 %v2762, 4294901760
      %2881 = vmatpush.msra.mxu0 %v2880
      %v2882 = vand.u32 %v2767, 4294901760
      %v2883 = vsub.f32 %v2767, %v2882
      %v2884 = vand.u32 %v2883, 4294901760
      %v2885 = vsub.f32 %v2883, %v2884
      %v2886 = vand.u32 %v2885, 4294901760
      %2887 = vmatmul.f32.gmra.mxu0 %v2886
      %v2888 = vpop.f32.mrf.mxu0
      %v2889 = vadd.f32 0.0, %v2888
      %v2890 = vand.u32 %v2770, 4294901760
      %v2891 = vsub.f32 %v2770, %v2890
      %v2892 = vand.u32 %v2891, 4294901760
      %v2893 = vsub.f32 %v2891, %v2892
      %v2894 = vand.u32 %v2893, 4294901760
      %2895 = vmatmul.f32.gmra.mxu0 %v2894
      %v2896 = vpop.f32.mrf.mxu0
      %v2897 = vadd.f32 0.0, %v2896
      %v2898 = vand.u32 %v2773, 4294901760
      %v2899 = vsub.f32 %v2773, %v2898
      %v2900 = vand.u32 %v2899, 4294901760
      %v2901 = vsub.f32 %v2899, %v2900
      %v2902 = vand.u32 %v2901, 4294901760
      %2903 = vmatmul.f32.gmra.mxu0 %v2902
      %v2904 = vpop.f32.mrf.mxu0
      %v2905 = vadd.f32 0.0, %v2904
      %v2906 = vand.u32 %v2776, 4294901760
      %v2907 = vsub.f32 %v2776, %v2906
      %v2908 = vand.u32 %v2907, 4294901760
      %v2909 = vsub.f32 %v2907, %v2908
      %v2910 = vand.u32 %v2909, 4294901760
      %2911 = vmatmul.f32.gmra.mxu0 %v2910
      %v2912 = vpop.f32.mrf.mxu0
      %v2913 = vadd.f32 0.0, %v2912
      %v2914 = vand.u32 %v2779, 4294901760
      %v2915 = vsub.f32 %v2779, %v2914
      %v2916 = vand.u32 %v2915, 4294901760
      %v2917 = vsub.f32 %v2915, %v2916
      %v2918 = vand.u32 %v2917, 4294901760
      %2919 = vmatmul.f32.gmra.mxu0 %v2918
      %v2920 = vpop.f32.mrf.mxu0
      %v2921 = vadd.f32 0.0, %v2920
      %v2922 = vand.u32 %v2782, 4294901760
      %v2923 = vsub.f32 %v2782, %v2922
      %v2924 = vand.u32 %v2923, 4294901760
      %v2925 = vsub.f32 %v2923, %v2924
      %v2926 = vand.u32 %v2925, 4294901760
      %2927 = vmatmul.f32.gmra.mxu0 %v2926
      %v2928 = vpop.f32.mrf.mxu0
      %v2929 = vadd.f32 0.0, %v2928
      %v2930 = vand.u32 %v2785, 4294901760
      %v2931 = vsub.f32 %v2785, %v2930
      %v2932 = vand.u32 %v2931, 4294901760
      %v2933 = vsub.f32 %v2931, %v2932
      %v2934 = vand.u32 %v2933, 4294901760
      %2935 = vmatmul.f32.gmra.mxu0 %v2934
      %v2936 = vpop.f32.mrf.mxu0
      %v2937 = vadd.f32 0.0, %v2936
      %v2938 = vand.u32 %v2788, 4294901760
      %v2939 = vsub.f32 %v2788, %v2938
      %v2940 = vand.u32 %v2939, 4294901760
      %v2941 = vsub.f32 %v2939, %v2940
      %v2942 = vand.u32 %v2941, 4294901760
      %2943 = vmatmul.f32.gmra.mxu0 %v2942
      %v2944 = vpop.f32.mrf.mxu0
      %v2945 = vadd.f32 0.0, %v2944
      %v2946 = vand.u32 %v2791, 4294901760
      %v2947 = vsub.f32 %v2791, %v2946
      %v2948 = vand.u32 %v2947, 4294901760
      %v2949 = vsub.f32 %v2947, %v2948
      %v2950 = vand.u32 %v2949, 4294901760
      %2951 = vmatmul.f32.gmra.mxu0 %v2950
      %v2952 = vpop.f32.mrf.mxu0
      %v2953 = vadd.f32 0.0, %v2952
      %v2954 = vand.u32 %v2794, 4294901760
      %v2955 = vsub.f32 %v2794, %v2954
      %v2956 = vand.u32 %v2955, 4294901760
      %v2957 = vsub.f32 %v2955, %v2956
      %v2958 = vand.u32 %v2957, 4294901760
      %2959 = vmatmul.f32.gmra.mxu0 %v2958
      %v2960 = vpop.f32.mrf.mxu0
      %v2961 = vadd.f32 0.0, %v2960
      %v2962 = vand.u32 %v2797, 4294901760
      %v2963 = vsub.f32 %v2797, %v2962
      %v2964 = vand.u32 %v2963, 4294901760
      %v2965 = vsub.f32 %v2963, %v2964
      %v2966 = vand.u32 %v2965, 4294901760
      %2967 = vmatmul.f32.gmra.mxu0 %v2966
      %v2968 = vpop.f32.mrf.mxu0
      %v2969 = vadd.f32 0.0, %v2968
      %v2970 = vand.u32 %v2800, 4294901760
      %v2971 = vsub.f32 %v2800, %v2970
      %v2972 = vand.u32 %v2971, 4294901760
      %v2973 = vsub.f32 %v2971, %v2972
      %v2974 = vand.u32 %v2973, 4294901760
      %2975 = vmatmul.f32.gmra.mxu0 %v2974
      %v2976 = vpop.f32.mrf.mxu0
      %v2977 = vadd.f32 0.0, %v2976
      %v2978 = vand.u32 %v2803, 4294901760
      %v2979 = vsub.f32 %v2803, %v2978
      %v2980 = vand.u32 %v2979, 4294901760
      %v2981 = vsub.f32 %v2979, %v2980
      %v2982 = vand.u32 %v2981, 4294901760
      %2983 = vmatmul.f32.gmra.mxu0 %v2982
      %v2984 = vpop.f32.mrf.mxu0
      %v2985 = vadd.f32 0.0, %v2984
      %v2986 = vand.u32 %v2806, 4294901760
      %v2987 = vsub.f32 %v2806, %v2986
      %v2988 = vand.u32 %v2987, 4294901760
      %v2989 = vsub.f32 %v2987, %v2988
      %v2990 = vand.u32 %v2989, 4294901760
      %2991 = vmatmul.f32.gmra.mxu0 %v2990
      %v2992 = vpop.f32.mrf.mxu0
      %v2993 = vadd.f32 0.0, %v2992
      %v2994 = vand.u32 %v2809, 4294901760
      %v2995 = vsub.f32 %v2809, %v2994
      %v2996 = vand.u32 %v2995, 4294901760
      %v2997 = vsub.f32 %v2995, %v2996
      %v2998 = vand.u32 %v2997, 4294901760
      %2999 = vmatmul.f32.gmra.mxu0 %v2998
      %v3000 = vpop.f32.mrf.mxu0
      %v3001 = vadd.f32 0.0, %v3000
      %v3002 = vand.u32 %v2812, 4294901760
      %v3003 = vsub.f32 %v2812, %v3002
      %v3004 = vand.u32 %v3003, 4294901760
      %v3005 = vsub.f32 %v3003, %v3004
      %v3006 = vand.u32 %v3005, 4294901760
      %3007 = vmatmul.f32.gmra.mxu0 %v3006
      %v3008 = vpop.f32.mrf.mxu0
      %v3009 = vadd.f32 0.0, %v3008
      %v3010 = vand.u32 %v2815, 4294901760
      %v3011 = vsub.f32 %v2815, %v3010
      %v3012 = vand.u32 %v3011, 4294901760
      %v3013 = vsub.f32 %v3011, %v3012
      %v3014 = vand.u32 %v3013, 4294901760
      %3015 = vmatmul.f32.gmra.mxu0 %v3014
      %v3016 = vpop.f32.mrf.mxu0
      %v3017 = vadd.f32 0.0, %v3016
      %v3018 = vand.u32 %v2818, 4294901760
      %v3019 = vsub.f32 %v2818, %v3018
      %v3020 = vand.u32 %v3019, 4294901760
      %v3021 = vsub.f32 %v3019, %v3020
      %v3022 = vand.u32 %v3021, 4294901760
      %3023 = vmatmul.f32.gmra.mxu0 %v3022
      %v3024 = vpop.f32.mrf.mxu0
      %v3025 = vadd.f32 0.0, %v3024
      %v3026 = vand.u32 %v2821, 4294901760
      %v3027 = vsub.f32 %v2821, %v3026
      %v3028 = vand.u32 %v3027, 4294901760
      %v3029 = vsub.f32 %v3027, %v3028
      %v3030 = vand.u32 %v3029, 4294901760
      %3031 = vmatmul.f32.gmra.mxu0 %v3030
      %v3032 = vpop.f32.mrf.mxu0
      %v3033 = vadd.f32 0.0, %v3032
      %v3034 = vand.u32 %v2824, 4294901760
      %v3035 = vsub.f32 %v2824, %v3034
      %v3036 = vand.u32 %v3035, 4294901760
      %v3037 = vsub.f32 %v3035, %v3036
      %v3038 = vand.u32 %v3037, 4294901760
      %3039 = vmatmul.f32.gmra.mxu0 %v3038
      %v3040 = vpop.f32.mrf.mxu0
      %v3041 = vadd.f32 0.0, %v3040
      %v3042 = vand.u32 %v2827, 4294901760
      %v3043 = vsub.f32 %v2827, %v3042
      %v3044 = vand.u32 %v3043, 4294901760
      %v3045 = vsub.f32 %v3043, %v3044
      %v3046 = vand.u32 %v3045, 4294901760
      %3047 = vmatmul.f32.gmra.mxu0 %v3046
      %v3048 = vpop.f32.mrf.mxu0
      %v3049 = vadd.f32 0.0, %v3048
      %v3050 = vand.u32 %v2830, 4294901760
      %v3051 = vsub.f32 %v2830, %v3050
      %v3052 = vand.u32 %v3051, 4294901760
      %v3053 = vsub.f32 %v3051, %v3052
      %v3054 = vand.u32 %v3053, 4294901760
      %3055 = vmatmul.f32.gmra.mxu0 %v3054
      %v3056 = vpop.f32.mrf.mxu0
      %v3057 = vadd.f32 0.0, %v3056
      %v3058 = vand.u32 %v2833, 4294901760
      %v3059 = vsub.f32 %v2833, %v3058
      %v3060 = vand.u32 %v3059, 4294901760
      %v3061 = vsub.f32 %v3059, %v3060
      %v3062 = vand.u32 %v3061, 4294901760
      %3063 = vmatmul.f32.gmra.mxu0 %v3062
      %v3064 = vpop.f32.mrf.mxu0
      %v3065 = vadd.f32 0.0, %v3064
      %v3066 = vand.u32 %v2836, 4294901760
      %v3067 = vsub.f32 %v2836, %v3066
      %v3068 = vand.u32 %v3067, 4294901760
      %v3069 = vsub.f32 %v3067, %v3068
      %v3070 = vand.u32 %v3069, 4294901760
      %3071 = vmatmul.f32.gmra.mxu0 %v3070
      %v3072 = vpop.f32.mrf.mxu0
      %v3073 = vadd.f32 0.0, %v3072
      %v3074 = vand.u32 %v2839, 4294901760
      %v3075 = vsub.f32 %v2839, %v3074
      %v3076 = vand.u32 %v3075, 4294901760
      %v3077 = vsub.f32 %v3075, %v3076
      %v3078 = vand.u32 %v3077, 4294901760
      %3079 = vmatmul.f32.gmra.mxu0 %v3078
      %v3080 = vpop.f32.mrf.mxu0
      %v3081 = vadd.f32 0.0, %v3080
      %v3082 = vand.u32 %v2842, 4294901760
      %v3083 = vsub.f32 %v2842, %v3082
      %v3084 = vand.u32 %v3083, 4294901760
      %v3085 = vsub.f32 %v3083, %v3084
      %v3086 = vand.u32 %v3085, 4294901760
      %3087 = vmatmul.f32.gmra.mxu0 %v3086
      %v3088 = vpop.f32.mrf.mxu0
      %v3089 = vadd.f32 0.0, %v3088
      %v3090 = vand.u32 %v2845, 4294901760
      %v3091 = vsub.f32 %v2845, %v3090
      %v3092 = vand.u32 %v3091, 4294901760
      %v3093 = vsub.f32 %v3091, %v3092
      %v3094 = vand.u32 %v3093, 4294901760
      %3095 = vmatmul.f32.gmra.mxu0 %v3094
      %v3096 = vpop.f32.mrf.mxu0
      %v3097 = vadd.f32 0.0, %v3096
      %v3098 = vand.u32 %v2848, 4294901760
      %v3099 = vsub.f32 %v2848, %v3098
      %v3100 = vand.u32 %v3099, 4294901760
      %v3101 = vsub.f32 %v3099, %v3100
      %v3102 = vand.u32 %v3101, 4294901760
      %3103 = vmatmul.f32.gmra.mxu0 %v3102
      %v3104 = vpop.f32.mrf.mxu0
      %v3105 = vadd.f32 0.0, %v3104
      %v3106 = vand.u32 %v2851, 4294901760
      %v3107 = vsub.f32 %v2851, %v3106
      %v3108 = vand.u32 %v3107, 4294901760
      %v3109 = vsub.f32 %v3107, %v3108
      %v3110 = vand.u32 %v3109, 4294901760
      %3111 = vmatmul.f32.gmra.mxu0 %v3110
      %v3112 = vpop.f32.mrf.mxu0
      %v3113 = vadd.f32 0.0, %v3112
      %v3114 = vand.u32 %v2854, 4294901760
      %v3115 = vsub.f32 %v2854, %v3114
      %v3116 = vand.u32 %v3115, 4294901760
      %v3117 = vsub.f32 %v3115, %v3116
      %v3118 = vand.u32 %v3117, 4294901760
      %3119 = vmatmul.f32.gmra.mxu0 %v3118
      %v3120 = vpop.f32.mrf.mxu0
      %v3121 = vadd.f32 0.0, %v3120
      %v3122 = vand.u32 %v2857, 4294901760
      %v3123 = vsub.f32 %v2857, %v3122
      %v3124 = vand.u32 %v3123, 4294901760
      %v3125 = vsub.f32 %v3123, %v3124
      %v3126 = vand.u32 %v3125, 4294901760
      %3127 = vmatmul.f32.gmra.mxu0 %v3126
      %v3128 = vpop.f32.mrf.mxu0
      %v3129 = vadd.f32 0.0, %v3128
      %v3130 = vand.u32 %v2860, 4294901760
      %v3131 = vsub.f32 %v2860, %v3130
      %v3132 = vand.u32 %v3131, 4294901760
      %v3133 = vsub.f32 %v3131, %v3132
      %v3134 = vand.u32 %v3133, 4294901760
      %3135 = vmatmul.f32.gmra.mxu0 %v3134
      %v3136 = vpop.f32.mrf.mxu0
      %v3137 = vadd.f32 0.0, %v3136
      %3138 = vdwg.mxu0
      %3139 = vmatpush.msra.mxu0 0.0
      %3140 = vmatpush.msra.mxu0 0.0
      %3141 = vmatpush.msra.mxu0 0.0
      %3142 = vmatpush.msra.mxu0 0.0
      %3143 = vmatpush.msra.mxu0 0.0
      %3144 = vmatpush.msra.mxu0 0.0
      %3145 = vmatpush.msra.mxu0 0.0
      %3146 = vmatpush.msra.mxu0 0.0
      %3147 = vmatpush.msra.mxu0 0.0
      %3148 = vmatpush.msra.mxu0 0.0
      %3149 = vmatpush.msra.mxu0 0.0
      %3150 = vmatpush.msra.mxu0 0.0
      %v3151 = vand.u32 %v2765, 4294901760
      %v3152 = vsub.f32 %v2765, %v3151
      %v3153 = vand.u32 %v3152, 4294901760
      %v3154 = vsub.f32 %v3152, %v3153
      %v3155 = vand.u32 %v3154, 4294901760
      %3156 = vmatpush.msra.mxu0 %v3155
      %v3157 = vand.u32 %v2764, 4294901760
      %v3158 = vsub.f32 %v2764, %v3157
      %v3159 = vand.u32 %v3158, 4294901760
      %v3160 = vsub.f32 %v3158, %v3159
      %v3161 = vand.u32 %v3160, 4294901760
      %3162 = vmatpush.msra.mxu0 %v3161
      %v3163 = vand.u32 %v2763, 4294901760
      %v3164 = vsub.f32 %v2763, %v3163
      %v3165 = vand.u32 %v3164, 4294901760
      %v3166 = vsub.f32 %v3164, %v3165
      %v3167 = vand.u32 %v3166, 4294901760
      %3168 = vmatpush.msra.mxu0 %v3167
      %v3169 = vand.u32 %v2762, 4294901760
      %v3170 = vsub.f32 %v2762, %v3169
      %v3171 = vand.u32 %v3170, 4294901760
      %v3172 = vsub.f32 %v3170, %v3171
      %v3173 = vand.u32 %v3172, 4294901760
      %3174 = vmatpush.msra.mxu0 %v3173
      %v3175 = vand.u32 %v2767, 4294901760
      %3176 = vmatmul.f32.gmra.mxu0 %v3175
      %v3177 = vpop.f32.mrf.mxu0
      %v3178 = vadd.f32 %v2889, %v3177
      %v3179 = vand.u32 %v2770, 4294901760
      %3180 = vmatmul.f32.gmra.mxu0 %v3179
      %v3181 = vpop.f32.mrf.mxu0
      %v3182 = vadd.f32 %v2897, %v3181
      %v3183 = vand.u32 %v2773, 4294901760
      %3184 = vmatmul.f32.gmra.mxu0 %v3183
      %v3185 = vpop.f32.mrf.mxu0
      %v3186 = vadd.f32 %v2905, %v3185
      %v3187 = vand.u32 %v2776, 4294901760
      %3188 = vmatmul.f32.gmra.mxu0 %v3187
      %v3189 = vpop.f32.mrf.mxu0
      %v3190 = vadd.f32 %v2913, %v3189
      %v3191 = vand.u32 %v2779, 4294901760
      %3192 = vmatmul.f32.gmra.mxu0 %v3191
      %v3193 = vpop.f32.mrf.mxu0
      %v3194 = vadd.f32 %v2921, %v3193
      %v3195 = vand.u32 %v2782, 4294901760
      %3196 = vmatmul.f32.gmra.mxu0 %v3195
      %v3197 = vpop.f32.mrf.mxu0
      %v3198 = vadd.f32 %v2929, %v3197
      %v3199 = vand.u32 %v2785, 4294901760
      %3200 = vmatmul.f32.gmra.mxu0 %v3199
      %v3201 = vpop.f32.mrf.mxu0
      %v3202 = vadd.f32 %v2937, %v3201
      %v3203 = vand.u32 %v2788, 4294901760
      %3204 = vmatmul.f32.gmra.mxu0 %v3203
      %v3205 = vpop.f32.mrf.mxu0
      %v3206 = vadd.f32 %v2945, %v3205
      %v3207 = vand.u32 %v2791, 4294901760
      %3208 = vmatmul.f32.gmra.mxu0 %v3207
      %v3209 = vpop.f32.mrf.mxu0
      %v3210 = vadd.f32 %v2953, %v3209
      %v3211 = vand.u32 %v2794, 4294901760
      %3212 = vmatmul.f32.gmra.mxu0 %v3211
      %v3213 = vpop.f32.mrf.mxu0
      %v3214 = vadd.f32 %v2961, %v3213
      %v3215 = vand.u32 %v2797, 4294901760
      %3216 = vmatmul.f32.gmra.mxu0 %v3215
      %v3217 = vpop.f32.mrf.mxu0
      %v3218 = vadd.f32 %v2969, %v3217
      %v3219 = vand.u32 %v2800, 4294901760
      %3220 = vmatmul.f32.gmra.mxu0 %v3219
      %v3221 = vpop.f32.mrf.mxu0
      %v3222 = vadd.f32 %v2977, %v3221
      %v3223 = vand.u32 %v2803, 4294901760
      %3224 = vmatmul.f32.gmra.mxu0 %v3223
      %v3225 = vpop.f32.mrf.mxu0
      %v3226 = vadd.f32 %v2985, %v3225
      %v3227 = vand.u32 %v2806, 4294901760
      %3228 = vmatmul.f32.gmra.mxu0 %v3227
      %v3229 = vpop.f32.mrf.mxu0
      %v3230 = vadd.f32 %v2993, %v3229
      %v3231 = vand.u32 %v2809, 4294901760
      %3232 = vmatmul.f32.gmra.mxu0 %v3231
      %v3233 = vpop.f32.mrf.mxu0
      %v3234 = vadd.f32 %v3001, %v3233
      %v3235 = vand.u32 %v2812, 4294901760
      %3236 = vmatmul.f32.gmra.mxu0 %v3235
      %v3237 = vpop.f32.mrf.mxu0
      %v3238 = vadd.f32 %v3009, %v3237
      %v3239 = vand.u32 %v2815, 4294901760
      %3240 = vmatmul.f32.gmra.mxu0 %v3239
      %v3241 = vpop.f32.mrf.mxu0
      %v3242 = vadd.f32 %v3017, %v3241
      %v3243 = vand.u32 %v2818, 4294901760
      %3244 = vmatmul.f32.gmra.mxu0 %v3243
      %v3245 = vpop.f32.mrf.mxu0
      %v3246 = vadd.f32 %v3025, %v3245
      %v3247 = vand.u32 %v2821, 4294901760
      %3248 = vmatmul.f32.gmra.mxu0 %v3247
      %v3249 = vpop.f32.mrf.mxu0
      %v3250 = vadd.f32 %v3033, %v3249
      %v3251 = vand.u32 %v2824, 4294901760
      %3252 = vmatmul.f32.gmra.mxu0 %v3251
      %v3253 = vpop.f32.mrf.mxu0
      %v3254 = vadd.f32 %v3041, %v3253
      %v3255 = vand.u32 %v2827, 4294901760
      %3256 = vmatmul.f32.gmra.mxu0 %v3255
      %v3257 = vpop.f32.mrf.mxu0
      %v3258 = vadd.f32 %v3049, %v3257
      %v3259 = vand.u32 %v2830, 4294901760
      %3260 = vmatmul.f32.gmra.mxu0 %v3259
      %v3261 = vpop.f32.mrf.mxu0
      %v3262 = vadd.f32 %v3057, %v3261
      %v3263 = vand.u32 %v2833, 4294901760
      %3264 = vmatmul.f32.gmra.mxu0 %v3263
      %v3265 = vpop.f32.mrf.mxu0
      %v3266 = vadd.f32 %v3065, %v3265
      %v3267 = vand.u32 %v2836, 4294901760
      %3268 = vmatmul.f32.gmra.mxu0 %v3267
      %v3269 = vpop.f32.mrf.mxu0
      %v3270 = vadd.f32 %v3073, %v3269
      %v3271 = vand.u32 %v2839, 4294901760
      %3272 = vmatmul.f32.gmra.mxu0 %v3271
      %v3273 = vpop.f32.mrf.mxu0
      %v3274 = vadd.f32 %v3081, %v3273
      %v3275 = vand.u32 %v2842, 4294901760
      %3276 = vmatmul.f32.gmra.mxu0 %v3275
      %v3277 = vpop.f32.mrf.mxu0
      %v3278 = vadd.f32 %v3089, %v3277
      %v3279 = vand.u32 %v2845, 4294901760
      %3280 = vmatmul.f32.gmra.mxu0 %v3279
      %v3281 = vpop.f32.mrf.mxu0
      %v3282 = vadd.f32 %v3097, %v3281
      %v3283 = vand.u32 %v2848, 4294901760
      %3284 = vmatmul.f32.gmra.mxu0 %v3283
      %v3285 = vpop.f32.mrf.mxu0
      %v3286 = vadd.f32 %v3105, %v3285
      %v3287 = vand.u32 %v2851, 4294901760
      %3288 = vmatmul.f32.gmra.mxu0 %v3287
      %v3289 = vpop.f32.mrf.mxu0
      %v3290 = vadd.f32 %v3113, %v3289
      %v3291 = vand.u32 %v2854, 4294901760
      %3292 = vmatmul.f32.gmra.mxu0 %v3291
      %v3293 = vpop.f32.mrf.mxu0
      %v3294 = vadd.f32 %v3121, %v3293
      %v3295 = vand.u32 %v2857, 4294901760
      %3296 = vmatmul.f32.gmra.mxu0 %v3295
      %v3297 = vpop.f32.mrf.mxu0
      %v3298 = vadd.f32 %v3129, %v3297
      %v3299 = vand.u32 %v2860, 4294901760
      %3300 = vmatmul.f32.gmra.mxu0 %v3299
      %v3301 = vpop.f32.mrf.mxu0
      %v3302 = vadd.f32 %v3137, %v3301
      %3303 = vdwg.mxu0
      %3304 = vmatpush.msra.mxu0 0.0
      %3305 = vmatpush.msra.mxu0 0.0
      %3306 = vmatpush.msra.mxu0 0.0
      %3307 = vmatpush.msra.mxu0 0.0
      %3308 = vmatpush.msra.mxu0 0.0
      %3309 = vmatpush.msra.mxu0 0.0
      %3310 = vmatpush.msra.mxu0 0.0
      %3311 = vmatpush.msra.mxu0 0.0
      %3312 = vmatpush.msra.mxu0 0.0
      %3313 = vmatpush.msra.mxu0 0.0
      %3314 = vmatpush.msra.mxu0 0.0
      %3315 = vmatpush.msra.mxu0 0.0
      %v3316 = vand.u32 %v2765, 4294901760
      %v3317 = vsub.f32 %v2765, %v3316
      %3318 = vmatpush.msra.mxu0 %v3317
      %v3319 = vand.u32 %v2764, 4294901760
      %v3320 = vsub.f32 %v2764, %v3319
      %3321 = vmatpush.msra.mxu0 %v3320
      %v3322 = vand.u32 %v2763, 4294901760
      %v3323 = vsub.f32 %v2763, %v3322
      %3324 = vmatpush.msra.mxu0 %v3323
      %v3325 = vand.u32 %v2762, 4294901760
      %v3326 = vsub.f32 %v2762, %v3325
      %3327 = vmatpush.msra.mxu0 %v3326
      %v3328 = vand.u32 %v2767, 4294901760
      %v3329 = vsub.f32 %v2767, %v3328
      %3330 = vmatmul.f32.gmra.mxu0 %v3329
      %v3331 = vpop.f32.mrf.mxu0
      %v3332 = vadd.f32 %v3178, %v3331
      %v3333 = vand.u32 %v2770, 4294901760
      %v3334 = vsub.f32 %v2770, %v3333
      %3335 = vmatmul.f32.gmra.mxu0 %v3334
      %v3336 = vpop.f32.mrf.mxu0
      %v3337 = vadd.f32 %v3182, %v3336
      %v3338 = vand.u32 %v2773, 4294901760
      %v3339 = vsub.f32 %v2773, %v3338
      %3340 = vmatmul.f32.gmra.mxu0 %v3339
      %v3341 = vpop.f32.mrf.mxu0
      %v3342 = vadd.f32 %v3186, %v3341
      %v3343 = vand.u32 %v2776, 4294901760
      %v3344 = vsub.f32 %v2776, %v3343
      %3345 = vmatmul.f32.gmra.mxu0 %v3344
      %v3346 = vpop.f32.mrf.mxu0
      %v3347 = vadd.f32 %v3190, %v3346
      %v3348 = vand.u32 %v2779, 4294901760
      %v3349 = vsub.f32 %v2779, %v3348
      %3350 = vmatmul.f32.gmra.mxu0 %v3349
      %v3351 = vpop.f32.mrf.mxu0
      %v3352 = vadd.f32 %v3194, %v3351
      %v3353 = vand.u32 %v2782, 4294901760
      %v3354 = vsub.f32 %v2782, %v3353
      %3355 = vmatmul.f32.gmra.mxu0 %v3354
      %v3356 = vpop.f32.mrf.mxu0
      %v3357 = vadd.f32 %v3198, %v3356
      %v3358 = vand.u32 %v2785, 4294901760
      %v3359 = vsub.f32 %v2785, %v3358
      %3360 = vmatmul.f32.gmra.mxu0 %v3359
      %v3361 = vpop.f32.mrf.mxu0
      %v3362 = vadd.f32 %v3202, %v3361
      %v3363 = vand.u32 %v2788, 4294901760
      %v3364 = vsub.f32 %v2788, %v3363
      %3365 = vmatmul.f32.gmra.mxu0 %v3364
      %v3366 = vpop.f32.mrf.mxu0
      %v3367 = vadd.f32 %v3206, %v3366
      %v3368 = vand.u32 %v2791, 4294901760
      %v3369 = vsub.f32 %v2791, %v3368
      %3370 = vmatmul.f32.gmra.mxu0 %v3369
      %v3371 = vpop.f32.mrf.mxu0
      %v3372 = vadd.f32 %v3210, %v3371
      %v3373 = vand.u32 %v2794, 4294901760
      %v3374 = vsub.f32 %v2794, %v3373
      %3375 = vmatmul.f32.gmra.mxu0 %v3374
      %v3376 = vpop.f32.mrf.mxu0
      %v3377 = vadd.f32 %v3214, %v3376
      %v3378 = vand.u32 %v2797, 4294901760
      %v3379 = vsub.f32 %v2797, %v3378
      %3380 = vmatmul.f32.gmra.mxu0 %v3379
      %v3381 = vpop.f32.mrf.mxu0
      %v3382 = vadd.f32 %v3218, %v3381
      %v3383 = vand.u32 %v2800, 4294901760
      %v3384 = vsub.f32 %v2800, %v3383
      %3385 = vmatmul.f32.gmra.mxu0 %v3384
      %v3386 = vpop.f32.mrf.mxu0
      %v3387 = vadd.f32 %v3222, %v3386
      %v3388 = vand.u32 %v2803, 4294901760
      %v3389 = vsub.f32 %v2803, %v3388
      %3390 = vmatmul.f32.gmra.mxu0 %v3389
      %v3391 = vpop.f32.mrf.mxu0
      %v3392 = vadd.f32 %v3226, %v3391
      %v3393 = vand.u32 %v2806, 4294901760
      %v3394 = vsub.f32 %v2806, %v3393
      %3395 = vmatmul.f32.gmra.mxu0 %v3394
      %v3396 = vpop.f32.mrf.mxu0
      %v3397 = vadd.f32 %v3230, %v3396
      %v3398 = vand.u32 %v2809, 4294901760
      %v3399 = vsub.f32 %v2809, %v3398
      %3400 = vmatmul.f32.gmra.mxu0 %v3399
      %v3401 = vpop.f32.mrf.mxu0
      %v3402 = vadd.f32 %v3234, %v3401
      %v3403 = vand.u32 %v2812, 4294901760
      %v3404 = vsub.f32 %v2812, %v3403
      %3405 = vmatmul.f32.gmra.mxu0 %v3404
      %v3406 = vpop.f32.mrf.mxu0
      %v3407 = vadd.f32 %v3238, %v3406
      %v3408 = vand.u32 %v2815, 4294901760
      %v3409 = vsub.f32 %v2815, %v3408
      %3410 = vmatmul.f32.gmra.mxu0 %v3409
      %v3411 = vpop.f32.mrf.mxu0
      %v3412 = vadd.f32 %v3242, %v3411
      %v3413 = vand.u32 %v2818, 4294901760
      %v3414 = vsub.f32 %v2818, %v3413
      %3415 = vmatmul.f32.gmra.mxu0 %v3414
      %v3416 = vpop.f32.mrf.mxu0
      %v3417 = vadd.f32 %v3246, %v3416
      %v3418 = vand.u32 %v2821, 4294901760
      %v3419 = vsub.f32 %v2821, %v3418
      %3420 = vmatmul.f32.gmra.mxu0 %v3419
      %v3421 = vpop.f32.mrf.mxu0
      %v3422 = vadd.f32 %v3250, %v3421
      %v3423 = vand.u32 %v2824, 4294901760
      %v3424 = vsub.f32 %v2824, %v3423
      %3425 = vmatmul.f32.gmra.mxu0 %v3424
      %v3426 = vpop.f32.mrf.mxu0
      %v3427 = vadd.f32 %v3254, %v3426
      %v3428 = vand.u32 %v2827, 4294901760
      %v3429 = vsub.f32 %v2827, %v3428
      %3430 = vmatmul.f32.gmra.mxu0 %v3429
      %v3431 = vpop.f32.mrf.mxu0
      %v3432 = vadd.f32 %v3258, %v3431
      %v3433 = vand.u32 %v2830, 4294901760
      %v3434 = vsub.f32 %v2830, %v3433
      %3435 = vmatmul.f32.gmra.mxu0 %v3434
      %v3436 = vpop.f32.mrf.mxu0
      %v3437 = vadd.f32 %v3262, %v3436
      %v3438 = vand.u32 %v2833, 4294901760
      %v3439 = vsub.f32 %v2833, %v3438
      %3440 = vmatmul.f32.gmra.mxu0 %v3439
      %v3441 = vpop.f32.mrf.mxu0
      %v3442 = vadd.f32 %v3266, %v3441
      %v3443 = vand.u32 %v2836, 4294901760
      %v3444 = vsub.f32 %v2836, %v3443
      %3445 = vmatmul.f32.gmra.mxu0 %v3444
      %v3446 = vpop.f32.mrf.mxu0
      %v3447 = vadd.f32 %v3270, %v3446
      %v3448 = vand.u32 %v2839, 4294901760
      %v3449 = vsub.f32 %v2839, %v3448
      %3450 = vmatmul.f32.gmra.mxu0 %v3449
      %v3451 = vpop.f32.mrf.mxu0
      %v3452 = vadd.f32 %v3274, %v3451
      %v3453 = vand.u32 %v2842, 4294901760
      %v3454 = vsub.f32 %v2842, %v3453
      %3455 = vmatmul.f32.gmra.mxu0 %v3454
      %v3456 = vpop.f32.mrf.mxu0
      %v3457 = vadd.f32 %v3278, %v3456
      %v3458 = vand.u32 %v2845, 4294901760
      %v3459 = vsub.f32 %v2845, %v3458
      %3460 = vmatmul.f32.gmra.mxu0 %v3459
      %v3461 = vpop.f32.mrf.mxu0
      %v3462 = vadd.f32 %v3282, %v3461
      %v3463 = vand.u32 %v2848, 4294901760
      %v3464 = vsub.f32 %v2848, %v3463
      %3465 = vmatmul.f32.gmra.mxu0 %v3464
      %v3466 = vpop.f32.mrf.mxu0
      %v3467 = vadd.f32 %v3286, %v3466
      %v3468 = vand.u32 %v2851, 4294901760
      %v3469 = vsub.f32 %v2851, %v3468
      %3470 = vmatmul.f32.gmra.mxu0 %v3469
      %v3471 = vpop.f32.mrf.mxu0
      %v3472 = vadd.f32 %v3290, %v3471
      %v3473 = vand.u32 %v2854, 4294901760
      %v3474 = vsub.f32 %v2854, %v3473
      %3475 = vmatmul.f32.gmra.mxu0 %v3474
      %v3476 = vpop.f32.mrf.mxu0
      %v3477 = vadd.f32 %v3294, %v3476
      %v3478 = vand.u32 %v2857, 4294901760
      %v3479 = vsub.f32 %v2857, %v3478
      %3480 = vmatmul.f32.gmra.mxu0 %v3479
      %v3481 = vpop.f32.mrf.mxu0
      %v3482 = vadd.f32 %v3298, %v3481
      %v3483 = vand.u32 %v2860, 4294901760
      %v3484 = vsub.f32 %v2860, %v3483
      %3485 = vmatmul.f32.gmra.mxu0 %v3484
      %v3486 = vpop.f32.mrf.mxu0
      %v3487 = vadd.f32 %v3302, %v3486
      %3488 = vdwg.mxu0
      %3489 = vmatpush.msra.mxu0 0.0
      %3490 = vmatpush.msra.mxu0 0.0
      %3491 = vmatpush.msra.mxu0 0.0
      %3492 = vmatpush.msra.mxu0 0.0
      %3493 = vmatpush.msra.mxu0 0.0
      %3494 = vmatpush.msra.mxu0 0.0
      %3495 = vmatpush.msra.mxu0 0.0
      %3496 = vmatpush.msra.mxu0 0.0
      %3497 = vmatpush.msra.mxu0 0.0
      %3498 = vmatpush.msra.mxu0 0.0
      %3499 = vmatpush.msra.mxu0 0.0
      %3500 = vmatpush.msra.mxu0 0.0
      %v3501 = vand.u32 %v2765, 4294901760
      %3502 = vmatpush.msra.mxu0 %v3501
      %v3503 = vand.u32 %v2764, 4294901760
      %3504 = vmatpush.msra.mxu0 %v3503
      %v3505 = vand.u32 %v2763, 4294901760
      %3506 = vmatpush.msra.mxu0 %v3505
      %v3507 = vand.u32 %v2762, 4294901760
      %3508 = vmatpush.msra.mxu0 %v3507
      %v3509 = vand.u32 %v2767, 4294901760
      %v3510 = vsub.f32 %v2767, %v3509
      %v3511 = vand.u32 %v3510, 4294901760
      %3512 = vmatmul.f32.gmra.mxu0 %v3511
      %v3513 = vpop.f32.mrf.mxu0
      %v3514 = vadd.f32 %v3332, %v3513
      %v3515 = vand.u32 %v2770, 4294901760
      %v3516 = vsub.f32 %v2770, %v3515
      %v3517 = vand.u32 %v3516, 4294901760
      %3518 = vmatmul.f32.gmra.mxu0 %v3517
      %v3519 = vpop.f32.mrf.mxu0
      %v3520 = vadd.f32 %v3337, %v3519
      %v3521 = vand.u32 %v2773, 4294901760
      %v3522 = vsub.f32 %v2773, %v3521
      %v3523 = vand.u32 %v3522, 4294901760
      %3524 = vmatmul.f32.gmra.mxu0 %v3523
      %v3525 = vpop.f32.mrf.mxu0
      %v3526 = vadd.f32 %v3342, %v3525
      %v3527 = vand.u32 %v2776, 4294901760
      %v3528 = vsub.f32 %v2776, %v3527
      %v3529 = vand.u32 %v3528, 4294901760
      %3530 = vmatmul.f32.gmra.mxu0 %v3529
      %v3531 = vpop.f32.mrf.mxu0
      %v3532 = vadd.f32 %v3347, %v3531
      %v3533 = vand.u32 %v2779, 4294901760
      %v3534 = vsub.f32 %v2779, %v3533
      %v3535 = vand.u32 %v3534, 4294901760
      %3536 = vmatmul.f32.gmra.mxu0 %v3535
      %v3537 = vpop.f32.mrf.mxu0
      %v3538 = vadd.f32 %v3352, %v3537
      %v3539 = vand.u32 %v2782, 4294901760
      %v3540 = vsub.f32 %v2782, %v3539
      %v3541 = vand.u32 %v3540, 4294901760
      %3542 = vmatmul.f32.gmra.mxu0 %v3541
      %v3543 = vpop.f32.mrf.mxu0
      %v3544 = vadd.f32 %v3357, %v3543
      %v3545 = vand.u32 %v2785, 4294901760
      %v3546 = vsub.f32 %v2785, %v3545
      %v3547 = vand.u32 %v3546, 4294901760
      %3548 = vmatmul.f32.gmra.mxu0 %v3547
      %v3549 = vpop.f32.mrf.mxu0
      %v3550 = vadd.f32 %v3362, %v3549
      %v3551 = vand.u32 %v2788, 4294901760
      %v3552 = vsub.f32 %v2788, %v3551
      %v3553 = vand.u32 %v3552, 4294901760
      %3554 = vmatmul.f32.gmra.mxu0 %v3553
      %v3555 = vpop.f32.mrf.mxu0
      %v3556 = vadd.f32 %v3367, %v3555
      %v3557 = vand.u32 %v2791, 4294901760
      %v3558 = vsub.f32 %v2791, %v3557
      %v3559 = vand.u32 %v3558, 4294901760
      %3560 = vmatmul.f32.gmra.mxu0 %v3559
      %v3561 = vpop.f32.mrf.mxu0
      %v3562 = vadd.f32 %v3372, %v3561
      %v3563 = vand.u32 %v2794, 4294901760
      %v3564 = vsub.f32 %v2794, %v3563
      %v3565 = vand.u32 %v3564, 4294901760
      %3566 = vmatmul.f32.gmra.mxu0 %v3565
      %v3567 = vpop.f32.mrf.mxu0
      %v3568 = vadd.f32 %v3377, %v3567
      %v3569 = vand.u32 %v2797, 4294901760
      %v3570 = vsub.f32 %v2797, %v3569
      %v3571 = vand.u32 %v3570, 4294901760
      %3572 = vmatmul.f32.gmra.mxu0 %v3571
      %v3573 = vpop.f32.mrf.mxu0
      %v3574 = vadd.f32 %v3382, %v3573
      %v3575 = vand.u32 %v2800, 4294901760
      %v3576 = vsub.f32 %v2800, %v3575
      %v3577 = vand.u32 %v3576, 4294901760
      %3578 = vmatmul.f32.gmra.mxu0 %v3577
      %v3579 = vpop.f32.mrf.mxu0
      %v3580 = vadd.f32 %v3387, %v3579
      %v3581 = vand.u32 %v2803, 4294901760
      %v3582 = vsub.f32 %v2803, %v3581
      %v3583 = vand.u32 %v3582, 4294901760
      %3584 = vmatmul.f32.gmra.mxu0 %v3583
      %v3585 = vpop.f32.mrf.mxu0
      %v3586 = vadd.f32 %v3392, %v3585
      %v3587 = vand.u32 %v2806, 4294901760
      %v3588 = vsub.f32 %v2806, %v3587
      %v3589 = vand.u32 %v3588, 4294901760
      %3590 = vmatmul.f32.gmra.mxu0 %v3589
      %v3591 = vpop.f32.mrf.mxu0
      %v3592 = vadd.f32 %v3397, %v3591
      %v3593 = vand.u32 %v2809, 4294901760
      %v3594 = vsub.f32 %v2809, %v3593
      %v3595 = vand.u32 %v3594, 4294901760
      %3596 = vmatmul.f32.gmra.mxu0 %v3595
      %v3597 = vpop.f32.mrf.mxu0
      %v3598 = vadd.f32 %v3402, %v3597
      %v3599 = vand.u32 %v2812, 4294901760
      %v3600 = vsub.f32 %v2812, %v3599
      %v3601 = vand.u32 %v3600, 4294901760
      %3602 = vmatmul.f32.gmra.mxu0 %v3601
      %v3603 = vpop.f32.mrf.mxu0
      %v3604 = vadd.f32 %v3407, %v3603
      %v3605 = vand.u32 %v2815, 4294901760
      %v3606 = vsub.f32 %v2815, %v3605
      %v3607 = vand.u32 %v3606, 4294901760
      %3608 = vmatmul.f32.gmra.mxu0 %v3607
      %v3609 = vpop.f32.mrf.mxu0
      %v3610 = vadd.f32 %v3412, %v3609
      %v3611 = vand.u32 %v2818, 4294901760
      %v3612 = vsub.f32 %v2818, %v3611
      %v3613 = vand.u32 %v3612, 4294901760
      %3614 = vmatmul.f32.gmra.mxu0 %v3613
      %v3615 = vpop.f32.mrf.mxu0
      %v3616 = vadd.f32 %v3417, %v3615
      %v3617 = vand.u32 %v2821, 4294901760
      %v3618 = vsub.f32 %v2821, %v3617
      %v3619 = vand.u32 %v3618, 4294901760
      %3620 = vmatmul.f32.gmra.mxu0 %v3619
      %v3621 = vpop.f32.mrf.mxu0
      %v3622 = vadd.f32 %v3422, %v3621
      %v3623 = vand.u32 %v2824, 4294901760
      %v3624 = vsub.f32 %v2824, %v3623
      %v3625 = vand.u32 %v3624, 4294901760
      %3626 = vmatmul.f32.gmra.mxu0 %v3625
      %v3627 = vpop.f32.mrf.mxu0
      %v3628 = vadd.f32 %v3427, %v3627
      %v3629 = vand.u32 %v2827, 4294901760
      %v3630 = vsub.f32 %v2827, %v3629
      %v3631 = vand.u32 %v3630, 4294901760
      %3632 = vmatmul.f32.gmra.mxu0 %v3631
      %v3633 = vpop.f32.mrf.mxu0
      %v3634 = vadd.f32 %v3432, %v3633
      %v3635 = vand.u32 %v2830, 4294901760
      %v3636 = vsub.f32 %v2830, %v3635
      %v3637 = vand.u32 %v3636, 4294901760
      %3638 = vmatmul.f32.gmra.mxu0 %v3637
      %v3639 = vpop.f32.mrf.mxu0
      %v3640 = vadd.f32 %v3437, %v3639
      %v3641 = vand.u32 %v2833, 4294901760
      %v3642 = vsub.f32 %v2833, %v3641
      %v3643 = vand.u32 %v3642, 4294901760
      %3644 = vmatmul.f32.gmra.mxu0 %v3643
      %v3645 = vpop.f32.mrf.mxu0
      %v3646 = vadd.f32 %v3442, %v3645
      %v3647 = vand.u32 %v2836, 4294901760
      %v3648 = vsub.f32 %v2836, %v3647
      %v3649 = vand.u32 %v3648, 4294901760
      %3650 = vmatmul.f32.gmra.mxu0 %v3649
      %v3651 = vpop.f32.mrf.mxu0
      %v3652 = vadd.f32 %v3447, %v3651
      %v3653 = vand.u32 %v2839, 4294901760
      %v3654 = vsub.f32 %v2839, %v3653
      %v3655 = vand.u32 %v3654, 4294901760
      %3656 = vmatmul.f32.gmra.mxu0 %v3655
      %v3657 = vpop.f32.mrf.mxu0
      %v3658 = vadd.f32 %v3452, %v3657
      %v3659 = vand.u32 %v2842, 4294901760
      %v3660 = vsub.f32 %v2842, %v3659
      %v3661 = vand.u32 %v3660, 4294901760
      %3662 = vmatmul.f32.gmra.mxu0 %v3661
      %v3663 = vpop.f32.mrf.mxu0
      %v3664 = vadd.f32 %v3457, %v3663
      %v3665 = vand.u32 %v2845, 4294901760
      %v3666 = vsub.f32 %v2845, %v3665
      %v3667 = vand.u32 %v3666, 4294901760
      %3668 = vmatmul.f32.gmra.mxu0 %v3667
      %v3669 = vpop.f32.mrf.mxu0
      %v3670 = vadd.f32 %v3462, %v3669
      %v3671 = vand.u32 %v2848, 4294901760
      %v3672 = vsub.f32 %v2848, %v3671
      %v3673 = vand.u32 %v3672, 4294901760
      %3674 = vmatmul.f32.gmra.mxu0 %v3673
      %v3675 = vpop.f32.mrf.mxu0
      %v3676 = vadd.f32 %v3467, %v3675
      %v3677 = vand.u32 %v2851, 4294901760
      %v3678 = vsub.f32 %v2851, %v3677
      %v3679 = vand.u32 %v3678, 4294901760
      %3680 = vmatmul.f32.gmra.mxu0 %v3679
      %v3681 = vpop.f32.mrf.mxu0
      %v3682 = vadd.f32 %v3472, %v3681
      %v3683 = vand.u32 %v2854, 4294901760
      %v3684 = vsub.f32 %v2854, %v3683
      %v3685 = vand.u32 %v3684, 4294901760
      %3686 = vmatmul.f32.gmra.mxu0 %v3685
      %v3687 = vpop.f32.mrf.mxu0
      %v3688 = vadd.f32 %v3477, %v3687
      %v3689 = vand.u32 %v2857, 4294901760
      %v3690 = vsub.f32 %v2857, %v3689
      %v3691 = vand.u32 %v3690, 4294901760
      %3692 = vmatmul.f32.gmra.mxu0 %v3691
      %v3693 = vpop.f32.mrf.mxu0
      %v3694 = vadd.f32 %v3482, %v3693
      %v3695 = vand.u32 %v2860, 4294901760
      %v3696 = vsub.f32 %v2860, %v3695
      %v3697 = vand.u32 %v3696, 4294901760
      %3698 = vmatmul.f32.gmra.mxu0 %v3697
      %v3699 = vpop.f32.mrf.mxu0
      %v3700 = vadd.f32 %v3487, %v3699
      %3701 = vdwg.mxu0
      %3702 = vmatpush.msra.mxu0 0.0
      %3703 = vmatpush.msra.mxu0 0.0
      %3704 = vmatpush.msra.mxu0 0.0
      %3705 = vmatpush.msra.mxu0 0.0
      %3706 = vmatpush.msra.mxu0 0.0
      %3707 = vmatpush.msra.mxu0 0.0
      %3708 = vmatpush.msra.mxu0 0.0
      %3709 = vmatpush.msra.mxu0 0.0
      %3710 = vmatpush.msra.mxu0 0.0
      %3711 = vmatpush.msra.mxu0 0.0
      %3712 = vmatpush.msra.mxu0 0.0
      %3713 = vmatpush.msra.mxu0 0.0
      %v3714 = vand.u32 %v2765, 4294901760
      %v3715 = vsub.f32 %v2765, %v3714
      %v3716 = vand.u32 %v3715, 4294901760
      %3717 = vmatpush.msra.mxu0 %v3716
      %v3718 = vand.u32 %v2764, 4294901760
      %v3719 = vsub.f32 %v2764, %v3718
      %v3720 = vand.u32 %v3719, 4294901760
      %3721 = vmatpush.msra.mxu0 %v3720
      %v3722 = vand.u32 %v2763, 4294901760
      %v3723 = vsub.f32 %v2763, %v3722
      %v3724 = vand.u32 %v3723, 4294901760
      %3725 = vmatpush.msra.mxu0 %v3724
      %v3726 = vand.u32 %v2762, 4294901760
      %v3727 = vsub.f32 %v2762, %v3726
      %v3728 = vand.u32 %v3727, 4294901760
      %3729 = vmatpush.msra.mxu0 %v3728
      %v3730 = vand.u32 %v2767, 4294901760
      %3731 = vmatmul.f32.gmra.mxu0 %v3730
      %v3732 = vpop.f32.mrf.mxu0
      %v3733 = vadd.f32 %v3514, %v3732
      %v3734 = vand.u32 %v2770, 4294901760
      %3735 = vmatmul.f32.gmra.mxu0 %v3734
      %v3736 = vpop.f32.mrf.mxu0
      %v3737 = vadd.f32 %v3520, %v3736
      %v3738 = vand.u32 %v2773, 4294901760
      %3739 = vmatmul.f32.gmra.mxu0 %v3738
      %v3740 = vpop.f32.mrf.mxu0
      %v3741 = vadd.f32 %v3526, %v3740
      %v3742 = vand.u32 %v2776, 4294901760
      %3743 = vmatmul.f32.gmra.mxu0 %v3742
      %v3744 = vpop.f32.mrf.mxu0
      %v3745 = vadd.f32 %v3532, %v3744
      %v3746 = vand.u32 %v2779, 4294901760
      %3747 = vmatmul.f32.gmra.mxu0 %v3746
      %v3748 = vpop.f32.mrf.mxu0
      %v3749 = vadd.f32 %v3538, %v3748
      %v3750 = vand.u32 %v2782, 4294901760
      %3751 = vmatmul.f32.gmra.mxu0 %v3750
      %v3752 = vpop.f32.mrf.mxu0
      %v3753 = vadd.f32 %v3544, %v3752
      %v3754 = vand.u32 %v2785, 4294901760
      %3755 = vmatmul.f32.gmra.mxu0 %v3754
      %v3756 = vpop.f32.mrf.mxu0
      %v3757 = vadd.f32 %v3550, %v3756
      %v3758 = vand.u32 %v2788, 4294901760
      %3759 = vmatmul.f32.gmra.mxu0 %v3758
      %v3760 = vpop.f32.mrf.mxu0
      %v3761 = vadd.f32 %v3556, %v3760
      %v3762 = vand.u32 %v2791, 4294901760
      %3763 = vmatmul.f32.gmra.mxu0 %v3762
      %v3764 = vpop.f32.mrf.mxu0
      %v3765 = vadd.f32 %v3562, %v3764
      %v3766 = vand.u32 %v2794, 4294901760
      %3767 = vmatmul.f32.gmra.mxu0 %v3766
      %v3768 = vpop.f32.mrf.mxu0
      %v3769 = vadd.f32 %v3568, %v3768
      %v3770 = vand.u32 %v2797, 4294901760
      %3771 = vmatmul.f32.gmra.mxu0 %v3770
      %v3772 = vpop.f32.mrf.mxu0
      %v3773 = vadd.f32 %v3574, %v3772
      %v3774 = vand.u32 %v2800, 4294901760
      %3775 = vmatmul.f32.gmra.mxu0 %v3774
      %v3776 = vpop.f32.mrf.mxu0
      %v3777 = vadd.f32 %v3580, %v3776
      %v3778 = vand.u32 %v2803, 4294901760
      %3779 = vmatmul.f32.gmra.mxu0 %v3778
      %v3780 = vpop.f32.mrf.mxu0
      %v3781 = vadd.f32 %v3586, %v3780
      %v3782 = vand.u32 %v2806, 4294901760
      %3783 = vmatmul.f32.gmra.mxu0 %v3782
      %v3784 = vpop.f32.mrf.mxu0
      %v3785 = vadd.f32 %v3592, %v3784
      %v3786 = vand.u32 %v2809, 4294901760
      %3787 = vmatmul.f32.gmra.mxu0 %v3786
      %v3788 = vpop.f32.mrf.mxu0
      %v3789 = vadd.f32 %v3598, %v3788
      %v3790 = vand.u32 %v2812, 4294901760
      %3791 = vmatmul.f32.gmra.mxu0 %v3790
      %v3792 = vpop.f32.mrf.mxu0
      %v3793 = vadd.f32 %v3604, %v3792
      %v3794 = vand.u32 %v2815, 4294901760
      %3795 = vmatmul.f32.gmra.mxu0 %v3794
      %v3796 = vpop.f32.mrf.mxu0
      %v3797 = vadd.f32 %v3610, %v3796
      %v3798 = vand.u32 %v2818, 4294901760
      %3799 = vmatmul.f32.gmra.mxu0 %v3798
      %v3800 = vpop.f32.mrf.mxu0
      %v3801 = vadd.f32 %v3616, %v3800
      %v3802 = vand.u32 %v2821, 4294901760
      %3803 = vmatmul.f32.gmra.mxu0 %v3802
      %v3804 = vpop.f32.mrf.mxu0
      %v3805 = vadd.f32 %v3622, %v3804
      %v3806 = vand.u32 %v2824, 4294901760
      %3807 = vmatmul.f32.gmra.mxu0 %v3806
      %v3808 = vpop.f32.mrf.mxu0
      %v3809 = vadd.f32 %v3628, %v3808
      %v3810 = vand.u32 %v2827, 4294901760
      %3811 = vmatmul.f32.gmra.mxu0 %v3810
      %v3812 = vpop.f32.mrf.mxu0
      %v3813 = vadd.f32 %v3634, %v3812
      %v3814 = vand.u32 %v2830, 4294901760
      %3815 = vmatmul.f32.gmra.mxu0 %v3814
      %v3816 = vpop.f32.mrf.mxu0
      %v3817 = vadd.f32 %v3640, %v3816
      %v3818 = vand.u32 %v2833, 4294901760
      %3819 = vmatmul.f32.gmra.mxu0 %v3818
      %v3820 = vpop.f32.mrf.mxu0
      %v3821 = vadd.f32 %v3646, %v3820
      %v3822 = vand.u32 %v2836, 4294901760
      %3823 = vmatmul.f32.gmra.mxu0 %v3822
      %v3824 = vpop.f32.mrf.mxu0
      %v3825 = vadd.f32 %v3652, %v3824
      %v3826 = vand.u32 %v2839, 4294901760
      %3827 = vmatmul.f32.gmra.mxu0 %v3826
      %v3828 = vpop.f32.mrf.mxu0
      %v3829 = vadd.f32 %v3658, %v3828
      %v3830 = vand.u32 %v2842, 4294901760
      %3831 = vmatmul.f32.gmra.mxu0 %v3830
      %v3832 = vpop.f32.mrf.mxu0
      %v3833 = vadd.f32 %v3664, %v3832
      %v3834 = vand.u32 %v2845, 4294901760
      %3835 = vmatmul.f32.gmra.mxu0 %v3834
      %v3836 = vpop.f32.mrf.mxu0
      %v3837 = vadd.f32 %v3670, %v3836
      %v3838 = vand.u32 %v2848, 4294901760
      %3839 = vmatmul.f32.gmra.mxu0 %v3838
      %v3840 = vpop.f32.mrf.mxu0
      %v3841 = vadd.f32 %v3676, %v3840
      %v3842 = vand.u32 %v2851, 4294901760
      %3843 = vmatmul.f32.gmra.mxu0 %v3842
      %v3844 = vpop.f32.mrf.mxu0
      %v3845 = vadd.f32 %v3682, %v3844
      %v3846 = vand.u32 %v2854, 4294901760
      %3847 = vmatmul.f32.gmra.mxu0 %v3846
      %v3848 = vpop.f32.mrf.mxu0
      %v3849 = vadd.f32 %v3688, %v3848
      %v3850 = vand.u32 %v2857, 4294901760
      %3851 = vmatmul.f32.gmra.mxu0 %v3850
      %v3852 = vpop.f32.mrf.mxu0
      %v3853 = vadd.f32 %v3694, %v3852
      %v3854 = vand.u32 %v2860, 4294901760
      %3855 = vmatmul.f32.gmra.mxu0 %v3854
      %v3856 = vpop.f32.mrf.mxu0
      %v3857 = vadd.f32 %v3700, %v3856
      %3858 = vdwg.mxu0
      %3859 = vmatpush.msra.mxu0 0.0
      %3860 = vmatpush.msra.mxu0 0.0
      %3861 = vmatpush.msra.mxu0 0.0
      %3862 = vmatpush.msra.mxu0 0.0
      %3863 = vmatpush.msra.mxu0 0.0
      %3864 = vmatpush.msra.mxu0 0.0
      %3865 = vmatpush.msra.mxu0 0.0
      %3866 = vmatpush.msra.mxu0 0.0
      %3867 = vmatpush.msra.mxu0 0.0
      %3868 = vmatpush.msra.mxu0 0.0
      %3869 = vmatpush.msra.mxu0 0.0
      %3870 = vmatpush.msra.mxu0 0.0
      %v3871 = vand.u32 %v2765, 4294901760
      %3872 = vmatpush.msra.mxu0 %v3871
      %v3873 = vand.u32 %v2764, 4294901760
      %3874 = vmatpush.msra.mxu0 %v3873
      %v3875 = vand.u32 %v2763, 4294901760
      %3876 = vmatpush.msra.mxu0 %v3875
      %v3877 = vand.u32 %v2762, 4294901760
      %3878 = vmatpush.msra.mxu0 %v3877
      %v3879 = vand.u32 %v2767, 4294901760
      %3880 = vmatmul.f32.gmra.mxu0 %v3879
      %v3881 = vpop.f32.mrf.mxu0
      %v3882 = vadd.f32 %v3733, %v3881
      %v3883 = vand.u32 %v2770, 4294901760
      %3884 = vmatmul.f32.gmra.mxu0 %v3883
      %v3885 = vpop.f32.mrf.mxu0
      %v3886 = vadd.f32 %v3737, %v3885
      %v3887 = vand.u32 %v2773, 4294901760
      %3888 = vmatmul.f32.gmra.mxu0 %v3887
      %v3889 = vpop.f32.mrf.mxu0
      %v3890 = vadd.f32 %v3741, %v3889
      %v3891 = vand.u32 %v2776, 4294901760
      %3892 = vmatmul.f32.gmra.mxu0 %v3891
      %v3893 = vpop.f32.mrf.mxu0
      %v3894 = vadd.f32 %v3745, %v3893
      %v3895 = vand.u32 %v2779, 4294901760
      %3896 = vmatmul.f32.gmra.mxu0 %v3895
      %v3897 = vpop.f32.mrf.mxu0
      %v3898 = vadd.f32 %v3749, %v3897
      %v3899 = vand.u32 %v2782, 4294901760
      %3900 = vmatmul.f32.gmra.mxu0 %v3899
      %v3901 = vpop.f32.mrf.mxu0
      %v3902 = vadd.f32 %v3753, %v3901
      %v3903 = vand.u32 %v2785, 4294901760
      %3904 = vmatmul.f32.gmra.mxu0 %v3903
      %v3905 = vpop.f32.mrf.mxu0
      %v3906 = vadd.f32 %v3757, %v3905
      %v3907 = vand.u32 %v2788, 4294901760
      %3908 = vmatmul.f32.gmra.mxu0 %v3907
      %v3909 = vpop.f32.mrf.mxu0
      %v3910 = vadd.f32 %v3761, %v3909
      %v3911 = vand.u32 %v2791, 4294901760
      %3912 = vmatmul.f32.gmra.mxu0 %v3911
      %v3913 = vpop.f32.mrf.mxu0
      %v3914 = vadd.f32 %v3765, %v3913
      %v3915 = vand.u32 %v2794, 4294901760
      %3916 = vmatmul.f32.gmra.mxu0 %v3915
      %v3917 = vpop.f32.mrf.mxu0
      %v3918 = vadd.f32 %v3769, %v3917
      %v3919 = vand.u32 %v2797, 4294901760
      %3920 = vmatmul.f32.gmra.mxu0 %v3919
      %v3921 = vpop.f32.mrf.mxu0
      %v3922 = vadd.f32 %v3773, %v3921
      %v3923 = vand.u32 %v2800, 4294901760
      %3924 = vmatmul.f32.gmra.mxu0 %v3923
      %v3925 = vpop.f32.mrf.mxu0
      %v3926 = vadd.f32 %v3777, %v3925
      %v3927 = vand.u32 %v2803, 4294901760
      %3928 = vmatmul.f32.gmra.mxu0 %v3927
      %v3929 = vpop.f32.mrf.mxu0
      %v3930 = vadd.f32 %v3781, %v3929
      %v3931 = vand.u32 %v2806, 4294901760
      %3932 = vmatmul.f32.gmra.mxu0 %v3931
      %v3933 = vpop.f32.mrf.mxu0
      %v3934 = vadd.f32 %v3785, %v3933
      %v3935 = vand.u32 %v2809, 4294901760
      %3936 = vmatmul.f32.gmra.mxu0 %v3935
      %v3937 = vpop.f32.mrf.mxu0
      %v3938 = vadd.f32 %v3789, %v3937
      %v3939 = vand.u32 %v2812, 4294901760
      %3940 = vmatmul.f32.gmra.mxu0 %v3939
      %v3941 = vpop.f32.mrf.mxu0
      %v3942 = vadd.f32 %v3793, %v3941
      %v3943 = vand.u32 %v2815, 4294901760
      %3944 = vmatmul.f32.gmra.mxu0 %v3943
      %v3945 = vpop.f32.mrf.mxu0
      %v3946 = vadd.f32 %v3797, %v3945
      %v3947 = vand.u32 %v2818, 4294901760
      %3948 = vmatmul.f32.gmra.mxu0 %v3947
      %v3949 = vpop.f32.mrf.mxu0
      %v3950 = vadd.f32 %v3801, %v3949
      %v3951 = vand.u32 %v2821, 4294901760
      %3952 = vmatmul.f32.gmra.mxu0 %v3951
      %v3953 = vpop.f32.mrf.mxu0
      %v3954 = vadd.f32 %v3805, %v3953
      %v3955 = vand.u32 %v2824, 4294901760
      %3956 = vmatmul.f32.gmra.mxu0 %v3955
      %v3957 = vpop.f32.mrf.mxu0
      %v3958 = vadd.f32 %v3809, %v3957
      %v3959 = vand.u32 %v2827, 4294901760
      %3960 = vmatmul.f32.gmra.mxu0 %v3959
      %v3961 = vpop.f32.mrf.mxu0
      %v3962 = vadd.f32 %v3813, %v3961
      %v3963 = vand.u32 %v2830, 4294901760
      %3964 = vmatmul.f32.gmra.mxu0 %v3963
      %v3965 = vpop.f32.mrf.mxu0
      %v3966 = vadd.f32 %v3817, %v3965
      %v3967 = vand.u32 %v2833, 4294901760
      %3968 = vmatmul.f32.gmra.mxu0 %v3967
      %v3969 = vpop.f32.mrf.mxu0
      %v3970 = vadd.f32 %v3821, %v3969
      %v3971 = vand.u32 %v2836, 4294901760
      %3972 = vmatmul.f32.gmra.mxu0 %v3971
      %v3973 = vpop.f32.mrf.mxu0
      %v3974 = vadd.f32 %v3825, %v3973
      %v3975 = vand.u32 %v2839, 4294901760
      %3976 = vmatmul.f32.gmra.mxu0 %v3975
      %v3977 = vpop.f32.mrf.mxu0
      %v3978 = vadd.f32 %v3829, %v3977
      %v3979 = vand.u32 %v2842, 4294901760
      %3980 = vmatmul.f32.gmra.mxu0 %v3979
      %v3981 = vpop.f32.mrf.mxu0
      %v3982 = vadd.f32 %v3833, %v3981
      %v3983 = vand.u32 %v2845, 4294901760
      %3984 = vmatmul.f32.gmra.mxu0 %v3983
      %v3985 = vpop.f32.mrf.mxu0
      %v3986 = vadd.f32 %v3837, %v3985
      %v3987 = vand.u32 %v2848, 4294901760
      %3988 = vmatmul.f32.gmra.mxu0 %v3987
      %v3989 = vpop.f32.mrf.mxu0
      %v3990 = vadd.f32 %v3841, %v3989
      %v3991 = vand.u32 %v2851, 4294901760
      %3992 = vmatmul.f32.gmra.mxu0 %v3991
      %v3993 = vpop.f32.mrf.mxu0
      %v3994 = vadd.f32 %v3845, %v3993
      %v3995 = vand.u32 %v2854, 4294901760
      %3996 = vmatmul.f32.gmra.mxu0 %v3995
      %v3997 = vpop.f32.mrf.mxu0
      %v3998 = vadd.f32 %v3849, %v3997
      %v3999 = vand.u32 %v2857, 4294901760
      %4000 = vmatmul.f32.gmra.mxu0 %v3999
      %v4001 = vpop.f32.mrf.mxu0
      %v4002 = vadd.f32 %v3853, %v4001
      %v4003 = vand.u32 %v2860, 4294901760
      %4004 = vmatmul.f32.gmra.mxu0 %v4003
      %v4005 = vpop.f32.mrf.mxu0
      %v4006 = vadd.f32 %v3857, %v4005
      %4007 = vdwg.mxu0
      %v4008 = vadd.f32 %v2603, %v3882
      %v4009 = vadd.f32 %v2607, %v3886
      %v4010 = vadd.f32 %v2611, %v3890
      %v4011 = vadd.f32 %v2615, %v3894
      %v4012 = vadd.f32 %v2619, %v3898
      %v4013 = vadd.f32 %v2623, %v3902
      %v4014 = vadd.f32 %v2627, %v3906
      %v4015 = vadd.f32 %v2631, %v3910
      %v4016 = vadd.f32 %v2635, %v3914
      %v4017 = vadd.f32 %v2639, %v3918
      %v4018 = vadd.f32 %v2643, %v3922
      %v4019 = vadd.f32 %v2647, %v3926
      %v4020 = vadd.f32 %v2651, %v3930
      %v4021 = vadd.f32 %v2655, %v3934
      %v4022 = vadd.f32 %v2659, %v3938
      %v4023 = vadd.f32 %v2663, %v3942
      %v4024 = vadd.f32 %v2667, %v3946
      %v4025 = vadd.f32 %v2671, %v3950
      %v4026 = vadd.f32 %v2675, %v3954
      %v4027 = vadd.f32 %v2679, %v3958
      %v4028 = vadd.f32 %v2683, %v3962
      %v4029 = vadd.f32 %v2687, %v3966
      %v4030 = vadd.f32 %v2691, %v3970
      %v4031 = vadd.f32 %v2695, %v3974
      %v4032 = vadd.f32 %v2699, %v3978
      %v4033 = vadd.f32 %v2703, %v3982
      %v4034 = vadd.f32 %v2707, %v3986
      %v4035 = vadd.f32 %v2711, %v3990
      %v4036 = vadd.f32 %v2715, %v3994
      %v4037 = vadd.f32 %v2719, %v3998
      %v4038 = vadd.f32 %v2723, %v4002
      %v4039 = vadd.f32 %v2727, %v4006
      %s4040 = scalar_lea.vmem %s165, 24
      %v4041 = vld [vmem:[%s4040] sm:$0xff]
      %v4042 = vld [vmem:[%s4040 + $0x8] sm:$0xff]
      %v4043 = vld [vmem:[%s4040 + $0x18] sm:$0xff]
      %v4044 = vld [vmem:[%s4040 + $0x20] sm:$0xff]
      %v4045 = vld [vmem:[%s4040 + $0x30] sm:$0xff]
      %v4046 = vld [vmem:[%s4040 + $0x38] sm:$0xff]
      %v4047 = vld [vmem:[%s4040 + $0x48] sm:$0xff]
      %v4048 = vld [vmem:[%s4040 + $0x50] sm:$0xff]
      %v4049 = vld [vmem:[%s4040 + $0x60] sm:$0xff]
      %v4050 = vld [vmem:[%s4040 + $0x68] sm:$0xff]
      %v4051 = vld [vmem:[%s4040 + $0x78] sm:$0xff]
      %v4052 = vld [vmem:[%s4040 + $0x80] sm:$0xff]
      %v4053 = vld [vmem:[%s4040 + $0x90] sm:$0xff]
      %v4054 = vld [vmem:[%s4040 + $0x98] sm:$0xff]
      %v4055 = vld [vmem:[%s4040 + $0xa8] sm:$0xff]
      %v4056 = vld [vmem:[%s4040 + $0xb0] sm:$0xff]
      %v4057 = vld [vmem:[%s4040 + $0xc0] sm:$0xff]
      %v4058 = vld [vmem:[%s4040 + $0xc8] sm:$0xff]
      %v4059 = vld [vmem:[%s4040 + $0xd8] sm:$0xff]
      %v4060 = vld [vmem:[%s4040 + $0xe0] sm:$0xff]
      %v4061 = vld [vmem:[%s4040 + $0xf0] sm:$0xff]
      %v4062 = vld [vmem:[%s4040 + $0xf8] sm:$0xff]
      %v4063 = vld [vmem:[%s4040 + $0x108] sm:$0xff]
      %v4064 = vld [vmem:[%s4040 + $0x110] sm:$0xff]
      %v4065 = vld [vmem:[%s4040 + $0x120] sm:$0xff]
      %v4066 = vld [vmem:[%s4040 + $0x128] sm:$0xff]
      %v4067 = vld [vmem:[%s4040 + $0x138] sm:$0xff]
      %v4068 = vld [vmem:[%s4040 + $0x140] sm:$0xff]
      %v4069 = vld [vmem:[%s4040 + $0x150] sm:$0xff]
      %v4070 = vld [vmem:[%s4040 + $0x158] sm:$0xff]
      %v4071 = vld [vmem:[%s4040 + $0x168] sm:$0xff]
      %v4072 = vld [vmem:[%s4040 + $0x170] sm:$0xff]
      %s4073 = scalar_lea.vmem %s1, 96
      %v4074 = vld [vmem:[%s4073] sm:$0xff]
      %v4075 = vld [vmem:[%s4073 + $0x8] sm:$0xff]
      %v4076 = vld [vmem:[%s4073 + $0x10] sm:$0xff]
      %v4077 = vld [vmem:[%s4073 + $0x18] sm:$0xff]
      %v4079 = vsel %vm244, %v4041, 0
      %v4082 = vsel %vm244, %v4042, 0
      %v4085 = vsel %vm244, %v4043, 0
      %v4088 = vsel %vm244, %v4044, 0
      %v4091 = vsel %vm244, %v4045, 0
      %v4094 = vsel %vm244, %v4046, 0
      %v4097 = vsel %vm244, %v4047, 0
      %v4100 = vsel %vm244, %v4048, 0
      %v4103 = vsel %vm244, %v4049, 0
      %v4106 = vsel %vm244, %v4050, 0
      %v4109 = vsel %vm244, %v4051, 0
      %v4112 = vsel %vm244, %v4052, 0
      %v4115 = vsel %vm244, %v4053, 0
      %v4118 = vsel %vm244, %v4054, 0
      %v4121 = vsel %vm244, %v4055, 0
      %v4124 = vsel %vm244, %v4056, 0
      %v4127 = vsel %vm244, %v4057, 0
      %v4130 = vsel %vm244, %v4058, 0
      %v4133 = vsel %vm244, %v4059, 0
      %v4136 = vsel %vm244, %v4060, 0
      %v4139 = vsel %vm244, %v4061, 0
      %v4142 = vsel %vm244, %v4062, 0
      %v4145 = vsel %vm244, %v4063, 0
      %v4148 = vsel %vm244, %v4064, 0
      %v4151 = vsel %vm244, %v4065, 0
      %v4154 = vsel %vm244, %v4066, 0
      %v4157 = vsel %vm244, %v4067, 0
      %v4160 = vsel %vm244, %v4068, 0
      %v4163 = vsel %vm244, %v4069, 0
      %v4166 = vsel %vm244, %v4070, 0
      %v4169 = vsel %vm244, %v4071, 0
      %v4172 = vsel %vm244, %v4072, 0
      %4174 = vmatpush.msra.mxu0 0.0
      %4175 = vmatpush.msra.mxu0 0.0
      %4176 = vmatpush.msra.mxu0 0.0
      %4177 = vmatpush.msra.mxu0 0.0
      %4178 = vmatpush.msra.mxu0 0.0
      %4179 = vmatpush.msra.mxu0 0.0
      %4180 = vmatpush.msra.mxu0 0.0
      %4181 = vmatpush.msra.mxu0 0.0
      %4182 = vmatpush.msra.mxu0 0.0
      %4183 = vmatpush.msra.mxu0 0.0
      %4184 = vmatpush.msra.mxu0 0.0
      %4185 = vmatpush.msra.mxu0 0.0
      %v4186 = vand.u32 %v4077, 4294901760
      %4187 = vmatpush.msra.mxu0 %v4186
      %v4188 = vand.u32 %v4076, 4294901760
      %4189 = vmatpush.msra.mxu0 %v4188
      %v4190 = vand.u32 %v4075, 4294901760
      %4191 = vmatpush.msra.mxu0 %v4190
      %v4192 = vand.u32 %v4074, 4294901760
      %4193 = vmatpush.msra.mxu0 %v4192
      %v4194 = vand.u32 %v4079, 4294901760
      %v4195 = vsub.f32 %v4079, %v4194
      %v4196 = vand.u32 %v4195, 4294901760
      %v4197 = vsub.f32 %v4195, %v4196
      %v4198 = vand.u32 %v4197, 4294901760
      %4199 = vmatmul.f32.gmra.mxu0 %v4198
      %v4200 = vpop.f32.mrf.mxu0
      %v4201 = vadd.f32 0.0, %v4200
      %v4202 = vand.u32 %v4082, 4294901760
      %v4203 = vsub.f32 %v4082, %v4202
      %v4204 = vand.u32 %v4203, 4294901760
      %v4205 = vsub.f32 %v4203, %v4204
      %v4206 = vand.u32 %v4205, 4294901760
      %4207 = vmatmul.f32.gmra.mxu0 %v4206
      %v4208 = vpop.f32.mrf.mxu0
      %v4209 = vadd.f32 0.0, %v4208
      %v4210 = vand.u32 %v4085, 4294901760
      %v4211 = vsub.f32 %v4085, %v4210
      %v4212 = vand.u32 %v4211, 4294901760
      %v4213 = vsub.f32 %v4211, %v4212
      %v4214 = vand.u32 %v4213, 4294901760
      %4215 = vmatmul.f32.gmra.mxu0 %v4214
      %v4216 = vpop.f32.mrf.mxu0
      %v4217 = vadd.f32 0.0, %v4216
      %v4218 = vand.u32 %v4088, 4294901760
      %v4219 = vsub.f32 %v4088, %v4218
      %v4220 = vand.u32 %v4219, 4294901760
      %v4221 = vsub.f32 %v4219, %v4220
      %v4222 = vand.u32 %v4221, 4294901760
      %4223 = vmatmul.f32.gmra.mxu0 %v4222
      %v4224 = vpop.f32.mrf.mxu0
      %v4225 = vadd.f32 0.0, %v4224
      %v4226 = vand.u32 %v4091, 4294901760
      %v4227 = vsub.f32 %v4091, %v4226
      %v4228 = vand.u32 %v4227, 4294901760
      %v4229 = vsub.f32 %v4227, %v4228
      %v4230 = vand.u32 %v4229, 4294901760
      %4231 = vmatmul.f32.gmra.mxu0 %v4230
      %v4232 = vpop.f32.mrf.mxu0
      %v4233 = vadd.f32 0.0, %v4232
      %v4234 = vand.u32 %v4094, 4294901760
      %v4235 = vsub.f32 %v4094, %v4234
      %v4236 = vand.u32 %v4235, 4294901760
      %v4237 = vsub.f32 %v4235, %v4236
      %v4238 = vand.u32 %v4237, 4294901760
      %4239 = vmatmul.f32.gmra.mxu0 %v4238
      %v4240 = vpop.f32.mrf.mxu0
      %v4241 = vadd.f32 0.0, %v4240
      %v4242 = vand.u32 %v4097, 4294901760
      %v4243 = vsub.f32 %v4097, %v4242
      %v4244 = vand.u32 %v4243, 4294901760
      %v4245 = vsub.f32 %v4243, %v4244
      %v4246 = vand.u32 %v4245, 4294901760
      %4247 = vmatmul.f32.gmra.mxu0 %v4246
      %v4248 = vpop.f32.mrf.mxu0
      %v4249 = vadd.f32 0.0, %v4248
      %v4250 = vand.u32 %v4100, 4294901760
      %v4251 = vsub.f32 %v4100, %v4250
      %v4252 = vand.u32 %v4251, 4294901760
      %v4253 = vsub.f32 %v4251, %v4252
      %v4254 = vand.u32 %v4253, 4294901760
      %4255 = vmatmul.f32.gmra.mxu0 %v4254
      %v4256 = vpop.f32.mrf.mxu0
      %v4257 = vadd.f32 0.0, %v4256
      %v4258 = vand.u32 %v4103, 4294901760
      %v4259 = vsub.f32 %v4103, %v4258
      %v4260 = vand.u32 %v4259, 4294901760
      %v4261 = vsub.f32 %v4259, %v4260
      %v4262 = vand.u32 %v4261, 4294901760
      %4263 = vmatmul.f32.gmra.mxu0 %v4262
      %v4264 = vpop.f32.mrf.mxu0
      %v4265 = vadd.f32 0.0, %v4264
      %v4266 = vand.u32 %v4106, 4294901760
      %v4267 = vsub.f32 %v4106, %v4266
      %v4268 = vand.u32 %v4267, 4294901760
      %v4269 = vsub.f32 %v4267, %v4268
      %v4270 = vand.u32 %v4269, 4294901760
      %4271 = vmatmul.f32.gmra.mxu0 %v4270
      %v4272 = vpop.f32.mrf.mxu0
      %v4273 = vadd.f32 0.0, %v4272
      %v4274 = vand.u32 %v4109, 4294901760
      %v4275 = vsub.f32 %v4109, %v4274
      %v4276 = vand.u32 %v4275, 4294901760
      %v4277 = vsub.f32 %v4275, %v4276
      %v4278 = vand.u32 %v4277, 4294901760
      %4279 = vmatmul.f32.gmra.mxu0 %v4278
      %v4280 = vpop.f32.mrf.mxu0
      %v4281 = vadd.f32 0.0, %v4280
      %v4282 = vand.u32 %v4112, 4294901760
      %v4283 = vsub.f32 %v4112, %v4282
      %v4284 = vand.u32 %v4283, 4294901760
      %v4285 = vsub.f32 %v4283, %v4284
      %v4286 = vand.u32 %v4285, 4294901760
      %4287 = vmatmul.f32.gmra.mxu0 %v4286
      %v4288 = vpop.f32.mrf.mxu0
      %v4289 = vadd.f32 0.0, %v4288
      %v4290 = vand.u32 %v4115, 4294901760
      %v4291 = vsub.f32 %v4115, %v4290
      %v4292 = vand.u32 %v4291, 4294901760
      %v4293 = vsub.f32 %v4291, %v4292
      %v4294 = vand.u32 %v4293, 4294901760
      %4295 = vmatmul.f32.gmra.mxu0 %v4294
      %v4296 = vpop.f32.mrf.mxu0
      %v4297 = vadd.f32 0.0, %v4296
      %v4298 = vand.u32 %v4118, 4294901760
      %v4299 = vsub.f32 %v4118, %v4298
      %v4300 = vand.u32 %v4299, 4294901760
      %v4301 = vsub.f32 %v4299, %v4300
      %v4302 = vand.u32 %v4301, 4294901760
      %4303 = vmatmul.f32.gmra.mxu0 %v4302
      %v4304 = vpop.f32.mrf.mxu0
      %v4305 = vadd.f32 0.0, %v4304
      %v4306 = vand.u32 %v4121, 4294901760
      %v4307 = vsub.f32 %v4121, %v4306
      %v4308 = vand.u32 %v4307, 4294901760
      %v4309 = vsub.f32 %v4307, %v4308
      %v4310 = vand.u32 %v4309, 4294901760
      %4311 = vmatmul.f32.gmra.mxu0 %v4310
      %v4312 = vpop.f32.mrf.mxu0
      %v4313 = vadd.f32 0.0, %v4312
      %v4314 = vand.u32 %v4124, 4294901760
      %v4315 = vsub.f32 %v4124, %v4314
      %v4316 = vand.u32 %v4315, 4294901760
      %v4317 = vsub.f32 %v4315, %v4316
      %v4318 = vand.u32 %v4317, 4294901760
      %4319 = vmatmul.f32.gmra.mxu0 %v4318
      %v4320 = vpop.f32.mrf.mxu0
      %v4321 = vadd.f32 0.0, %v4320
      %v4322 = vand.u32 %v4127, 4294901760
      %v4323 = vsub.f32 %v4127, %v4322
      %v4324 = vand.u32 %v4323, 4294901760
      %v4325 = vsub.f32 %v4323, %v4324
      %v4326 = vand.u32 %v4325, 4294901760
      %4327 = vmatmul.f32.gmra.mxu0 %v4326
      %v4328 = vpop.f32.mrf.mxu0
      %v4329 = vadd.f32 0.0, %v4328
      %v4330 = vand.u32 %v4130, 4294901760
      %v4331 = vsub.f32 %v4130, %v4330
      %v4332 = vand.u32 %v4331, 4294901760
      %v4333 = vsub.f32 %v4331, %v4332
      %v4334 = vand.u32 %v4333, 4294901760
      %4335 = vmatmul.f32.gmra.mxu0 %v4334
      %v4336 = vpop.f32.mrf.mxu0
      %v4337 = vadd.f32 0.0, %v4336
      %v4338 = vand.u32 %v4133, 4294901760
      %v4339 = vsub.f32 %v4133, %v4338
      %v4340 = vand.u32 %v4339, 4294901760
      %v4341 = vsub.f32 %v4339, %v4340
      %v4342 = vand.u32 %v4341, 4294901760
      %4343 = vmatmul.f32.gmra.mxu0 %v4342
      %v4344 = vpop.f32.mrf.mxu0
      %v4345 = vadd.f32 0.0, %v4344
      %v4346 = vand.u32 %v4136, 4294901760
      %v4347 = vsub.f32 %v4136, %v4346
      %v4348 = vand.u32 %v4347, 4294901760
      %v4349 = vsub.f32 %v4347, %v4348
      %v4350 = vand.u32 %v4349, 4294901760
      %4351 = vmatmul.f32.gmra.mxu0 %v4350
      %v4352 = vpop.f32.mrf.mxu0
      %v4353 = vadd.f32 0.0, %v4352
      %v4354 = vand.u32 %v4139, 4294901760
      %v4355 = vsub.f32 %v4139, %v4354
      %v4356 = vand.u32 %v4355, 4294901760
      %v4357 = vsub.f32 %v4355, %v4356
      %v4358 = vand.u32 %v4357, 4294901760
      %4359 = vmatmul.f32.gmra.mxu0 %v4358
      %v4360 = vpop.f32.mrf.mxu0
      %v4361 = vadd.f32 0.0, %v4360
      %v4362 = vand.u32 %v4142, 4294901760
      %v4363 = vsub.f32 %v4142, %v4362
      %v4364 = vand.u32 %v4363, 4294901760
      %v4365 = vsub.f32 %v4363, %v4364
      %v4366 = vand.u32 %v4365, 4294901760
      %4367 = vmatmul.f32.gmra.mxu0 %v4366
      %v4368 = vpop.f32.mrf.mxu0
      %v4369 = vadd.f32 0.0, %v4368
      %v4370 = vand.u32 %v4145, 4294901760
      %v4371 = vsub.f32 %v4145, %v4370
      %v4372 = vand.u32 %v4371, 4294901760
      %v4373 = vsub.f32 %v4371, %v4372
      %v4374 = vand.u32 %v4373, 4294901760
      %4375 = vmatmul.f32.gmra.mxu0 %v4374
      %v4376 = vpop.f32.mrf.mxu0
      %v4377 = vadd.f32 0.0, %v4376
      %v4378 = vand.u32 %v4148, 4294901760
      %v4379 = vsub.f32 %v4148, %v4378
      %v4380 = vand.u32 %v4379, 4294901760
      %v4381 = vsub.f32 %v4379, %v4380
      %v4382 = vand.u32 %v4381, 4294901760
      %4383 = vmatmul.f32.gmra.mxu0 %v4382
      %v4384 = vpop.f32.mrf.mxu0
      %v4385 = vadd.f32 0.0, %v4384
      %v4386 = vand.u32 %v4151, 4294901760
      %v4387 = vsub.f32 %v4151, %v4386
      %v4388 = vand.u32 %v4387, 4294901760
      %v4389 = vsub.f32 %v4387, %v4388
      %v4390 = vand.u32 %v4389, 4294901760
      %4391 = vmatmul.f32.gmra.mxu0 %v4390
      %v4392 = vpop.f32.mrf.mxu0
      %v4393 = vadd.f32 0.0, %v4392
      %v4394 = vand.u32 %v4154, 4294901760
      %v4395 = vsub.f32 %v4154, %v4394
      %v4396 = vand.u32 %v4395, 4294901760
      %v4397 = vsub.f32 %v4395, %v4396
      %v4398 = vand.u32 %v4397, 4294901760
      %4399 = vmatmul.f32.gmra.mxu0 %v4398
      %v4400 = vpop.f32.mrf.mxu0
      %v4401 = vadd.f32 0.0, %v4400
      %v4402 = vand.u32 %v4157, 4294901760
      %v4403 = vsub.f32 %v4157, %v4402
      %v4404 = vand.u32 %v4403, 4294901760
      %v4405 = vsub.f32 %v4403, %v4404
      %v4406 = vand.u32 %v4405, 4294901760
      %4407 = vmatmul.f32.gmra.mxu0 %v4406
      %v4408 = vpop.f32.mrf.mxu0
      %v4409 = vadd.f32 0.0, %v4408
      %v4410 = vand.u32 %v4160, 4294901760
      %v4411 = vsub.f32 %v4160, %v4410
      %v4412 = vand.u32 %v4411, 4294901760
      %v4413 = vsub.f32 %v4411, %v4412
      %v4414 = vand.u32 %v4413, 4294901760
      %4415 = vmatmul.f32.gmra.mxu0 %v4414
      %v4416 = vpop.f32.mrf.mxu0
      %v4417 = vadd.f32 0.0, %v4416
      %v4418 = vand.u32 %v4163, 4294901760
      %v4419 = vsub.f32 %v4163, %v4418
      %v4420 = vand.u32 %v4419, 4294901760
      %v4421 = vsub.f32 %v4419, %v4420
      %v4422 = vand.u32 %v4421, 4294901760
      %4423 = vmatmul.f32.gmra.mxu0 %v4422
      %v4424 = vpop.f32.mrf.mxu0
      %v4425 = vadd.f32 0.0, %v4424
      %v4426 = vand.u32 %v4166, 4294901760
      %v4427 = vsub.f32 %v4166, %v4426
      %v4428 = vand.u32 %v4427, 4294901760
      %v4429 = vsub.f32 %v4427, %v4428
      %v4430 = vand.u32 %v4429, 4294901760
      %4431 = vmatmul.f32.gmra.mxu0 %v4430
      %v4432 = vpop.f32.mrf.mxu0
      %v4433 = vadd.f32 0.0, %v4432
      %v4434 = vand.u32 %v4169, 4294901760
      %v4435 = vsub.f32 %v4169, %v4434
      %v4436 = vand.u32 %v4435, 4294901760
      %v4437 = vsub.f32 %v4435, %v4436
      %v4438 = vand.u32 %v4437, 4294901760
      %4439 = vmatmul.f32.gmra.mxu0 %v4438
      %v4440 = vpop.f32.mrf.mxu0
      %v4441 = vadd.f32 0.0, %v4440
      %v4442 = vand.u32 %v4172, 4294901760
      %v4443 = vsub.f32 %v4172, %v4442
      %v4444 = vand.u32 %v4443, 4294901760
      %v4445 = vsub.f32 %v4443, %v4444
      %v4446 = vand.u32 %v4445, 4294901760
      %4447 = vmatmul.f32.gmra.mxu0 %v4446
      %v4448 = vpop.f32.mrf.mxu0
      %v4449 = vadd.f32 0.0, %v4448
      %4450 = vdwg.mxu0
      %4451 = vmatpush.msra.mxu0 0.0
      %4452 = vmatpush.msra.mxu0 0.0
      %4453 = vmatpush.msra.mxu0 0.0
      %4454 = vmatpush.msra.mxu0 0.0
      %4455 = vmatpush.msra.mxu0 0.0
      %4456 = vmatpush.msra.mxu0 0.0
      %4457 = vmatpush.msra.mxu0 0.0
      %4458 = vmatpush.msra.mxu0 0.0
      %4459 = vmatpush.msra.mxu0 0.0
      %4460 = vmatpush.msra.mxu0 0.0
      %4461 = vmatpush.msra.mxu0 0.0
      %4462 = vmatpush.msra.mxu0 0.0
      %v4463 = vand.u32 %v4077, 4294901760
      %v4464 = vsub.f32 %v4077, %v4463
      %v4465 = vand.u32 %v4464, 4294901760
      %v4466 = vsub.f32 %v4464, %v4465
      %v4467 = vand.u32 %v4466, 4294901760
      %4468 = vmatpush.msra.mxu0 %v4467
      %v4469 = vand.u32 %v4076, 4294901760
      %v4470 = vsub.f32 %v4076, %v4469
      %v4471 = vand.u32 %v4470, 4294901760
      %v4472 = vsub.f32 %v4470, %v4471
      %v4473 = vand.u32 %v4472, 4294901760
      %4474 = vmatpush.msra.mxu0 %v4473
      %v4475 = vand.u32 %v4075, 4294901760
      %v4476 = vsub.f32 %v4075, %v4475
      %v4477 = vand.u32 %v4476, 4294901760
      %v4478 = vsub.f32 %v4476, %v4477
      %v4479 = vand.u32 %v4478, 4294901760
      %4480 = vmatpush.msra.mxu0 %v4479
      %v4481 = vand.u32 %v4074, 4294901760
      %v4482 = vsub.f32 %v4074, %v4481
      %v4483 = vand.u32 %v4482, 4294901760
      %v4484 = vsub.f32 %v4482, %v4483
      %v4485 = vand.u32 %v4484, 4294901760
      %4486 = vmatpush.msra.mxu0 %v4485
      %v4487 = vand.u32 %v4079, 4294901760
      %4488 = vmatmul.f32.gmra.mxu0 %v4487
      %v4489 = vpop.f32.mrf.mxu0
      %v4490 = vadd.f32 %v4201, %v4489
      %v4491 = vand.u32 %v4082, 4294901760
      %4492 = vmatmul.f32.gmra.mxu0 %v4491
      %v4493 = vpop.f32.mrf.mxu0
      %v4494 = vadd.f32 %v4209, %v4493
      %v4495 = vand.u32 %v4085, 4294901760
      %4496 = vmatmul.f32.gmra.mxu0 %v4495
      %v4497 = vpop.f32.mrf.mxu0
      %v4498 = vadd.f32 %v4217, %v4497
      %v4499 = vand.u32 %v4088, 4294901760
      %4500 = vmatmul.f32.gmra.mxu0 %v4499
      %v4501 = vpop.f32.mrf.mxu0
      %v4502 = vadd.f32 %v4225, %v4501
      %v4503 = vand.u32 %v4091, 4294901760
      %4504 = vmatmul.f32.gmra.mxu0 %v4503
      %v4505 = vpop.f32.mrf.mxu0
      %v4506 = vadd.f32 %v4233, %v4505
      %v4507 = vand.u32 %v4094, 4294901760
      %4508 = vmatmul.f32.gmra.mxu0 %v4507
      %v4509 = vpop.f32.mrf.mxu0
      %v4510 = vadd.f32 %v4241, %v4509
      %v4511 = vand.u32 %v4097, 4294901760
      %4512 = vmatmul.f32.gmra.mxu0 %v4511
      %v4513 = vpop.f32.mrf.mxu0
      %v4514 = vadd.f32 %v4249, %v4513
      %v4515 = vand.u32 %v4100, 4294901760
      %4516 = vmatmul.f32.gmra.mxu0 %v4515
      %v4517 = vpop.f32.mrf.mxu0
      %v4518 = vadd.f32 %v4257, %v4517
      %v4519 = vand.u32 %v4103, 4294901760
      %4520 = vmatmul.f32.gmra.mxu0 %v4519
      %v4521 = vpop.f32.mrf.mxu0
      %v4522 = vadd.f32 %v4265, %v4521
      %v4523 = vand.u32 %v4106, 4294901760
      %4524 = vmatmul.f32.gmra.mxu0 %v4523
      %v4525 = vpop.f32.mrf.mxu0
      %v4526 = vadd.f32 %v4273, %v4525
      %v4527 = vand.u32 %v4109, 4294901760
      %4528 = vmatmul.f32.gmra.mxu0 %v4527
      %v4529 = vpop.f32.mrf.mxu0
      %v4530 = vadd.f32 %v4281, %v4529
      %v4531 = vand.u32 %v4112, 4294901760
      %4532 = vmatmul.f32.gmra.mxu0 %v4531
      %v4533 = vpop.f32.mrf.mxu0
      %v4534 = vadd.f32 %v4289, %v4533
      %v4535 = vand.u32 %v4115, 4294901760
      %4536 = vmatmul.f32.gmra.mxu0 %v4535
      %v4537 = vpop.f32.mrf.mxu0
      %v4538 = vadd.f32 %v4297, %v4537
      %v4539 = vand.u32 %v4118, 4294901760
      %4540 = vmatmul.f32.gmra.mxu0 %v4539
      %v4541 = vpop.f32.mrf.mxu0
      %v4542 = vadd.f32 %v4305, %v4541
      %v4543 = vand.u32 %v4121, 4294901760
      %4544 = vmatmul.f32.gmra.mxu0 %v4543
      %v4545 = vpop.f32.mrf.mxu0
      %v4546 = vadd.f32 %v4313, %v4545
      %v4547 = vand.u32 %v4124, 4294901760
      %4548 = vmatmul.f32.gmra.mxu0 %v4547
      %v4549 = vpop.f32.mrf.mxu0
      %v4550 = vadd.f32 %v4321, %v4549
      %v4551 = vand.u32 %v4127, 4294901760
      %4552 = vmatmul.f32.gmra.mxu0 %v4551
      %v4553 = vpop.f32.mrf.mxu0
      %v4554 = vadd.f32 %v4329, %v4553
      %v4555 = vand.u32 %v4130, 4294901760
      %4556 = vmatmul.f32.gmra.mxu0 %v4555
      %v4557 = vpop.f32.mrf.mxu0
      %v4558 = vadd.f32 %v4337, %v4557
      %v4559 = vand.u32 %v4133, 4294901760
      %4560 = vmatmul.f32.gmra.mxu0 %v4559
      %v4561 = vpop.f32.mrf.mxu0
      %v4562 = vadd.f32 %v4345, %v4561
      %v4563 = vand.u32 %v4136, 4294901760
      %4564 = vmatmul.f32.gmra.mxu0 %v4563
      %v4565 = vpop.f32.mrf.mxu0
      %v4566 = vadd.f32 %v4353, %v4565
      %v4567 = vand.u32 %v4139, 4294901760
      %4568 = vmatmul.f32.gmra.mxu0 %v4567
      %v4569 = vpop.f32.mrf.mxu0
      %v4570 = vadd.f32 %v4361, %v4569
      %v4571 = vand.u32 %v4142, 4294901760
      %4572 = vmatmul.f32.gmra.mxu0 %v4571
      %v4573 = vpop.f32.mrf.mxu0
      %v4574 = vadd.f32 %v4369, %v4573
      %v4575 = vand.u32 %v4145, 4294901760
      %4576 = vmatmul.f32.gmra.mxu0 %v4575
      %v4577 = vpop.f32.mrf.mxu0
      %v4578 = vadd.f32 %v4377, %v4577
      %v4579 = vand.u32 %v4148, 4294901760
      %4580 = vmatmul.f32.gmra.mxu0 %v4579
      %v4581 = vpop.f32.mrf.mxu0
      %v4582 = vadd.f32 %v4385, %v4581
      %v4583 = vand.u32 %v4151, 4294901760
      %4584 = vmatmul.f32.gmra.mxu0 %v4583
      %v4585 = vpop.f32.mrf.mxu0
      %v4586 = vadd.f32 %v4393, %v4585
      %v4587 = vand.u32 %v4154, 4294901760
      %4588 = vmatmul.f32.gmra.mxu0 %v4587
      %v4589 = vpop.f32.mrf.mxu0
      %v4590 = vadd.f32 %v4401, %v4589
      %v4591 = vand.u32 %v4157, 4294901760
      %4592 = vmatmul.f32.gmra.mxu0 %v4591
      %v4593 = vpop.f32.mrf.mxu0
      %v4594 = vadd.f32 %v4409, %v4593
      %v4595 = vand.u32 %v4160, 4294901760
      %4596 = vmatmul.f32.gmra.mxu0 %v4595
      %v4597 = vpop.f32.mrf.mxu0
      %v4598 = vadd.f32 %v4417, %v4597
      %v4599 = vand.u32 %v4163, 4294901760
      %4600 = vmatmul.f32.gmra.mxu0 %v4599
      %v4601 = vpop.f32.mrf.mxu0
      %v4602 = vadd.f32 %v4425, %v4601
      %v4603 = vand.u32 %v4166, 4294901760
      %4604 = vmatmul.f32.gmra.mxu0 %v4603
      %v4605 = vpop.f32.mrf.mxu0
      %v4606 = vadd.f32 %v4433, %v4605
      %v4607 = vand.u32 %v4169, 4294901760
      %4608 = vmatmul.f32.gmra.mxu0 %v4607
      %v4609 = vpop.f32.mrf.mxu0
      %v4610 = vadd.f32 %v4441, %v4609
      %v4611 = vand.u32 %v4172, 4294901760
      %4612 = vmatmul.f32.gmra.mxu0 %v4611
      %v4613 = vpop.f32.mrf.mxu0
      %v4614 = vadd.f32 %v4449, %v4613
      %4615 = vdwg.mxu0
      %4616 = vmatpush.msra.mxu0 0.0
      %4617 = vmatpush.msra.mxu0 0.0
      %4618 = vmatpush.msra.mxu0 0.0
      %4619 = vmatpush.msra.mxu0 0.0
      %4620 = vmatpush.msra.mxu0 0.0
      %4621 = vmatpush.msra.mxu0 0.0
      %4622 = vmatpush.msra.mxu0 0.0
      %4623 = vmatpush.msra.mxu0 0.0
      %4624 = vmatpush.msra.mxu0 0.0
      %4625 = vmatpush.msra.mxu0 0.0
      %4626 = vmatpush.msra.mxu0 0.0
      %4627 = vmatpush.msra.mxu0 0.0
      %v4628 = vand.u32 %v4077, 4294901760
      %v4629 = vsub.f32 %v4077, %v4628
      %4630 = vmatpush.msra.mxu0 %v4629
      %v4631 = vand.u32 %v4076, 4294901760
      %v4632 = vsub.f32 %v4076, %v4631
      %4633 = vmatpush.msra.mxu0 %v4632
      %v4634 = vand.u32 %v4075, 4294901760
      %v4635 = vsub.f32 %v4075, %v4634
      %4636 = vmatpush.msra.mxu0 %v4635
      %v4637 = vand.u32 %v4074, 4294901760
      %v4638 = vsub.f32 %v4074, %v4637
      %4639 = vmatpush.msra.mxu0 %v4638
      %v4640 = vand.u32 %v4079, 4294901760
      %v4641 = vsub.f32 %v4079, %v4640
      %4642 = vmatmul.f32.gmra.mxu0 %v4641
      %v4643 = vpop.f32.mrf.mxu0
      %v4644 = vadd.f32 %v4490, %v4643
      %v4645 = vand.u32 %v4082, 4294901760
      %v4646 = vsub.f32 %v4082, %v4645
      %4647 = vmatmul.f32.gmra.mxu0 %v4646
      %v4648 = vpop.f32.mrf.mxu0
      %v4649 = vadd.f32 %v4494, %v4648
      %v4650 = vand.u32 %v4085, 4294901760
      %v4651 = vsub.f32 %v4085, %v4650
      %4652 = vmatmul.f32.gmra.mxu0 %v4651
      %v4653 = vpop.f32.mrf.mxu0
      %v4654 = vadd.f32 %v4498, %v4653
      %v4655 = vand.u32 %v4088, 4294901760
      %v4656 = vsub.f32 %v4088, %v4655
      %4657 = vmatmul.f32.gmra.mxu0 %v4656
      %v4658 = vpop.f32.mrf.mxu0
      %v4659 = vadd.f32 %v4502, %v4658
      %v4660 = vand.u32 %v4091, 4294901760
      %v4661 = vsub.f32 %v4091, %v4660
      %4662 = vmatmul.f32.gmra.mxu0 %v4661
      %v4663 = vpop.f32.mrf.mxu0
      %v4664 = vadd.f32 %v4506, %v4663
      %v4665 = vand.u32 %v4094, 4294901760
      %v4666 = vsub.f32 %v4094, %v4665
      %4667 = vmatmul.f32.gmra.mxu0 %v4666
      %v4668 = vpop.f32.mrf.mxu0
      %v4669 = vadd.f32 %v4510, %v4668
      %v4670 = vand.u32 %v4097, 4294901760
      %v4671 = vsub.f32 %v4097, %v4670
      %4672 = vmatmul.f32.gmra.mxu0 %v4671
      %v4673 = vpop.f32.mrf.mxu0
      %v4674 = vadd.f32 %v4514, %v4673
      %v4675 = vand.u32 %v4100, 4294901760
      %v4676 = vsub.f32 %v4100, %v4675
      %4677 = vmatmul.f32.gmra.mxu0 %v4676
      %v4678 = vpop.f32.mrf.mxu0
      %v4679 = vadd.f32 %v4518, %v4678
      %v4680 = vand.u32 %v4103, 4294901760
      %v4681 = vsub.f32 %v4103, %v4680
      %4682 = vmatmul.f32.gmra.mxu0 %v4681
      %v4683 = vpop.f32.mrf.mxu0
      %v4684 = vadd.f32 %v4522, %v4683
      %v4685 = vand.u32 %v4106, 4294901760
      %v4686 = vsub.f32 %v4106, %v4685
      %4687 = vmatmul.f32.gmra.mxu0 %v4686
      %v4688 = vpop.f32.mrf.mxu0
      %v4689 = vadd.f32 %v4526, %v4688
      %v4690 = vand.u32 %v4109, 4294901760
      %v4691 = vsub.f32 %v4109, %v4690
      %4692 = vmatmul.f32.gmra.mxu0 %v4691
      %v4693 = vpop.f32.mrf.mxu0
      %v4694 = vadd.f32 %v4530, %v4693
      %v4695 = vand.u32 %v4112, 4294901760
      %v4696 = vsub.f32 %v4112, %v4695
      %4697 = vmatmul.f32.gmra.mxu0 %v4696
      %v4698 = vpop.f32.mrf.mxu0
      %v4699 = vadd.f32 %v4534, %v4698
      %v4700 = vand.u32 %v4115, 4294901760
      %v4701 = vsub.f32 %v4115, %v4700
      %4702 = vmatmul.f32.gmra.mxu0 %v4701
      %v4703 = vpop.f32.mrf.mxu0
      %v4704 = vadd.f32 %v4538, %v4703
      %v4705 = vand.u32 %v4118, 4294901760
      %v4706 = vsub.f32 %v4118, %v4705
      %4707 = vmatmul.f32.gmra.mxu0 %v4706
      %v4708 = vpop.f32.mrf.mxu0
      %v4709 = vadd.f32 %v4542, %v4708
      %v4710 = vand.u32 %v4121, 4294901760
      %v4711 = vsub.f32 %v4121, %v4710
      %4712 = vmatmul.f32.gmra.mxu0 %v4711
      %v4713 = vpop.f32.mrf.mxu0
      %v4714 = vadd.f32 %v4546, %v4713
      %v4715 = vand.u32 %v4124, 4294901760
      %v4716 = vsub.f32 %v4124, %v4715
      %4717 = vmatmul.f32.gmra.mxu0 %v4716
      %v4718 = vpop.f32.mrf.mxu0
      %v4719 = vadd.f32 %v4550, %v4718
      %v4720 = vand.u32 %v4127, 4294901760
      %v4721 = vsub.f32 %v4127, %v4720
      %4722 = vmatmul.f32.gmra.mxu0 %v4721
      %v4723 = vpop.f32.mrf.mxu0
      %v4724 = vadd.f32 %v4554, %v4723
      %v4725 = vand.u32 %v4130, 4294901760
      %v4726 = vsub.f32 %v4130, %v4725
      %4727 = vmatmul.f32.gmra.mxu0 %v4726
      %v4728 = vpop.f32.mrf.mxu0
      %v4729 = vadd.f32 %v4558, %v4728
      %v4730 = vand.u32 %v4133, 4294901760
      %v4731 = vsub.f32 %v4133, %v4730
      %4732 = vmatmul.f32.gmra.mxu0 %v4731
      %v4733 = vpop.f32.mrf.mxu0
      %v4734 = vadd.f32 %v4562, %v4733
      %v4735 = vand.u32 %v4136, 4294901760
      %v4736 = vsub.f32 %v4136, %v4735
      %4737 = vmatmul.f32.gmra.mxu0 %v4736
      %v4738 = vpop.f32.mrf.mxu0
      %v4739 = vadd.f32 %v4566, %v4738
      %v4740 = vand.u32 %v4139, 4294901760
      %v4741 = vsub.f32 %v4139, %v4740
      %4742 = vmatmul.f32.gmra.mxu0 %v4741
      %v4743 = vpop.f32.mrf.mxu0
      %v4744 = vadd.f32 %v4570, %v4743
      %v4745 = vand.u32 %v4142, 4294901760
      %v4746 = vsub.f32 %v4142, %v4745
      %4747 = vmatmul.f32.gmra.mxu0 %v4746
      %v4748 = vpop.f32.mrf.mxu0
      %v4749 = vadd.f32 %v4574, %v4748
      %v4750 = vand.u32 %v4145, 4294901760
      %v4751 = vsub.f32 %v4145, %v4750
      %4752 = vmatmul.f32.gmra.mxu0 %v4751
      %v4753 = vpop.f32.mrf.mxu0
      %v4754 = vadd.f32 %v4578, %v4753
      %v4755 = vand.u32 %v4148, 4294901760
      %v4756 = vsub.f32 %v4148, %v4755
      %4757 = vmatmul.f32.gmra.mxu0 %v4756
      %v4758 = vpop.f32.mrf.mxu0
      %v4759 = vadd.f32 %v4582, %v4758
      %v4760 = vand.u32 %v4151, 4294901760
      %v4761 = vsub.f32 %v4151, %v4760
      %4762 = vmatmul.f32.gmra.mxu0 %v4761
      %v4763 = vpop.f32.mrf.mxu0
      %v4764 = vadd.f32 %v4586, %v4763
      %v4765 = vand.u32 %v4154, 4294901760
      %v4766 = vsub.f32 %v4154, %v4765
      %4767 = vmatmul.f32.gmra.mxu0 %v4766
      %v4768 = vpop.f32.mrf.mxu0
      %v4769 = vadd.f32 %v4590, %v4768
      %v4770 = vand.u32 %v4157, 4294901760
      %v4771 = vsub.f32 %v4157, %v4770
      %4772 = vmatmul.f32.gmra.mxu0 %v4771
      %v4773 = vpop.f32.mrf.mxu0
      %v4774 = vadd.f32 %v4594, %v4773
      %v4775 = vand.u32 %v4160, 4294901760
      %v4776 = vsub.f32 %v4160, %v4775
      %4777 = vmatmul.f32.gmra.mxu0 %v4776
      %v4778 = vpop.f32.mrf.mxu0
      %v4779 = vadd.f32 %v4598, %v4778
      %v4780 = vand.u32 %v4163, 4294901760
      %v4781 = vsub.f32 %v4163, %v4780
      %4782 = vmatmul.f32.gmra.mxu0 %v4781
      %v4783 = vpop.f32.mrf.mxu0
      %v4784 = vadd.f32 %v4602, %v4783
      %v4785 = vand.u32 %v4166, 4294901760
      %v4786 = vsub.f32 %v4166, %v4785
      %4787 = vmatmul.f32.gmra.mxu0 %v4786
      %v4788 = vpop.f32.mrf.mxu0
      %v4789 = vadd.f32 %v4606, %v4788
      %v4790 = vand.u32 %v4169, 4294901760
      %v4791 = vsub.f32 %v4169, %v4790
      %4792 = vmatmul.f32.gmra.mxu0 %v4791
      %v4793 = vpop.f32.mrf.mxu0
      %v4794 = vadd.f32 %v4610, %v4793
      %v4795 = vand.u32 %v4172, 4294901760
      %v4796 = vsub.f32 %v4172, %v4795
      %4797 = vmatmul.f32.gmra.mxu0 %v4796
      %v4798 = vpop.f32.mrf.mxu0
      %v4799 = vadd.f32 %v4614, %v4798
      %4800 = vdwg.mxu0
      %4801 = vmatpush.msra.mxu0 0.0
      %4802 = vmatpush.msra.mxu0 0.0
      %4803 = vmatpush.msra.mxu0 0.0
      %4804 = vmatpush.msra.mxu0 0.0
      %4805 = vmatpush.msra.mxu0 0.0
      %4806 = vmatpush.msra.mxu0 0.0
      %4807 = vmatpush.msra.mxu0 0.0
      %4808 = vmatpush.msra.mxu0 0.0
      %4809 = vmatpush.msra.mxu0 0.0
      %4810 = vmatpush.msra.mxu0 0.0
      %4811 = vmatpush.msra.mxu0 0.0
      %4812 = vmatpush.msra.mxu0 0.0
      %v4813 = vand.u32 %v4077, 4294901760
      %4814 = vmatpush.msra.mxu0 %v4813
      %v4815 = vand.u32 %v4076, 4294901760
      %4816 = vmatpush.msra.mxu0 %v4815
      %v4817 = vand.u32 %v4075, 4294901760
      %4818 = vmatpush.msra.mxu0 %v4817
      %v4819 = vand.u32 %v4074, 4294901760
      %4820 = vmatpush.msra.mxu0 %v4819
      %v4821 = vand.u32 %v4079, 4294901760
      %v4822 = vsub.f32 %v4079, %v4821
      %v4823 = vand.u32 %v4822, 4294901760
      %4824 = vmatmul.f32.gmra.mxu0 %v4823
      %v4825 = vpop.f32.mrf.mxu0
      %v4826 = vadd.f32 %v4644, %v4825
      %v4827 = vand.u32 %v4082, 4294901760
      %v4828 = vsub.f32 %v4082, %v4827
      %v4829 = vand.u32 %v4828, 4294901760
      %4830 = vmatmul.f32.gmra.mxu0 %v4829
      %v4831 = vpop.f32.mrf.mxu0
      %v4832 = vadd.f32 %v4649, %v4831
      %v4833 = vand.u32 %v4085, 4294901760
      %v4834 = vsub.f32 %v4085, %v4833
      %v4835 = vand.u32 %v4834, 4294901760
      %4836 = vmatmul.f32.gmra.mxu0 %v4835
      %v4837 = vpop.f32.mrf.mxu0
      %v4838 = vadd.f32 %v4654, %v4837
      %v4839 = vand.u32 %v4088, 4294901760
      %v4840 = vsub.f32 %v4088, %v4839
      %v4841 = vand.u32 %v4840, 4294901760
      %4842 = vmatmul.f32.gmra.mxu0 %v4841
      %v4843 = vpop.f32.mrf.mxu0
      %v4844 = vadd.f32 %v4659, %v4843
      %v4845 = vand.u32 %v4091, 4294901760
      %v4846 = vsub.f32 %v4091, %v4845
      %v4847 = vand.u32 %v4846, 4294901760
      %4848 = vmatmul.f32.gmra.mxu0 %v4847
      %v4849 = vpop.f32.mrf.mxu0
      %v4850 = vadd.f32 %v4664, %v4849
      %v4851 = vand.u32 %v4094, 4294901760
      %v4852 = vsub.f32 %v4094, %v4851
      %v4853 = vand.u32 %v4852, 4294901760
      %4854 = vmatmul.f32.gmra.mxu0 %v4853
      %v4855 = vpop.f32.mrf.mxu0
      %v4856 = vadd.f32 %v4669, %v4855
      %v4857 = vand.u32 %v4097, 4294901760
      %v4858 = vsub.f32 %v4097, %v4857
      %v4859 = vand.u32 %v4858, 4294901760
      %4860 = vmatmul.f32.gmra.mxu0 %v4859
      %v4861 = vpop.f32.mrf.mxu0
      %v4862 = vadd.f32 %v4674, %v4861
      %v4863 = vand.u32 %v4100, 4294901760
      %v4864 = vsub.f32 %v4100, %v4863
      %v4865 = vand.u32 %v4864, 4294901760
      %4866 = vmatmul.f32.gmra.mxu0 %v4865
      %v4867 = vpop.f32.mrf.mxu0
      %v4868 = vadd.f32 %v4679, %v4867
      %v4869 = vand.u32 %v4103, 4294901760
      %v4870 = vsub.f32 %v4103, %v4869
      %v4871 = vand.u32 %v4870, 4294901760
      %4872 = vmatmul.f32.gmra.mxu0 %v4871
      %v4873 = vpop.f32.mrf.mxu0
      %v4874 = vadd.f32 %v4684, %v4873
      %v4875 = vand.u32 %v4106, 4294901760
      %v4876 = vsub.f32 %v4106, %v4875
      %v4877 = vand.u32 %v4876, 4294901760
      %4878 = vmatmul.f32.gmra.mxu0 %v4877
      %v4879 = vpop.f32.mrf.mxu0
      %v4880 = vadd.f32 %v4689, %v4879
      %v4881 = vand.u32 %v4109, 4294901760
      %v4882 = vsub.f32 %v4109, %v4881
      %v4883 = vand.u32 %v4882, 4294901760
      %4884 = vmatmul.f32.gmra.mxu0 %v4883
      %v4885 = vpop.f32.mrf.mxu0
      %v4886 = vadd.f32 %v4694, %v4885
      %v4887 = vand.u32 %v4112, 4294901760
      %v4888 = vsub.f32 %v4112, %v4887
      %v4889 = vand.u32 %v4888, 4294901760
      %4890 = vmatmul.f32.gmra.mxu0 %v4889
      %v4891 = vpop.f32.mrf.mxu0
      %v4892 = vadd.f32 %v4699, %v4891
      %v4893 = vand.u32 %v4115, 4294901760
      %v4894 = vsub.f32 %v4115, %v4893
      %v4895 = vand.u32 %v4894, 4294901760
      %4896 = vmatmul.f32.gmra.mxu0 %v4895
      %v4897 = vpop.f32.mrf.mxu0
      %v4898 = vadd.f32 %v4704, %v4897
      %v4899 = vand.u32 %v4118, 4294901760
      %v4900 = vsub.f32 %v4118, %v4899
      %v4901 = vand.u32 %v4900, 4294901760
      %4902 = vmatmul.f32.gmra.mxu0 %v4901
      %v4903 = vpop.f32.mrf.mxu0
      %v4904 = vadd.f32 %v4709, %v4903
      %v4905 = vand.u32 %v4121, 4294901760
      %v4906 = vsub.f32 %v4121, %v4905
      %v4907 = vand.u32 %v4906, 4294901760
      %4908 = vmatmul.f32.gmra.mxu0 %v4907
      %v4909 = vpop.f32.mrf.mxu0
      %v4910 = vadd.f32 %v4714, %v4909
      %v4911 = vand.u32 %v4124, 4294901760
      %v4912 = vsub.f32 %v4124, %v4911
      %v4913 = vand.u32 %v4912, 4294901760
      %4914 = vmatmul.f32.gmra.mxu0 %v4913
      %v4915 = vpop.f32.mrf.mxu0
      %v4916 = vadd.f32 %v4719, %v4915
      %v4917 = vand.u32 %v4127, 4294901760
      %v4918 = vsub.f32 %v4127, %v4917
      %v4919 = vand.u32 %v4918, 4294901760
      %4920 = vmatmul.f32.gmra.mxu0 %v4919
      %v4921 = vpop.f32.mrf.mxu0
      %v4922 = vadd.f32 %v4724, %v4921
      %v4923 = vand.u32 %v4130, 4294901760
      %v4924 = vsub.f32 %v4130, %v4923
      %v4925 = vand.u32 %v4924, 4294901760
      %4926 = vmatmul.f32.gmra.mxu0 %v4925
      %v4927 = vpop.f32.mrf.mxu0
      %v4928 = vadd.f32 %v4729, %v4927
      %v4929 = vand.u32 %v4133, 4294901760
      %v4930 = vsub.f32 %v4133, %v4929
      %v4931 = vand.u32 %v4930, 4294901760
      %4932 = vmatmul.f32.gmra.mxu0 %v4931
      %v4933 = vpop.f32.mrf.mxu0
      %v4934 = vadd.f32 %v4734, %v4933
      %v4935 = vand.u32 %v4136, 4294901760
      %v4936 = vsub.f32 %v4136, %v4935
      %v4937 = vand.u32 %v4936, 4294901760
      %4938 = vmatmul.f32.gmra.mxu0 %v4937
      %v4939 = vpop.f32.mrf.mxu0
      %v4940 = vadd.f32 %v4739, %v4939
      %v4941 = vand.u32 %v4139, 4294901760
      %v4942 = vsub.f32 %v4139, %v4941
      %v4943 = vand.u32 %v4942, 4294901760
      %4944 = vmatmul.f32.gmra.mxu0 %v4943
      %v4945 = vpop.f32.mrf.mxu0
      %v4946 = vadd.f32 %v4744, %v4945
      %v4947 = vand.u32 %v4142, 4294901760
      %v4948 = vsub.f32 %v4142, %v4947
      %v4949 = vand.u32 %v4948, 4294901760
      %4950 = vmatmul.f32.gmra.mxu0 %v4949
      %v4951 = vpop.f32.mrf.mxu0
      %v4952 = vadd.f32 %v4749, %v4951
      %v4953 = vand.u32 %v4145, 4294901760
      %v4954 = vsub.f32 %v4145, %v4953
      %v4955 = vand.u32 %v4954, 4294901760
      %4956 = vmatmul.f32.gmra.mxu0 %v4955
      %v4957 = vpop.f32.mrf.mxu0
      %v4958 = vadd.f32 %v4754, %v4957
      %v4959 = vand.u32 %v4148, 4294901760
      %v4960 = vsub.f32 %v4148, %v4959
      %v4961 = vand.u32 %v4960, 4294901760
      %4962 = vmatmul.f32.gmra.mxu0 %v4961
      %v4963 = vpop.f32.mrf.mxu0
      %v4964 = vadd.f32 %v4759, %v4963
      %v4965 = vand.u32 %v4151, 4294901760
      %v4966 = vsub.f32 %v4151, %v4965
      %v4967 = vand.u32 %v4966, 4294901760
      %4968 = vmatmul.f32.gmra.mxu0 %v4967
      %v4969 = vpop.f32.mrf.mxu0
      %v4970 = vadd.f32 %v4764, %v4969
      %v4971 = vand.u32 %v4154, 4294901760
      %v4972 = vsub.f32 %v4154, %v4971
      %v4973 = vand.u32 %v4972, 4294901760
      %4974 = vmatmul.f32.gmra.mxu0 %v4973
      %v4975 = vpop.f32.mrf.mxu0
      %v4976 = vadd.f32 %v4769, %v4975
      %v4977 = vand.u32 %v4157, 4294901760
      %v4978 = vsub.f32 %v4157, %v4977
      %v4979 = vand.u32 %v4978, 4294901760
      %4980 = vmatmul.f32.gmra.mxu0 %v4979
      %v4981 = vpop.f32.mrf.mxu0
      %v4982 = vadd.f32 %v4774, %v4981
      %v4983 = vand.u32 %v4160, 4294901760
      %v4984 = vsub.f32 %v4160, %v4983
      %v4985 = vand.u32 %v4984, 4294901760
      %4986 = vmatmul.f32.gmra.mxu0 %v4985
      %v4987 = vpop.f32.mrf.mxu0
      %v4988 = vadd.f32 %v4779, %v4987
      %v4989 = vand.u32 %v4163, 4294901760
      %v4990 = vsub.f32 %v4163, %v4989
      %v4991 = vand.u32 %v4990, 4294901760
      %4992 = vmatmul.f32.gmra.mxu0 %v4991
      %v4993 = vpop.f32.mrf.mxu0
      %v4994 = vadd.f32 %v4784, %v4993
      %v4995 = vand.u32 %v4166, 4294901760
      %v4996 = vsub.f32 %v4166, %v4995
      %v4997 = vand.u32 %v4996, 4294901760
      %4998 = vmatmul.f32.gmra.mxu0 %v4997
      %v4999 = vpop.f32.mrf.mxu0
      %v5000 = vadd.f32 %v4789, %v4999
      %v5001 = vand.u32 %v4169, 4294901760
      %v5002 = vsub.f32 %v4169, %v5001
      %v5003 = vand.u32 %v5002, 4294901760
      %5004 = vmatmul.f32.gmra.mxu0 %v5003
      %v5005 = vpop.f32.mrf.mxu0
      %v5006 = vadd.f32 %v4794, %v5005
      %v5007 = vand.u32 %v4172, 4294901760
      %v5008 = vsub.f32 %v4172, %v5007
      %v5009 = vand.u32 %v5008, 4294901760
      %5010 = vmatmul.f32.gmra.mxu0 %v5009
      %v5011 = vpop.f32.mrf.mxu0
      %v5012 = vadd.f32 %v4799, %v5011
      %5013 = vdwg.mxu0
      %5014 = vmatpush.msra.mxu0 0.0
      %5015 = vmatpush.msra.mxu0 0.0
      %5016 = vmatpush.msra.mxu0 0.0
      %5017 = vmatpush.msra.mxu0 0.0
      %5018 = vmatpush.msra.mxu0 0.0
      %5019 = vmatpush.msra.mxu0 0.0
      %5020 = vmatpush.msra.mxu0 0.0
      %5021 = vmatpush.msra.mxu0 0.0
      %5022 = vmatpush.msra.mxu0 0.0
      %5023 = vmatpush.msra.mxu0 0.0
      %5024 = vmatpush.msra.mxu0 0.0
      %5025 = vmatpush.msra.mxu0 0.0
      %v5026 = vand.u32 %v4077, 4294901760
      %v5027 = vsub.f32 %v4077, %v5026
      %v5028 = vand.u32 %v5027, 4294901760
      %5029 = vmatpush.msra.mxu0 %v5028
      %v5030 = vand.u32 %v4076, 4294901760
      %v5031 = vsub.f32 %v4076, %v5030
      %v5032 = vand.u32 %v5031, 4294901760
      %5033 = vmatpush.msra.mxu0 %v5032
      %v5034 = vand.u32 %v4075, 4294901760
      %v5035 = vsub.f32 %v4075, %v5034
      %v5036 = vand.u32 %v5035, 4294901760
      %5037 = vmatpush.msra.mxu0 %v5036
      %v5038 = vand.u32 %v4074, 4294901760
      %v5039 = vsub.f32 %v4074, %v5038
      %v5040 = vand.u32 %v5039, 4294901760
      %5041 = vmatpush.msra.mxu0 %v5040
      %v5042 = vand.u32 %v4079, 4294901760
      %5043 = vmatmul.f32.gmra.mxu0 %v5042
      %v5044 = vpop.f32.mrf.mxu0
      %v5045 = vadd.f32 %v4826, %v5044
      %v5046 = vand.u32 %v4082, 4294901760
      %5047 = vmatmul.f32.gmra.mxu0 %v5046
      %v5048 = vpop.f32.mrf.mxu0
      %v5049 = vadd.f32 %v4832, %v5048
      %v5050 = vand.u32 %v4085, 4294901760
      %5051 = vmatmul.f32.gmra.mxu0 %v5050
      %v5052 = vpop.f32.mrf.mxu0
      %v5053 = vadd.f32 %v4838, %v5052
      %v5054 = vand.u32 %v4088, 4294901760
      %5055 = vmatmul.f32.gmra.mxu0 %v5054
      %v5056 = vpop.f32.mrf.mxu0
      %v5057 = vadd.f32 %v4844, %v5056
      %v5058 = vand.u32 %v4091, 4294901760
      %5059 = vmatmul.f32.gmra.mxu0 %v5058
      %v5060 = vpop.f32.mrf.mxu0
      %v5061 = vadd.f32 %v4850, %v5060
      %v5062 = vand.u32 %v4094, 4294901760
      %5063 = vmatmul.f32.gmra.mxu0 %v5062
      %v5064 = vpop.f32.mrf.mxu0
      %v5065 = vadd.f32 %v4856, %v5064
      %v5066 = vand.u32 %v4097, 4294901760
      %5067 = vmatmul.f32.gmra.mxu0 %v5066
      %v5068 = vpop.f32.mrf.mxu0
      %v5069 = vadd.f32 %v4862, %v5068
      %v5070 = vand.u32 %v4100, 4294901760
      %5071 = vmatmul.f32.gmra.mxu0 %v5070
      %v5072 = vpop.f32.mrf.mxu0
      %v5073 = vadd.f32 %v4868, %v5072
      %v5074 = vand.u32 %v4103, 4294901760
      %5075 = vmatmul.f32.gmra.mxu0 %v5074
      %v5076 = vpop.f32.mrf.mxu0
      %v5077 = vadd.f32 %v4874, %v5076
      %v5078 = vand.u32 %v4106, 4294901760
      %5079 = vmatmul.f32.gmra.mxu0 %v5078
      %v5080 = vpop.f32.mrf.mxu0
      %v5081 = vadd.f32 %v4880, %v5080
      %v5082 = vand.u32 %v4109, 4294901760
      %5083 = vmatmul.f32.gmra.mxu0 %v5082
      %v5084 = vpop.f32.mrf.mxu0
      %v5085 = vadd.f32 %v4886, %v5084
      %v5086 = vand.u32 %v4112, 4294901760
      %5087 = vmatmul.f32.gmra.mxu0 %v5086
      %v5088 = vpop.f32.mrf.mxu0
      %v5089 = vadd.f32 %v4892, %v5088
      %v5090 = vand.u32 %v4115, 4294901760
      %5091 = vmatmul.f32.gmra.mxu0 %v5090
      %v5092 = vpop.f32.mrf.mxu0
      %v5093 = vadd.f32 %v4898, %v5092
      %v5094 = vand.u32 %v4118, 4294901760
      %5095 = vmatmul.f32.gmra.mxu0 %v5094
      %v5096 = vpop.f32.mrf.mxu0
      %v5097 = vadd.f32 %v4904, %v5096
      %v5098 = vand.u32 %v4121, 4294901760
      %5099 = vmatmul.f32.gmra.mxu0 %v5098
      %v5100 = vpop.f32.mrf.mxu0
      %v5101 = vadd.f32 %v4910, %v5100
      %v5102 = vand.u32 %v4124, 4294901760
      %5103 = vmatmul.f32.gmra.mxu0 %v5102
      %v5104 = vpop.f32.mrf.mxu0
      %v5105 = vadd.f32 %v4916, %v5104
      %v5106 = vand.u32 %v4127, 4294901760
      %5107 = vmatmul.f32.gmra.mxu0 %v5106
      %v5108 = vpop.f32.mrf.mxu0
      %v5109 = vadd.f32 %v4922, %v5108
      %v5110 = vand.u32 %v4130, 4294901760
      %5111 = vmatmul.f32.gmra.mxu0 %v5110
      %v5112 = vpop.f32.mrf.mxu0
      %v5113 = vadd.f32 %v4928, %v5112
      %v5114 = vand.u32 %v4133, 4294901760
      %5115 = vmatmul.f32.gmra.mxu0 %v5114
      %v5116 = vpop.f32.mrf.mxu0
      %v5117 = vadd.f32 %v4934, %v5116
      %v5118 = vand.u32 %v4136, 4294901760
      %5119 = vmatmul.f32.gmra.mxu0 %v5118
      %v5120 = vpop.f32.mrf.mxu0
      %v5121 = vadd.f32 %v4940, %v5120
      %v5122 = vand.u32 %v4139, 4294901760
      %5123 = vmatmul.f32.gmra.mxu0 %v5122
      %v5124 = vpop.f32.mrf.mxu0
      %v5125 = vadd.f32 %v4946, %v5124
      %v5126 = vand.u32 %v4142, 4294901760
      %5127 = vmatmul.f32.gmra.mxu0 %v5126
      %v5128 = vpop.f32.mrf.mxu0
      %v5129 = vadd.f32 %v4952, %v5128
      %v5130 = vand.u32 %v4145, 4294901760
      %5131 = vmatmul.f32.gmra.mxu0 %v5130
      %v5132 = vpop.f32.mrf.mxu0
      %v5133 = vadd.f32 %v4958, %v5132
      %v5134 = vand.u32 %v4148, 4294901760
      %5135 = vmatmul.f32.gmra.mxu0 %v5134
      %v5136 = vpop.f32.mrf.mxu0
      %v5137 = vadd.f32 %v4964, %v5136
      %v5138 = vand.u32 %v4151, 4294901760
      %5139 = vmatmul.f32.gmra.mxu0 %v5138
      %v5140 = vpop.f32.mrf.mxu0
      %v5141 = vadd.f32 %v4970, %v5140
      %v5142 = vand.u32 %v4154, 4294901760
      %5143 = vmatmul.f32.gmra.mxu0 %v5142
      %v5144 = vpop.f32.mrf.mxu0
      %v5145 = vadd.f32 %v4976, %v5144
      %v5146 = vand.u32 %v4157, 4294901760
      %5147 = vmatmul.f32.gmra.mxu0 %v5146
      %v5148 = vpop.f32.mrf.mxu0
      %v5149 = vadd.f32 %v4982, %v5148
      %v5150 = vand.u32 %v4160, 4294901760
      %5151 = vmatmul.f32.gmra.mxu0 %v5150
      %v5152 = vpop.f32.mrf.mxu0
      %v5153 = vadd.f32 %v4988, %v5152
      %v5154 = vand.u32 %v4163, 4294901760
      %5155 = vmatmul.f32.gmra.mxu0 %v5154
      %v5156 = vpop.f32.mrf.mxu0
      %v5157 = vadd.f32 %v4994, %v5156
      %v5158 = vand.u32 %v4166, 4294901760
      %5159 = vmatmul.f32.gmra.mxu0 %v5158
      %v5160 = vpop.f32.mrf.mxu0
      %v5161 = vadd.f32 %v5000, %v5160
      %v5162 = vand.u32 %v4169, 4294901760
      %5163 = vmatmul.f32.gmra.mxu0 %v5162
      %v5164 = vpop.f32.mrf.mxu0
      %v5165 = vadd.f32 %v5006, %v5164
      %v5166 = vand.u32 %v4172, 4294901760
      %5167 = vmatmul.f32.gmra.mxu0 %v5166
      %v5168 = vpop.f32.mrf.mxu0
      %v5169 = vadd.f32 %v5012, %v5168
      %5170 = vdwg.mxu0
      %5171 = vmatpush.msra.mxu0 0.0
      %5172 = vmatpush.msra.mxu0 0.0
      %5173 = vmatpush.msra.mxu0 0.0
      %5174 = vmatpush.msra.mxu0 0.0
      %5175 = vmatpush.msra.mxu0 0.0
      %5176 = vmatpush.msra.mxu0 0.0
      %5177 = vmatpush.msra.mxu0 0.0
      %5178 = vmatpush.msra.mxu0 0.0
      %5179 = vmatpush.msra.mxu0 0.0
      %5180 = vmatpush.msra.mxu0 0.0
      %5181 = vmatpush.msra.mxu0 0.0
      %5182 = vmatpush.msra.mxu0 0.0
      %v5183 = vand.u32 %v4077, 4294901760
      %5184 = vmatpush.msra.mxu0 %v5183
      %v5185 = vand.u32 %v4076, 4294901760
      %5186 = vmatpush.msra.mxu0 %v5185
      %v5187 = vand.u32 %v4075, 4294901760
      %5188 = vmatpush.msra.mxu0 %v5187
      %v5189 = vand.u32 %v4074, 4294901760
      %5190 = vmatpush.msra.mxu0 %v5189
      %v5191 = vand.u32 %v4079, 4294901760
      %5192 = vmatmul.f32.gmra.mxu0 %v5191
      %v5193 = vpop.f32.mrf.mxu0
      %v5194 = vadd.f32 %v5045, %v5193
      %v5195 = vand.u32 %v4082, 4294901760
      %5196 = vmatmul.f32.gmra.mxu0 %v5195
      %v5197 = vpop.f32.mrf.mxu0
      %v5198 = vadd.f32 %v5049, %v5197
      %v5199 = vand.u32 %v4085, 4294901760
      %5200 = vmatmul.f32.gmra.mxu0 %v5199
      %v5201 = vpop.f32.mrf.mxu0
      %v5202 = vadd.f32 %v5053, %v5201
      %v5203 = vand.u32 %v4088, 4294901760
      %5204 = vmatmul.f32.gmra.mxu0 %v5203
      %v5205 = vpop.f32.mrf.mxu0
      %v5206 = vadd.f32 %v5057, %v5205
      %v5207 = vand.u32 %v4091, 4294901760
      %5208 = vmatmul.f32.gmra.mxu0 %v5207
      %v5209 = vpop.f32.mrf.mxu0
      %v5210 = vadd.f32 %v5061, %v5209
      %v5211 = vand.u32 %v4094, 4294901760
      %5212 = vmatmul.f32.gmra.mxu0 %v5211
      %v5213 = vpop.f32.mrf.mxu0
      %v5214 = vadd.f32 %v5065, %v5213
      %v5215 = vand.u32 %v4097, 4294901760
      %5216 = vmatmul.f32.gmra.mxu0 %v5215
      %v5217 = vpop.f32.mrf.mxu0
      %v5218 = vadd.f32 %v5069, %v5217
      %v5219 = vand.u32 %v4100, 4294901760
      %5220 = vmatmul.f32.gmra.mxu0 %v5219
      %v5221 = vpop.f32.mrf.mxu0
      %v5222 = vadd.f32 %v5073, %v5221
      %v5223 = vand.u32 %v4103, 4294901760
      %5224 = vmatmul.f32.gmra.mxu0 %v5223
      %v5225 = vpop.f32.mrf.mxu0
      %v5226 = vadd.f32 %v5077, %v5225
      %v5227 = vand.u32 %v4106, 4294901760
      %5228 = vmatmul.f32.gmra.mxu0 %v5227
      %v5229 = vpop.f32.mrf.mxu0
      %v5230 = vadd.f32 %v5081, %v5229
      %v5231 = vand.u32 %v4109, 4294901760
      %5232 = vmatmul.f32.gmra.mxu0 %v5231
      %v5233 = vpop.f32.mrf.mxu0
      %v5234 = vadd.f32 %v5085, %v5233
      %v5235 = vand.u32 %v4112, 4294901760
      %5236 = vmatmul.f32.gmra.mxu0 %v5235
      %v5237 = vpop.f32.mrf.mxu0
      %v5238 = vadd.f32 %v5089, %v5237
      %v5239 = vand.u32 %v4115, 4294901760
      %5240 = vmatmul.f32.gmra.mxu0 %v5239
      %v5241 = vpop.f32.mrf.mxu0
      %v5242 = vadd.f32 %v5093, %v5241
      %v5243 = vand.u32 %v4118, 4294901760
      %5244 = vmatmul.f32.gmra.mxu0 %v5243
      %v5245 = vpop.f32.mrf.mxu0
      %v5246 = vadd.f32 %v5097, %v5245
      %v5247 = vand.u32 %v4121, 4294901760
      %5248 = vmatmul.f32.gmra.mxu0 %v5247
      %v5249 = vpop.f32.mrf.mxu0
      %v5250 = vadd.f32 %v5101, %v5249
      %v5251 = vand.u32 %v4124, 4294901760
      %5252 = vmatmul.f32.gmra.mxu0 %v5251
      %v5253 = vpop.f32.mrf.mxu0
      %v5254 = vadd.f32 %v5105, %v5253
      %v5255 = vand.u32 %v4127, 4294901760
      %5256 = vmatmul.f32.gmra.mxu0 %v5255
      %v5257 = vpop.f32.mrf.mxu0
      %v5258 = vadd.f32 %v5109, %v5257
      %v5259 = vand.u32 %v4130, 4294901760
      %5260 = vmatmul.f32.gmra.mxu0 %v5259
      %v5261 = vpop.f32.mrf.mxu0
      %v5262 = vadd.f32 %v5113, %v5261
      %v5263 = vand.u32 %v4133, 4294901760
      %5264 = vmatmul.f32.gmra.mxu0 %v5263
      %v5265 = vpop.f32.mrf.mxu0
      %v5266 = vadd.f32 %v5117, %v5265
      %v5267 = vand.u32 %v4136, 4294901760
      %5268 = vmatmul.f32.gmra.mxu0 %v5267
      %v5269 = vpop.f32.mrf.mxu0
      %v5270 = vadd.f32 %v5121, %v5269
      %v5271 = vand.u32 %v4139, 4294901760
      %5272 = vmatmul.f32.gmra.mxu0 %v5271
      %v5273 = vpop.f32.mrf.mxu0
      %v5274 = vadd.f32 %v5125, %v5273
      %v5275 = vand.u32 %v4142, 4294901760
      %5276 = vmatmul.f32.gmra.mxu0 %v5275
      %v5277 = vpop.f32.mrf.mxu0
      %v5278 = vadd.f32 %v5129, %v5277
      %v5279 = vand.u32 %v4145, 4294901760
      %5280 = vmatmul.f32.gmra.mxu0 %v5279
      %v5281 = vpop.f32.mrf.mxu0
      %v5282 = vadd.f32 %v5133, %v5281
      %v5283 = vand.u32 %v4148, 4294901760
      %5284 = vmatmul.f32.gmra.mxu0 %v5283
      %v5285 = vpop.f32.mrf.mxu0
      %v5286 = vadd.f32 %v5137, %v5285
      %v5287 = vand.u32 %v4151, 4294901760
      %5288 = vmatmul.f32.gmra.mxu0 %v5287
      %v5289 = vpop.f32.mrf.mxu0
      %v5290 = vadd.f32 %v5141, %v5289
      %v5291 = vand.u32 %v4154, 4294901760
      %5292 = vmatmul.f32.gmra.mxu0 %v5291
      %v5293 = vpop.f32.mrf.mxu0
      %v5294 = vadd.f32 %v5145, %v5293
      %v5295 = vand.u32 %v4157, 4294901760
      %5296 = vmatmul.f32.gmra.mxu0 %v5295
      %v5297 = vpop.f32.mrf.mxu0
      %v5298 = vadd.f32 %v5149, %v5297
      %v5299 = vand.u32 %v4160, 4294901760
      %5300 = vmatmul.f32.gmra.mxu0 %v5299
      %v5301 = vpop.f32.mrf.mxu0
      %v5302 = vadd.f32 %v5153, %v5301
      %v5303 = vand.u32 %v4163, 4294901760
      %5304 = vmatmul.f32.gmra.mxu0 %v5303
      %v5305 = vpop.f32.mrf.mxu0
      %v5306 = vadd.f32 %v5157, %v5305
      %v5307 = vand.u32 %v4166, 4294901760
      %5308 = vmatmul.f32.gmra.mxu0 %v5307
      %v5309 = vpop.f32.mrf.mxu0
      %v5310 = vadd.f32 %v5161, %v5309
      %v5311 = vand.u32 %v4169, 4294901760
      %5312 = vmatmul.f32.gmra.mxu0 %v5311
      %v5313 = vpop.f32.mrf.mxu0
      %v5314 = vadd.f32 %v5165, %v5313
      %v5315 = vand.u32 %v4172, 4294901760
      %5316 = vmatmul.f32.gmra.mxu0 %v5315
      %v5317 = vpop.f32.mrf.mxu0
      %v5318 = vadd.f32 %v5169, %v5317
      %5319 = vdwg.mxu0
      %v5320 = vadd.f32 %v4008, %v5194
      %v5321 = vadd.f32 %v4009, %v5198
      %v5322 = vadd.f32 %v4010, %v5202
      %v5323 = vadd.f32 %v4011, %v5206
      %v5324 = vadd.f32 %v4012, %v5210
      %v5325 = vadd.f32 %v4013, %v5214
      %v5326 = vadd.f32 %v4014, %v5218
      %v5327 = vadd.f32 %v4015, %v5222
      %v5328 = vadd.f32 %v4016, %v5226
      %v5329 = vadd.f32 %v4017, %v5230
      %v5330 = vadd.f32 %v4018, %v5234
      %v5331 = vadd.f32 %v4019, %v5238
      %v5332 = vadd.f32 %v4020, %v5242
      %v5333 = vadd.f32 %v4021, %v5246
      %v5334 = vadd.f32 %v4022, %v5250
      %v5335 = vadd.f32 %v4023, %v5254
      %v5336 = vadd.f32 %v4024, %v5258
      %v5337 = vadd.f32 %v4025, %v5262
      %v5338 = vadd.f32 %v4026, %v5266
      %v5339 = vadd.f32 %v4027, %v5270
      %v5340 = vadd.f32 %v4028, %v5274
      %v5341 = vadd.f32 %v4029, %v5278
      %v5342 = vadd.f32 %v4030, %v5282
      %v5343 = vadd.f32 %v4031, %v5286
      %v5344 = vadd.f32 %v4032, %v5290
      %v5345 = vadd.f32 %v4033, %v5294
      %v5346 = vadd.f32 %v4034, %v5298
      %v5347 = vadd.f32 %v4035, %v5302
      %v5348 = vadd.f32 %v4036, %v5306
      %v5349 = vadd.f32 %v4037, %v5310
      %v5350 = vadd.f32 %v4038, %v5314
      %v5351 = vadd.f32 %v4039, %v5318
      %v5352 = vld [vmem:[%s4040 + $0x1] sm:$0xff]
      %v5353 = vld [vmem:[%s4040 + $0x9] sm:$0xff]
      %v5354 = vld [vmem:[%s4040 + $0x19] sm:$0xff]
      %v5355 = vld [vmem:[%s4040 + $0x21] sm:$0xff]
      %v5356 = vld [vmem:[%s4040 + $0x31] sm:$0xff]
      %v5357 = vld [vmem:[%s4040 + $0x39] sm:$0xff]
      %v5358 = vld [vmem:[%s4040 + $0x49] sm:$0xff]
      %v5359 = vld [vmem:[%s4040 + $0x51] sm:$0xff]
      %v5360 = vld [vmem:[%s4040 + $0x61] sm:$0xff]
      %v5361 = vld [vmem:[%s4040 + $0x69] sm:$0xff]
      %v5362 = vld [vmem:[%s4040 + $0x79] sm:$0xff]
      %v5363 = vld [vmem:[%s4040 + $0x81] sm:$0xff]
      %v5364 = vld [vmem:[%s4040 + $0x91] sm:$0xff]
      %v5365 = vld [vmem:[%s4040 + $0x99] sm:$0xff]
      %v5366 = vld [vmem:[%s4040 + $0xa9] sm:$0xff]
      %v5367 = vld [vmem:[%s4040 + $0xb1] sm:$0xff]
      %v5368 = vld [vmem:[%s4040 + $0xc1] sm:$0xff]
      %v5369 = vld [vmem:[%s4040 + $0xc9] sm:$0xff]
      %v5370 = vld [vmem:[%s4040 + $0xd9] sm:$0xff]
      %v5371 = vld [vmem:[%s4040 + $0xe1] sm:$0xff]
      %v5372 = vld [vmem:[%s4040 + $0xf1] sm:$0xff]
      %v5373 = vld [vmem:[%s4040 + $0xf9] sm:$0xff]
      %v5374 = vld [vmem:[%s4040 + $0x109] sm:$0xff]
      %v5375 = vld [vmem:[%s4040 + $0x111] sm:$0xff]
      %v5376 = vld [vmem:[%s4040 + $0x121] sm:$0xff]
      %v5377 = vld [vmem:[%s4040 + $0x129] sm:$0xff]
      %v5378 = vld [vmem:[%s4040 + $0x139] sm:$0xff]
      %v5379 = vld [vmem:[%s4040 + $0x141] sm:$0xff]
      %v5380 = vld [vmem:[%s4040 + $0x151] sm:$0xff]
      %v5381 = vld [vmem:[%s4040 + $0x159] sm:$0xff]
      %v5382 = vld [vmem:[%s4040 + $0x169] sm:$0xff]
      %v5383 = vld [vmem:[%s4040 + $0x171] sm:$0xff]
      %s5384 = scalar_lea.vmem %s1, 128
      %v5385 = vld [vmem:[%s5384] sm:$0xff]
      %v5386 = vld [vmem:[%s5384 + $0x8] sm:$0xff]
      %v5387 = vld [vmem:[%s5384 + $0x10] sm:$0xff]
      %v5388 = vld [vmem:[%s5384 + $0x18] sm:$0xff]
      %v5390 = vsel %vm244, %v5352, 0
      %v5393 = vsel %vm244, %v5353, 0
      %v5396 = vsel %vm244, %v5354, 0
      %v5399 = vsel %vm244, %v5355, 0
      %v5402 = vsel %vm244, %v5356, 0
      %v5405 = vsel %vm244, %v5357, 0
      %v5408 = vsel %vm244, %v5358, 0
      %v5411 = vsel %vm244, %v5359, 0
      %v5414 = vsel %vm244, %v5360, 0
      %v5417 = vsel %vm244, %v5361, 0
      %v5420 = vsel %vm244, %v5362, 0
      %v5423 = vsel %vm244, %v5363, 0
      %v5426 = vsel %vm244, %v5364, 0
      %v5429 = vsel %vm244, %v5365, 0
      %v5432 = vsel %vm244, %v5366, 0
      %v5435 = vsel %vm244, %v5367, 0
      %v5438 = vsel %vm244, %v5368, 0
      %v5441 = vsel %vm244, %v5369, 0
      %v5444 = vsel %vm244, %v5370, 0
      %v5447 = vsel %vm244, %v5371, 0
      %v5450 = vsel %vm244, %v5372, 0
      %v5453 = vsel %vm244, %v5373, 0
      %v5456 = vsel %vm244, %v5374, 0
      %v5459 = vsel %vm244, %v5375, 0
      %v5462 = vsel %vm244, %v5376, 0
      %v5465 = vsel %vm244, %v5377, 0
      %v5468 = vsel %vm244, %v5378, 0
      %v5471 = vsel %vm244, %v5379, 0
      %v5474 = vsel %vm244, %v5380, 0
      %v5477 = vsel %vm244, %v5381, 0
      %v5480 = vsel %vm244, %v5382, 0
      %v5483 = vsel %vm244, %v5383, 0
      %5485 = vmatpush.msra.mxu0 0.0
      %5486 = vmatpush.msra.mxu0 0.0
      %5487 = vmatpush.msra.mxu0 0.0
      %5488 = vmatpush.msra.mxu0 0.0
      %5489 = vmatpush.msra.mxu0 0.0
      %5490 = vmatpush.msra.mxu0 0.0
      %5491 = vmatpush.msra.mxu0 0.0
      %5492 = vmatpush.msra.mxu0 0.0
      %5493 = vmatpush.msra.mxu0 0.0
      %5494 = vmatpush.msra.mxu0 0.0
      %5495 = vmatpush.msra.mxu0 0.0
      %5496 = vmatpush.msra.mxu0 0.0
      %v5497 = vand.u32 %v5388, 4294901760
      %5498 = vmatpush.msra.mxu0 %v5497
      %v5499 = vand.u32 %v5387, 4294901760
      %5500 = vmatpush.msra.mxu0 %v5499
      %v5501 = vand.u32 %v5386, 4294901760
      %5502 = vmatpush.msra.mxu0 %v5501
      %v5503 = vand.u32 %v5385, 4294901760
      %5504 = vmatpush.msra.mxu0 %v5503
      %v5505 = vand.u32 %v5390, 4294901760
      %v5506 = vsub.f32 %v5390, %v5505
      %v5507 = vand.u32 %v5506, 4294901760
      %v5508 = vsub.f32 %v5506, %v5507
      %v5509 = vand.u32 %v5508, 4294901760
      %5510 = vmatmul.f32.gmra.mxu0 %v5509
      %v5511 = vpop.f32.mrf.mxu0
      %v5512 = vadd.f32 0.0, %v5511
      %v5513 = vand.u32 %v5393, 4294901760
      %v5514 = vsub.f32 %v5393, %v5513
      %v5515 = vand.u32 %v5514, 4294901760
      %v5516 = vsub.f32 %v5514, %v5515
      %v5517 = vand.u32 %v5516, 4294901760
      %5518 = vmatmul.f32.gmra.mxu0 %v5517
      %v5519 = vpop.f32.mrf.mxu0
      %v5520 = vadd.f32 0.0, %v5519
      %v5521 = vand.u32 %v5396, 4294901760
      %v5522 = vsub.f32 %v5396, %v5521
      %v5523 = vand.u32 %v5522, 4294901760
      %v5524 = vsub.f32 %v5522, %v5523
      %v5525 = vand.u32 %v5524, 4294901760
      %5526 = vmatmul.f32.gmra.mxu0 %v5525
      %v5527 = vpop.f32.mrf.mxu0
      %v5528 = vadd.f32 0.0, %v5527
      %v5529 = vand.u32 %v5399, 4294901760
      %v5530 = vsub.f32 %v5399, %v5529
      %v5531 = vand.u32 %v5530, 4294901760
      %v5532 = vsub.f32 %v5530, %v5531
      %v5533 = vand.u32 %v5532, 4294901760
      %5534 = vmatmul.f32.gmra.mxu0 %v5533
      %v5535 = vpop.f32.mrf.mxu0
      %v5536 = vadd.f32 0.0, %v5535
      %v5537 = vand.u32 %v5402, 4294901760
      %v5538 = vsub.f32 %v5402, %v5537
      %v5539 = vand.u32 %v5538, 4294901760
      %v5540 = vsub.f32 %v5538, %v5539
      %v5541 = vand.u32 %v5540, 4294901760
      %5542 = vmatmul.f32.gmra.mxu0 %v5541
      %v5543 = vpop.f32.mrf.mxu0
      %v5544 = vadd.f32 0.0, %v5543
      %v5545 = vand.u32 %v5405, 4294901760
      %v5546 = vsub.f32 %v5405, %v5545
      %v5547 = vand.u32 %v5546, 4294901760
      %v5548 = vsub.f32 %v5546, %v5547
      %v5549 = vand.u32 %v5548, 4294901760
      %5550 = vmatmul.f32.gmra.mxu0 %v5549
      %v5551 = vpop.f32.mrf.mxu0
      %v5552 = vadd.f32 0.0, %v5551
      %v5553 = vand.u32 %v5408, 4294901760
      %v5554 = vsub.f32 %v5408, %v5553
      %v5555 = vand.u32 %v5554, 4294901760
      %v5556 = vsub.f32 %v5554, %v5555
      %v5557 = vand.u32 %v5556, 4294901760
      %5558 = vmatmul.f32.gmra.mxu0 %v5557
      %v5559 = vpop.f32.mrf.mxu0
      %v5560 = vadd.f32 0.0, %v5559
      %v5561 = vand.u32 %v5411, 4294901760
      %v5562 = vsub.f32 %v5411, %v5561
      %v5563 = vand.u32 %v5562, 4294901760
      %v5564 = vsub.f32 %v5562, %v5563
      %v5565 = vand.u32 %v5564, 4294901760
      %5566 = vmatmul.f32.gmra.mxu0 %v5565
      %v5567 = vpop.f32.mrf.mxu0
      %v5568 = vadd.f32 0.0, %v5567
      %v5569 = vand.u32 %v5414, 4294901760
      %v5570 = vsub.f32 %v5414, %v5569
      %v5571 = vand.u32 %v5570, 4294901760
      %v5572 = vsub.f32 %v5570, %v5571
      %v5573 = vand.u32 %v5572, 4294901760
      %5574 = vmatmul.f32.gmra.mxu0 %v5573
      %v5575 = vpop.f32.mrf.mxu0
      %v5576 = vadd.f32 0.0, %v5575
      %v5577 = vand.u32 %v5417, 4294901760
      %v5578 = vsub.f32 %v5417, %v5577
      %v5579 = vand.u32 %v5578, 4294901760
      %v5580 = vsub.f32 %v5578, %v5579
      %v5581 = vand.u32 %v5580, 4294901760
      %5582 = vmatmul.f32.gmra.mxu0 %v5581
      %v5583 = vpop.f32.mrf.mxu0
      %v5584 = vadd.f32 0.0, %v5583
      %v5585 = vand.u32 %v5420, 4294901760
      %v5586 = vsub.f32 %v5420, %v5585
      %v5587 = vand.u32 %v5586, 4294901760
      %v5588 = vsub.f32 %v5586, %v5587
      %v5589 = vand.u32 %v5588, 4294901760
      %5590 = vmatmul.f32.gmra.mxu0 %v5589
      %v5591 = vpop.f32.mrf.mxu0
      %v5592 = vadd.f32 0.0, %v5591
      %v5593 = vand.u32 %v5423, 4294901760
      %v5594 = vsub.f32 %v5423, %v5593
      %v5595 = vand.u32 %v5594, 4294901760
      %v5596 = vsub.f32 %v5594, %v5595
      %v5597 = vand.u32 %v5596, 4294901760
      %5598 = vmatmul.f32.gmra.mxu0 %v5597
      %v5599 = vpop.f32.mrf.mxu0
      %v5600 = vadd.f32 0.0, %v5599
      %v5601 = vand.u32 %v5426, 4294901760
      %v5602 = vsub.f32 %v5426, %v5601
      %v5603 = vand.u32 %v5602, 4294901760
      %v5604 = vsub.f32 %v5602, %v5603
      %v5605 = vand.u32 %v5604, 4294901760
      %5606 = vmatmul.f32.gmra.mxu0 %v5605
      %v5607 = vpop.f32.mrf.mxu0
      %v5608 = vadd.f32 0.0, %v5607
      %v5609 = vand.u32 %v5429, 4294901760
      %v5610 = vsub.f32 %v5429, %v5609
      %v5611 = vand.u32 %v5610, 4294901760
      %v5612 = vsub.f32 %v5610, %v5611
      %v5613 = vand.u32 %v5612, 4294901760
      %5614 = vmatmul.f32.gmra.mxu0 %v5613
      %v5615 = vpop.f32.mrf.mxu0
      %v5616 = vadd.f32 0.0, %v5615
      %v5617 = vand.u32 %v5432, 4294901760
      %v5618 = vsub.f32 %v5432, %v5617
      %v5619 = vand.u32 %v5618, 4294901760
      %v5620 = vsub.f32 %v5618, %v5619
      %v5621 = vand.u32 %v5620, 4294901760
      %5622 = vmatmul.f32.gmra.mxu0 %v5621
      %v5623 = vpop.f32.mrf.mxu0
      %v5624 = vadd.f32 0.0, %v5623
      %v5625 = vand.u32 %v5435, 4294901760
      %v5626 = vsub.f32 %v5435, %v5625
      %v5627 = vand.u32 %v5626, 4294901760
      %v5628 = vsub.f32 %v5626, %v5627
      %v5629 = vand.u32 %v5628, 4294901760
      %5630 = vmatmul.f32.gmra.mxu0 %v5629
      %v5631 = vpop.f32.mrf.mxu0
      %v5632 = vadd.f32 0.0, %v5631
      %v5633 = vand.u32 %v5438, 4294901760
      %v5634 = vsub.f32 %v5438, %v5633
      %v5635 = vand.u32 %v5634, 4294901760
      %v5636 = vsub.f32 %v5634, %v5635
      %v5637 = vand.u32 %v5636, 4294901760
      %5638 = vmatmul.f32.gmra.mxu0 %v5637
      %v5639 = vpop.f32.mrf.mxu0
      %v5640 = vadd.f32 0.0, %v5639
      %v5641 = vand.u32 %v5441, 4294901760
      %v5642 = vsub.f32 %v5441, %v5641
      %v5643 = vand.u32 %v5642, 4294901760
      %v5644 = vsub.f32 %v5642, %v5643
      %v5645 = vand.u32 %v5644, 4294901760
      %5646 = vmatmul.f32.gmra.mxu0 %v5645
      %v5647 = vpop.f32.mrf.mxu0
      %v5648 = vadd.f32 0.0, %v5647
      %v5649 = vand.u32 %v5444, 4294901760
      %v5650 = vsub.f32 %v5444, %v5649
      %v5651 = vand.u32 %v5650, 4294901760
      %v5652 = vsub.f32 %v5650, %v5651
      %v5653 = vand.u32 %v5652, 4294901760
      %5654 = vmatmul.f32.gmra.mxu0 %v5653
      %v5655 = vpop.f32.mrf.mxu0
      %v5656 = vadd.f32 0.0, %v5655
      %v5657 = vand.u32 %v5447, 4294901760
      %v5658 = vsub.f32 %v5447, %v5657
      %v5659 = vand.u32 %v5658, 4294901760
      %v5660 = vsub.f32 %v5658, %v5659
      %v5661 = vand.u32 %v5660, 4294901760
      %5662 = vmatmul.f32.gmra.mxu0 %v5661
      %v5663 = vpop.f32.mrf.mxu0
      %v5664 = vadd.f32 0.0, %v5663
      %v5665 = vand.u32 %v5450, 4294901760
      %v5666 = vsub.f32 %v5450, %v5665
      %v5667 = vand.u32 %v5666, 4294901760
      %v5668 = vsub.f32 %v5666, %v5667
      %v5669 = vand.u32 %v5668, 4294901760
      %5670 = vmatmul.f32.gmra.mxu0 %v5669
      %v5671 = vpop.f32.mrf.mxu0
      %v5672 = vadd.f32 0.0, %v5671
      %v5673 = vand.u32 %v5453, 4294901760
      %v5674 = vsub.f32 %v5453, %v5673
      %v5675 = vand.u32 %v5674, 4294901760
      %v5676 = vsub.f32 %v5674, %v5675
      %v5677 = vand.u32 %v5676, 4294901760
      %5678 = vmatmul.f32.gmra.mxu0 %v5677
      %v5679 = vpop.f32.mrf.mxu0
      %v5680 = vadd.f32 0.0, %v5679
      %v5681 = vand.u32 %v5456, 4294901760
      %v5682 = vsub.f32 %v5456, %v5681
      %v5683 = vand.u32 %v5682, 4294901760
      %v5684 = vsub.f32 %v5682, %v5683
      %v5685 = vand.u32 %v5684, 4294901760
      %5686 = vmatmul.f32.gmra.mxu0 %v5685
      %v5687 = vpop.f32.mrf.mxu0
      %v5688 = vadd.f32 0.0, %v5687
      %v5689 = vand.u32 %v5459, 4294901760
      %v5690 = vsub.f32 %v5459, %v5689
      %v5691 = vand.u32 %v5690, 4294901760
      %v5692 = vsub.f32 %v5690, %v5691
      %v5693 = vand.u32 %v5692, 4294901760
      %5694 = vmatmul.f32.gmra.mxu0 %v5693
      %v5695 = vpop.f32.mrf.mxu0
      %v5696 = vadd.f32 0.0, %v5695
      %v5697 = vand.u32 %v5462, 4294901760
      %v5698 = vsub.f32 %v5462, %v5697
      %v5699 = vand.u32 %v5698, 4294901760
      %v5700 = vsub.f32 %v5698, %v5699
      %v5701 = vand.u32 %v5700, 4294901760
      %5702 = vmatmul.f32.gmra.mxu0 %v5701
      %v5703 = vpop.f32.mrf.mxu0
      %v5704 = vadd.f32 0.0, %v5703
      %v5705 = vand.u32 %v5465, 4294901760
      %v5706 = vsub.f32 %v5465, %v5705
      %v5707 = vand.u32 %v5706, 4294901760
      %v5708 = vsub.f32 %v5706, %v5707
      %v5709 = vand.u32 %v5708, 4294901760
      %5710 = vmatmul.f32.gmra.mxu0 %v5709
      %v5711 = vpop.f32.mrf.mxu0
      %v5712 = vadd.f32 0.0, %v5711
      %v5713 = vand.u32 %v5468, 4294901760
      %v5714 = vsub.f32 %v5468, %v5713
      %v5715 = vand.u32 %v5714, 4294901760
      %v5716 = vsub.f32 %v5714, %v5715
      %v5717 = vand.u32 %v5716, 4294901760
      %5718 = vmatmul.f32.gmra.mxu0 %v5717
      %v5719 = vpop.f32.mrf.mxu0
      %v5720 = vadd.f32 0.0, %v5719
      %v5721 = vand.u32 %v5471, 4294901760
      %v5722 = vsub.f32 %v5471, %v5721
      %v5723 = vand.u32 %v5722, 4294901760
      %v5724 = vsub.f32 %v5722, %v5723
      %v5725 = vand.u32 %v5724, 4294901760
      %5726 = vmatmul.f32.gmra.mxu0 %v5725
      %v5727 = vpop.f32.mrf.mxu0
      %v5728 = vadd.f32 0.0, %v5727
      %v5729 = vand.u32 %v5474, 4294901760
      %v5730 = vsub.f32 %v5474, %v5729
      %v5731 = vand.u32 %v5730, 4294901760
      %v5732 = vsub.f32 %v5730, %v5731
      %v5733 = vand.u32 %v5732, 4294901760
      %5734 = vmatmul.f32.gmra.mxu0 %v5733
      %v5735 = vpop.f32.mrf.mxu0
      %v5736 = vadd.f32 0.0, %v5735
      %v5737 = vand.u32 %v5477, 4294901760
      %v5738 = vsub.f32 %v5477, %v5737
      %v5739 = vand.u32 %v5738, 4294901760
      %v5740 = vsub.f32 %v5738, %v5739
      %v5741 = vand.u32 %v5740, 4294901760
      %5742 = vmatmul.f32.gmra.mxu0 %v5741
      %v5743 = vpop.f32.mrf.mxu0
      %v5744 = vadd.f32 0.0, %v5743
      %v5745 = vand.u32 %v5480, 4294901760
      %v5746 = vsub.f32 %v5480, %v5745
      %v5747 = vand.u32 %v5746, 4294901760
      %v5748 = vsub.f32 %v5746, %v5747
      %v5749 = vand.u32 %v5748, 4294901760
      %5750 = vmatmul.f32.gmra.mxu0 %v5749
      %v5751 = vpop.f32.mrf.mxu0
      %v5752 = vadd.f32 0.0, %v5751
      %v5753 = vand.u32 %v5483, 4294901760
      %v5754 = vsub.f32 %v5483, %v5753
      %v5755 = vand.u32 %v5754, 4294901760
      %v5756 = vsub.f32 %v5754, %v5755
      %v5757 = vand.u32 %v5756, 4294901760
      %5758 = vmatmul.f32.gmra.mxu0 %v5757
      %v5759 = vpop.f32.mrf.mxu0
      %v5760 = vadd.f32 0.0, %v5759
      %5761 = vdwg.mxu0
      %5762 = vmatpush.msra.mxu0 0.0
      %5763 = vmatpush.msra.mxu0 0.0
      %5764 = vmatpush.msra.mxu0 0.0
      %5765 = vmatpush.msra.mxu0 0.0
      %5766 = vmatpush.msra.mxu0 0.0
      %5767 = vmatpush.msra.mxu0 0.0
      %5768 = vmatpush.msra.mxu0 0.0
      %5769 = vmatpush.msra.mxu0 0.0
      %5770 = vmatpush.msra.mxu0 0.0
      %5771 = vmatpush.msra.mxu0 0.0
      %5772 = vmatpush.msra.mxu0 0.0
      %5773 = vmatpush.msra.mxu0 0.0
      %v5774 = vand.u32 %v5388, 4294901760
      %v5775 = vsub.f32 %v5388, %v5774
      %v5776 = vand.u32 %v5775, 4294901760
      %v5777 = vsub.f32 %v5775, %v5776
      %v5778 = vand.u32 %v5777, 4294901760
      %5779 = vmatpush.msra.mxu0 %v5778
      %v5780 = vand.u32 %v5387, 4294901760
      %v5781 = vsub.f32 %v5387, %v5780
      %v5782 = vand.u32 %v5781, 4294901760
      %v5783 = vsub.f32 %v5781, %v5782
      %v5784 = vand.u32 %v5783, 4294901760
      %5785 = vmatpush.msra.mxu0 %v5784
      %v5786 = vand.u32 %v5386, 4294901760
      %v5787 = vsub.f32 %v5386, %v5786
      %v5788 = vand.u32 %v5787, 4294901760
      %v5789 = vsub.f32 %v5787, %v5788
      %v5790 = vand.u32 %v5789, 4294901760
      %5791 = vmatpush.msra.mxu0 %v5790
      %v5792 = vand.u32 %v5385, 4294901760
      %v5793 = vsub.f32 %v5385, %v5792
      %v5794 = vand.u32 %v5793, 4294901760
      %v5795 = vsub.f32 %v5793, %v5794
      %v5796 = vand.u32 %v5795, 4294901760
      %5797 = vmatpush.msra.mxu0 %v5796
      %v5798 = vand.u32 %v5390, 4294901760
      %5799 = vmatmul.f32.gmra.mxu0 %v5798
      %v5800 = vpop.f32.mrf.mxu0
      %v5801 = vadd.f32 %v5512, %v5800
      %v5802 = vand.u32 %v5393, 4294901760
      %5803 = vmatmul.f32.gmra.mxu0 %v5802
      %v5804 = vpop.f32.mrf.mxu0
      %v5805 = vadd.f32 %v5520, %v5804
      %v5806 = vand.u32 %v5396, 4294901760
      %5807 = vmatmul.f32.gmra.mxu0 %v5806
      %v5808 = vpop.f32.mrf.mxu0
      %v5809 = vadd.f32 %v5528, %v5808
      %v5810 = vand.u32 %v5399, 4294901760
      %5811 = vmatmul.f32.gmra.mxu0 %v5810
      %v5812 = vpop.f32.mrf.mxu0
      %v5813 = vadd.f32 %v5536, %v5812
      %v5814 = vand.u32 %v5402, 4294901760
      %5815 = vmatmul.f32.gmra.mxu0 %v5814
      %v5816 = vpop.f32.mrf.mxu0
      %v5817 = vadd.f32 %v5544, %v5816
      %v5818 = vand.u32 %v5405, 4294901760
      %5819 = vmatmul.f32.gmra.mxu0 %v5818
      %v5820 = vpop.f32.mrf.mxu0
      %v5821 = vadd.f32 %v5552, %v5820
      %v5822 = vand.u32 %v5408, 4294901760
      %5823 = vmatmul.f32.gmra.mxu0 %v5822
      %v5824 = vpop.f32.mrf.mxu0
      %v5825 = vadd.f32 %v5560, %v5824
      %v5826 = vand.u32 %v5411, 4294901760
      %5827 = vmatmul.f32.gmra.mxu0 %v5826
      %v5828 = vpop.f32.mrf.mxu0
      %v5829 = vadd.f32 %v5568, %v5828
      %v5830 = vand.u32 %v5414, 4294901760
      %5831 = vmatmul.f32.gmra.mxu0 %v5830
      %v5832 = vpop.f32.mrf.mxu0
      %v5833 = vadd.f32 %v5576, %v5832
      %v5834 = vand.u32 %v5417, 4294901760
      %5835 = vmatmul.f32.gmra.mxu0 %v5834
      %v5836 = vpop.f32.mrf.mxu0
      %v5837 = vadd.f32 %v5584, %v5836
      %v5838 = vand.u32 %v5420, 4294901760
      %5839 = vmatmul.f32.gmra.mxu0 %v5838
      %v5840 = vpop.f32.mrf.mxu0
      %v5841 = vadd.f32 %v5592, %v5840
      %v5842 = vand.u32 %v5423, 4294901760
      %5843 = vmatmul.f32.gmra.mxu0 %v5842
      %v5844 = vpop.f32.mrf.mxu0
      %v5845 = vadd.f32 %v5600, %v5844
      %v5846 = vand.u32 %v5426, 4294901760
      %5847 = vmatmul.f32.gmra.mxu0 %v5846
      %v5848 = vpop.f32.mrf.mxu0
      %v5849 = vadd.f32 %v5608, %v5848
      %v5850 = vand.u32 %v5429, 4294901760
      %5851 = vmatmul.f32.gmra.mxu0 %v5850
      %v5852 = vpop.f32.mrf.mxu0
      %v5853 = vadd.f32 %v5616, %v5852
      %v5854 = vand.u32 %v5432, 4294901760
      %5855 = vmatmul.f32.gmra.mxu0 %v5854
      %v5856 = vpop.f32.mrf.mxu0
      %v5857 = vadd.f32 %v5624, %v5856
      %v5858 = vand.u32 %v5435, 4294901760
      %5859 = vmatmul.f32.gmra.mxu0 %v5858
      %v5860 = vpop.f32.mrf.mxu0
      %v5861 = vadd.f32 %v5632, %v5860
      %v5862 = vand.u32 %v5438, 4294901760
      %5863 = vmatmul.f32.gmra.mxu0 %v5862
      %v5864 = vpop.f32.mrf.mxu0
      %v5865 = vadd.f32 %v5640, %v5864
      %v5866 = vand.u32 %v5441, 4294901760
      %5867 = vmatmul.f32.gmra.mxu0 %v5866
      %v5868 = vpop.f32.mrf.mxu0
      %v5869 = vadd.f32 %v5648, %v5868
      %v5870 = vand.u32 %v5444, 4294901760
      %5871 = vmatmul.f32.gmra.mxu0 %v5870
      %v5872 = vpop.f32.mrf.mxu0
      %v5873 = vadd.f32 %v5656, %v5872
      %v5874 = vand.u32 %v5447, 4294901760
      %5875 = vmatmul.f32.gmra.mxu0 %v5874
      %v5876 = vpop.f32.mrf.mxu0
      %v5877 = vadd.f32 %v5664, %v5876
      %v5878 = vand.u32 %v5450, 4294901760
      %5879 = vmatmul.f32.gmra.mxu0 %v5878
      %v5880 = vpop.f32.mrf.mxu0
      %v5881 = vadd.f32 %v5672, %v5880
      %v5882 = vand.u32 %v5453, 4294901760
      %5883 = vmatmul.f32.gmra.mxu0 %v5882
      %v5884 = vpop.f32.mrf.mxu0
      %v5885 = vadd.f32 %v5680, %v5884
      %v5886 = vand.u32 %v5456, 4294901760
      %5887 = vmatmul.f32.gmra.mxu0 %v5886
      %v5888 = vpop.f32.mrf.mxu0
      %v5889 = vadd.f32 %v5688, %v5888
      %v5890 = vand.u32 %v5459, 4294901760
      %5891 = vmatmul.f32.gmra.mxu0 %v5890
      %v5892 = vpop.f32.mrf.mxu0
      %v5893 = vadd.f32 %v5696, %v5892
      %v5894 = vand.u32 %v5462, 4294901760
      %5895 = vmatmul.f32.gmra.mxu0 %v5894
      %v5896 = vpop.f32.mrf.mxu0
      %v5897 = vadd.f32 %v5704, %v5896
      %v5898 = vand.u32 %v5465, 4294901760
      %5899 = vmatmul.f32.gmra.mxu0 %v5898
      %v5900 = vpop.f32.mrf.mxu0
      %v5901 = vadd.f32 %v5712, %v5900
      %v5902 = vand.u32 %v5468, 4294901760
      %5903 = vmatmul.f32.gmra.mxu0 %v5902
      %v5904 = vpop.f32.mrf.mxu0
      %v5905 = vadd.f32 %v5720, %v5904
      %v5906 = vand.u32 %v5471, 4294901760
      %5907 = vmatmul.f32.gmra.mxu0 %v5906
      %v5908 = vpop.f32.mrf.mxu0
      %v5909 = vadd.f32 %v5728, %v5908
      %v5910 = vand.u32 %v5474, 4294901760
      %5911 = vmatmul.f32.gmra.mxu0 %v5910
      %v5912 = vpop.f32.mrf.mxu0
      %v5913 = vadd.f32 %v5736, %v5912
      %v5914 = vand.u32 %v5477, 4294901760
      %5915 = vmatmul.f32.gmra.mxu0 %v5914
      %v5916 = vpop.f32.mrf.mxu0
      %v5917 = vadd.f32 %v5744, %v5916
      %v5918 = vand.u32 %v5480, 4294901760
      %5919 = vmatmul.f32.gmra.mxu0 %v5918
      %v5920 = vpop.f32.mrf.mxu0
      %v5921 = vadd.f32 %v5752, %v5920
      %v5922 = vand.u32 %v5483, 4294901760
      %5923 = vmatmul.f32.gmra.mxu0 %v5922
      %v5924 = vpop.f32.mrf.mxu0
      %v5925 = vadd.f32 %v5760, %v5924
      %5926 = vdwg.mxu0
      %5927 = vmatpush.msra.mxu0 0.0
      %5928 = vmatpush.msra.mxu0 0.0
      %5929 = vmatpush.msra.mxu0 0.0
      %5930 = vmatpush.msra.mxu0 0.0
      %5931 = vmatpush.msra.mxu0 0.0
      %5932 = vmatpush.msra.mxu0 0.0
      %5933 = vmatpush.msra.mxu0 0.0
      %5934 = vmatpush.msra.mxu0 0.0
      %5935 = vmatpush.msra.mxu0 0.0
      %5936 = vmatpush.msra.mxu0 0.0
      %5937 = vmatpush.msra.mxu0 0.0
      %5938 = vmatpush.msra.mxu0 0.0
      %v5939 = vand.u32 %v5388, 4294901760
      %v5940 = vsub.f32 %v5388, %v5939
      %5941 = vmatpush.msra.mxu0 %v5940
      %v5942 = vand.u32 %v5387, 4294901760
      %v5943 = vsub.f32 %v5387, %v5942
      %5944 = vmatpush.msra.mxu0 %v5943
      %v5945 = vand.u32 %v5386, 4294901760
      %v5946 = vsub.f32 %v5386, %v5945
      %5947 = vmatpush.msra.mxu0 %v5946
      %v5948 = vand.u32 %v5385, 4294901760
      %v5949 = vsub.f32 %v5385, %v5948
      %5950 = vmatpush.msra.mxu0 %v5949
      %v5951 = vand.u32 %v5390, 4294901760
      %v5952 = vsub.f32 %v5390, %v5951
      %5953 = vmatmul.f32.gmra.mxu0 %v5952
      %v5954 = vpop.f32.mrf.mxu0
      %v5955 = vadd.f32 %v5801, %v5954
      %v5956 = vand.u32 %v5393, 4294901760
      %v5957 = vsub.f32 %v5393, %v5956
      %5958 = vmatmul.f32.gmra.mxu0 %v5957
      %v5959 = vpop.f32.mrf.mxu0
      %v5960 = vadd.f32 %v5805, %v5959
      %v5961 = vand.u32 %v5396, 4294901760
      %v5962 = vsub.f32 %v5396, %v5961
      %5963 = vmatmul.f32.gmra.mxu0 %v5962
      %v5964 = vpop.f32.mrf.mxu0
      %v5965 = vadd.f32 %v5809, %v5964
      %v5966 = vand.u32 %v5399, 4294901760
      %v5967 = vsub.f32 %v5399, %v5966
      %5968 = vmatmul.f32.gmra.mxu0 %v5967
      %v5969 = vpop.f32.mrf.mxu0
      %v5970 = vadd.f32 %v5813, %v5969
      %v5971 = vand.u32 %v5402, 4294901760
      %v5972 = vsub.f32 %v5402, %v5971
      %5973 = vmatmul.f32.gmra.mxu0 %v5972
      %v5974 = vpop.f32.mrf.mxu0
      %v5975 = vadd.f32 %v5817, %v5974
      %v5976 = vand.u32 %v5405, 4294901760
      %v5977 = vsub.f32 %v5405, %v5976
      %5978 = vmatmul.f32.gmra.mxu0 %v5977
      %v5979 = vpop.f32.mrf.mxu0
      %v5980 = vadd.f32 %v5821, %v5979
      %v5981 = vand.u32 %v5408, 4294901760
      %v5982 = vsub.f32 %v5408, %v5981
      %5983 = vmatmul.f32.gmra.mxu0 %v5982
      %v5984 = vpop.f32.mrf.mxu0
      %v5985 = vadd.f32 %v5825, %v5984
      %v5986 = vand.u32 %v5411, 4294901760
      %v5987 = vsub.f32 %v5411, %v5986
      %5988 = vmatmul.f32.gmra.mxu0 %v5987
      %v5989 = vpop.f32.mrf.mxu0
      %v5990 = vadd.f32 %v5829, %v5989
      %v5991 = vand.u32 %v5414, 4294901760
      %v5992 = vsub.f32 %v5414, %v5991
      %5993 = vmatmul.f32.gmra.mxu0 %v5992
      %v5994 = vpop.f32.mrf.mxu0
      %v5995 = vadd.f32 %v5833, %v5994
      %v5996 = vand.u32 %v5417, 4294901760
      %v5997 = vsub.f32 %v5417, %v5996
      %5998 = vmatmul.f32.gmra.mxu0 %v5997
      %v5999 = vpop.f32.mrf.mxu0
      %v6000 = vadd.f32 %v5837, %v5999
      %v6001 = vand.u32 %v5420, 4294901760
      %v6002 = vsub.f32 %v5420, %v6001
      %6003 = vmatmul.f32.gmra.mxu0 %v6002
      %v6004 = vpop.f32.mrf.mxu0
      %v6005 = vadd.f32 %v5841, %v6004
      %v6006 = vand.u32 %v5423, 4294901760
      %v6007 = vsub.f32 %v5423, %v6006
      %6008 = vmatmul.f32.gmra.mxu0 %v6007
      %v6009 = vpop.f32.mrf.mxu0
      %v6010 = vadd.f32 %v5845, %v6009
      %v6011 = vand.u32 %v5426, 4294901760
      %v6012 = vsub.f32 %v5426, %v6011
      %6013 = vmatmul.f32.gmra.mxu0 %v6012
      %v6014 = vpop.f32.mrf.mxu0
      %v6015 = vadd.f32 %v5849, %v6014
      %v6016 = vand.u32 %v5429, 4294901760
      %v6017 = vsub.f32 %v5429, %v6016
      %6018 = vmatmul.f32.gmra.mxu0 %v6017
      %v6019 = vpop.f32.mrf.mxu0
      %v6020 = vadd.f32 %v5853, %v6019
      %v6021 = vand.u32 %v5432, 4294901760
      %v6022 = vsub.f32 %v5432, %v6021
      %6023 = vmatmul.f32.gmra.mxu0 %v6022
      %v6024 = vpop.f32.mrf.mxu0
      %v6025 = vadd.f32 %v5857, %v6024
      %v6026 = vand.u32 %v5435, 4294901760
      %v6027 = vsub.f32 %v5435, %v6026
      %6028 = vmatmul.f32.gmra.mxu0 %v6027
      %v6029 = vpop.f32.mrf.mxu0
      %v6030 = vadd.f32 %v5861, %v6029
      %v6031 = vand.u32 %v5438, 4294901760
      %v6032 = vsub.f32 %v5438, %v6031
      %6033 = vmatmul.f32.gmra.mxu0 %v6032
      %v6034 = vpop.f32.mrf.mxu0
      %v6035 = vadd.f32 %v5865, %v6034
      %v6036 = vand.u32 %v5441, 4294901760
      %v6037 = vsub.f32 %v5441, %v6036
      %6038 = vmatmul.f32.gmra.mxu0 %v6037
      %v6039 = vpop.f32.mrf.mxu0
      %v6040 = vadd.f32 %v5869, %v6039
      %v6041 = vand.u32 %v5444, 4294901760
      %v6042 = vsub.f32 %v5444, %v6041
      %6043 = vmatmul.f32.gmra.mxu0 %v6042
      %v6044 = vpop.f32.mrf.mxu0
      %v6045 = vadd.f32 %v5873, %v6044
      %v6046 = vand.u32 %v5447, 4294901760
      %v6047 = vsub.f32 %v5447, %v6046
      %6048 = vmatmul.f32.gmra.mxu0 %v6047
      %v6049 = vpop.f32.mrf.mxu0
      %v6050 = vadd.f32 %v5877, %v6049
      %v6051 = vand.u32 %v5450, 4294901760
      %v6052 = vsub.f32 %v5450, %v6051
      %6053 = vmatmul.f32.gmra.mxu0 %v6052
      %v6054 = vpop.f32.mrf.mxu0
      %v6055 = vadd.f32 %v5881, %v6054
      %v6056 = vand.u32 %v5453, 4294901760
      %v6057 = vsub.f32 %v5453, %v6056
      %6058 = vmatmul.f32.gmra.mxu0 %v6057
      %v6059 = vpop.f32.mrf.mxu0
      %v6060 = vadd.f32 %v5885, %v6059
      %v6061 = vand.u32 %v5456, 4294901760
      %v6062 = vsub.f32 %v5456, %v6061
      %6063 = vmatmul.f32.gmra.mxu0 %v6062
      %v6064 = vpop.f32.mrf.mxu0
      %v6065 = vadd.f32 %v5889, %v6064
      %v6066 = vand.u32 %v5459, 4294901760
      %v6067 = vsub.f32 %v5459, %v6066
      %6068 = vmatmul.f32.gmra.mxu0 %v6067
      %v6069 = vpop.f32.mrf.mxu0
      %v6070 = vadd.f32 %v5893, %v6069
      %v6071 = vand.u32 %v5462, 4294901760
      %v6072 = vsub.f32 %v5462, %v6071
      %6073 = vmatmul.f32.gmra.mxu0 %v6072
      %v6074 = vpop.f32.mrf.mxu0
      %v6075 = vadd.f32 %v5897, %v6074
      %v6076 = vand.u32 %v5465, 4294901760
      %v6077 = vsub.f32 %v5465, %v6076
      %6078 = vmatmul.f32.gmra.mxu0 %v6077
      %v6079 = vpop.f32.mrf.mxu0
      %v6080 = vadd.f32 %v5901, %v6079
      %v6081 = vand.u32 %v5468, 4294901760
      %v6082 = vsub.f32 %v5468, %v6081
      %6083 = vmatmul.f32.gmra.mxu0 %v6082
      %v6084 = vpop.f32.mrf.mxu0
      %v6085 = vadd.f32 %v5905, %v6084
      %v6086 = vand.u32 %v5471, 4294901760
      %v6087 = vsub.f32 %v5471, %v6086
      %6088 = vmatmul.f32.gmra.mxu0 %v6087
      %v6089 = vpop.f32.mrf.mxu0
      %v6090 = vadd.f32 %v5909, %v6089
      %v6091 = vand.u32 %v5474, 4294901760
      %v6092 = vsub.f32 %v5474, %v6091
      %6093 = vmatmul.f32.gmra.mxu0 %v6092
      %v6094 = vpop.f32.mrf.mxu0
      %v6095 = vadd.f32 %v5913, %v6094
      %v6096 = vand.u32 %v5477, 4294901760
      %v6097 = vsub.f32 %v5477, %v6096
      %6098 = vmatmul.f32.gmra.mxu0 %v6097
      %v6099 = vpop.f32.mrf.mxu0
      %v6100 = vadd.f32 %v5917, %v6099
      %v6101 = vand.u32 %v5480, 4294901760
      %v6102 = vsub.f32 %v5480, %v6101
      %6103 = vmatmul.f32.gmra.mxu0 %v6102
      %v6104 = vpop.f32.mrf.mxu0
      %v6105 = vadd.f32 %v5921, %v6104
      %v6106 = vand.u32 %v5483, 4294901760
      %v6107 = vsub.f32 %v5483, %v6106
      %6108 = vmatmul.f32.gmra.mxu0 %v6107
      %v6109 = vpop.f32.mrf.mxu0
      %v6110 = vadd.f32 %v5925, %v6109
      %6111 = vdwg.mxu0
      %6112 = vmatpush.msra.mxu0 0.0
      %6113 = vmatpush.msra.mxu0 0.0
      %6114 = vmatpush.msra.mxu0 0.0
      %6115 = vmatpush.msra.mxu0 0.0
      %6116 = vmatpush.msra.mxu0 0.0
      %6117 = vmatpush.msra.mxu0 0.0
      %6118 = vmatpush.msra.mxu0 0.0
      %6119 = vmatpush.msra.mxu0 0.0
      %6120 = vmatpush.msra.mxu0 0.0
      %6121 = vmatpush.msra.mxu0 0.0
      %6122 = vmatpush.msra.mxu0 0.0
      %6123 = vmatpush.msra.mxu0 0.0
      %v6124 = vand.u32 %v5388, 4294901760
      %6125 = vmatpush.msra.mxu0 %v6124
      %v6126 = vand.u32 %v5387, 4294901760
      %6127 = vmatpush.msra.mxu0 %v6126
      %v6128 = vand.u32 %v5386, 4294901760
      %6129 = vmatpush.msra.mxu0 %v6128
      %v6130 = vand.u32 %v5385, 4294901760
      %6131 = vmatpush.msra.mxu0 %v6130
      %v6132 = vand.u32 %v5390, 4294901760
      %v6133 = vsub.f32 %v5390, %v6132
      %v6134 = vand.u32 %v6133, 4294901760
      %6135 = vmatmul.f32.gmra.mxu0 %v6134
      %v6136 = vpop.f32.mrf.mxu0
      %v6137 = vadd.f32 %v5955, %v6136
      %v6138 = vand.u32 %v5393, 4294901760
      %v6139 = vsub.f32 %v5393, %v6138
      %v6140 = vand.u32 %v6139, 4294901760
      %6141 = vmatmul.f32.gmra.mxu0 %v6140
      %v6142 = vpop.f32.mrf.mxu0
      %v6143 = vadd.f32 %v5960, %v6142
      %v6144 = vand.u32 %v5396, 4294901760
      %v6145 = vsub.f32 %v5396, %v6144
      %v6146 = vand.u32 %v6145, 4294901760
      %6147 = vmatmul.f32.gmra.mxu0 %v6146
      %v6148 = vpop.f32.mrf.mxu0
      %v6149 = vadd.f32 %v5965, %v6148
      %v6150 = vand.u32 %v5399, 4294901760
      %v6151 = vsub.f32 %v5399, %v6150
      %v6152 = vand.u32 %v6151, 4294901760
      %6153 = vmatmul.f32.gmra.mxu0 %v6152
      %v6154 = vpop.f32.mrf.mxu0
      %v6155 = vadd.f32 %v5970, %v6154
      %v6156 = vand.u32 %v5402, 4294901760
      %v6157 = vsub.f32 %v5402, %v6156
      %v6158 = vand.u32 %v6157, 4294901760
      %6159 = vmatmul.f32.gmra.mxu0 %v6158
      %v6160 = vpop.f32.mrf.mxu0
      %v6161 = vadd.f32 %v5975, %v6160
      %v6162 = vand.u32 %v5405, 4294901760
      %v6163 = vsub.f32 %v5405, %v6162
      %v6164 = vand.u32 %v6163, 4294901760
      %6165 = vmatmul.f32.gmra.mxu0 %v6164
      %v6166 = vpop.f32.mrf.mxu0
      %v6167 = vadd.f32 %v5980, %v6166
      %v6168 = vand.u32 %v5408, 4294901760
      %v6169 = vsub.f32 %v5408, %v6168
      %v6170 = vand.u32 %v6169, 4294901760
      %6171 = vmatmul.f32.gmra.mxu0 %v6170
      %v6172 = vpop.f32.mrf.mxu0
      %v6173 = vadd.f32 %v5985, %v6172
      %v6174 = vand.u32 %v5411, 4294901760
      %v6175 = vsub.f32 %v5411, %v6174
      %v6176 = vand.u32 %v6175, 4294901760
      %6177 = vmatmul.f32.gmra.mxu0 %v6176
      %v6178 = vpop.f32.mrf.mxu0
      %v6179 = vadd.f32 %v5990, %v6178
      %v6180 = vand.u32 %v5414, 4294901760
      %v6181 = vsub.f32 %v5414, %v6180
      %v6182 = vand.u32 %v6181, 4294901760
      %6183 = vmatmul.f32.gmra.mxu0 %v6182
      %v6184 = vpop.f32.mrf.mxu0
      %v6185 = vadd.f32 %v5995, %v6184
      %v6186 = vand.u32 %v5417, 4294901760
      %v6187 = vsub.f32 %v5417, %v6186
      %v6188 = vand.u32 %v6187, 4294901760
      %6189 = vmatmul.f32.gmra.mxu0 %v6188
      %v6190 = vpop.f32.mrf.mxu0
      %v6191 = vadd.f32 %v6000, %v6190
      %v6192 = vand.u32 %v5420, 4294901760
      %v6193 = vsub.f32 %v5420, %v6192
      %v6194 = vand.u32 %v6193, 4294901760
      %6195 = vmatmul.f32.gmra.mxu0 %v6194
      %v6196 = vpop.f32.mrf.mxu0
      %v6197 = vadd.f32 %v6005, %v6196
      %v6198 = vand.u32 %v5423, 4294901760
      %v6199 = vsub.f32 %v5423, %v6198
      %v6200 = vand.u32 %v6199, 4294901760
      %6201 = vmatmul.f32.gmra.mxu0 %v6200
      %v6202 = vpop.f32.mrf.mxu0
      %v6203 = vadd.f32 %v6010, %v6202
      %v6204 = vand.u32 %v5426, 4294901760
      %v6205 = vsub.f32 %v5426, %v6204
      %v6206 = vand.u32 %v6205, 4294901760
      %6207 = vmatmul.f32.gmra.mxu0 %v6206
      %v6208 = vpop.f32.mrf.mxu0
      %v6209 = vadd.f32 %v6015, %v6208
      %v6210 = vand.u32 %v5429, 4294901760
      %v6211 = vsub.f32 %v5429, %v6210
      %v6212 = vand.u32 %v6211, 4294901760
      %6213 = vmatmul.f32.gmra.mxu0 %v6212
      %v6214 = vpop.f32.mrf.mxu0
      %v6215 = vadd.f32 %v6020, %v6214
      %v6216 = vand.u32 %v5432, 4294901760
      %v6217 = vsub.f32 %v5432, %v6216
      %v6218 = vand.u32 %v6217, 4294901760
      %6219 = vmatmul.f32.gmra.mxu0 %v6218
      %v6220 = vpop.f32.mrf.mxu0
      %v6221 = vadd.f32 %v6025, %v6220
      %v6222 = vand.u32 %v5435, 4294901760
      %v6223 = vsub.f32 %v5435, %v6222
      %v6224 = vand.u32 %v6223, 4294901760
      %6225 = vmatmul.f32.gmra.mxu0 %v6224
      %v6226 = vpop.f32.mrf.mxu0
      %v6227 = vadd.f32 %v6030, %v6226
      %v6228 = vand.u32 %v5438, 4294901760
      %v6229 = vsub.f32 %v5438, %v6228
      %v6230 = vand.u32 %v6229, 4294901760
      %6231 = vmatmul.f32.gmra.mxu0 %v6230
      %v6232 = vpop.f32.mrf.mxu0
      %v6233 = vadd.f32 %v6035, %v6232
      %v6234 = vand.u32 %v5441, 4294901760
      %v6235 = vsub.f32 %v5441, %v6234
      %v6236 = vand.u32 %v6235, 4294901760
      %6237 = vmatmul.f32.gmra.mxu0 %v6236
      %v6238 = vpop.f32.mrf.mxu0
      %v6239 = vadd.f32 %v6040, %v6238
      %v6240 = vand.u32 %v5444, 4294901760
      %v6241 = vsub.f32 %v5444, %v6240
      %v6242 = vand.u32 %v6241, 4294901760
      %6243 = vmatmul.f32.gmra.mxu0 %v6242
      %v6244 = vpop.f32.mrf.mxu0
      %v6245 = vadd.f32 %v6045, %v6244
      %v6246 = vand.u32 %v5447, 4294901760
      %v6247 = vsub.f32 %v5447, %v6246
      %v6248 = vand.u32 %v6247, 4294901760
      %6249 = vmatmul.f32.gmra.mxu0 %v6248
      %v6250 = vpop.f32.mrf.mxu0
      %v6251 = vadd.f32 %v6050, %v6250
      %v6252 = vand.u32 %v5450, 4294901760
      %v6253 = vsub.f32 %v5450, %v6252
      %v6254 = vand.u32 %v6253, 4294901760
      %6255 = vmatmul.f32.gmra.mxu0 %v6254
      %v6256 = vpop.f32.mrf.mxu0
      %v6257 = vadd.f32 %v6055, %v6256
      %v6258 = vand.u32 %v5453, 4294901760
      %v6259 = vsub.f32 %v5453, %v6258
      %v6260 = vand.u32 %v6259, 4294901760
      %6261 = vmatmul.f32.gmra.mxu0 %v6260
      %v6262 = vpop.f32.mrf.mxu0
      %v6263 = vadd.f32 %v6060, %v6262
      %v6264 = vand.u32 %v5456, 4294901760
      %v6265 = vsub.f32 %v5456, %v6264
      %v6266 = vand.u32 %v6265, 4294901760
      %6267 = vmatmul.f32.gmra.mxu0 %v6266
      %v6268 = vpop.f32.mrf.mxu0
      %v6269 = vadd.f32 %v6065, %v6268
      %v6270 = vand.u32 %v5459, 4294901760
      %v6271 = vsub.f32 %v5459, %v6270
      %v6272 = vand.u32 %v6271, 4294901760
      %6273 = vmatmul.f32.gmra.mxu0 %v6272
      %v6274 = vpop.f32.mrf.mxu0
      %v6275 = vadd.f32 %v6070, %v6274
      %v6276 = vand.u32 %v5462, 4294901760
      %v6277 = vsub.f32 %v5462, %v6276
      %v6278 = vand.u32 %v6277, 4294901760
      %6279 = vmatmul.f32.gmra.mxu0 %v6278
      %v6280 = vpop.f32.mrf.mxu0
      %v6281 = vadd.f32 %v6075, %v6280
      %v6282 = vand.u32 %v5465, 4294901760
      %v6283 = vsub.f32 %v5465, %v6282
      %v6284 = vand.u32 %v6283, 4294901760
      %6285 = vmatmul.f32.gmra.mxu0 %v6284
      %v6286 = vpop.f32.mrf.mxu0
      %v6287 = vadd.f32 %v6080, %v6286
      %v6288 = vand.u32 %v5468, 4294901760
      %v6289 = vsub.f32 %v5468, %v6288
      %v6290 = vand.u32 %v6289, 4294901760
      %6291 = vmatmul.f32.gmra.mxu0 %v6290
      %v6292 = vpop.f32.mrf.mxu0
      %v6293 = vadd.f32 %v6085, %v6292
      %v6294 = vand.u32 %v5471, 4294901760
      %v6295 = vsub.f32 %v5471, %v6294
      %v6296 = vand.u32 %v6295, 4294901760
      %6297 = vmatmul.f32.gmra.mxu0 %v6296
      %v6298 = vpop.f32.mrf.mxu0
      %v6299 = vadd.f32 %v6090, %v6298
      %v6300 = vand.u32 %v5474, 4294901760
      %v6301 = vsub.f32 %v5474, %v6300
      %v6302 = vand.u32 %v6301, 4294901760
      %6303 = vmatmul.f32.gmra.mxu0 %v6302
      %v6304 = vpop.f32.mrf.mxu0
      %v6305 = vadd.f32 %v6095, %v6304
      %v6306 = vand.u32 %v5477, 4294901760
      %v6307 = vsub.f32 %v5477, %v6306
      %v6308 = vand.u32 %v6307, 4294901760
      %6309 = vmatmul.f32.gmra.mxu0 %v6308
      %v6310 = vpop.f32.mrf.mxu0
      %v6311 = vadd.f32 %v6100, %v6310
      %v6312 = vand.u32 %v5480, 4294901760
      %v6313 = vsub.f32 %v5480, %v6312
      %v6314 = vand.u32 %v6313, 4294901760
      %6315 = vmatmul.f32.gmra.mxu0 %v6314
      %v6316 = vpop.f32.mrf.mxu0
      %v6317 = vadd.f32 %v6105, %v6316
      %v6318 = vand.u32 %v5483, 4294901760
      %v6319 = vsub.f32 %v5483, %v6318
      %v6320 = vand.u32 %v6319, 4294901760
      %6321 = vmatmul.f32.gmra.mxu0 %v6320
      %v6322 = vpop.f32.mrf.mxu0
      %v6323 = vadd.f32 %v6110, %v6322
      %6324 = vdwg.mxu0
      %6325 = vmatpush.msra.mxu0 0.0
      %6326 = vmatpush.msra.mxu0 0.0
      %6327 = vmatpush.msra.mxu0 0.0
      %6328 = vmatpush.msra.mxu0 0.0
      %6329 = vmatpush.msra.mxu0 0.0
      %6330 = vmatpush.msra.mxu0 0.0
      %6331 = vmatpush.msra.mxu0 0.0
      %6332 = vmatpush.msra.mxu0 0.0
      %6333 = vmatpush.msra.mxu0 0.0
      %6334 = vmatpush.msra.mxu0 0.0
      %6335 = vmatpush.msra.mxu0 0.0
      %6336 = vmatpush.msra.mxu0 0.0
      %v6337 = vand.u32 %v5388, 4294901760
      %v6338 = vsub.f32 %v5388, %v6337
      %v6339 = vand.u32 %v6338, 4294901760
      %6340 = vmatpush.msra.mxu0 %v6339
      %v6341 = vand.u32 %v5387, 4294901760
      %v6342 = vsub.f32 %v5387, %v6341
      %v6343 = vand.u32 %v6342, 4294901760
      %6344 = vmatpush.msra.mxu0 %v6343
      %v6345 = vand.u32 %v5386, 4294901760
      %v6346 = vsub.f32 %v5386, %v6345
      %v6347 = vand.u32 %v6346, 4294901760
      %6348 = vmatpush.msra.mxu0 %v6347
      %v6349 = vand.u32 %v5385, 4294901760
      %v6350 = vsub.f32 %v5385, %v6349
      %v6351 = vand.u32 %v6350, 4294901760
      %6352 = vmatpush.msra.mxu0 %v6351
      %v6353 = vand.u32 %v5390, 4294901760
      %6354 = vmatmul.f32.gmra.mxu0 %v6353
      %v6355 = vpop.f32.mrf.mxu0
      %v6356 = vadd.f32 %v6137, %v6355
      %v6357 = vand.u32 %v5393, 4294901760
      %6358 = vmatmul.f32.gmra.mxu0 %v6357
      %v6359 = vpop.f32.mrf.mxu0
      %v6360 = vadd.f32 %v6143, %v6359
      %v6361 = vand.u32 %v5396, 4294901760
      %6362 = vmatmul.f32.gmra.mxu0 %v6361
      %v6363 = vpop.f32.mrf.mxu0
      %v6364 = vadd.f32 %v6149, %v6363
      %v6365 = vand.u32 %v5399, 4294901760
      %6366 = vmatmul.f32.gmra.mxu0 %v6365
      %v6367 = vpop.f32.mrf.mxu0
      %v6368 = vadd.f32 %v6155, %v6367
      %v6369 = vand.u32 %v5402, 4294901760
      %6370 = vmatmul.f32.gmra.mxu0 %v6369
      %v6371 = vpop.f32.mrf.mxu0
      %v6372 = vadd.f32 %v6161, %v6371
      %v6373 = vand.u32 %v5405, 4294901760
      %6374 = vmatmul.f32.gmra.mxu0 %v6373
      %v6375 = vpop.f32.mrf.mxu0
      %v6376 = vadd.f32 %v6167, %v6375
      %v6377 = vand.u32 %v5408, 4294901760
      %6378 = vmatmul.f32.gmra.mxu0 %v6377
      %v6379 = vpop.f32.mrf.mxu0
      %v6380 = vadd.f32 %v6173, %v6379
      %v6381 = vand.u32 %v5411, 4294901760
      %6382 = vmatmul.f32.gmra.mxu0 %v6381
      %v6383 = vpop.f32.mrf.mxu0
      %v6384 = vadd.f32 %v6179, %v6383
      %v6385 = vand.u32 %v5414, 4294901760
      %6386 = vmatmul.f32.gmra.mxu0 %v6385
      %v6387 = vpop.f32.mrf.mxu0
      %v6388 = vadd.f32 %v6185, %v6387
      %v6389 = vand.u32 %v5417, 4294901760
      %6390 = vmatmul.f32.gmra.mxu0 %v6389
      %v6391 = vpop.f32.mrf.mxu0
      %v6392 = vadd.f32 %v6191, %v6391
      %v6393 = vand.u32 %v5420, 4294901760
      %6394 = vmatmul.f32.gmra.mxu0 %v6393
      %v6395 = vpop.f32.mrf.mxu0
      %v6396 = vadd.f32 %v6197, %v6395
      %v6397 = vand.u32 %v5423, 4294901760
      %6398 = vmatmul.f32.gmra.mxu0 %v6397
      %v6399 = vpop.f32.mrf.mxu0
      %v6400 = vadd.f32 %v6203, %v6399
      %v6401 = vand.u32 %v5426, 4294901760
      %6402 = vmatmul.f32.gmra.mxu0 %v6401
      %v6403 = vpop.f32.mrf.mxu0
      %v6404 = vadd.f32 %v6209, %v6403
      %v6405 = vand.u32 %v5429, 4294901760
      %6406 = vmatmul.f32.gmra.mxu0 %v6405
      %v6407 = vpop.f32.mrf.mxu0
      %v6408 = vadd.f32 %v6215, %v6407
      %v6409 = vand.u32 %v5432, 4294901760
      %6410 = vmatmul.f32.gmra.mxu0 %v6409
      %v6411 = vpop.f32.mrf.mxu0
      %v6412 = vadd.f32 %v6221, %v6411
      %v6413 = vand.u32 %v5435, 4294901760
      %6414 = vmatmul.f32.gmra.mxu0 %v6413
      %v6415 = vpop.f32.mrf.mxu0
      %v6416 = vadd.f32 %v6227, %v6415
      %v6417 = vand.u32 %v5438, 4294901760
      %6418 = vmatmul.f32.gmra.mxu0 %v6417
      %v6419 = vpop.f32.mrf.mxu0
      %v6420 = vadd.f32 %v6233, %v6419
      %v6421 = vand.u32 %v5441, 4294901760
      %6422 = vmatmul.f32.gmra.mxu0 %v6421
      %v6423 = vpop.f32.mrf.mxu0
      %v6424 = vadd.f32 %v6239, %v6423
      %v6425 = vand.u32 %v5444, 4294901760
      %6426 = vmatmul.f32.gmra.mxu0 %v6425
      %v6427 = vpop.f32.mrf.mxu0
      %v6428 = vadd.f32 %v6245, %v6427
      %v6429 = vand.u32 %v5447, 4294901760
      %6430 = vmatmul.f32.gmra.mxu0 %v6429
      %v6431 = vpop.f32.mrf.mxu0
      %v6432 = vadd.f32 %v6251, %v6431
      %v6433 = vand.u32 %v5450, 4294901760
      %6434 = vmatmul.f32.gmra.mxu0 %v6433
      %v6435 = vpop.f32.mrf.mxu0
      %v6436 = vadd.f32 %v6257, %v6435
      %v6437 = vand.u32 %v5453, 4294901760
      %6438 = vmatmul.f32.gmra.mxu0 %v6437
      %v6439 = vpop.f32.mrf.mxu0
      %v6440 = vadd.f32 %v6263, %v6439
      %v6441 = vand.u32 %v5456, 4294901760
      %6442 = vmatmul.f32.gmra.mxu0 %v6441
      %v6443 = vpop.f32.mrf.mxu0
      %v6444 = vadd.f32 %v6269, %v6443
      %v6445 = vand.u32 %v5459, 4294901760
      %6446 = vmatmul.f32.gmra.mxu0 %v6445
      %v6447 = vpop.f32.mrf.mxu0
      %v6448 = vadd.f32 %v6275, %v6447
      %v6449 = vand.u32 %v5462, 4294901760
      %6450 = vmatmul.f32.gmra.mxu0 %v6449
      %v6451 = vpop.f32.mrf.mxu0
      %v6452 = vadd.f32 %v6281, %v6451
      %v6453 = vand.u32 %v5465, 4294901760
      %6454 = vmatmul.f32.gmra.mxu0 %v6453
      %v6455 = vpop.f32.mrf.mxu0
      %v6456 = vadd.f32 %v6287, %v6455
      %v6457 = vand.u32 %v5468, 4294901760
      %6458 = vmatmul.f32.gmra.mxu0 %v6457
      %v6459 = vpop.f32.mrf.mxu0
      %v6460 = vadd.f32 %v6293, %v6459
      %v6461 = vand.u32 %v5471, 4294901760
      %6462 = vmatmul.f32.gmra.mxu0 %v6461
      %v6463 = vpop.f32.mrf.mxu0
      %v6464 = vadd.f32 %v6299, %v6463
      %v6465 = vand.u32 %v5474, 4294901760
      %6466 = vmatmul.f32.gmra.mxu0 %v6465
      %v6467 = vpop.f32.mrf.mxu0
      %v6468 = vadd.f32 %v6305, %v6467
      %v6469 = vand.u32 %v5477, 4294901760
      %6470 = vmatmul.f32.gmra.mxu0 %v6469
      %v6471 = vpop.f32.mrf.mxu0
      %v6472 = vadd.f32 %v6311, %v6471
      %v6473 = vand.u32 %v5480, 4294901760
      %6474 = vmatmul.f32.gmra.mxu0 %v6473
      %v6475 = vpop.f32.mrf.mxu0
      %v6476 = vadd.f32 %v6317, %v6475
      %v6477 = vand.u32 %v5483, 4294901760
      %6478 = vmatmul.f32.gmra.mxu0 %v6477
      %v6479 = vpop.f32.mrf.mxu0
      %v6480 = vadd.f32 %v6323, %v6479
      %6481 = vdwg.mxu0
      %6482 = vmatpush.msra.mxu0 0.0
      %6483 = vmatpush.msra.mxu0 0.0
      %6484 = vmatpush.msra.mxu0 0.0
      %6485 = vmatpush.msra.mxu0 0.0
      %6486 = vmatpush.msra.mxu0 0.0
      %6487 = vmatpush.msra.mxu0 0.0
      %6488 = vmatpush.msra.mxu0 0.0
      %6489 = vmatpush.msra.mxu0 0.0
      %6490 = vmatpush.msra.mxu0 0.0
      %6491 = vmatpush.msra.mxu0 0.0
      %6492 = vmatpush.msra.mxu0 0.0
      %6493 = vmatpush.msra.mxu0 0.0
      %v6494 = vand.u32 %v5388, 4294901760
      %6495 = vmatpush.msra.mxu0 %v6494
      %v6496 = vand.u32 %v5387, 4294901760
      %6497 = vmatpush.msra.mxu0 %v6496
      %v6498 = vand.u32 %v5386, 4294901760
      %6499 = vmatpush.msra.mxu0 %v6498
      %v6500 = vand.u32 %v5385, 4294901760
      %6501 = vmatpush.msra.mxu0 %v6500
      %v6502 = vand.u32 %v5390, 4294901760
      %6503 = vmatmul.f32.gmra.mxu0 %v6502
      %v6504 = vpop.f32.mrf.mxu0
      %v6505 = vadd.f32 %v6356, %v6504
      %v6506 = vand.u32 %v5393, 4294901760
      %6507 = vmatmul.f32.gmra.mxu0 %v6506
      %v6508 = vpop.f32.mrf.mxu0
      %v6509 = vadd.f32 %v6360, %v6508
      %v6510 = vand.u32 %v5396, 4294901760
      %6511 = vmatmul.f32.gmra.mxu0 %v6510
      %v6512 = vpop.f32.mrf.mxu0
      %v6513 = vadd.f32 %v6364, %v6512
      %v6514 = vand.u32 %v5399, 4294901760
      %6515 = vmatmul.f32.gmra.mxu0 %v6514
      %v6516 = vpop.f32.mrf.mxu0
      %v6517 = vadd.f32 %v6368, %v6516
      %v6518 = vand.u32 %v5402, 4294901760
      %6519 = vmatmul.f32.gmra.mxu0 %v6518
      %v6520 = vpop.f32.mrf.mxu0
      %v6521 = vadd.f32 %v6372, %v6520
      %v6522 = vand.u32 %v5405, 4294901760
      %6523 = vmatmul.f32.gmra.mxu0 %v6522
      %v6524 = vpop.f32.mrf.mxu0
      %v6525 = vadd.f32 %v6376, %v6524
      %v6526 = vand.u32 %v5408, 4294901760
      %6527 = vmatmul.f32.gmra.mxu0 %v6526
      %v6528 = vpop.f32.mrf.mxu0
      %v6529 = vadd.f32 %v6380, %v6528
      %v6530 = vand.u32 %v5411, 4294901760
      %6531 = vmatmul.f32.gmra.mxu0 %v6530
      %v6532 = vpop.f32.mrf.mxu0
      %v6533 = vadd.f32 %v6384, %v6532
      %v6534 = vand.u32 %v5414, 4294901760
      %6535 = vmatmul.f32.gmra.mxu0 %v6534
      %v6536 = vpop.f32.mrf.mxu0
      %v6537 = vadd.f32 %v6388, %v6536
      %v6538 = vand.u32 %v5417, 4294901760
      %6539 = vmatmul.f32.gmra.mxu0 %v6538
      %v6540 = vpop.f32.mrf.mxu0
      %v6541 = vadd.f32 %v6392, %v6540
      %v6542 = vand.u32 %v5420, 4294901760
      %6543 = vmatmul.f32.gmra.mxu0 %v6542
      %v6544 = vpop.f32.mrf.mxu0
      %v6545 = vadd.f32 %v6396, %v6544
      %v6546 = vand.u32 %v5423, 4294901760
      %6547 = vmatmul.f32.gmra.mxu0 %v6546
      %v6548 = vpop.f32.mrf.mxu0
      %v6549 = vadd.f32 %v6400, %v6548
      %v6550 = vand.u32 %v5426, 4294901760
      %6551 = vmatmul.f32.gmra.mxu0 %v6550
      %v6552 = vpop.f32.mrf.mxu0
      %v6553 = vadd.f32 %v6404, %v6552
      %v6554 = vand.u32 %v5429, 4294901760
      %6555 = vmatmul.f32.gmra.mxu0 %v6554
      %v6556 = vpop.f32.mrf.mxu0
      %v6557 = vadd.f32 %v6408, %v6556
      %v6558 = vand.u32 %v5432, 4294901760
      %6559 = vmatmul.f32.gmra.mxu0 %v6558
      %v6560 = vpop.f32.mrf.mxu0
      %v6561 = vadd.f32 %v6412, %v6560
      %v6562 = vand.u32 %v5435, 4294901760
      %6563 = vmatmul.f32.gmra.mxu0 %v6562
      %v6564 = vpop.f32.mrf.mxu0
      %v6565 = vadd.f32 %v6416, %v6564
      %v6566 = vand.u32 %v5438, 4294901760
      %6567 = vmatmul.f32.gmra.mxu0 %v6566
      %v6568 = vpop.f32.mrf.mxu0
      %v6569 = vadd.f32 %v6420, %v6568
      %v6570 = vand.u32 %v5441, 4294901760
      %6571 = vmatmul.f32.gmra.mxu0 %v6570
      %v6572 = vpop.f32.mrf.mxu0
      %v6573 = vadd.f32 %v6424, %v6572
      %v6574 = vand.u32 %v5444, 4294901760
      %6575 = vmatmul.f32.gmra.mxu0 %v6574
      %v6576 = vpop.f32.mrf.mxu0
      %v6577 = vadd.f32 %v6428, %v6576
      %v6578 = vand.u32 %v5447, 4294901760
      %6579 = vmatmul.f32.gmra.mxu0 %v6578
      %v6580 = vpop.f32.mrf.mxu0
      %v6581 = vadd.f32 %v6432, %v6580
      %v6582 = vand.u32 %v5450, 4294901760
      %6583 = vmatmul.f32.gmra.mxu0 %v6582
      %v6584 = vpop.f32.mrf.mxu0
      %v6585 = vadd.f32 %v6436, %v6584
      %v6586 = vand.u32 %v5453, 4294901760
      %6587 = vmatmul.f32.gmra.mxu0 %v6586
      %v6588 = vpop.f32.mrf.mxu0
      %v6589 = vadd.f32 %v6440, %v6588
      %v6590 = vand.u32 %v5456, 4294901760
      %6591 = vmatmul.f32.gmra.mxu0 %v6590
      %v6592 = vpop.f32.mrf.mxu0
      %v6593 = vadd.f32 %v6444, %v6592
      %v6594 = vand.u32 %v5459, 4294901760
      %6595 = vmatmul.f32.gmra.mxu0 %v6594
      %v6596 = vpop.f32.mrf.mxu0
      %v6597 = vadd.f32 %v6448, %v6596
      %v6598 = vand.u32 %v5462, 4294901760
      %6599 = vmatmul.f32.gmra.mxu0 %v6598
      %v6600 = vpop.f32.mrf.mxu0
      %v6601 = vadd.f32 %v6452, %v6600
      %v6602 = vand.u32 %v5465, 4294901760
      %6603 = vmatmul.f32.gmra.mxu0 %v6602
      %v6604 = vpop.f32.mrf.mxu0
      %v6605 = vadd.f32 %v6456, %v6604
      %v6606 = vand.u32 %v5468, 4294901760
      %6607 = vmatmul.f32.gmra.mxu0 %v6606
      %v6608 = vpop.f32.mrf.mxu0
      %v6609 = vadd.f32 %v6460, %v6608
      %v6610 = vand.u32 %v5471, 4294901760
      %6611 = vmatmul.f32.gmra.mxu0 %v6610
      %v6612 = vpop.f32.mrf.mxu0
      %v6613 = vadd.f32 %v6464, %v6612
      %v6614 = vand.u32 %v5474, 4294901760
      %6615 = vmatmul.f32.gmra.mxu0 %v6614
      %v6616 = vpop.f32.mrf.mxu0
      %v6617 = vadd.f32 %v6468, %v6616
      %v6618 = vand.u32 %v5477, 4294901760
      %6619 = vmatmul.f32.gmra.mxu0 %v6618
      %v6620 = vpop.f32.mrf.mxu0
      %v6621 = vadd.f32 %v6472, %v6620
      %v6622 = vand.u32 %v5480, 4294901760
      %6623 = vmatmul.f32.gmra.mxu0 %v6622
      %v6624 = vpop.f32.mrf.mxu0
      %v6625 = vadd.f32 %v6476, %v6624
      %v6626 = vand.u32 %v5483, 4294901760
      %6627 = vmatmul.f32.gmra.mxu0 %v6626
      %v6628 = vpop.f32.mrf.mxu0
      %v6629 = vadd.f32 %v6480, %v6628
      %6630 = vdwg.mxu0
      %v6631 = vadd.f32 %v5320, %v6505
      %v6632 = vadd.f32 %v5321, %v6509
      %v6633 = vadd.f32 %v5322, %v6513
      %v6634 = vadd.f32 %v5323, %v6517
      %v6635 = vadd.f32 %v5324, %v6521
      %v6636 = vadd.f32 %v5325, %v6525
      %v6637 = vadd.f32 %v5326, %v6529
      %v6638 = vadd.f32 %v5327, %v6533
      %v6639 = vadd.f32 %v5328, %v6537
      %v6640 = vadd.f32 %v5329, %v6541
      %v6641 = vadd.f32 %v5330, %v6545
      %v6642 = vadd.f32 %v5331, %v6549
      %v6643 = vadd.f32 %v5332, %v6553
      %v6644 = vadd.f32 %v5333, %v6557
      %v6645 = vadd.f32 %v5334, %v6561
      %v6646 = vadd.f32 %v5335, %v6565
      %v6647 = vadd.f32 %v5336, %v6569
      %v6648 = vadd.f32 %v5337, %v6573
      %v6649 = vadd.f32 %v5338, %v6577
      %v6650 = vadd.f32 %v5339, %v6581
      %v6651 = vadd.f32 %v5340, %v6585
      %v6652 = vadd.f32 %v5341, %v6589
      %v6653 = vadd.f32 %v5342, %v6593
      %v6654 = vadd.f32 %v5343, %v6597
      %v6655 = vadd.f32 %v5344, %v6601
      %v6656 = vadd.f32 %v5345, %v6605
      %v6657 = vadd.f32 %v5346, %v6609
      %v6658 = vadd.f32 %v5347, %v6613
      %v6659 = vadd.f32 %v5348, %v6617
      %v6660 = vadd.f32 %v5349, %v6621
      %v6661 = vadd.f32 %v5350, %v6625
      %v6662 = vadd.f32 %v5351, %v6629
      %v6663 = vld [vmem:[%s4040 + $0x2] sm:$0xff]
      %v6664 = vld [vmem:[%s4040 + $0xa] sm:$0xff]
      %v6665 = vld [vmem:[%s4040 + $0x1a] sm:$0xff]
      %v6666 = vld [vmem:[%s4040 + $0x22] sm:$0xff]
      %v6667 = vld [vmem:[%s4040 + $0x32] sm:$0xff]
      %v6668 = vld [vmem:[%s4040 + $0x3a] sm:$0xff]
      %v6669 = vld [vmem:[%s4040 + $0x4a] sm:$0xff]
      %v6670 = vld [vmem:[%s4040 + $0x52] sm:$0xff]
      %v6671 = vld [vmem:[%s4040 + $0x62] sm:$0xff]
      %v6672 = vld [vmem:[%s4040 + $0x6a] sm:$0xff]
      %v6673 = vld [vmem:[%s4040 + $0x7a] sm:$0xff]
      %v6674 = vld [vmem:[%s4040 + $0x82] sm:$0xff]
      %v6675 = vld [vmem:[%s4040 + $0x92] sm:$0xff]
      %v6676 = vld [vmem:[%s4040 + $0x9a] sm:$0xff]
      %v6677 = vld [vmem:[%s4040 + $0xaa] sm:$0xff]
      %v6678 = vld [vmem:[%s4040 + $0xb2] sm:$0xff]
      %v6679 = vld [vmem:[%s4040 + $0xc2] sm:$0xff]
      %v6680 = vld [vmem:[%s4040 + $0xca] sm:$0xff]
      %v6681 = vld [vmem:[%s4040 + $0xda] sm:$0xff]
      %v6682 = vld [vmem:[%s4040 + $0xe2] sm:$0xff]
      %v6683 = vld [vmem:[%s4040 + $0xf2] sm:$0xff]
      %v6684 = vld [vmem:[%s4040 + $0xfa] sm:$0xff]
      %v6685 = vld [vmem:[%s4040 + $0x10a] sm:$0xff]
      %v6686 = vld [vmem:[%s4040 + $0x112] sm:$0xff]
      %v6687 = vld [vmem:[%s4040 + $0x122] sm:$0xff]
      %v6688 = vld [vmem:[%s4040 + $0x12a] sm:$0xff]
      %v6689 = vld [vmem:[%s4040 + $0x13a] sm:$0xff]
      %v6690 = vld [vmem:[%s4040 + $0x142] sm:$0xff]
      %v6691 = vld [vmem:[%s4040 + $0x152] sm:$0xff]
      %v6692 = vld [vmem:[%s4040 + $0x15a] sm:$0xff]
      %v6693 = vld [vmem:[%s4040 + $0x16a] sm:$0xff]
      %v6694 = vld [vmem:[%s4040 + $0x172] sm:$0xff]
      %s6695 = scalar_lea.vmem %s1, 160
      %v6696 = vld [vmem:[%s6695] sm:$0xff]
      %v6697 = vld [vmem:[%s6695 + $0x8] sm:$0xff]
      %v6698 = vld [vmem:[%s6695 + $0x10] sm:$0xff]
      %v6699 = vld [vmem:[%s6695 + $0x18] sm:$0xff]
      %v6701 = vsel %vm244, %v6663, 0
      %v6704 = vsel %vm244, %v6664, 0
      %v6707 = vsel %vm244, %v6665, 0
      %v6710 = vsel %vm244, %v6666, 0
      %v6713 = vsel %vm244, %v6667, 0
      %v6716 = vsel %vm244, %v6668, 0
      %v6719 = vsel %vm244, %v6669, 0
      %v6722 = vsel %vm244, %v6670, 0
      %v6725 = vsel %vm244, %v6671, 0
      %v6728 = vsel %vm244, %v6672, 0
      %v6731 = vsel %vm244, %v6673, 0
      %v6734 = vsel %vm244, %v6674, 0
      %v6737 = vsel %vm244, %v6675, 0
      %v6740 = vsel %vm244, %v6676, 0
      %v6743 = vsel %vm244, %v6677, 0
      %v6746 = vsel %vm244, %v6678, 0
      %v6749 = vsel %vm244, %v6679, 0
      %v6752 = vsel %vm244, %v6680, 0
      %v6755 = vsel %vm244, %v6681, 0
      %v6758 = vsel %vm244, %v6682, 0
      %v6761 = vsel %vm244, %v6683, 0
      %v6764 = vsel %vm244, %v6684, 0
      %v6767 = vsel %vm244, %v6685, 0
      %v6770 = vsel %vm244, %v6686, 0
      %v6773 = vsel %vm244, %v6687, 0
      %v6776 = vsel %vm244, %v6688, 0
      %v6779 = vsel %vm244, %v6689, 0
      %v6782 = vsel %vm244, %v6690, 0
      %v6785 = vsel %vm244, %v6691, 0
      %v6788 = vsel %vm244, %v6692, 0
      %v6791 = vsel %vm244, %v6693, 0
      %v6794 = vsel %vm244, %v6694, 0
      %6796 = vmatpush.msra.mxu0 0.0
      %6797 = vmatpush.msra.mxu0 0.0
      %6798 = vmatpush.msra.mxu0 0.0
      %6799 = vmatpush.msra.mxu0 0.0
      %6800 = vmatpush.msra.mxu0 0.0
      %6801 = vmatpush.msra.mxu0 0.0
      %6802 = vmatpush.msra.mxu0 0.0
      %6803 = vmatpush.msra.mxu0 0.0
      %6804 = vmatpush.msra.mxu0 0.0
      %6805 = vmatpush.msra.mxu0 0.0
      %6806 = vmatpush.msra.mxu0 0.0
      %6807 = vmatpush.msra.mxu0 0.0
      %v6808 = vand.u32 %v6699, 4294901760
      %6809 = vmatpush.msra.mxu0 %v6808
      %v6810 = vand.u32 %v6698, 4294901760
      %6811 = vmatpush.msra.mxu0 %v6810
      %v6812 = vand.u32 %v6697, 4294901760
      %6813 = vmatpush.msra.mxu0 %v6812
      %v6814 = vand.u32 %v6696, 4294901760
      %6815 = vmatpush.msra.mxu0 %v6814
      %v6816 = vand.u32 %v6701, 4294901760
      %v6817 = vsub.f32 %v6701, %v6816
      %v6818 = vand.u32 %v6817, 4294901760
      %v6819 = vsub.f32 %v6817, %v6818
      %v6820 = vand.u32 %v6819, 4294901760
      %6821 = vmatmul.f32.gmra.mxu0 %v6820
      %v6822 = vpop.f32.mrf.mxu0
      %v6823 = vadd.f32 0.0, %v6822
      %v6824 = vand.u32 %v6704, 4294901760
      %v6825 = vsub.f32 %v6704, %v6824
      %v6826 = vand.u32 %v6825, 4294901760
      %v6827 = vsub.f32 %v6825, %v6826
      %v6828 = vand.u32 %v6827, 4294901760
      %6829 = vmatmul.f32.gmra.mxu0 %v6828
      %v6830 = vpop.f32.mrf.mxu0
      %v6831 = vadd.f32 0.0, %v6830
      %v6832 = vand.u32 %v6707, 4294901760
      %v6833 = vsub.f32 %v6707, %v6832
      %v6834 = vand.u32 %v6833, 4294901760
      %v6835 = vsub.f32 %v6833, %v6834
      %v6836 = vand.u32 %v6835, 4294901760
      %6837 = vmatmul.f32.gmra.mxu0 %v6836
      %v6838 = vpop.f32.mrf.mxu0
      %v6839 = vadd.f32 0.0, %v6838
      %v6840 = vand.u32 %v6710, 4294901760
      %v6841 = vsub.f32 %v6710, %v6840
      %v6842 = vand.u32 %v6841, 4294901760
      %v6843 = vsub.f32 %v6841, %v6842
      %v6844 = vand.u32 %v6843, 4294901760
      %6845 = vmatmul.f32.gmra.mxu0 %v6844
      %v6846 = vpop.f32.mrf.mxu0
      %v6847 = vadd.f32 0.0, %v6846
      %v6848 = vand.u32 %v6713, 4294901760
      %v6849 = vsub.f32 %v6713, %v6848
      %v6850 = vand.u32 %v6849, 4294901760
      %v6851 = vsub.f32 %v6849, %v6850
      %v6852 = vand.u32 %v6851, 4294901760
      %6853 = vmatmul.f32.gmra.mxu0 %v6852
      %v6854 = vpop.f32.mrf.mxu0
      %v6855 = vadd.f32 0.0, %v6854
      %v6856 = vand.u32 %v6716, 4294901760
      %v6857 = vsub.f32 %v6716, %v6856
      %v6858 = vand.u32 %v6857, 4294901760
      %v6859 = vsub.f32 %v6857, %v6858
      %v6860 = vand.u32 %v6859, 4294901760
      %6861 = vmatmul.f32.gmra.mxu0 %v6860
      %v6862 = vpop.f32.mrf.mxu0
      %v6863 = vadd.f32 0.0, %v6862
      %v6864 = vand.u32 %v6719, 4294901760
      %v6865 = vsub.f32 %v6719, %v6864
      %v6866 = vand.u32 %v6865, 4294901760
      %v6867 = vsub.f32 %v6865, %v6866
      %v6868 = vand.u32 %v6867, 4294901760
      %6869 = vmatmul.f32.gmra.mxu0 %v6868
      %v6870 = vpop.f32.mrf.mxu0
      %v6871 = vadd.f32 0.0, %v6870
      %v6872 = vand.u32 %v6722, 4294901760
      %v6873 = vsub.f32 %v6722, %v6872
      %v6874 = vand.u32 %v6873, 4294901760
      %v6875 = vsub.f32 %v6873, %v6874
      %v6876 = vand.u32 %v6875, 4294901760
      %6877 = vmatmul.f32.gmra.mxu0 %v6876
      %v6878 = vpop.f32.mrf.mxu0
      %v6879 = vadd.f32 0.0, %v6878
      %v6880 = vand.u32 %v6725, 4294901760
      %v6881 = vsub.f32 %v6725, %v6880
      %v6882 = vand.u32 %v6881, 4294901760
      %v6883 = vsub.f32 %v6881, %v6882
      %v6884 = vand.u32 %v6883, 4294901760
      %6885 = vmatmul.f32.gmra.mxu0 %v6884
      %v6886 = vpop.f32.mrf.mxu0
      %v6887 = vadd.f32 0.0, %v6886
      %v6888 = vand.u32 %v6728, 4294901760
      %v6889 = vsub.f32 %v6728, %v6888
      %v6890 = vand.u32 %v6889, 4294901760
      %v6891 = vsub.f32 %v6889, %v6890
      %v6892 = vand.u32 %v6891, 4294901760
      %6893 = vmatmul.f32.gmra.mxu0 %v6892
      %v6894 = vpop.f32.mrf.mxu0
      %v6895 = vadd.f32 0.0, %v6894
      %v6896 = vand.u32 %v6731, 4294901760
      %v6897 = vsub.f32 %v6731, %v6896
      %v6898 = vand.u32 %v6897, 4294901760
      %v6899 = vsub.f32 %v6897, %v6898
      %v6900 = vand.u32 %v6899, 4294901760
      %6901 = vmatmul.f32.gmra.mxu0 %v6900
      %v6902 = vpop.f32.mrf.mxu0
      %v6903 = vadd.f32 0.0, %v6902
      %v6904 = vand.u32 %v6734, 4294901760
      %v6905 = vsub.f32 %v6734, %v6904
      %v6906 = vand.u32 %v6905, 4294901760
      %v6907 = vsub.f32 %v6905, %v6906
      %v6908 = vand.u32 %v6907, 4294901760
      %6909 = vmatmul.f32.gmra.mxu0 %v6908
      %v6910 = vpop.f32.mrf.mxu0
      %v6911 = vadd.f32 0.0, %v6910
      %v6912 = vand.u32 %v6737, 4294901760
      %v6913 = vsub.f32 %v6737, %v6912
      %v6914 = vand.u32 %v6913, 4294901760
      %v6915 = vsub.f32 %v6913, %v6914
      %v6916 = vand.u32 %v6915, 4294901760
      %6917 = vmatmul.f32.gmra.mxu0 %v6916
      %v6918 = vpop.f32.mrf.mxu0
      %v6919 = vadd.f32 0.0, %v6918
      %v6920 = vand.u32 %v6740, 4294901760
      %v6921 = vsub.f32 %v6740, %v6920
      %v6922 = vand.u32 %v6921, 4294901760
      %v6923 = vsub.f32 %v6921, %v6922
      %v6924 = vand.u32 %v6923, 4294901760
      %6925 = vmatmul.f32.gmra.mxu0 %v6924
      %v6926 = vpop.f32.mrf.mxu0
      %v6927 = vadd.f32 0.0, %v6926
      %v6928 = vand.u32 %v6743, 4294901760
      %v6929 = vsub.f32 %v6743, %v6928
      %v6930 = vand.u32 %v6929, 4294901760
      %v6931 = vsub.f32 %v6929, %v6930
      %v6932 = vand.u32 %v6931, 4294901760
      %6933 = vmatmul.f32.gmra.mxu0 %v6932
      %v6934 = vpop.f32.mrf.mxu0
      %v6935 = vadd.f32 0.0, %v6934
      %v6936 = vand.u32 %v6746, 4294901760
      %v6937 = vsub.f32 %v6746, %v6936
      %v6938 = vand.u32 %v6937, 4294901760
      %v6939 = vsub.f32 %v6937, %v6938
      %v6940 = vand.u32 %v6939, 4294901760
      %6941 = vmatmul.f32.gmra.mxu0 %v6940
      %v6942 = vpop.f32.mrf.mxu0
      %v6943 = vadd.f32 0.0, %v6942
      %v6944 = vand.u32 %v6749, 4294901760
      %v6945 = vsub.f32 %v6749, %v6944
      %v6946 = vand.u32 %v6945, 4294901760
      %v6947 = vsub.f32 %v6945, %v6946
      %v6948 = vand.u32 %v6947, 4294901760
      %6949 = vmatmul.f32.gmra.mxu0 %v6948
      %v6950 = vpop.f32.mrf.mxu0
      %v6951 = vadd.f32 0.0, %v6950
      %v6952 = vand.u32 %v6752, 4294901760
      %v6953 = vsub.f32 %v6752, %v6952
      %v6954 = vand.u32 %v6953, 4294901760
      %v6955 = vsub.f32 %v6953, %v6954
      %v6956 = vand.u32 %v6955, 4294901760
      %6957 = vmatmul.f32.gmra.mxu0 %v6956
      %v6958 = vpop.f32.mrf.mxu0
      %v6959 = vadd.f32 0.0, %v6958
      %v6960 = vand.u32 %v6755, 4294901760
      %v6961 = vsub.f32 %v6755, %v6960
      %v6962 = vand.u32 %v6961, 4294901760
      %v6963 = vsub.f32 %v6961, %v6962
      %v6964 = vand.u32 %v6963, 4294901760
      %6965 = vmatmul.f32.gmra.mxu0 %v6964
      %v6966 = vpop.f32.mrf.mxu0
      %v6967 = vadd.f32 0.0, %v6966
      %v6968 = vand.u32 %v6758, 4294901760
      %v6969 = vsub.f32 %v6758, %v6968
      %v6970 = vand.u32 %v6969, 4294901760
      %v6971 = vsub.f32 %v6969, %v6970
      %v6972 = vand.u32 %v6971, 4294901760
      %6973 = vmatmul.f32.gmra.mxu0 %v6972
      %v6974 = vpop.f32.mrf.mxu0
      %v6975 = vadd.f32 0.0, %v6974
      %v6976 = vand.u32 %v6761, 4294901760
      %v6977 = vsub.f32 %v6761, %v6976
      %v6978 = vand.u32 %v6977, 4294901760
      %v6979 = vsub.f32 %v6977, %v6978
      %v6980 = vand.u32 %v6979, 4294901760
      %6981 = vmatmul.f32.gmra.mxu0 %v6980
      %v6982 = vpop.f32.mrf.mxu0
      %v6983 = vadd.f32 0.0, %v6982
      %v6984 = vand.u32 %v6764, 4294901760
      %v6985 = vsub.f32 %v6764, %v6984
      %v6986 = vand.u32 %v6985, 4294901760
      %v6987 = vsub.f32 %v6985, %v6986
      %v6988 = vand.u32 %v6987, 4294901760
      %6989 = vmatmul.f32.gmra.mxu0 %v6988
      %v6990 = vpop.f32.mrf.mxu0
      %v6991 = vadd.f32 0.0, %v6990
      %v6992 = vand.u32 %v6767, 4294901760
      %v6993 = vsub.f32 %v6767, %v6992
      %v6994 = vand.u32 %v6993, 4294901760
      %v6995 = vsub.f32 %v6993, %v6994
      %v6996 = vand.u32 %v6995, 4294901760
      %6997 = vmatmul.f32.gmra.mxu0 %v6996
      %v6998 = vpop.f32.mrf.mxu0
      %v6999 = vadd.f32 0.0, %v6998
      %v7000 = vand.u32 %v6770, 4294901760
      %v7001 = vsub.f32 %v6770, %v7000
      %v7002 = vand.u32 %v7001, 4294901760
      %v7003 = vsub.f32 %v7001, %v7002
      %v7004 = vand.u32 %v7003, 4294901760
      %7005 = vmatmul.f32.gmra.mxu0 %v7004
      %v7006 = vpop.f32.mrf.mxu0
      %v7007 = vadd.f32 0.0, %v7006
      %v7008 = vand.u32 %v6773, 4294901760
      %v7009 = vsub.f32 %v6773, %v7008
      %v7010 = vand.u32 %v7009, 4294901760
      %v7011 = vsub.f32 %v7009, %v7010
      %v7012 = vand.u32 %v7011, 4294901760
      %7013 = vmatmul.f32.gmra.mxu0 %v7012
      %v7014 = vpop.f32.mrf.mxu0
      %v7015 = vadd.f32 0.0, %v7014
      %v7016 = vand.u32 %v6776, 4294901760
      %v7017 = vsub.f32 %v6776, %v7016
      %v7018 = vand.u32 %v7017, 4294901760
      %v7019 = vsub.f32 %v7017, %v7018
      %v7020 = vand.u32 %v7019, 4294901760
      %7021 = vmatmul.f32.gmra.mxu0 %v7020
      %v7022 = vpop.f32.mrf.mxu0
      %v7023 = vadd.f32 0.0, %v7022
      %v7024 = vand.u32 %v6779, 4294901760
      %v7025 = vsub.f32 %v6779, %v7024
      %v7026 = vand.u32 %v7025, 4294901760
      %v7027 = vsub.f32 %v7025, %v7026
      %v7028 = vand.u32 %v7027, 4294901760
      %7029 = vmatmul.f32.gmra.mxu0 %v7028
      %v7030 = vpop.f32.mrf.mxu0
      %v7031 = vadd.f32 0.0, %v7030
      %v7032 = vand.u32 %v6782, 4294901760
      %v7033 = vsub.f32 %v6782, %v7032
      %v7034 = vand.u32 %v7033, 4294901760
      %v7035 = vsub.f32 %v7033, %v7034
      %v7036 = vand.u32 %v7035, 4294901760
      %7037 = vmatmul.f32.gmra.mxu0 %v7036
      %v7038 = vpop.f32.mrf.mxu0
      %v7039 = vadd.f32 0.0, %v7038
      %v7040 = vand.u32 %v6785, 4294901760
      %v7041 = vsub.f32 %v6785, %v7040
      %v7042 = vand.u32 %v7041, 4294901760
      %v7043 = vsub.f32 %v7041, %v7042
      %v7044 = vand.u32 %v7043, 4294901760
      %7045 = vmatmul.f32.gmra.mxu0 %v7044
      %v7046 = vpop.f32.mrf.mxu0
      %v7047 = vadd.f32 0.0, %v7046
      %v7048 = vand.u32 %v6788, 4294901760
      %v7049 = vsub.f32 %v6788, %v7048
      %v7050 = vand.u32 %v7049, 4294901760
      %v7051 = vsub.f32 %v7049, %v7050
      %v7052 = vand.u32 %v7051, 4294901760
      %7053 = vmatmul.f32.gmra.mxu0 %v7052
      %v7054 = vpop.f32.mrf.mxu0
      %v7055 = vadd.f32 0.0, %v7054
      %v7056 = vand.u32 %v6791, 4294901760
      %v7057 = vsub.f32 %v6791, %v7056
      %v7058 = vand.u32 %v7057, 4294901760
      %v7059 = vsub.f32 %v7057, %v7058
      %v7060 = vand.u32 %v7059, 4294901760
      %7061 = vmatmul.f32.gmra.mxu0 %v7060
      %v7062 = vpop.f32.mrf.mxu0
      %v7063 = vadd.f32 0.0, %v7062
      %v7064 = vand.u32 %v6794, 4294901760
      %v7065 = vsub.f32 %v6794, %v7064
      %v7066 = vand.u32 %v7065, 4294901760
      %v7067 = vsub.f32 %v7065, %v7066
      %v7068 = vand.u32 %v7067, 4294901760
      %7069 = vmatmul.f32.gmra.mxu0 %v7068
      %v7070 = vpop.f32.mrf.mxu0
      %v7071 = vadd.f32 0.0, %v7070
      %7072 = vdwg.mxu0
      %7073 = vmatpush.msra.mxu0 0.0
      %7074 = vmatpush.msra.mxu0 0.0
      %7075 = vmatpush.msra.mxu0 0.0
      %7076 = vmatpush.msra.mxu0 0.0
      %7077 = vmatpush.msra.mxu0 0.0
      %7078 = vmatpush.msra.mxu0 0.0
      %7079 = vmatpush.msra.mxu0 0.0
      %7080 = vmatpush.msra.mxu0 0.0
      %7081 = vmatpush.msra.mxu0 0.0
      %7082 = vmatpush.msra.mxu0 0.0
      %7083 = vmatpush.msra.mxu0 0.0
      %7084 = vmatpush.msra.mxu0 0.0
      %v7085 = vand.u32 %v6699, 4294901760
      %v7086 = vsub.f32 %v6699, %v7085
      %v7087 = vand.u32 %v7086, 4294901760
      %v7088 = vsub.f32 %v7086, %v7087
      %v7089 = vand.u32 %v7088, 4294901760
      %7090 = vmatpush.msra.mxu0 %v7089
      %v7091 = vand.u32 %v6698, 4294901760
      %v7092 = vsub.f32 %v6698, %v7091
      %v7093 = vand.u32 %v7092, 4294901760
      %v7094 = vsub.f32 %v7092, %v7093
      %v7095 = vand.u32 %v7094, 4294901760
      %7096 = vmatpush.msra.mxu0 %v7095
      %v7097 = vand.u32 %v6697, 4294901760
      %v7098 = vsub.f32 %v6697, %v7097
      %v7099 = vand.u32 %v7098, 4294901760
      %v7100 = vsub.f32 %v7098, %v7099
      %v7101 = vand.u32 %v7100, 4294901760
      %7102 = vmatpush.msra.mxu0 %v7101
      %v7103 = vand.u32 %v6696, 4294901760
      %v7104 = vsub.f32 %v6696, %v7103
      %v7105 = vand.u32 %v7104, 4294901760
      %v7106 = vsub.f32 %v7104, %v7105
      %v7107 = vand.u32 %v7106, 4294901760
      %7108 = vmatpush.msra.mxu0 %v7107
      %v7109 = vand.u32 %v6701, 4294901760
      %7110 = vmatmul.f32.gmra.mxu0 %v7109
      %v7111 = vpop.f32.mrf.mxu0
      %v7112 = vadd.f32 %v6823, %v7111
      %v7113 = vand.u32 %v6704, 4294901760
      %7114 = vmatmul.f32.gmra.mxu0 %v7113
      %v7115 = vpop.f32.mrf.mxu0
      %v7116 = vadd.f32 %v6831, %v7115
      %v7117 = vand.u32 %v6707, 4294901760
      %7118 = vmatmul.f32.gmra.mxu0 %v7117
      %v7119 = vpop.f32.mrf.mxu0
      %v7120 = vadd.f32 %v6839, %v7119
      %v7121 = vand.u32 %v6710, 4294901760
      %7122 = vmatmul.f32.gmra.mxu0 %v7121
      %v7123 = vpop.f32.mrf.mxu0
      %v7124 = vadd.f32 %v6847, %v7123
      %v7125 = vand.u32 %v6713, 4294901760
      %7126 = vmatmul.f32.gmra.mxu0 %v7125
      %v7127 = vpop.f32.mrf.mxu0
      %v7128 = vadd.f32 %v6855, %v7127
      %v7129 = vand.u32 %v6716, 4294901760
      %7130 = vmatmul.f32.gmra.mxu0 %v7129
      %v7131 = vpop.f32.mrf.mxu0
      %v7132 = vadd.f32 %v6863, %v7131
      %v7133 = vand.u32 %v6719, 4294901760
      %7134 = vmatmul.f32.gmra.mxu0 %v7133
      %v7135 = vpop.f32.mrf.mxu0
      %v7136 = vadd.f32 %v6871, %v7135
      %v7137 = vand.u32 %v6722, 4294901760
      %7138 = vmatmul.f32.gmra.mxu0 %v7137
      %v7139 = vpop.f32.mrf.mxu0
      %v7140 = vadd.f32 %v6879, %v7139
      %v7141 = vand.u32 %v6725, 4294901760
      %7142 = vmatmul.f32.gmra.mxu0 %v7141
      %v7143 = vpop.f32.mrf.mxu0
      %v7144 = vadd.f32 %v6887, %v7143
      %v7145 = vand.u32 %v6728, 4294901760
      %7146 = vmatmul.f32.gmra.mxu0 %v7145
      %v7147 = vpop.f32.mrf.mxu0
      %v7148 = vadd.f32 %v6895, %v7147
      %v7149 = vand.u32 %v6731, 4294901760
      %7150 = vmatmul.f32.gmra.mxu0 %v7149
      %v7151 = vpop.f32.mrf.mxu0
      %v7152 = vadd.f32 %v6903, %v7151
      %v7153 = vand.u32 %v6734, 4294901760
      %7154 = vmatmul.f32.gmra.mxu0 %v7153
      %v7155 = vpop.f32.mrf.mxu0
      %v7156 = vadd.f32 %v6911, %v7155
      %v7157 = vand.u32 %v6737, 4294901760
      %7158 = vmatmul.f32.gmra.mxu0 %v7157
      %v7159 = vpop.f32.mrf.mxu0
      %v7160 = vadd.f32 %v6919, %v7159
      %v7161 = vand.u32 %v6740, 4294901760
      %7162 = vmatmul.f32.gmra.mxu0 %v7161
      %v7163 = vpop.f32.mrf.mxu0
      %v7164 = vadd.f32 %v6927, %v7163
      %v7165 = vand.u32 %v6743, 4294901760
      %7166 = vmatmul.f32.gmra.mxu0 %v7165
      %v7167 = vpop.f32.mrf.mxu0
      %v7168 = vadd.f32 %v6935, %v7167
      %v7169 = vand.u32 %v6746, 4294901760
      %7170 = vmatmul.f32.gmra.mxu0 %v7169
      %v7171 = vpop.f32.mrf.mxu0
      %v7172 = vadd.f32 %v6943, %v7171
      %v7173 = vand.u32 %v6749, 4294901760
      %7174 = vmatmul.f32.gmra.mxu0 %v7173
      %v7175 = vpop.f32.mrf.mxu0
      %v7176 = vadd.f32 %v6951, %v7175
      %v7177 = vand.u32 %v6752, 4294901760
      %7178 = vmatmul.f32.gmra.mxu0 %v7177
      %v7179 = vpop.f32.mrf.mxu0
      %v7180 = vadd.f32 %v6959, %v7179
      %v7181 = vand.u32 %v6755, 4294901760
      %7182 = vmatmul.f32.gmra.mxu0 %v7181
      %v7183 = vpop.f32.mrf.mxu0
      %v7184 = vadd.f32 %v6967, %v7183
      %v7185 = vand.u32 %v6758, 4294901760
      %7186 = vmatmul.f32.gmra.mxu0 %v7185
      %v7187 = vpop.f32.mrf.mxu0
      %v7188 = vadd.f32 %v6975, %v7187
      %v7189 = vand.u32 %v6761, 4294901760
      %7190 = vmatmul.f32.gmra.mxu0 %v7189
      %v7191 = vpop.f32.mrf.mxu0
      %v7192 = vadd.f32 %v6983, %v7191
      %v7193 = vand.u32 %v6764, 4294901760
      %7194 = vmatmul.f32.gmra.mxu0 %v7193
      %v7195 = vpop.f32.mrf.mxu0
      %v7196 = vadd.f32 %v6991, %v7195
      %v7197 = vand.u32 %v6767, 4294901760
      %7198 = vmatmul.f32.gmra.mxu0 %v7197
      %v7199 = vpop.f32.mrf.mxu0
      %v7200 = vadd.f32 %v6999, %v7199
      %v7201 = vand.u32 %v6770, 4294901760
      %7202 = vmatmul.f32.gmra.mxu0 %v7201
      %v7203 = vpop.f32.mrf.mxu0
      %v7204 = vadd.f32 %v7007, %v7203
      %v7205 = vand.u32 %v6773, 4294901760
      %7206 = vmatmul.f32.gmra.mxu0 %v7205
      %v7207 = vpop.f32.mrf.mxu0
      %v7208 = vadd.f32 %v7015, %v7207
      %v7209 = vand.u32 %v6776, 4294901760
      %7210 = vmatmul.f32.gmra.mxu0 %v7209
      %v7211 = vpop.f32.mrf.mxu0
      %v7212 = vadd.f32 %v7023, %v7211
      %v7213 = vand.u32 %v6779, 4294901760
      %7214 = vmatmul.f32.gmra.mxu0 %v7213
      %v7215 = vpop.f32.mrf.mxu0
      %v7216 = vadd.f32 %v7031, %v7215
      %v7217 = vand.u32 %v6782, 4294901760
      %7218 = vmatmul.f32.gmra.mxu0 %v7217
      %v7219 = vpop.f32.mrf.mxu0
      %v7220 = vadd.f32 %v7039, %v7219
      %v7221 = vand.u32 %v6785, 4294901760
      %7222 = vmatmul.f32.gmra.mxu0 %v7221
      %v7223 = vpop.f32.mrf.mxu0
      %v7224 = vadd.f32 %v7047, %v7223
      %v7225 = vand.u32 %v6788, 4294901760
      %7226 = vmatmul.f32.gmra.mxu0 %v7225
      %v7227 = vpop.f32.mrf.mxu0
      %v7228 = vadd.f32 %v7055, %v7227
      %v7229 = vand.u32 %v6791, 4294901760
      %7230 = vmatmul.f32.gmra.mxu0 %v7229
      %v7231 = vpop.f32.mrf.mxu0
      %v7232 = vadd.f32 %v7063, %v7231
      %v7233 = vand.u32 %v6794, 4294901760
      %7234 = vmatmul.f32.gmra.mxu0 %v7233
      %v7235 = vpop.f32.mrf.mxu0
      %v7236 = vadd.f32 %v7071, %v7235
      %7237 = vdwg.mxu0
      %7238 = vmatpush.msra.mxu0 0.0
      %7239 = vmatpush.msra.mxu0 0.0
      %7240 = vmatpush.msra.mxu0 0.0
      %7241 = vmatpush.msra.mxu0 0.0
      %7242 = vmatpush.msra.mxu0 0.0
      %7243 = vmatpush.msra.mxu0 0.0
      %7244 = vmatpush.msra.mxu0 0.0
      %7245 = vmatpush.msra.mxu0 0.0
      %7246 = vmatpush.msra.mxu0 0.0
      %7247 = vmatpush.msra.mxu0 0.0
      %7248 = vmatpush.msra.mxu0 0.0
      %7249 = vmatpush.msra.mxu0 0.0
      %v7250 = vand.u32 %v6699, 4294901760
      %v7251 = vsub.f32 %v6699, %v7250
      %7252 = vmatpush.msra.mxu0 %v7251
      %v7253 = vand.u32 %v6698, 4294901760
      %v7254 = vsub.f32 %v6698, %v7253
      %7255 = vmatpush.msra.mxu0 %v7254
      %v7256 = vand.u32 %v6697, 4294901760
      %v7257 = vsub.f32 %v6697, %v7256
      %7258 = vmatpush.msra.mxu0 %v7257
      %v7259 = vand.u32 %v6696, 4294901760
      %v7260 = vsub.f32 %v6696, %v7259
      %7261 = vmatpush.msra.mxu0 %v7260
      %v7262 = vand.u32 %v6701, 4294901760
      %v7263 = vsub.f32 %v6701, %v7262
      %7264 = vmatmul.f32.gmra.mxu0 %v7263
      %v7265 = vpop.f32.mrf.mxu0
      %v7266 = vadd.f32 %v7112, %v7265
      %v7267 = vand.u32 %v6704, 4294901760
      %v7268 = vsub.f32 %v6704, %v7267
      %7269 = vmatmul.f32.gmra.mxu0 %v7268
      %v7270 = vpop.f32.mrf.mxu0
      %v7271 = vadd.f32 %v7116, %v7270
      %v7272 = vand.u32 %v6707, 4294901760
      %v7273 = vsub.f32 %v6707, %v7272
      %7274 = vmatmul.f32.gmra.mxu0 %v7273
      %v7275 = vpop.f32.mrf.mxu0
      %v7276 = vadd.f32 %v7120, %v7275
      %v7277 = vand.u32 %v6710, 4294901760
      %v7278 = vsub.f32 %v6710, %v7277
      %7279 = vmatmul.f32.gmra.mxu0 %v7278
      %v7280 = vpop.f32.mrf.mxu0
      %v7281 = vadd.f32 %v7124, %v7280
      %v7282 = vand.u32 %v6713, 4294901760
      %v7283 = vsub.f32 %v6713, %v7282
      %7284 = vmatmul.f32.gmra.mxu0 %v7283
      %v7285 = vpop.f32.mrf.mxu0
      %v7286 = vadd.f32 %v7128, %v7285
      %v7287 = vand.u32 %v6716, 4294901760
      %v7288 = vsub.f32 %v6716, %v7287
      %7289 = vmatmul.f32.gmra.mxu0 %v7288
      %v7290 = vpop.f32.mrf.mxu0
      %v7291 = vadd.f32 %v7132, %v7290
      %v7292 = vand.u32 %v6719, 4294901760
      %v7293 = vsub.f32 %v6719, %v7292
      %7294 = vmatmul.f32.gmra.mxu0 %v7293
      %v7295 = vpop.f32.mrf.mxu0
      %v7296 = vadd.f32 %v7136, %v7295
      %v7297 = vand.u32 %v6722, 4294901760
      %v7298 = vsub.f32 %v6722, %v7297
      %7299 = vmatmul.f32.gmra.mxu0 %v7298
      %v7300 = vpop.f32.mrf.mxu0
      %v7301 = vadd.f32 %v7140, %v7300
      %v7302 = vand.u32 %v6725, 4294901760
      %v7303 = vsub.f32 %v6725, %v7302
      %7304 = vmatmul.f32.gmra.mxu0 %v7303
      %v7305 = vpop.f32.mrf.mxu0
      %v7306 = vadd.f32 %v7144, %v7305
      %v7307 = vand.u32 %v6728, 4294901760
      %v7308 = vsub.f32 %v6728, %v7307
      %7309 = vmatmul.f32.gmra.mxu0 %v7308
      %v7310 = vpop.f32.mrf.mxu0
      %v7311 = vadd.f32 %v7148, %v7310
      %v7312 = vand.u32 %v6731, 4294901760
      %v7313 = vsub.f32 %v6731, %v7312
      %7314 = vmatmul.f32.gmra.mxu0 %v7313
      %v7315 = vpop.f32.mrf.mxu0
      %v7316 = vadd.f32 %v7152, %v7315
      %v7317 = vand.u32 %v6734, 4294901760
      %v7318 = vsub.f32 %v6734, %v7317
      %7319 = vmatmul.f32.gmra.mxu0 %v7318
      %v7320 = vpop.f32.mrf.mxu0
      %v7321 = vadd.f32 %v7156, %v7320
      %v7322 = vand.u32 %v6737, 4294901760
      %v7323 = vsub.f32 %v6737, %v7322
      %7324 = vmatmul.f32.gmra.mxu0 %v7323
      %v7325 = vpop.f32.mrf.mxu0
      %v7326 = vadd.f32 %v7160, %v7325
      %v7327 = vand.u32 %v6740, 4294901760
      %v7328 = vsub.f32 %v6740, %v7327
      %7329 = vmatmul.f32.gmra.mxu0 %v7328
      %v7330 = vpop.f32.mrf.mxu0
      %v7331 = vadd.f32 %v7164, %v7330
      %v7332 = vand.u32 %v6743, 4294901760
      %v7333 = vsub.f32 %v6743, %v7332
      %7334 = vmatmul.f32.gmra.mxu0 %v7333
      %v7335 = vpop.f32.mrf.mxu0
      %v7336 = vadd.f32 %v7168, %v7335
      %v7337 = vand.u32 %v6746, 4294901760
      %v7338 = vsub.f32 %v6746, %v7337
      %7339 = vmatmul.f32.gmra.mxu0 %v7338
      %v7340 = vpop.f32.mrf.mxu0
      %v7341 = vadd.f32 %v7172, %v7340
      %v7342 = vand.u32 %v6749, 4294901760
      %v7343 = vsub.f32 %v6749, %v7342
      %7344 = vmatmul.f32.gmra.mxu0 %v7343
      %v7345 = vpop.f32.mrf.mxu0
      %v7346 = vadd.f32 %v7176, %v7345
      %v7347 = vand.u32 %v6752, 4294901760
      %v7348 = vsub.f32 %v6752, %v7347
      %7349 = vmatmul.f32.gmra.mxu0 %v7348
      %v7350 = vpop.f32.mrf.mxu0
      %v7351 = vadd.f32 %v7180, %v7350
      %v7352 = vand.u32 %v6755, 4294901760
      %v7353 = vsub.f32 %v6755, %v7352
      %7354 = vmatmul.f32.gmra.mxu0 %v7353
      %v7355 = vpop.f32.mrf.mxu0
      %v7356 = vadd.f32 %v7184, %v7355
      %v7357 = vand.u32 %v6758, 4294901760
      %v7358 = vsub.f32 %v6758, %v7357
      %7359 = vmatmul.f32.gmra.mxu0 %v7358
      %v7360 = vpop.f32.mrf.mxu0
      %v7361 = vadd.f32 %v7188, %v7360
      %v7362 = vand.u32 %v6761, 4294901760
      %v7363 = vsub.f32 %v6761, %v7362
      %7364 = vmatmul.f32.gmra.mxu0 %v7363
      %v7365 = vpop.f32.mrf.mxu0
      %v7366 = vadd.f32 %v7192, %v7365
      %v7367 = vand.u32 %v6764, 4294901760
      %v7368 = vsub.f32 %v6764, %v7367
      %7369 = vmatmul.f32.gmra.mxu0 %v7368
      %v7370 = vpop.f32.mrf.mxu0
      %v7371 = vadd.f32 %v7196, %v7370
      %v7372 = vand.u32 %v6767, 4294901760
      %v7373 = vsub.f32 %v6767, %v7372
      %7374 = vmatmul.f32.gmra.mxu0 %v7373
      %v7375 = vpop.f32.mrf.mxu0
      %v7376 = vadd.f32 %v7200, %v7375
      %v7377 = vand.u32 %v6770, 4294901760
      %v7378 = vsub.f32 %v6770, %v7377
      %7379 = vmatmul.f32.gmra.mxu0 %v7378
      %v7380 = vpop.f32.mrf.mxu0
      %v7381 = vadd.f32 %v7204, %v7380
      %v7382 = vand.u32 %v6773, 4294901760
      %v7383 = vsub.f32 %v6773, %v7382
      %7384 = vmatmul.f32.gmra.mxu0 %v7383
      %v7385 = vpop.f32.mrf.mxu0
      %v7386 = vadd.f32 %v7208, %v7385
      %v7387 = vand.u32 %v6776, 4294901760
      %v7388 = vsub.f32 %v6776, %v7387
      %7389 = vmatmul.f32.gmra.mxu0 %v7388
      %v7390 = vpop.f32.mrf.mxu0
      %v7391 = vadd.f32 %v7212, %v7390
      %v7392 = vand.u32 %v6779, 4294901760
      %v7393 = vsub.f32 %v6779, %v7392
      %7394 = vmatmul.f32.gmra.mxu0 %v7393
      %v7395 = vpop.f32.mrf.mxu0
      %v7396 = vadd.f32 %v7216, %v7395
      %v7397 = vand.u32 %v6782, 4294901760
      %v7398 = vsub.f32 %v6782, %v7397
      %7399 = vmatmul.f32.gmra.mxu0 %v7398
      %v7400 = vpop.f32.mrf.mxu0
      %v7401 = vadd.f32 %v7220, %v7400
      %v7402 = vand.u32 %v6785, 4294901760
      %v7403 = vsub.f32 %v6785, %v7402
      %7404 = vmatmul.f32.gmra.mxu0 %v7403
      %v7405 = vpop.f32.mrf.mxu0
      %v7406 = vadd.f32 %v7224, %v7405
      %v7407 = vand.u32 %v6788, 4294901760
      %v7408 = vsub.f32 %v6788, %v7407
      %7409 = vmatmul.f32.gmra.mxu0 %v7408
      %v7410 = vpop.f32.mrf.mxu0
      %v7411 = vadd.f32 %v7228, %v7410
      %v7412 = vand.u32 %v6791, 4294901760
      %v7413 = vsub.f32 %v6791, %v7412
      %7414 = vmatmul.f32.gmra.mxu0 %v7413
      %v7415 = vpop.f32.mrf.mxu0
      %v7416 = vadd.f32 %v7232, %v7415
      %v7417 = vand.u32 %v6794, 4294901760
      %v7418 = vsub.f32 %v6794, %v7417
      %7419 = vmatmul.f32.gmra.mxu0 %v7418
      %v7420 = vpop.f32.mrf.mxu0
      %v7421 = vadd.f32 %v7236, %v7420
      %7422 = vdwg.mxu0
      %7423 = vmatpush.msra.mxu0 0.0
      %7424 = vmatpush.msra.mxu0 0.0
      %7425 = vmatpush.msra.mxu0 0.0
      %7426 = vmatpush.msra.mxu0 0.0
      %7427 = vmatpush.msra.mxu0 0.0
      %7428 = vmatpush.msra.mxu0 0.0
      %7429 = vmatpush.msra.mxu0 0.0
      %7430 = vmatpush.msra.mxu0 0.0
      %7431 = vmatpush.msra.mxu0 0.0
      %7432 = vmatpush.msra.mxu0 0.0
      %7433 = vmatpush.msra.mxu0 0.0
      %7434 = vmatpush.msra.mxu0 0.0
      %v7435 = vand.u32 %v6699, 4294901760
      %7436 = vmatpush.msra.mxu0 %v7435
      %v7437 = vand.u32 %v6698, 4294901760
      %7438 = vmatpush.msra.mxu0 %v7437
      %v7439 = vand.u32 %v6697, 4294901760
      %7440 = vmatpush.msra.mxu0 %v7439
      %v7441 = vand.u32 %v6696, 4294901760
      %7442 = vmatpush.msra.mxu0 %v7441
      %v7443 = vand.u32 %v6701, 4294901760
      %v7444 = vsub.f32 %v6701, %v7443
      %v7445 = vand.u32 %v7444, 4294901760
      %7446 = vmatmul.f32.gmra.mxu0 %v7445
      %v7447 = vpop.f32.mrf.mxu0
      %v7448 = vadd.f32 %v7266, %v7447
      %v7449 = vand.u32 %v6704, 4294901760
      %v7450 = vsub.f32 %v6704, %v7449
      %v7451 = vand.u32 %v7450, 4294901760
      %7452 = vmatmul.f32.gmra.mxu0 %v7451
      %v7453 = vpop.f32.mrf.mxu0
      %v7454 = vadd.f32 %v7271, %v7453
      %v7455 = vand.u32 %v6707, 4294901760
      %v7456 = vsub.f32 %v6707, %v7455
      %v7457 = vand.u32 %v7456, 4294901760
      %7458 = vmatmul.f32.gmra.mxu0 %v7457
      %v7459 = vpop.f32.mrf.mxu0
      %v7460 = vadd.f32 %v7276, %v7459
      %v7461 = vand.u32 %v6710, 4294901760
      %v7462 = vsub.f32 %v6710, %v7461
      %v7463 = vand.u32 %v7462, 4294901760
      %7464 = vmatmul.f32.gmra.mxu0 %v7463
      %v7465 = vpop.f32.mrf.mxu0
      %v7466 = vadd.f32 %v7281, %v7465
      %v7467 = vand.u32 %v6713, 4294901760
      %v7468 = vsub.f32 %v6713, %v7467
      %v7469 = vand.u32 %v7468, 4294901760
      %7470 = vmatmul.f32.gmra.mxu0 %v7469
      %v7471 = vpop.f32.mrf.mxu0
      %v7472 = vadd.f32 %v7286, %v7471
      %v7473 = vand.u32 %v6716, 4294901760
      %v7474 = vsub.f32 %v6716, %v7473
      %v7475 = vand.u32 %v7474, 4294901760
      %7476 = vmatmul.f32.gmra.mxu0 %v7475
      %v7477 = vpop.f32.mrf.mxu0
      %v7478 = vadd.f32 %v7291, %v7477
      %v7479 = vand.u32 %v6719, 4294901760
      %v7480 = vsub.f32 %v6719, %v7479
      %v7481 = vand.u32 %v7480, 4294901760
      %7482 = vmatmul.f32.gmra.mxu0 %v7481
      %v7483 = vpop.f32.mrf.mxu0
      %v7484 = vadd.f32 %v7296, %v7483
      %v7485 = vand.u32 %v6722, 4294901760
      %v7486 = vsub.f32 %v6722, %v7485
      %v7487 = vand.u32 %v7486, 4294901760
      %7488 = vmatmul.f32.gmra.mxu0 %v7487
      %v7489 = vpop.f32.mrf.mxu0
      %v7490 = vadd.f32 %v7301, %v7489
      %v7491 = vand.u32 %v6725, 4294901760
      %v7492 = vsub.f32 %v6725, %v7491
      %v7493 = vand.u32 %v7492, 4294901760
      %7494 = vmatmul.f32.gmra.mxu0 %v7493
      %v7495 = vpop.f32.mrf.mxu0
      %v7496 = vadd.f32 %v7306, %v7495
      %v7497 = vand.u32 %v6728, 4294901760
      %v7498 = vsub.f32 %v6728, %v7497
      %v7499 = vand.u32 %v7498, 4294901760
      %7500 = vmatmul.f32.gmra.mxu0 %v7499
      %v7501 = vpop.f32.mrf.mxu0
      %v7502 = vadd.f32 %v7311, %v7501
      %v7503 = vand.u32 %v6731, 4294901760
      %v7504 = vsub.f32 %v6731, %v7503
      %v7505 = vand.u32 %v7504, 4294901760
      %7506 = vmatmul.f32.gmra.mxu0 %v7505
      %v7507 = vpop.f32.mrf.mxu0
      %v7508 = vadd.f32 %v7316, %v7507
      %v7509 = vand.u32 %v6734, 4294901760
      %v7510 = vsub.f32 %v6734, %v7509
      %v7511 = vand.u32 %v7510, 4294901760
      %7512 = vmatmul.f32.gmra.mxu0 %v7511
      %v7513 = vpop.f32.mrf.mxu0
      %v7514 = vadd.f32 %v7321, %v7513
      %v7515 = vand.u32 %v6737, 4294901760
      %v7516 = vsub.f32 %v6737, %v7515
      %v7517 = vand.u32 %v7516, 4294901760
      %7518 = vmatmul.f32.gmra.mxu0 %v7517
      %v7519 = vpop.f32.mrf.mxu0
      %v7520 = vadd.f32 %v7326, %v7519
      %v7521 = vand.u32 %v6740, 4294901760
      %v7522 = vsub.f32 %v6740, %v7521
      %v7523 = vand.u32 %v7522, 4294901760
      %7524 = vmatmul.f32.gmra.mxu0 %v7523
      %v7525 = vpop.f32.mrf.mxu0
      %v7526 = vadd.f32 %v7331, %v7525
      %v7527 = vand.u32 %v6743, 4294901760
      %v7528 = vsub.f32 %v6743, %v7527
      %v7529 = vand.u32 %v7528, 4294901760
      %7530 = vmatmul.f32.gmra.mxu0 %v7529
      %v7531 = vpop.f32.mrf.mxu0
      %v7532 = vadd.f32 %v7336, %v7531
      %v7533 = vand.u32 %v6746, 4294901760
      %v7534 = vsub.f32 %v6746, %v7533
      %v7535 = vand.u32 %v7534, 4294901760
      %7536 = vmatmul.f32.gmra.mxu0 %v7535
      %v7537 = vpop.f32.mrf.mxu0
      %v7538 = vadd.f32 %v7341, %v7537
      %v7539 = vand.u32 %v6749, 4294901760
      %v7540 = vsub.f32 %v6749, %v7539
      %v7541 = vand.u32 %v7540, 4294901760
      %7542 = vmatmul.f32.gmra.mxu0 %v7541
      %v7543 = vpop.f32.mrf.mxu0
      %v7544 = vadd.f32 %v7346, %v7543
      %v7545 = vand.u32 %v6752, 4294901760
      %v7546 = vsub.f32 %v6752, %v7545
      %v7547 = vand.u32 %v7546, 4294901760
      %7548 = vmatmul.f32.gmra.mxu0 %v7547
      %v7549 = vpop.f32.mrf.mxu0
      %v7550 = vadd.f32 %v7351, %v7549
      %v7551 = vand.u32 %v6755, 4294901760
      %v7552 = vsub.f32 %v6755, %v7551
      %v7553 = vand.u32 %v7552, 4294901760
      %7554 = vmatmul.f32.gmra.mxu0 %v7553
      %v7555 = vpop.f32.mrf.mxu0
      %v7556 = vadd.f32 %v7356, %v7555
      %v7557 = vand.u32 %v6758, 4294901760
      %v7558 = vsub.f32 %v6758, %v7557
      %v7559 = vand.u32 %v7558, 4294901760
      %7560 = vmatmul.f32.gmra.mxu0 %v7559
      %v7561 = vpop.f32.mrf.mxu0
      %v7562 = vadd.f32 %v7361, %v7561
      %v7563 = vand.u32 %v6761, 4294901760
      %v7564 = vsub.f32 %v6761, %v7563
      %v7565 = vand.u32 %v7564, 4294901760
      %7566 = vmatmul.f32.gmra.mxu0 %v7565
      %v7567 = vpop.f32.mrf.mxu0
      %v7568 = vadd.f32 %v7366, %v7567
      %v7569 = vand.u32 %v6764, 4294901760
      %v7570 = vsub.f32 %v6764, %v7569
      %v7571 = vand.u32 %v7570, 4294901760
      %7572 = vmatmul.f32.gmra.mxu0 %v7571
      %v7573 = vpop.f32.mrf.mxu0
      %v7574 = vadd.f32 %v7371, %v7573
      %v7575 = vand.u32 %v6767, 4294901760
      %v7576 = vsub.f32 %v6767, %v7575
      %v7577 = vand.u32 %v7576, 4294901760
      %7578 = vmatmul.f32.gmra.mxu0 %v7577
      %v7579 = vpop.f32.mrf.mxu0
      %v7580 = vadd.f32 %v7376, %v7579
      %v7581 = vand.u32 %v6770, 4294901760
      %v7582 = vsub.f32 %v6770, %v7581
      %v7583 = vand.u32 %v7582, 4294901760
      %7584 = vmatmul.f32.gmra.mxu0 %v7583
      %v7585 = vpop.f32.mrf.mxu0
      %v7586 = vadd.f32 %v7381, %v7585
      %v7587 = vand.u32 %v6773, 4294901760
      %v7588 = vsub.f32 %v6773, %v7587
      %v7589 = vand.u32 %v7588, 4294901760
      %7590 = vmatmul.f32.gmra.mxu0 %v7589
      %v7591 = vpop.f32.mrf.mxu0
      %v7592 = vadd.f32 %v7386, %v7591
      %v7593 = vand.u32 %v6776, 4294901760
      %v7594 = vsub.f32 %v6776, %v7593
      %v7595 = vand.u32 %v7594, 4294901760
      %7596 = vmatmul.f32.gmra.mxu0 %v7595
      %v7597 = vpop.f32.mrf.mxu0
      %v7598 = vadd.f32 %v7391, %v7597
      %v7599 = vand.u32 %v6779, 4294901760
      %v7600 = vsub.f32 %v6779, %v7599
      %v7601 = vand.u32 %v7600, 4294901760
      %7602 = vmatmul.f32.gmra.mxu0 %v7601
      %v7603 = vpop.f32.mrf.mxu0
      %v7604 = vadd.f32 %v7396, %v7603
      %v7605 = vand.u32 %v6782, 4294901760
      %v7606 = vsub.f32 %v6782, %v7605
      %v7607 = vand.u32 %v7606, 4294901760
      %7608 = vmatmul.f32.gmra.mxu0 %v7607
      %v7609 = vpop.f32.mrf.mxu0
      %v7610 = vadd.f32 %v7401, %v7609
      %v7611 = vand.u32 %v6785, 4294901760
      %v7612 = vsub.f32 %v6785, %v7611
      %v7613 = vand.u32 %v7612, 4294901760
      %7614 = vmatmul.f32.gmra.mxu0 %v7613
      %v7615 = vpop.f32.mrf.mxu0
      %v7616 = vadd.f32 %v7406, %v7615
      %v7617 = vand.u32 %v6788, 4294901760
      %v7618 = vsub.f32 %v6788, %v7617
      %v7619 = vand.u32 %v7618, 4294901760
      %7620 = vmatmul.f32.gmra.mxu0 %v7619
      %v7621 = vpop.f32.mrf.mxu0
      %v7622 = vadd.f32 %v7411, %v7621
      %v7623 = vand.u32 %v6791, 4294901760
      %v7624 = vsub.f32 %v6791, %v7623
      %v7625 = vand.u32 %v7624, 4294901760
      %7626 = vmatmul.f32.gmra.mxu0 %v7625
      %v7627 = vpop.f32.mrf.mxu0
      %v7628 = vadd.f32 %v7416, %v7627
      %v7629 = vand.u32 %v6794, 4294901760
      %v7630 = vsub.f32 %v6794, %v7629
      %v7631 = vand.u32 %v7630, 4294901760
      %7632 = vmatmul.f32.gmra.mxu0 %v7631
      %v7633 = vpop.f32.mrf.mxu0
      %v7634 = vadd.f32 %v7421, %v7633
      %7635 = vdwg.mxu0
      %7636 = vmatpush.msra.mxu0 0.0
      %7637 = vmatpush.msra.mxu0 0.0
      %7638 = vmatpush.msra.mxu0 0.0
      %7639 = vmatpush.msra.mxu0 0.0
      %7640 = vmatpush.msra.mxu0 0.0
      %7641 = vmatpush.msra.mxu0 0.0
      %7642 = vmatpush.msra.mxu0 0.0
      %7643 = vmatpush.msra.mxu0 0.0
      %7644 = vmatpush.msra.mxu0 0.0
      %7645 = vmatpush.msra.mxu0 0.0
      %7646 = vmatpush.msra.mxu0 0.0
      %7647 = vmatpush.msra.mxu0 0.0
      %v7648 = vand.u32 %v6699, 4294901760
      %v7649 = vsub.f32 %v6699, %v7648
      %v7650 = vand.u32 %v7649, 4294901760
      %7651 = vmatpush.msra.mxu0 %v7650
      %v7652 = vand.u32 %v6698, 4294901760
      %v7653 = vsub.f32 %v6698, %v7652
      %v7654 = vand.u32 %v7653, 4294901760
      %7655 = vmatpush.msra.mxu0 %v7654
      %v7656 = vand.u32 %v6697, 4294901760
      %v7657 = vsub.f32 %v6697, %v7656
      %v7658 = vand.u32 %v7657, 4294901760
      %7659 = vmatpush.msra.mxu0 %v7658
      %v7660 = vand.u32 %v6696, 4294901760
      %v7661 = vsub.f32 %v6696, %v7660
      %v7662 = vand.u32 %v7661, 4294901760
      %7663 = vmatpush.msra.mxu0 %v7662
      %v7664 = vand.u32 %v6701, 4294901760
      %7665 = vmatmul.f32.gmra.mxu0 %v7664
      %v7666 = vpop.f32.mrf.mxu0
      %v7667 = vadd.f32 %v7448, %v7666
      %v7668 = vand.u32 %v6704, 4294901760
      %7669 = vmatmul.f32.gmra.mxu0 %v7668
      %v7670 = vpop.f32.mrf.mxu0
      %v7671 = vadd.f32 %v7454, %v7670
      %v7672 = vand.u32 %v6707, 4294901760
      %7673 = vmatmul.f32.gmra.mxu0 %v7672
      %v7674 = vpop.f32.mrf.mxu0
      %v7675 = vadd.f32 %v7460, %v7674
      %v7676 = vand.u32 %v6710, 4294901760
      %7677 = vmatmul.f32.gmra.mxu0 %v7676
      %v7678 = vpop.f32.mrf.mxu0
      %v7679 = vadd.f32 %v7466, %v7678
      %v7680 = vand.u32 %v6713, 4294901760
      %7681 = vmatmul.f32.gmra.mxu0 %v7680
      %v7682 = vpop.f32.mrf.mxu0
      %v7683 = vadd.f32 %v7472, %v7682
      %v7684 = vand.u32 %v6716, 4294901760
      %7685 = vmatmul.f32.gmra.mxu0 %v7684
      %v7686 = vpop.f32.mrf.mxu0
      %v7687 = vadd.f32 %v7478, %v7686
      %v7688 = vand.u32 %v6719, 4294901760
      %7689 = vmatmul.f32.gmra.mxu0 %v7688
      %v7690 = vpop.f32.mrf.mxu0
      %v7691 = vadd.f32 %v7484, %v7690
      %v7692 = vand.u32 %v6722, 4294901760
      %7693 = vmatmul.f32.gmra.mxu0 %v7692
      %v7694 = vpop.f32.mrf.mxu0
      %v7695 = vadd.f32 %v7490, %v7694
      %v7696 = vand.u32 %v6725, 4294901760
      %7697 = vmatmul.f32.gmra.mxu0 %v7696
      %v7698 = vpop.f32.mrf.mxu0
      %v7699 = vadd.f32 %v7496, %v7698
      %v7700 = vand.u32 %v6728, 4294901760
      %7701 = vmatmul.f32.gmra.mxu0 %v7700
      %v7702 = vpop.f32.mrf.mxu0
      %v7703 = vadd.f32 %v7502, %v7702
      %v7704 = vand.u32 %v6731, 4294901760
      %7705 = vmatmul.f32.gmra.mxu0 %v7704
      %v7706 = vpop.f32.mrf.mxu0
      %v7707 = vadd.f32 %v7508, %v7706
      %v7708 = vand.u32 %v6734, 4294901760
      %7709 = vmatmul.f32.gmra.mxu0 %v7708
      %v7710 = vpop.f32.mrf.mxu0
      %v7711 = vadd.f32 %v7514, %v7710
      %v7712 = vand.u32 %v6737, 4294901760
      %7713 = vmatmul.f32.gmra.mxu0 %v7712
      %v7714 = vpop.f32.mrf.mxu0
      %v7715 = vadd.f32 %v7520, %v7714
      %v7716 = vand.u32 %v6740, 4294901760
      %7717 = vmatmul.f32.gmra.mxu0 %v7716
      %v7718 = vpop.f32.mrf.mxu0
      %v7719 = vadd.f32 %v7526, %v7718
      %v7720 = vand.u32 %v6743, 4294901760
      %7721 = vmatmul.f32.gmra.mxu0 %v7720
      %v7722 = vpop.f32.mrf.mxu0
      %v7723 = vadd.f32 %v7532, %v7722
      %v7724 = vand.u32 %v6746, 4294901760
      %7725 = vmatmul.f32.gmra.mxu0 %v7724
      %v7726 = vpop.f32.mrf.mxu0
      %v7727 = vadd.f32 %v7538, %v7726
      %v7728 = vand.u32 %v6749, 4294901760
      %7729 = vmatmul.f32.gmra.mxu0 %v7728
      %v7730 = vpop.f32.mrf.mxu0
      %v7731 = vadd.f32 %v7544, %v7730
      %v7732 = vand.u32 %v6752, 4294901760
      %7733 = vmatmul.f32.gmra.mxu0 %v7732
      %v7734 = vpop.f32.mrf.mxu0
      %v7735 = vadd.f32 %v7550, %v7734
      %v7736 = vand.u32 %v6755, 4294901760
      %7737 = vmatmul.f32.gmra.mxu0 %v7736
      %v7738 = vpop.f32.mrf.mxu0
      %v7739 = vadd.f32 %v7556, %v7738
      %v7740 = vand.u32 %v6758, 4294901760
      %7741 = vmatmul.f32.gmra.mxu0 %v7740
      %v7742 = vpop.f32.mrf.mxu0
      %v7743 = vadd.f32 %v7562, %v7742
      %v7744 = vand.u32 %v6761, 4294901760
      %7745 = vmatmul.f32.gmra.mxu0 %v7744
      %v7746 = vpop.f32.mrf.mxu0
      %v7747 = vadd.f32 %v7568, %v7746
      %v7748 = vand.u32 %v6764, 4294901760
      %7749 = vmatmul.f32.gmra.mxu0 %v7748
      %v7750 = vpop.f32.mrf.mxu0
      %v7751 = vadd.f32 %v7574, %v7750
      %v7752 = vand.u32 %v6767, 4294901760
      %7753 = vmatmul.f32.gmra.mxu0 %v7752
      %v7754 = vpop.f32.mrf.mxu0
      %v7755 = vadd.f32 %v7580, %v7754
      %v7756 = vand.u32 %v6770, 4294901760
      %7757 = vmatmul.f32.gmra.mxu0 %v7756
      %v7758 = vpop.f32.mrf.mxu0
      %v7759 = vadd.f32 %v7586, %v7758
      %v7760 = vand.u32 %v6773, 4294901760
      %7761 = vmatmul.f32.gmra.mxu0 %v7760
      %v7762 = vpop.f32.mrf.mxu0
      %v7763 = vadd.f32 %v7592, %v7762
      %v7764 = vand.u32 %v6776, 4294901760
      %7765 = vmatmul.f32.gmra.mxu0 %v7764
      %v7766 = vpop.f32.mrf.mxu0
      %v7767 = vadd.f32 %v7598, %v7766
      %v7768 = vand.u32 %v6779, 4294901760
      %7769 = vmatmul.f32.gmra.mxu0 %v7768
      %v7770 = vpop.f32.mrf.mxu0
      %v7771 = vadd.f32 %v7604, %v7770
      %v7772 = vand.u32 %v6782, 4294901760
      %7773 = vmatmul.f32.gmra.mxu0 %v7772
      %v7774 = vpop.f32.mrf.mxu0
      %v7775 = vadd.f32 %v7610, %v7774
      %v7776 = vand.u32 %v6785, 4294901760
      %7777 = vmatmul.f32.gmra.mxu0 %v7776
      %v7778 = vpop.f32.mrf.mxu0
      %v7779 = vadd.f32 %v7616, %v7778
      %v7780 = vand.u32 %v6788, 4294901760
      %7781 = vmatmul.f32.gmra.mxu0 %v7780
      %v7782 = vpop.f32.mrf.mxu0
      %v7783 = vadd.f32 %v7622, %v7782
      %v7784 = vand.u32 %v6791, 4294901760
      %7785 = vmatmul.f32.gmra.mxu0 %v7784
      %v7786 = vpop.f32.mrf.mxu0
      %v7787 = vadd.f32 %v7628, %v7786
      %v7788 = vand.u32 %v6794, 4294901760
      %7789 = vmatmul.f32.gmra.mxu0 %v7788
      %v7790 = vpop.f32.mrf.mxu0
      %v7791 = vadd.f32 %v7634, %v7790
      %7792 = vdwg.mxu0
      %7793 = vmatpush.msra.mxu0 0.0
      %7794 = vmatpush.msra.mxu0 0.0
      %7795 = vmatpush.msra.mxu0 0.0
      %7796 = vmatpush.msra.mxu0 0.0
      %7797 = vmatpush.msra.mxu0 0.0
      %7798 = vmatpush.msra.mxu0 0.0
      %7799 = vmatpush.msra.mxu0 0.0
      %7800 = vmatpush.msra.mxu0 0.0
      %7801 = vmatpush.msra.mxu0 0.0
      %7802 = vmatpush.msra.mxu0 0.0
      %7803 = vmatpush.msra.mxu0 0.0
      %7804 = vmatpush.msra.mxu0 0.0
      %v7805 = vand.u32 %v6699, 4294901760
      %7806 = vmatpush.msra.mxu0 %v7805
      %v7807 = vand.u32 %v6698, 4294901760
      %7808 = vmatpush.msra.mxu0 %v7807
      %v7809 = vand.u32 %v6697, 4294901760
      %7810 = vmatpush.msra.mxu0 %v7809
      %v7811 = vand.u32 %v6696, 4294901760
      %7812 = vmatpush.msra.mxu0 %v7811
      %v7813 = vand.u32 %v6701, 4294901760
      %7814 = vmatmul.f32.gmra.mxu0 %v7813
      %v7815 = vpop.f32.mrf.mxu0
      %v7816 = vadd.f32 %v7667, %v7815
      %v7817 = vand.u32 %v6704, 4294901760
      %7818 = vmatmul.f32.gmra.mxu0 %v7817
      %v7819 = vpop.f32.mrf.mxu0
      %v7820 = vadd.f32 %v7671, %v7819
      %v7821 = vand.u32 %v6707, 4294901760
      %7822 = vmatmul.f32.gmra.mxu0 %v7821
      %v7823 = vpop.f32.mrf.mxu0
      %v7824 = vadd.f32 %v7675, %v7823
      %v7825 = vand.u32 %v6710, 4294901760
      %7826 = vmatmul.f32.gmra.mxu0 %v7825
      %v7827 = vpop.f32.mrf.mxu0
      %v7828 = vadd.f32 %v7679, %v7827
      %v7829 = vand.u32 %v6713, 4294901760
      %7830 = vmatmul.f32.gmra.mxu0 %v7829
      %v7831 = vpop.f32.mrf.mxu0
      %v7832 = vadd.f32 %v7683, %v7831
      %v7833 = vand.u32 %v6716, 4294901760
      %7834 = vmatmul.f32.gmra.mxu0 %v7833
      %v7835 = vpop.f32.mrf.mxu0
      %v7836 = vadd.f32 %v7687, %v7835
      %v7837 = vand.u32 %v6719, 4294901760
      %7838 = vmatmul.f32.gmra.mxu0 %v7837
      %v7839 = vpop.f32.mrf.mxu0
      %v7840 = vadd.f32 %v7691, %v7839
      %v7841 = vand.u32 %v6722, 4294901760
      %7842 = vmatmul.f32.gmra.mxu0 %v7841
      %v7843 = vpop.f32.mrf.mxu0
      %v7844 = vadd.f32 %v7695, %v7843
      %v7845 = vand.u32 %v6725, 4294901760
      %7846 = vmatmul.f32.gmra.mxu0 %v7845
      %v7847 = vpop.f32.mrf.mxu0
      %v7848 = vadd.f32 %v7699, %v7847
      %v7849 = vand.u32 %v6728, 4294901760
      %7850 = vmatmul.f32.gmra.mxu0 %v7849
      %v7851 = vpop.f32.mrf.mxu0
      %v7852 = vadd.f32 %v7703, %v7851
      %v7853 = vand.u32 %v6731, 4294901760
      %7854 = vmatmul.f32.gmra.mxu0 %v7853
      %v7855 = vpop.f32.mrf.mxu0
      %v7856 = vadd.f32 %v7707, %v7855
      %v7857 = vand.u32 %v6734, 4294901760
      %7858 = vmatmul.f32.gmra.mxu0 %v7857
      %v7859 = vpop.f32.mrf.mxu0
      %v7860 = vadd.f32 %v7711, %v7859
      %v7861 = vand.u32 %v6737, 4294901760
      %7862 = vmatmul.f32.gmra.mxu0 %v7861
      %v7863 = vpop.f32.mrf.mxu0
      %v7864 = vadd.f32 %v7715, %v7863
      %v7865 = vand.u32 %v6740, 4294901760
      %7866 = vmatmul.f32.gmra.mxu0 %v7865
      %v7867 = vpop.f32.mrf.mxu0
      %v7868 = vadd.f32 %v7719, %v7867
      %v7869 = vand.u32 %v6743, 4294901760
      %7870 = vmatmul.f32.gmra.mxu0 %v7869
      %v7871 = vpop.f32.mrf.mxu0
      %v7872 = vadd.f32 %v7723, %v7871
      %v7873 = vand.u32 %v6746, 4294901760
      %7874 = vmatmul.f32.gmra.mxu0 %v7873
      %v7875 = vpop.f32.mrf.mxu0
      %v7876 = vadd.f32 %v7727, %v7875
      %v7877 = vand.u32 %v6749, 4294901760
      %7878 = vmatmul.f32.gmra.mxu0 %v7877
      %v7879 = vpop.f32.mrf.mxu0
      %v7880 = vadd.f32 %v7731, %v7879
      %v7881 = vand.u32 %v6752, 4294901760
      %7882 = vmatmul.f32.gmra.mxu0 %v7881
      %v7883 = vpop.f32.mrf.mxu0
      %v7884 = vadd.f32 %v7735, %v7883
      %v7885 = vand.u32 %v6755, 4294901760
      %7886 = vmatmul.f32.gmra.mxu0 %v7885
      %v7887 = vpop.f32.mrf.mxu0
      %v7888 = vadd.f32 %v7739, %v7887
      %v7889 = vand.u32 %v6758, 4294901760
      %7890 = vmatmul.f32.gmra.mxu0 %v7889
      %v7891 = vpop.f32.mrf.mxu0
      %v7892 = vadd.f32 %v7743, %v7891
      %v7893 = vand.u32 %v6761, 4294901760
      %7894 = vmatmul.f32.gmra.mxu0 %v7893
      %v7895 = vpop.f32.mrf.mxu0
      %v7896 = vadd.f32 %v7747, %v7895
      %v7897 = vand.u32 %v6764, 4294901760
      %7898 = vmatmul.f32.gmra.mxu0 %v7897
      %v7899 = vpop.f32.mrf.mxu0
      %v7900 = vadd.f32 %v7751, %v7899
      %v7901 = vand.u32 %v6767, 4294901760
      %7902 = vmatmul.f32.gmra.mxu0 %v7901
      %v7903 = vpop.f32.mrf.mxu0
      %v7904 = vadd.f32 %v7755, %v7903
      %v7905 = vand.u32 %v6770, 4294901760
      %7906 = vmatmul.f32.gmra.mxu0 %v7905
      %v7907 = vpop.f32.mrf.mxu0
      %v7908 = vadd.f32 %v7759, %v7907
      %v7909 = vand.u32 %v6773, 4294901760
      %7910 = vmatmul.f32.gmra.mxu0 %v7909
      %v7911 = vpop.f32.mrf.mxu0
      %v7912 = vadd.f32 %v7763, %v7911
      %v7913 = vand.u32 %v6776, 4294901760
      %7914 = vmatmul.f32.gmra.mxu0 %v7913
      %v7915 = vpop.f32.mrf.mxu0
      %v7916 = vadd.f32 %v7767, %v7915
      %v7917 = vand.u32 %v6779, 4294901760
      %7918 = vmatmul.f32.gmra.mxu0 %v7917
      %v7919 = vpop.f32.mrf.mxu0
      %v7920 = vadd.f32 %v7771, %v7919
      %v7921 = vand.u32 %v6782, 4294901760
      %7922 = vmatmul.f32.gmra.mxu0 %v7921
      %v7923 = vpop.f32.mrf.mxu0
      %v7924 = vadd.f32 %v7775, %v7923
      %v7925 = vand.u32 %v6785, 4294901760
      %7926 = vmatmul.f32.gmra.mxu0 %v7925
      %v7927 = vpop.f32.mrf.mxu0
      %v7928 = vadd.f32 %v7779, %v7927
      %v7929 = vand.u32 %v6788, 4294901760
      %7930 = vmatmul.f32.gmra.mxu0 %v7929
      %v7931 = vpop.f32.mrf.mxu0
      %v7932 = vadd.f32 %v7783, %v7931
      %v7933 = vand.u32 %v6791, 4294901760
      %7934 = vmatmul.f32.gmra.mxu0 %v7933
      %v7935 = vpop.f32.mrf.mxu0
      %v7936 = vadd.f32 %v7787, %v7935
      %v7937 = vand.u32 %v6794, 4294901760
      %7938 = vmatmul.f32.gmra.mxu0 %v7937
      %v7939 = vpop.f32.mrf.mxu0
      %v7940 = vadd.f32 %v7791, %v7939
      %7941 = vdwg.mxu0
      %v7942 = vadd.f32 %v6631, %v7816
      %v7943 = vadd.f32 %v6632, %v7820
      %v7944 = vadd.f32 %v6633, %v7824
      %v7945 = vadd.f32 %v6634, %v7828
      %v7946 = vadd.f32 %v6635, %v7832
      %v7947 = vadd.f32 %v6636, %v7836
      %v7948 = vadd.f32 %v6637, %v7840
      %v7949 = vadd.f32 %v6638, %v7844
      %v7950 = vadd.f32 %v6639, %v7848
      %v7951 = vadd.f32 %v6640, %v7852
      %v7952 = vadd.f32 %v6641, %v7856
      %v7953 = vadd.f32 %v6642, %v7860
      %v7954 = vadd.f32 %v6643, %v7864
      %v7955 = vadd.f32 %v6644, %v7868
      %v7956 = vadd.f32 %v6645, %v7872
      %v7957 = vadd.f32 %v6646, %v7876
      %v7958 = vadd.f32 %v6647, %v7880
      %v7959 = vadd.f32 %v6648, %v7884
      %v7960 = vadd.f32 %v6649, %v7888
      %v7961 = vadd.f32 %v6650, %v7892
      %v7962 = vadd.f32 %v6651, %v7896
      %v7963 = vadd.f32 %v6652, %v7900
      %v7964 = vadd.f32 %v6653, %v7904
      %v7965 = vadd.f32 %v6654, %v7908
      %v7966 = vadd.f32 %v6655, %v7912
      %v7967 = vadd.f32 %v6656, %v7916
      %v7968 = vadd.f32 %v6657, %v7920
      %v7969 = vadd.f32 %v6658, %v7924
      %v7970 = vadd.f32 %v6659, %v7928
      %v7971 = vadd.f32 %v6660, %v7932
      %v7972 = vadd.f32 %v6661, %v7936
      %v7973 = vadd.f32 %v6662, %v7940
      %s7974 = scalar_lea.vmem %s165, 48
      %v7975 = vld [vmem:[%s7974] sm:$0xff]
      %v7976 = vld [vmem:[%s7974 + $0x8] sm:$0xff]
      %v7977 = vld [vmem:[%s7974 + $0x18] sm:$0xff]
      %v7978 = vld [vmem:[%s7974 + $0x20] sm:$0xff]
      %v7979 = vld [vmem:[%s7974 + $0x30] sm:$0xff]
      %v7980 = vld [vmem:[%s7974 + $0x38] sm:$0xff]
      %v7981 = vld [vmem:[%s7974 + $0x48] sm:$0xff]
      %v7982 = vld [vmem:[%s7974 + $0x50] sm:$0xff]
      %v7983 = vld [vmem:[%s7974 + $0x60] sm:$0xff]
      %v7984 = vld [vmem:[%s7974 + $0x68] sm:$0xff]
      %v7985 = vld [vmem:[%s7974 + $0x78] sm:$0xff]
      %v7986 = vld [vmem:[%s7974 + $0x80] sm:$0xff]
      %v7987 = vld [vmem:[%s7974 + $0x90] sm:$0xff]
      %v7988 = vld [vmem:[%s7974 + $0x98] sm:$0xff]
      %v7989 = vld [vmem:[%s7974 + $0xa8] sm:$0xff]
      %v7990 = vld [vmem:[%s7974 + $0xb0] sm:$0xff]
      %v7991 = vld [vmem:[%s7974 + $0xc0] sm:$0xff]
      %v7992 = vld [vmem:[%s7974 + $0xc8] sm:$0xff]
      %v7993 = vld [vmem:[%s7974 + $0xd8] sm:$0xff]
      %v7994 = vld [vmem:[%s7974 + $0xe0] sm:$0xff]
      %v7995 = vld [vmem:[%s7974 + $0xf0] sm:$0xff]
      %v7996 = vld [vmem:[%s7974 + $0xf8] sm:$0xff]
      %v7997 = vld [vmem:[%s7974 + $0x108] sm:$0xff]
      %v7998 = vld [vmem:[%s7974 + $0x110] sm:$0xff]
      %v7999 = vld [vmem:[%s7974 + $0x120] sm:$0xff]
      %v8000 = vld [vmem:[%s7974 + $0x128] sm:$0xff]
      %v8001 = vld [vmem:[%s7974 + $0x138] sm:$0xff]
      %v8002 = vld [vmem:[%s7974 + $0x140] sm:$0xff]
      %v8003 = vld [vmem:[%s7974 + $0x150] sm:$0xff]
      %v8004 = vld [vmem:[%s7974 + $0x158] sm:$0xff]
      %v8005 = vld [vmem:[%s7974 + $0x168] sm:$0xff]
      %v8006 = vld [vmem:[%s7974 + $0x170] sm:$0xff]
      %s8007 = scalar_lea.vmem %s1, 192
      %v8008 = vld [vmem:[%s8007] sm:$0xff]
      %v8009 = vld [vmem:[%s8007 + $0x8] sm:$0xff]
      %v8010 = vld [vmem:[%s8007 + $0x10] sm:$0xff]
      %v8011 = vld [vmem:[%s8007 + $0x18] sm:$0xff]
      %v8013 = vsel %vm244, %v7975, 0
      %v8016 = vsel %vm244, %v7976, 0
      %v8019 = vsel %vm244, %v7977, 0
      %v8022 = vsel %vm244, %v7978, 0
      %v8025 = vsel %vm244, %v7979, 0
      %v8028 = vsel %vm244, %v7980, 0
      %v8031 = vsel %vm244, %v7981, 0
      %v8034 = vsel %vm244, %v7982, 0
      %v8037 = vsel %vm244, %v7983, 0
      %v8040 = vsel %vm244, %v7984, 0
      %v8043 = vsel %vm244, %v7985, 0
      %v8046 = vsel %vm244, %v7986, 0
      %v8049 = vsel %vm244, %v7987, 0
      %v8052 = vsel %vm244, %v7988, 0
      %v8055 = vsel %vm244, %v7989, 0
      %v8058 = vsel %vm244, %v7990, 0
      %v8061 = vsel %vm244, %v7991, 0
      %v8064 = vsel %vm244, %v7992, 0
      %v8067 = vsel %vm244, %v7993, 0
      %v8070 = vsel %vm244, %v7994, 0
      %v8073 = vsel %vm244, %v7995, 0
      %v8076 = vsel %vm244, %v7996, 0
      %v8079 = vsel %vm244, %v7997, 0
      %v8082 = vsel %vm244, %v7998, 0
      %v8085 = vsel %vm244, %v7999, 0
      %v8088 = vsel %vm244, %v8000, 0
      %v8091 = vsel %vm244, %v8001, 0
      %v8094 = vsel %vm244, %v8002, 0
      %v8097 = vsel %vm244, %v8003, 0
      %v8100 = vsel %vm244, %v8004, 0
      %v8103 = vsel %vm244, %v8005, 0
      %v8106 = vsel %vm244, %v8006, 0
      %8108 = vmatpush.msra.mxu0 0.0
      %8109 = vmatpush.msra.mxu0 0.0
      %8110 = vmatpush.msra.mxu0 0.0
      %8111 = vmatpush.msra.mxu0 0.0
      %8112 = vmatpush.msra.mxu0 0.0
      %8113 = vmatpush.msra.mxu0 0.0
      %8114 = vmatpush.msra.mxu0 0.0
      %8115 = vmatpush.msra.mxu0 0.0
      %8116 = vmatpush.msra.mxu0 0.0
      %8117 = vmatpush.msra.mxu0 0.0
      %8118 = vmatpush.msra.mxu0 0.0
      %8119 = vmatpush.msra.mxu0 0.0
      %v8120 = vand.u32 %v8011, 4294901760
      %8121 = vmatpush.msra.mxu0 %v8120
      %v8122 = vand.u32 %v8010, 4294901760
      %8123 = vmatpush.msra.mxu0 %v8122
      %v8124 = vand.u32 %v8009, 4294901760
      %8125 = vmatpush.msra.mxu0 %v8124
      %v8126 = vand.u32 %v8008, 4294901760
      %8127 = vmatpush.msra.mxu0 %v8126
      %v8128 = vand.u32 %v8013, 4294901760
      %v8129 = vsub.f32 %v8013, %v8128
      %v8130 = vand.u32 %v8129, 4294901760
      %v8131 = vsub.f32 %v8129, %v8130
      %v8132 = vand.u32 %v8131, 4294901760
      %8133 = vmatmul.f32.gmra.mxu0 %v8132
      %v8134 = vpop.f32.mrf.mxu0
      %v8135 = vadd.f32 0.0, %v8134
      %v8136 = vand.u32 %v8016, 4294901760
      %v8137 = vsub.f32 %v8016, %v8136
      %v8138 = vand.u32 %v8137, 4294901760
      %v8139 = vsub.f32 %v8137, %v8138
      %v8140 = vand.u32 %v8139, 4294901760
      %8141 = vmatmul.f32.gmra.mxu0 %v8140
      %v8142 = vpop.f32.mrf.mxu0
      %v8143 = vadd.f32 0.0, %v8142
      %v8144 = vand.u32 %v8019, 4294901760
      %v8145 = vsub.f32 %v8019, %v8144
      %v8146 = vand.u32 %v8145, 4294901760
      %v8147 = vsub.f32 %v8145, %v8146
      %v8148 = vand.u32 %v8147, 4294901760
      %8149 = vmatmul.f32.gmra.mxu0 %v8148
      %v8150 = vpop.f32.mrf.mxu0
      %v8151 = vadd.f32 0.0, %v8150
      %v8152 = vand.u32 %v8022, 4294901760
      %v8153 = vsub.f32 %v8022, %v8152
      %v8154 = vand.u32 %v8153, 4294901760
      %v8155 = vsub.f32 %v8153, %v8154
      %v8156 = vand.u32 %v8155, 4294901760
      %8157 = vmatmul.f32.gmra.mxu0 %v8156
      %v8158 = vpop.f32.mrf.mxu0
      %v8159 = vadd.f32 0.0, %v8158
      %v8160 = vand.u32 %v8025, 4294901760
      %v8161 = vsub.f32 %v8025, %v8160
      %v8162 = vand.u32 %v8161, 4294901760
      %v8163 = vsub.f32 %v8161, %v8162
      %v8164 = vand.u32 %v8163, 4294901760
      %8165 = vmatmul.f32.gmra.mxu0 %v8164
      %v8166 = vpop.f32.mrf.mxu0
      %v8167 = vadd.f32 0.0, %v8166
      %v8168 = vand.u32 %v8028, 4294901760
      %v8169 = vsub.f32 %v8028, %v8168
      %v8170 = vand.u32 %v8169, 4294901760
      %v8171 = vsub.f32 %v8169, %v8170
      %v8172 = vand.u32 %v8171, 4294901760
      %8173 = vmatmul.f32.gmra.mxu0 %v8172
      %v8174 = vpop.f32.mrf.mxu0
      %v8175 = vadd.f32 0.0, %v8174
      %v8176 = vand.u32 %v8031, 4294901760
      %v8177 = vsub.f32 %v8031, %v8176
      %v8178 = vand.u32 %v8177, 4294901760
      %v8179 = vsub.f32 %v8177, %v8178
      %v8180 = vand.u32 %v8179, 4294901760
      %8181 = vmatmul.f32.gmra.mxu0 %v8180
      %v8182 = vpop.f32.mrf.mxu0
      %v8183 = vadd.f32 0.0, %v8182
      %v8184 = vand.u32 %v8034, 4294901760
      %v8185 = vsub.f32 %v8034, %v8184
      %v8186 = vand.u32 %v8185, 4294901760
      %v8187 = vsub.f32 %v8185, %v8186
      %v8188 = vand.u32 %v8187, 4294901760
      %8189 = vmatmul.f32.gmra.mxu0 %v8188
      %v8190 = vpop.f32.mrf.mxu0
      %v8191 = vadd.f32 0.0, %v8190
      %v8192 = vand.u32 %v8037, 4294901760
      %v8193 = vsub.f32 %v8037, %v8192
      %v8194 = vand.u32 %v8193, 4294901760
      %v8195 = vsub.f32 %v8193, %v8194
      %v8196 = vand.u32 %v8195, 4294901760
      %8197 = vmatmul.f32.gmra.mxu0 %v8196
      %v8198 = vpop.f32.mrf.mxu0
      %v8199 = vadd.f32 0.0, %v8198
      %v8200 = vand.u32 %v8040, 4294901760
      %v8201 = vsub.f32 %v8040, %v8200
      %v8202 = vand.u32 %v8201, 4294901760
      %v8203 = vsub.f32 %v8201, %v8202
      %v8204 = vand.u32 %v8203, 4294901760
      %8205 = vmatmul.f32.gmra.mxu0 %v8204
      %v8206 = vpop.f32.mrf.mxu0
      %v8207 = vadd.f32 0.0, %v8206
      %v8208 = vand.u32 %v8043, 4294901760
      %v8209 = vsub.f32 %v8043, %v8208
      %v8210 = vand.u32 %v8209, 4294901760
      %v8211 = vsub.f32 %v8209, %v8210
      %v8212 = vand.u32 %v8211, 4294901760
      %8213 = vmatmul.f32.gmra.mxu0 %v8212
      %v8214 = vpop.f32.mrf.mxu0
      %v8215 = vadd.f32 0.0, %v8214
      %v8216 = vand.u32 %v8046, 4294901760
      %v8217 = vsub.f32 %v8046, %v8216
      %v8218 = vand.u32 %v8217, 4294901760
      %v8219 = vsub.f32 %v8217, %v8218
      %v8220 = vand.u32 %v8219, 4294901760
      %8221 = vmatmul.f32.gmra.mxu0 %v8220
      %v8222 = vpop.f32.mrf.mxu0
      %v8223 = vadd.f32 0.0, %v8222
      %v8224 = vand.u32 %v8049, 4294901760
      %v8225 = vsub.f32 %v8049, %v8224
      %v8226 = vand.u32 %v8225, 4294901760
      %v8227 = vsub.f32 %v8225, %v8226
      %v8228 = vand.u32 %v8227, 4294901760
      %8229 = vmatmul.f32.gmra.mxu0 %v8228
      %v8230 = vpop.f32.mrf.mxu0
      %v8231 = vadd.f32 0.0, %v8230
      %v8232 = vand.u32 %v8052, 4294901760
      %v8233 = vsub.f32 %v8052, %v8232
      %v8234 = vand.u32 %v8233, 4294901760
      %v8235 = vsub.f32 %v8233, %v8234
      %v8236 = vand.u32 %v8235, 4294901760
      %8237 = vmatmul.f32.gmra.mxu0 %v8236
      %v8238 = vpop.f32.mrf.mxu0
      %v8239 = vadd.f32 0.0, %v8238
      %v8240 = vand.u32 %v8055, 4294901760
      %v8241 = vsub.f32 %v8055, %v8240
      %v8242 = vand.u32 %v8241, 4294901760
      %v8243 = vsub.f32 %v8241, %v8242
      %v8244 = vand.u32 %v8243, 4294901760
      %8245 = vmatmul.f32.gmra.mxu0 %v8244
      %v8246 = vpop.f32.mrf.mxu0
      %v8247 = vadd.f32 0.0, %v8246
      %v8248 = vand.u32 %v8058, 4294901760
      %v8249 = vsub.f32 %v8058, %v8248
      %v8250 = vand.u32 %v8249, 4294901760
      %v8251 = vsub.f32 %v8249, %v8250
      %v8252 = vand.u32 %v8251, 4294901760
      %8253 = vmatmul.f32.gmra.mxu0 %v8252
      %v8254 = vpop.f32.mrf.mxu0
      %v8255 = vadd.f32 0.0, %v8254
      %v8256 = vand.u32 %v8061, 4294901760
      %v8257 = vsub.f32 %v8061, %v8256
      %v8258 = vand.u32 %v8257, 4294901760
      %v8259 = vsub.f32 %v8257, %v8258
      %v8260 = vand.u32 %v8259, 4294901760
      %8261 = vmatmul.f32.gmra.mxu0 %v8260
      %v8262 = vpop.f32.mrf.mxu0
      %v8263 = vadd.f32 0.0, %v8262
      %v8264 = vand.u32 %v8064, 4294901760
      %v8265 = vsub.f32 %v8064, %v8264
      %v8266 = vand.u32 %v8265, 4294901760
      %v8267 = vsub.f32 %v8265, %v8266
      %v8268 = vand.u32 %v8267, 4294901760
      %8269 = vmatmul.f32.gmra.mxu0 %v8268
      %v8270 = vpop.f32.mrf.mxu0
      %v8271 = vadd.f32 0.0, %v8270
      %v8272 = vand.u32 %v8067, 4294901760
      %v8273 = vsub.f32 %v8067, %v8272
      %v8274 = vand.u32 %v8273, 4294901760
      %v8275 = vsub.f32 %v8273, %v8274
      %v8276 = vand.u32 %v8275, 4294901760
      %8277 = vmatmul.f32.gmra.mxu0 %v8276
      %v8278 = vpop.f32.mrf.mxu0
      %v8279 = vadd.f32 0.0, %v8278
      %v8280 = vand.u32 %v8070, 4294901760
      %v8281 = vsub.f32 %v8070, %v8280
      %v8282 = vand.u32 %v8281, 4294901760
      %v8283 = vsub.f32 %v8281, %v8282
      %v8284 = vand.u32 %v8283, 4294901760
      %8285 = vmatmul.f32.gmra.mxu0 %v8284
      %v8286 = vpop.f32.mrf.mxu0
      %v8287 = vadd.f32 0.0, %v8286
      %v8288 = vand.u32 %v8073, 4294901760
      %v8289 = vsub.f32 %v8073, %v8288
      %v8290 = vand.u32 %v8289, 4294901760
      %v8291 = vsub.f32 %v8289, %v8290
      %v8292 = vand.u32 %v8291, 4294901760
      %8293 = vmatmul.f32.gmra.mxu0 %v8292
      %v8294 = vpop.f32.mrf.mxu0
      %v8295 = vadd.f32 0.0, %v8294
      %v8296 = vand.u32 %v8076, 4294901760
      %v8297 = vsub.f32 %v8076, %v8296
      %v8298 = vand.u32 %v8297, 4294901760
      %v8299 = vsub.f32 %v8297, %v8298
      %v8300 = vand.u32 %v8299, 4294901760
      %8301 = vmatmul.f32.gmra.mxu0 %v8300
      %v8302 = vpop.f32.mrf.mxu0
      %v8303 = vadd.f32 0.0, %v8302
      %v8304 = vand.u32 %v8079, 4294901760
      %v8305 = vsub.f32 %v8079, %v8304
      %v8306 = vand.u32 %v8305, 4294901760
      %v8307 = vsub.f32 %v8305, %v8306
      %v8308 = vand.u32 %v8307, 4294901760
      %8309 = vmatmul.f32.gmra.mxu0 %v8308
      %v8310 = vpop.f32.mrf.mxu0
      %v8311 = vadd.f32 0.0, %v8310
      %v8312 = vand.u32 %v8082, 4294901760
      %v8313 = vsub.f32 %v8082, %v8312
      %v8314 = vand.u32 %v8313, 4294901760
      %v8315 = vsub.f32 %v8313, %v8314
      %v8316 = vand.u32 %v8315, 4294901760
      %8317 = vmatmul.f32.gmra.mxu0 %v8316
      %v8318 = vpop.f32.mrf.mxu0
      %v8319 = vadd.f32 0.0, %v8318
      %v8320 = vand.u32 %v8085, 4294901760
      %v8321 = vsub.f32 %v8085, %v8320
      %v8322 = vand.u32 %v8321, 4294901760
      %v8323 = vsub.f32 %v8321, %v8322
      %v8324 = vand.u32 %v8323, 4294901760
      %8325 = vmatmul.f32.gmra.mxu0 %v8324
      %v8326 = vpop.f32.mrf.mxu0
      %v8327 = vadd.f32 0.0, %v8326
      %v8328 = vand.u32 %v8088, 4294901760
      %v8329 = vsub.f32 %v8088, %v8328
      %v8330 = vand.u32 %v8329, 4294901760
      %v8331 = vsub.f32 %v8329, %v8330
      %v8332 = vand.u32 %v8331, 4294901760
      %8333 = vmatmul.f32.gmra.mxu0 %v8332
      %v8334 = vpop.f32.mrf.mxu0
      %v8335 = vadd.f32 0.0, %v8334
      %v8336 = vand.u32 %v8091, 4294901760
      %v8337 = vsub.f32 %v8091, %v8336
      %v8338 = vand.u32 %v8337, 4294901760
      %v8339 = vsub.f32 %v8337, %v8338
      %v8340 = vand.u32 %v8339, 4294901760
      %8341 = vmatmul.f32.gmra.mxu0 %v8340
      %v8342 = vpop.f32.mrf.mxu0
      %v8343 = vadd.f32 0.0, %v8342
      %v8344 = vand.u32 %v8094, 4294901760
      %v8345 = vsub.f32 %v8094, %v8344
      %v8346 = vand.u32 %v8345, 4294901760
      %v8347 = vsub.f32 %v8345, %v8346
      %v8348 = vand.u32 %v8347, 4294901760
      %8349 = vmatmul.f32.gmra.mxu0 %v8348
      %v8350 = vpop.f32.mrf.mxu0
      %v8351 = vadd.f32 0.0, %v8350
      %v8352 = vand.u32 %v8097, 4294901760
      %v8353 = vsub.f32 %v8097, %v8352
      %v8354 = vand.u32 %v8353, 4294901760
      %v8355 = vsub.f32 %v8353, %v8354
      %v8356 = vand.u32 %v8355, 4294901760
      %8357 = vmatmul.f32.gmra.mxu0 %v8356
      %v8358 = vpop.f32.mrf.mxu0
      %v8359 = vadd.f32 0.0, %v8358
      %v8360 = vand.u32 %v8100, 4294901760
      %v8361 = vsub.f32 %v8100, %v8360
      %v8362 = vand.u32 %v8361, 4294901760
      %v8363 = vsub.f32 %v8361, %v8362
      %v8364 = vand.u32 %v8363, 4294901760
      %8365 = vmatmul.f32.gmra.mxu0 %v8364
      %v8366 = vpop.f32.mrf.mxu0
      %v8367 = vadd.f32 0.0, %v8366
      %v8368 = vand.u32 %v8103, 4294901760
      %v8369 = vsub.f32 %v8103, %v8368
      %v8370 = vand.u32 %v8369, 4294901760
      %v8371 = vsub.f32 %v8369, %v8370
      %v8372 = vand.u32 %v8371, 4294901760
      %8373 = vmatmul.f32.gmra.mxu0 %v8372
      %v8374 = vpop.f32.mrf.mxu0
      %v8375 = vadd.f32 0.0, %v8374
      %v8376 = vand.u32 %v8106, 4294901760
      %v8377 = vsub.f32 %v8106, %v8376
      %v8378 = vand.u32 %v8377, 4294901760
      %v8379 = vsub.f32 %v8377, %v8378
      %v8380 = vand.u32 %v8379, 4294901760
      %8381 = vmatmul.f32.gmra.mxu0 %v8380
      %v8382 = vpop.f32.mrf.mxu0
      %v8383 = vadd.f32 0.0, %v8382
      %8384 = vdwg.mxu0
      %8385 = vmatpush.msra.mxu0 0.0
      %8386 = vmatpush.msra.mxu0 0.0
      %8387 = vmatpush.msra.mxu0 0.0
      %8388 = vmatpush.msra.mxu0 0.0
      %8389 = vmatpush.msra.mxu0 0.0
      %8390 = vmatpush.msra.mxu0 0.0
      %8391 = vmatpush.msra.mxu0 0.0
      %8392 = vmatpush.msra.mxu0 0.0
      %8393 = vmatpush.msra.mxu0 0.0
      %8394 = vmatpush.msra.mxu0 0.0
      %8395 = vmatpush.msra.mxu0 0.0
      %8396 = vmatpush.msra.mxu0 0.0
      %v8397 = vand.u32 %v8011, 4294901760
      %v8398 = vsub.f32 %v8011, %v8397
      %v8399 = vand.u32 %v8398, 4294901760
      %v8400 = vsub.f32 %v8398, %v8399
      %v8401 = vand.u32 %v8400, 4294901760
      %8402 = vmatpush.msra.mxu0 %v8401
      %v8403 = vand.u32 %v8010, 4294901760
      %v8404 = vsub.f32 %v8010, %v8403
      %v8405 = vand.u32 %v8404, 4294901760
      %v8406 = vsub.f32 %v8404, %v8405
      %v8407 = vand.u32 %v8406, 4294901760
      %8408 = vmatpush.msra.mxu0 %v8407
      %v8409 = vand.u32 %v8009, 4294901760
      %v8410 = vsub.f32 %v8009, %v8409
      %v8411 = vand.u32 %v8410, 4294901760
      %v8412 = vsub.f32 %v8410, %v8411
      %v8413 = vand.u32 %v8412, 4294901760
      %8414 = vmatpush.msra.mxu0 %v8413
      %v8415 = vand.u32 %v8008, 4294901760
      %v8416 = vsub.f32 %v8008, %v8415
      %v8417 = vand.u32 %v8416, 4294901760
      %v8418 = vsub.f32 %v8416, %v8417
      %v8419 = vand.u32 %v8418, 4294901760
      %8420 = vmatpush.msra.mxu0 %v8419
      %v8421 = vand.u32 %v8013, 4294901760
      %8422 = vmatmul.f32.gmra.mxu0 %v8421
      %v8423 = vpop.f32.mrf.mxu0
      %v8424 = vadd.f32 %v8135, %v8423
      %v8425 = vand.u32 %v8016, 4294901760
      %8426 = vmatmul.f32.gmra.mxu0 %v8425
      %v8427 = vpop.f32.mrf.mxu0
      %v8428 = vadd.f32 %v8143, %v8427
      %v8429 = vand.u32 %v8019, 4294901760
      %8430 = vmatmul.f32.gmra.mxu0 %v8429
      %v8431 = vpop.f32.mrf.mxu0
      %v8432 = vadd.f32 %v8151, %v8431
      %v8433 = vand.u32 %v8022, 4294901760
      %8434 = vmatmul.f32.gmra.mxu0 %v8433
      %v8435 = vpop.f32.mrf.mxu0
      %v8436 = vadd.f32 %v8159, %v8435
      %v8437 = vand.u32 %v8025, 4294901760
      %8438 = vmatmul.f32.gmra.mxu0 %v8437
      %v8439 = vpop.f32.mrf.mxu0
      %v8440 = vadd.f32 %v8167, %v8439
      %v8441 = vand.u32 %v8028, 4294901760
      %8442 = vmatmul.f32.gmra.mxu0 %v8441
      %v8443 = vpop.f32.mrf.mxu0
      %v8444 = vadd.f32 %v8175, %v8443
      %v8445 = vand.u32 %v8031, 4294901760
      %8446 = vmatmul.f32.gmra.mxu0 %v8445
      %v8447 = vpop.f32.mrf.mxu0
      %v8448 = vadd.f32 %v8183, %v8447
      %v8449 = vand.u32 %v8034, 4294901760
      %8450 = vmatmul.f32.gmra.mxu0 %v8449
      %v8451 = vpop.f32.mrf.mxu0
      %v8452 = vadd.f32 %v8191, %v8451
      %v8453 = vand.u32 %v8037, 4294901760
      %8454 = vmatmul.f32.gmra.mxu0 %v8453
      %v8455 = vpop.f32.mrf.mxu0
      %v8456 = vadd.f32 %v8199, %v8455
      %v8457 = vand.u32 %v8040, 4294901760
      %8458 = vmatmul.f32.gmra.mxu0 %v8457
      %v8459 = vpop.f32.mrf.mxu0
      %v8460 = vadd.f32 %v8207, %v8459
      %v8461 = vand.u32 %v8043, 4294901760
      %8462 = vmatmul.f32.gmra.mxu0 %v8461
      %v8463 = vpop.f32.mrf.mxu0
      %v8464 = vadd.f32 %v8215, %v8463
      %v8465 = vand.u32 %v8046, 4294901760
      %8466 = vmatmul.f32.gmra.mxu0 %v8465
      %v8467 = vpop.f32.mrf.mxu0
      %v8468 = vadd.f32 %v8223, %v8467
      %v8469 = vand.u32 %v8049, 4294901760
      %8470 = vmatmul.f32.gmra.mxu0 %v8469
      %v8471 = vpop.f32.mrf.mxu0
      %v8472 = vadd.f32 %v8231, %v8471
      %v8473 = vand.u32 %v8052, 4294901760
      %8474 = vmatmul.f32.gmra.mxu0 %v8473
      %v8475 = vpop.f32.mrf.mxu0
      %v8476 = vadd.f32 %v8239, %v8475
      %v8477 = vand.u32 %v8055, 4294901760
      %8478 = vmatmul.f32.gmra.mxu0 %v8477
      %v8479 = vpop.f32.mrf.mxu0
      %v8480 = vadd.f32 %v8247, %v8479
      %v8481 = vand.u32 %v8058, 4294901760
      %8482 = vmatmul.f32.gmra.mxu0 %v8481
      %v8483 = vpop.f32.mrf.mxu0
      %v8484 = vadd.f32 %v8255, %v8483
      %v8485 = vand.u32 %v8061, 4294901760
      %8486 = vmatmul.f32.gmra.mxu0 %v8485
      %v8487 = vpop.f32.mrf.mxu0
      %v8488 = vadd.f32 %v8263, %v8487
      %v8489 = vand.u32 %v8064, 4294901760
      %8490 = vmatmul.f32.gmra.mxu0 %v8489
      %v8491 = vpop.f32.mrf.mxu0
      %v8492 = vadd.f32 %v8271, %v8491
      %v8493 = vand.u32 %v8067, 4294901760
      %8494 = vmatmul.f32.gmra.mxu0 %v8493
      %v8495 = vpop.f32.mrf.mxu0
      %v8496 = vadd.f32 %v8279, %v8495
      %v8497 = vand.u32 %v8070, 4294901760
      %8498 = vmatmul.f32.gmra.mxu0 %v8497
      %v8499 = vpop.f32.mrf.mxu0
      %v8500 = vadd.f32 %v8287, %v8499
      %v8501 = vand.u32 %v8073, 4294901760
      %8502 = vmatmul.f32.gmra.mxu0 %v8501
      %v8503 = vpop.f32.mrf.mxu0
      %v8504 = vadd.f32 %v8295, %v8503
      %v8505 = vand.u32 %v8076, 4294901760
      %8506 = vmatmul.f32.gmra.mxu0 %v8505
      %v8507 = vpop.f32.mrf.mxu0
      %v8508 = vadd.f32 %v8303, %v8507
      %v8509 = vand.u32 %v8079, 4294901760
      %8510 = vmatmul.f32.gmra.mxu0 %v8509
      %v8511 = vpop.f32.mrf.mxu0
      %v8512 = vadd.f32 %v8311, %v8511
      %v8513 = vand.u32 %v8082, 4294901760
      %8514 = vmatmul.f32.gmra.mxu0 %v8513
      %v8515 = vpop.f32.mrf.mxu0
      %v8516 = vadd.f32 %v8319, %v8515
      %v8517 = vand.u32 %v8085, 4294901760
      %8518 = vmatmul.f32.gmra.mxu0 %v8517
      %v8519 = vpop.f32.mrf.mxu0
      %v8520 = vadd.f32 %v8327, %v8519
      %v8521 = vand.u32 %v8088, 4294901760
      %8522 = vmatmul.f32.gmra.mxu0 %v8521
      %v8523 = vpop.f32.mrf.mxu0
      %v8524 = vadd.f32 %v8335, %v8523
      %v8525 = vand.u32 %v8091, 4294901760
      %8526 = vmatmul.f32.gmra.mxu0 %v8525
      %v8527 = vpop.f32.mrf.mxu0
      %v8528 = vadd.f32 %v8343, %v8527
      %v8529 = vand.u32 %v8094, 4294901760
      %8530 = vmatmul.f32.gmra.mxu0 %v8529
      %v8531 = vpop.f32.mrf.mxu0
      %v8532 = vadd.f32 %v8351, %v8531
      %v8533 = vand.u32 %v8097, 4294901760
      %8534 = vmatmul.f32.gmra.mxu0 %v8533
      %v8535 = vpop.f32.mrf.mxu0
      %v8536 = vadd.f32 %v8359, %v8535
      %v8537 = vand.u32 %v8100, 4294901760
      %8538 = vmatmul.f32.gmra.mxu0 %v8537
      %v8539 = vpop.f32.mrf.mxu0
      %v8540 = vadd.f32 %v8367, %v8539
      %v8541 = vand.u32 %v8103, 4294901760
      %8542 = vmatmul.f32.gmra.mxu0 %v8541
      %v8543 = vpop.f32.mrf.mxu0
      %v8544 = vadd.f32 %v8375, %v8543
      %v8545 = vand.u32 %v8106, 4294901760
      %8546 = vmatmul.f32.gmra.mxu0 %v8545
      %v8547 = vpop.f32.mrf.mxu0
      %v8548 = vadd.f32 %v8383, %v8547
      %8549 = vdwg.mxu0
      %8550 = vmatpush.msra.mxu0 0.0
      %8551 = vmatpush.msra.mxu0 0.0
      %8552 = vmatpush.msra.mxu0 0.0
      %8553 = vmatpush.msra.mxu0 0.0
      %8554 = vmatpush.msra.mxu0 0.0
      %8555 = vmatpush.msra.mxu0 0.0
      %8556 = vmatpush.msra.mxu0 0.0
      %8557 = vmatpush.msra.mxu0 0.0
      %8558 = vmatpush.msra.mxu0 0.0
      %8559 = vmatpush.msra.mxu0 0.0
      %8560 = vmatpush.msra.mxu0 0.0
      %8561 = vmatpush.msra.mxu0 0.0
      %v8562 = vand.u32 %v8011, 4294901760
      %v8563 = vsub.f32 %v8011, %v8562
      %8564 = vmatpush.msra.mxu0 %v8563
      %v8565 = vand.u32 %v8010, 4294901760
      %v8566 = vsub.f32 %v8010, %v8565
      %8567 = vmatpush.msra.mxu0 %v8566
      %v8568 = vand.u32 %v8009, 4294901760
      %v8569 = vsub.f32 %v8009, %v8568
      %8570 = vmatpush.msra.mxu0 %v8569
      %v8571 = vand.u32 %v8008, 4294901760
      %v8572 = vsub.f32 %v8008, %v8571
      %8573 = vmatpush.msra.mxu0 %v8572
      %v8574 = vand.u32 %v8013, 4294901760
      %v8575 = vsub.f32 %v8013, %v8574
      %8576 = vmatmul.f32.gmra.mxu0 %v8575
      %v8577 = vpop.f32.mrf.mxu0
      %v8578 = vadd.f32 %v8424, %v8577
      %v8579 = vand.u32 %v8016, 4294901760
      %v8580 = vsub.f32 %v8016, %v8579
      %8581 = vmatmul.f32.gmra.mxu0 %v8580
      %v8582 = vpop.f32.mrf.mxu0
      %v8583 = vadd.f32 %v8428, %v8582
      %v8584 = vand.u32 %v8019, 4294901760
      %v8585 = vsub.f32 %v8019, %v8584
      %8586 = vmatmul.f32.gmra.mxu0 %v8585
      %v8587 = vpop.f32.mrf.mxu0
      %v8588 = vadd.f32 %v8432, %v8587
      %v8589 = vand.u32 %v8022, 4294901760
      %v8590 = vsub.f32 %v8022, %v8589
      %8591 = vmatmul.f32.gmra.mxu0 %v8590
      %v8592 = vpop.f32.mrf.mxu0
      %v8593 = vadd.f32 %v8436, %v8592
      %v8594 = vand.u32 %v8025, 4294901760
      %v8595 = vsub.f32 %v8025, %v8594
      %8596 = vmatmul.f32.gmra.mxu0 %v8595
      %v8597 = vpop.f32.mrf.mxu0
      %v8598 = vadd.f32 %v8440, %v8597
      %v8599 = vand.u32 %v8028, 4294901760
      %v8600 = vsub.f32 %v8028, %v8599
      %8601 = vmatmul.f32.gmra.mxu0 %v8600
      %v8602 = vpop.f32.mrf.mxu0
      %v8603 = vadd.f32 %v8444, %v8602
      %v8604 = vand.u32 %v8031, 4294901760
      %v8605 = vsub.f32 %v8031, %v8604
      %8606 = vmatmul.f32.gmra.mxu0 %v8605
      %v8607 = vpop.f32.mrf.mxu0
      %v8608 = vadd.f32 %v8448, %v8607
      %v8609 = vand.u32 %v8034, 4294901760
      %v8610 = vsub.f32 %v8034, %v8609
      %8611 = vmatmul.f32.gmra.mxu0 %v8610
      %v8612 = vpop.f32.mrf.mxu0
      %v8613 = vadd.f32 %v8452, %v8612
      %v8614 = vand.u32 %v8037, 4294901760
      %v8615 = vsub.f32 %v8037, %v8614
      %8616 = vmatmul.f32.gmra.mxu0 %v8615
      %v8617 = vpop.f32.mrf.mxu0
      %v8618 = vadd.f32 %v8456, %v8617
      %v8619 = vand.u32 %v8040, 4294901760
      %v8620 = vsub.f32 %v8040, %v8619
      %8621 = vmatmul.f32.gmra.mxu0 %v8620
      %v8622 = vpop.f32.mrf.mxu0
      %v8623 = vadd.f32 %v8460, %v8622
      %v8624 = vand.u32 %v8043, 4294901760
      %v8625 = vsub.f32 %v8043, %v8624
      %8626 = vmatmul.f32.gmra.mxu0 %v8625
      %v8627 = vpop.f32.mrf.mxu0
      %v8628 = vadd.f32 %v8464, %v8627
      %v8629 = vand.u32 %v8046, 4294901760
      %v8630 = vsub.f32 %v8046, %v8629
      %8631 = vmatmul.f32.gmra.mxu0 %v8630
      %v8632 = vpop.f32.mrf.mxu0
      %v8633 = vadd.f32 %v8468, %v8632
      %v8634 = vand.u32 %v8049, 4294901760
      %v8635 = vsub.f32 %v8049, %v8634
      %8636 = vmatmul.f32.gmra.mxu0 %v8635
      %v8637 = vpop.f32.mrf.mxu0
      %v8638 = vadd.f32 %v8472, %v8637
      %v8639 = vand.u32 %v8052, 4294901760
      %v8640 = vsub.f32 %v8052, %v8639
      %8641 = vmatmul.f32.gmra.mxu0 %v8640
      %v8642 = vpop.f32.mrf.mxu0
      %v8643 = vadd.f32 %v8476, %v8642
      %v8644 = vand.u32 %v8055, 4294901760
      %v8645 = vsub.f32 %v8055, %v8644
      %8646 = vmatmul.f32.gmra.mxu0 %v8645
      %v8647 = vpop.f32.mrf.mxu0
      %v8648 = vadd.f32 %v8480, %v8647
      %v8649 = vand.u32 %v8058, 4294901760
      %v8650 = vsub.f32 %v8058, %v8649
      %8651 = vmatmul.f32.gmra.mxu0 %v8650
      %v8652 = vpop.f32.mrf.mxu0
      %v8653 = vadd.f32 %v8484, %v8652
      %v8654 = vand.u32 %v8061, 4294901760
      %v8655 = vsub.f32 %v8061, %v8654
      %8656 = vmatmul.f32.gmra.mxu0 %v8655
      %v8657 = vpop.f32.mrf.mxu0
      %v8658 = vadd.f32 %v8488, %v8657
      %v8659 = vand.u32 %v8064, 4294901760
      %v8660 = vsub.f32 %v8064, %v8659
      %8661 = vmatmul.f32.gmra.mxu0 %v8660
      %v8662 = vpop.f32.mrf.mxu0
      %v8663 = vadd.f32 %v8492, %v8662
      %v8664 = vand.u32 %v8067, 4294901760
      %v8665 = vsub.f32 %v8067, %v8664
      %8666 = vmatmul.f32.gmra.mxu0 %v8665
      %v8667 = vpop.f32.mrf.mxu0
      %v8668 = vadd.f32 %v8496, %v8667
      %v8669 = vand.u32 %v8070, 4294901760
      %v8670 = vsub.f32 %v8070, %v8669
      %8671 = vmatmul.f32.gmra.mxu0 %v8670
      %v8672 = vpop.f32.mrf.mxu0
      %v8673 = vadd.f32 %v8500, %v8672
      %v8674 = vand.u32 %v8073, 4294901760
      %v8675 = vsub.f32 %v8073, %v8674
      %8676 = vmatmul.f32.gmra.mxu0 %v8675
      %v8677 = vpop.f32.mrf.mxu0
      %v8678 = vadd.f32 %v8504, %v8677
      %v8679 = vand.u32 %v8076, 4294901760
      %v8680 = vsub.f32 %v8076, %v8679
      %8681 = vmatmul.f32.gmra.mxu0 %v8680
      %v8682 = vpop.f32.mrf.mxu0
      %v8683 = vadd.f32 %v8508, %v8682
      %v8684 = vand.u32 %v8079, 4294901760
      %v8685 = vsub.f32 %v8079, %v8684
      %8686 = vmatmul.f32.gmra.mxu0 %v8685
      %v8687 = vpop.f32.mrf.mxu0
      %v8688 = vadd.f32 %v8512, %v8687
      %v8689 = vand.u32 %v8082, 4294901760
      %v8690 = vsub.f32 %v8082, %v8689
      %8691 = vmatmul.f32.gmra.mxu0 %v8690
      %v8692 = vpop.f32.mrf.mxu0
      %v8693 = vadd.f32 %v8516, %v8692
      %v8694 = vand.u32 %v8085, 4294901760
      %v8695 = vsub.f32 %v8085, %v8694
      %8696 = vmatmul.f32.gmra.mxu0 %v8695
      %v8697 = vpop.f32.mrf.mxu0
      %v8698 = vadd.f32 %v8520, %v8697
      %v8699 = vand.u32 %v8088, 4294901760
      %v8700 = vsub.f32 %v8088, %v8699
      %8701 = vmatmul.f32.gmra.mxu0 %v8700
      %v8702 = vpop.f32.mrf.mxu0
      %v8703 = vadd.f32 %v8524, %v8702
      %v8704 = vand.u32 %v8091, 4294901760
      %v8705 = vsub.f32 %v8091, %v8704
      %8706 = vmatmul.f32.gmra.mxu0 %v8705
      %v8707 = vpop.f32.mrf.mxu0
      %v8708 = vadd.f32 %v8528, %v8707
      %v8709 = vand.u32 %v8094, 4294901760
      %v8710 = vsub.f32 %v8094, %v8709
      %8711 = vmatmul.f32.gmra.mxu0 %v8710
      %v8712 = vpop.f32.mrf.mxu0
      %v8713 = vadd.f32 %v8532, %v8712
      %v8714 = vand.u32 %v8097, 4294901760
      %v8715 = vsub.f32 %v8097, %v8714
      %8716 = vmatmul.f32.gmra.mxu0 %v8715
      %v8717 = vpop.f32.mrf.mxu0
      %v8718 = vadd.f32 %v8536, %v8717
      %v8719 = vand.u32 %v8100, 4294901760
      %v8720 = vsub.f32 %v8100, %v8719
      %8721 = vmatmul.f32.gmra.mxu0 %v8720
      %v8722 = vpop.f32.mrf.mxu0
      %v8723 = vadd.f32 %v8540, %v8722
      %v8724 = vand.u32 %v8103, 4294901760
      %v8725 = vsub.f32 %v8103, %v8724
      %8726 = vmatmul.f32.gmra.mxu0 %v8725
      %v8727 = vpop.f32.mrf.mxu0
      %v8728 = vadd.f32 %v8544, %v8727
      %v8729 = vand.u32 %v8106, 4294901760
      %v8730 = vsub.f32 %v8106, %v8729
      %8731 = vmatmul.f32.gmra.mxu0 %v8730
      %v8732 = vpop.f32.mrf.mxu0
      %v8733 = vadd.f32 %v8548, %v8732
      %8734 = vdwg.mxu0
      %8735 = vmatpush.msra.mxu0 0.0
      %8736 = vmatpush.msra.mxu0 0.0
      %8737 = vmatpush.msra.mxu0 0.0
      %8738 = vmatpush.msra.mxu0 0.0
      %8739 = vmatpush.msra.mxu0 0.0
      %8740 = vmatpush.msra.mxu0 0.0
      %8741 = vmatpush.msra.mxu0 0.0
      %8742 = vmatpush.msra.mxu0 0.0
      %8743 = vmatpush.msra.mxu0 0.0
      %8744 = vmatpush.msra.mxu0 0.0
      %8745 = vmatpush.msra.mxu0 0.0
      %8746 = vmatpush.msra.mxu0 0.0
      %v8747 = vand.u32 %v8011, 4294901760
      %8748 = vmatpush.msra.mxu0 %v8747
      %v8749 = vand.u32 %v8010, 4294901760
      %8750 = vmatpush.msra.mxu0 %v8749
      %v8751 = vand.u32 %v8009, 4294901760
      %8752 = vmatpush.msra.mxu0 %v8751
      %v8753 = vand.u32 %v8008, 4294901760
      %8754 = vmatpush.msra.mxu0 %v8753
      %v8755 = vand.u32 %v8013, 4294901760
      %v8756 = vsub.f32 %v8013, %v8755
      %v8757 = vand.u32 %v8756, 4294901760
      %8758 = vmatmul.f32.gmra.mxu0 %v8757
      %v8759 = vpop.f32.mrf.mxu0
      %v8760 = vadd.f32 %v8578, %v8759
      %v8761 = vand.u32 %v8016, 4294901760
      %v8762 = vsub.f32 %v8016, %v8761
      %v8763 = vand.u32 %v8762, 4294901760
      %8764 = vmatmul.f32.gmra.mxu0 %v8763
      %v8765 = vpop.f32.mrf.mxu0
      %v8766 = vadd.f32 %v8583, %v8765
      %v8767 = vand.u32 %v8019, 4294901760
      %v8768 = vsub.f32 %v8019, %v8767
      %v8769 = vand.u32 %v8768, 4294901760
      %8770 = vmatmul.f32.gmra.mxu0 %v8769
      %v8771 = vpop.f32.mrf.mxu0
      %v8772 = vadd.f32 %v8588, %v8771
      %v8773 = vand.u32 %v8022, 4294901760
      %v8774 = vsub.f32 %v8022, %v8773
      %v8775 = vand.u32 %v8774, 4294901760
      %8776 = vmatmul.f32.gmra.mxu0 %v8775
      %v8777 = vpop.f32.mrf.mxu0
      %v8778 = vadd.f32 %v8593, %v8777
      %v8779 = vand.u32 %v8025, 4294901760
      %v8780 = vsub.f32 %v8025, %v8779
      %v8781 = vand.u32 %v8780, 4294901760
      %8782 = vmatmul.f32.gmra.mxu0 %v8781
      %v8783 = vpop.f32.mrf.mxu0
      %v8784 = vadd.f32 %v8598, %v8783
      %v8785 = vand.u32 %v8028, 4294901760
      %v8786 = vsub.f32 %v8028, %v8785
      %v8787 = vand.u32 %v8786, 4294901760
      %8788 = vmatmul.f32.gmra.mxu0 %v8787
      %v8789 = vpop.f32.mrf.mxu0
      %v8790 = vadd.f32 %v8603, %v8789
      %v8791 = vand.u32 %v8031, 4294901760
      %v8792 = vsub.f32 %v8031, %v8791
      %v8793 = vand.u32 %v8792, 4294901760
      %8794 = vmatmul.f32.gmra.mxu0 %v8793
      %v8795 = vpop.f32.mrf.mxu0
      %v8796 = vadd.f32 %v8608, %v8795
      %v8797 = vand.u32 %v8034, 4294901760
      %v8798 = vsub.f32 %v8034, %v8797
      %v8799 = vand.u32 %v8798, 4294901760
      %8800 = vmatmul.f32.gmra.mxu0 %v8799
      %v8801 = vpop.f32.mrf.mxu0
      %v8802 = vadd.f32 %v8613, %v8801
      %v8803 = vand.u32 %v8037, 4294901760
      %v8804 = vsub.f32 %v8037, %v8803
      %v8805 = vand.u32 %v8804, 4294901760
      %8806 = vmatmul.f32.gmra.mxu0 %v8805
      %v8807 = vpop.f32.mrf.mxu0
      %v8808 = vadd.f32 %v8618, %v8807
      %v8809 = vand.u32 %v8040, 4294901760
      %v8810 = vsub.f32 %v8040, %v8809
      %v8811 = vand.u32 %v8810, 4294901760
      %8812 = vmatmul.f32.gmra.mxu0 %v8811
      %v8813 = vpop.f32.mrf.mxu0
      %v8814 = vadd.f32 %v8623, %v8813
      %v8815 = vand.u32 %v8043, 4294901760
      %v8816 = vsub.f32 %v8043, %v8815
      %v8817 = vand.u32 %v8816, 4294901760
      %8818 = vmatmul.f32.gmra.mxu0 %v8817
      %v8819 = vpop.f32.mrf.mxu0
      %v8820 = vadd.f32 %v8628, %v8819
      %v8821 = vand.u32 %v8046, 4294901760
      %v8822 = vsub.f32 %v8046, %v8821
      %v8823 = vand.u32 %v8822, 4294901760
      %8824 = vmatmul.f32.gmra.mxu0 %v8823
      %v8825 = vpop.f32.mrf.mxu0
      %v8826 = vadd.f32 %v8633, %v8825
      %v8827 = vand.u32 %v8049, 4294901760
      %v8828 = vsub.f32 %v8049, %v8827
      %v8829 = vand.u32 %v8828, 4294901760
      %8830 = vmatmul.f32.gmra.mxu0 %v8829
      %v8831 = vpop.f32.mrf.mxu0
      %v8832 = vadd.f32 %v8638, %v8831
      %v8833 = vand.u32 %v8052, 4294901760
      %v8834 = vsub.f32 %v8052, %v8833
      %v8835 = vand.u32 %v8834, 4294901760
      %8836 = vmatmul.f32.gmra.mxu0 %v8835
      %v8837 = vpop.f32.mrf.mxu0
      %v8838 = vadd.f32 %v8643, %v8837
      %v8839 = vand.u32 %v8055, 4294901760
      %v8840 = vsub.f32 %v8055, %v8839
      %v8841 = vand.u32 %v8840, 4294901760
      %8842 = vmatmul.f32.gmra.mxu0 %v8841
      %v8843 = vpop.f32.mrf.mxu0
      %v8844 = vadd.f32 %v8648, %v8843
      %v8845 = vand.u32 %v8058, 4294901760
      %v8846 = vsub.f32 %v8058, %v8845
      %v8847 = vand.u32 %v8846, 4294901760
      %8848 = vmatmul.f32.gmra.mxu0 %v8847
      %v8849 = vpop.f32.mrf.mxu0
      %v8850 = vadd.f32 %v8653, %v8849
      %v8851 = vand.u32 %v8061, 4294901760
      %v8852 = vsub.f32 %v8061, %v8851
      %v8853 = vand.u32 %v8852, 4294901760
      %8854 = vmatmul.f32.gmra.mxu0 %v8853
      %v8855 = vpop.f32.mrf.mxu0
      %v8856 = vadd.f32 %v8658, %v8855
      %v8857 = vand.u32 %v8064, 4294901760
      %v8858 = vsub.f32 %v8064, %v8857
      %v8859 = vand.u32 %v8858, 4294901760
      %8860 = vmatmul.f32.gmra.mxu0 %v8859
      %v8861 = vpop.f32.mrf.mxu0
      %v8862 = vadd.f32 %v8663, %v8861
      %v8863 = vand.u32 %v8067, 4294901760
      %v8864 = vsub.f32 %v8067, %v8863
      %v8865 = vand.u32 %v8864, 4294901760
      %8866 = vmatmul.f32.gmra.mxu0 %v8865
      %v8867 = vpop.f32.mrf.mxu0
      %v8868 = vadd.f32 %v8668, %v8867
      %v8869 = vand.u32 %v8070, 4294901760
      %v8870 = vsub.f32 %v8070, %v8869
      %v8871 = vand.u32 %v8870, 4294901760
      %8872 = vmatmul.f32.gmra.mxu0 %v8871
      %v8873 = vpop.f32.mrf.mxu0
      %v8874 = vadd.f32 %v8673, %v8873
      %v8875 = vand.u32 %v8073, 4294901760
      %v8876 = vsub.f32 %v8073, %v8875
      %v8877 = vand.u32 %v8876, 4294901760
      %8878 = vmatmul.f32.gmra.mxu0 %v8877
      %v8879 = vpop.f32.mrf.mxu0
      %v8880 = vadd.f32 %v8678, %v8879
      %v8881 = vand.u32 %v8076, 4294901760
      %v8882 = vsub.f32 %v8076, %v8881
      %v8883 = vand.u32 %v8882, 4294901760
      %8884 = vmatmul.f32.gmra.mxu0 %v8883
      %v8885 = vpop.f32.mrf.mxu0
      %v8886 = vadd.f32 %v8683, %v8885
      %v8887 = vand.u32 %v8079, 4294901760
      %v8888 = vsub.f32 %v8079, %v8887
      %v8889 = vand.u32 %v8888, 4294901760
      %8890 = vmatmul.f32.gmra.mxu0 %v8889
      %v8891 = vpop.f32.mrf.mxu0
      %v8892 = vadd.f32 %v8688, %v8891
      %v8893 = vand.u32 %v8082, 4294901760
      %v8894 = vsub.f32 %v8082, %v8893
      %v8895 = vand.u32 %v8894, 4294901760
      %8896 = vmatmul.f32.gmra.mxu0 %v8895
      %v8897 = vpop.f32.mrf.mxu0
      %v8898 = vadd.f32 %v8693, %v8897
      %v8899 = vand.u32 %v8085, 4294901760
      %v8900 = vsub.f32 %v8085, %v8899
      %v8901 = vand.u32 %v8900, 4294901760
      %8902 = vmatmul.f32.gmra.mxu0 %v8901
      %v8903 = vpop.f32.mrf.mxu0
      %v8904 = vadd.f32 %v8698, %v8903
      %v8905 = vand.u32 %v8088, 4294901760
      %v8906 = vsub.f32 %v8088, %v8905
      %v8907 = vand.u32 %v8906, 4294901760
      %8908 = vmatmul.f32.gmra.mxu0 %v8907
      %v8909 = vpop.f32.mrf.mxu0
      %v8910 = vadd.f32 %v8703, %v8909
      %v8911 = vand.u32 %v8091, 4294901760
      %v8912 = vsub.f32 %v8091, %v8911
      %v8913 = vand.u32 %v8912, 4294901760
      %8914 = vmatmul.f32.gmra.mxu0 %v8913
      %v8915 = vpop.f32.mrf.mxu0
      %v8916 = vadd.f32 %v8708, %v8915
      %v8917 = vand.u32 %v8094, 4294901760
      %v8918 = vsub.f32 %v8094, %v8917
      %v8919 = vand.u32 %v8918, 4294901760
      %8920 = vmatmul.f32.gmra.mxu0 %v8919
      %v8921 = vpop.f32.mrf.mxu0
      %v8922 = vadd.f32 %v8713, %v8921
      %v8923 = vand.u32 %v8097, 4294901760
      %v8924 = vsub.f32 %v8097, %v8923
      %v8925 = vand.u32 %v8924, 4294901760
      %8926 = vmatmul.f32.gmra.mxu0 %v8925
      %v8927 = vpop.f32.mrf.mxu0
      %v8928 = vadd.f32 %v8718, %v8927
      %v8929 = vand.u32 %v8100, 4294901760
      %v8930 = vsub.f32 %v8100, %v8929
      %v8931 = vand.u32 %v8930, 4294901760
      %8932 = vmatmul.f32.gmra.mxu0 %v8931
      %v8933 = vpop.f32.mrf.mxu0
      %v8934 = vadd.f32 %v8723, %v8933
      %v8935 = vand.u32 %v8103, 4294901760
      %v8936 = vsub.f32 %v8103, %v8935
      %v8937 = vand.u32 %v8936, 4294901760
      %8938 = vmatmul.f32.gmra.mxu0 %v8937
      %v8939 = vpop.f32.mrf.mxu0
      %v8940 = vadd.f32 %v8728, %v8939
      %v8941 = vand.u32 %v8106, 4294901760
      %v8942 = vsub.f32 %v8106, %v8941
      %v8943 = vand.u32 %v8942, 4294901760
      %8944 = vmatmul.f32.gmra.mxu0 %v8943
      %v8945 = vpop.f32.mrf.mxu0
      %v8946 = vadd.f32 %v8733, %v8945
      %8947 = vdwg.mxu0
      %8948 = vmatpush.msra.mxu0 0.0
      %8949 = vmatpush.msra.mxu0 0.0
      %8950 = vmatpush.msra.mxu0 0.0
      %8951 = vmatpush.msra.mxu0 0.0
      %8952 = vmatpush.msra.mxu0 0.0
      %8953 = vmatpush.msra.mxu0 0.0
      %8954 = vmatpush.msra.mxu0 0.0
      %8955 = vmatpush.msra.mxu0 0.0
      %8956 = vmatpush.msra.mxu0 0.0
      %8957 = vmatpush.msra.mxu0 0.0
      %8958 = vmatpush.msra.mxu0 0.0
      %8959 = vmatpush.msra.mxu0 0.0
      %v8960 = vand.u32 %v8011, 4294901760
      %v8961 = vsub.f32 %v8011, %v8960
      %v8962 = vand.u32 %v8961, 4294901760
      %8963 = vmatpush.msra.mxu0 %v8962
      %v8964 = vand.u32 %v8010, 4294901760
      %v8965 = vsub.f32 %v8010, %v8964
      %v8966 = vand.u32 %v8965, 4294901760
      %8967 = vmatpush.msra.mxu0 %v8966
      %v8968 = vand.u32 %v8009, 4294901760
      %v8969 = vsub.f32 %v8009, %v8968
      %v8970 = vand.u32 %v8969, 4294901760
      %8971 = vmatpush.msra.mxu0 %v8970
      %v8972 = vand.u32 %v8008, 4294901760
      %v8973 = vsub.f32 %v8008, %v8972
      %v8974 = vand.u32 %v8973, 4294901760
      %8975 = vmatpush.msra.mxu0 %v8974
      %v8976 = vand.u32 %v8013, 4294901760
      %8977 = vmatmul.f32.gmra.mxu0 %v8976
      %v8978 = vpop.f32.mrf.mxu0
      %v8979 = vadd.f32 %v8760, %v8978
      %v8980 = vand.u32 %v8016, 4294901760
      %8981 = vmatmul.f32.gmra.mxu0 %v8980
      %v8982 = vpop.f32.mrf.mxu0
      %v8983 = vadd.f32 %v8766, %v8982
      %v8984 = vand.u32 %v8019, 4294901760
      %8985 = vmatmul.f32.gmra.mxu0 %v8984
      %v8986 = vpop.f32.mrf.mxu0
      %v8987 = vadd.f32 %v8772, %v8986
      %v8988 = vand.u32 %v8022, 4294901760
      %8989 = vmatmul.f32.gmra.mxu0 %v8988
      %v8990 = vpop.f32.mrf.mxu0
      %v8991 = vadd.f32 %v8778, %v8990
      %v8992 = vand.u32 %v8025, 4294901760
      %8993 = vmatmul.f32.gmra.mxu0 %v8992
      %v8994 = vpop.f32.mrf.mxu0
      %v8995 = vadd.f32 %v8784, %v8994
      %v8996 = vand.u32 %v8028, 4294901760
      %8997 = vmatmul.f32.gmra.mxu0 %v8996
      %v8998 = vpop.f32.mrf.mxu0
      %v8999 = vadd.f32 %v8790, %v8998
      %v9000 = vand.u32 %v8031, 4294901760
      %9001 = vmatmul.f32.gmra.mxu0 %v9000
      %v9002 = vpop.f32.mrf.mxu0
      %v9003 = vadd.f32 %v8796, %v9002
      %v9004 = vand.u32 %v8034, 4294901760
      %9005 = vmatmul.f32.gmra.mxu0 %v9004
      %v9006 = vpop.f32.mrf.mxu0
      %v9007 = vadd.f32 %v8802, %v9006
      %v9008 = vand.u32 %v8037, 4294901760
      %9009 = vmatmul.f32.gmra.mxu0 %v9008
      %v9010 = vpop.f32.mrf.mxu0
      %v9011 = vadd.f32 %v8808, %v9010
      %v9012 = vand.u32 %v8040, 4294901760
      %9013 = vmatmul.f32.gmra.mxu0 %v9012
      %v9014 = vpop.f32.mrf.mxu0
      %v9015 = vadd.f32 %v8814, %v9014
      %v9016 = vand.u32 %v8043, 4294901760
      %9017 = vmatmul.f32.gmra.mxu0 %v9016
      %v9018 = vpop.f32.mrf.mxu0
      %v9019 = vadd.f32 %v8820, %v9018
      %v9020 = vand.u32 %v8046, 4294901760
      %9021 = vmatmul.f32.gmra.mxu0 %v9020
      %v9022 = vpop.f32.mrf.mxu0
      %v9023 = vadd.f32 %v8826, %v9022
      %v9024 = vand.u32 %v8049, 4294901760
      %9025 = vmatmul.f32.gmra.mxu0 %v9024
      %v9026 = vpop.f32.mrf.mxu0
      %v9027 = vadd.f32 %v8832, %v9026
      %v9028 = vand.u32 %v8052, 4294901760
      %9029 = vmatmul.f32.gmra.mxu0 %v9028
      %v9030 = vpop.f32.mrf.mxu0
      %v9031 = vadd.f32 %v8838, %v9030
      %v9032 = vand.u32 %v8055, 4294901760
      %9033 = vmatmul.f32.gmra.mxu0 %v9032
      %v9034 = vpop.f32.mrf.mxu0
      %v9035 = vadd.f32 %v8844, %v9034
      %v9036 = vand.u32 %v8058, 4294901760
      %9037 = vmatmul.f32.gmra.mxu0 %v9036
      %v9038 = vpop.f32.mrf.mxu0
      %v9039 = vadd.f32 %v8850, %v9038
      %v9040 = vand.u32 %v8061, 4294901760
      %9041 = vmatmul.f32.gmra.mxu0 %v9040
      %v9042 = vpop.f32.mrf.mxu0
      %v9043 = vadd.f32 %v8856, %v9042
      %v9044 = vand.u32 %v8064, 4294901760
      %9045 = vmatmul.f32.gmra.mxu0 %v9044
      %v9046 = vpop.f32.mrf.mxu0
      %v9047 = vadd.f32 %v8862, %v9046
      %v9048 = vand.u32 %v8067, 4294901760
      %9049 = vmatmul.f32.gmra.mxu0 %v9048
      %v9050 = vpop.f32.mrf.mxu0
      %v9051 = vadd.f32 %v8868, %v9050
      %v9052 = vand.u32 %v8070, 4294901760
      %9053 = vmatmul.f32.gmra.mxu0 %v9052
      %v9054 = vpop.f32.mrf.mxu0
      %v9055 = vadd.f32 %v8874, %v9054
      %v9056 = vand.u32 %v8073, 4294901760
      %9057 = vmatmul.f32.gmra.mxu0 %v9056
      %v9058 = vpop.f32.mrf.mxu0
      %v9059 = vadd.f32 %v8880, %v9058
      %v9060 = vand.u32 %v8076, 4294901760
      %9061 = vmatmul.f32.gmra.mxu0 %v9060
      %v9062 = vpop.f32.mrf.mxu0
      %v9063 = vadd.f32 %v8886, %v9062
      %v9064 = vand.u32 %v8079, 4294901760
      %9065 = vmatmul.f32.gmra.mxu0 %v9064
      %v9066 = vpop.f32.mrf.mxu0
      %v9067 = vadd.f32 %v8892, %v9066
      %v9068 = vand.u32 %v8082, 4294901760
      %9069 = vmatmul.f32.gmra.mxu0 %v9068
      %v9070 = vpop.f32.mrf.mxu0
      %v9071 = vadd.f32 %v8898, %v9070
      %v9072 = vand.u32 %v8085, 4294901760
      %9073 = vmatmul.f32.gmra.mxu0 %v9072
      %v9074 = vpop.f32.mrf.mxu0
      %v9075 = vadd.f32 %v8904, %v9074
      %v9076 = vand.u32 %v8088, 4294901760
      %9077 = vmatmul.f32.gmra.mxu0 %v9076
      %v9078 = vpop.f32.mrf.mxu0
      %v9079 = vadd.f32 %v8910, %v9078
      %v9080 = vand.u32 %v8091, 4294901760
      %9081 = vmatmul.f32.gmra.mxu0 %v9080
      %v9082 = vpop.f32.mrf.mxu0
      %v9083 = vadd.f32 %v8916, %v9082
      %v9084 = vand.u32 %v8094, 4294901760
      %9085 = vmatmul.f32.gmra.mxu0 %v9084
      %v9086 = vpop.f32.mrf.mxu0
      %v9087 = vadd.f32 %v8922, %v9086
      %v9088 = vand.u32 %v8097, 4294901760
      %9089 = vmatmul.f32.gmra.mxu0 %v9088
      %v9090 = vpop.f32.mrf.mxu0
      %v9091 = vadd.f32 %v8928, %v9090
      %v9092 = vand.u32 %v8100, 4294901760
      %9093 = vmatmul.f32.gmra.mxu0 %v9092
      %v9094 = vpop.f32.mrf.mxu0
      %v9095 = vadd.f32 %v8934, %v9094
      %v9096 = vand.u32 %v8103, 4294901760
      %9097 = vmatmul.f32.gmra.mxu0 %v9096
      %v9098 = vpop.f32.mrf.mxu0
      %v9099 = vadd.f32 %v8940, %v9098
      %v9100 = vand.u32 %v8106, 4294901760
      %9101 = vmatmul.f32.gmra.mxu0 %v9100
      %v9102 = vpop.f32.mrf.mxu0
      %v9103 = vadd.f32 %v8946, %v9102
      %9104 = vdwg.mxu0
      %9105 = vmatpush.msra.mxu0 0.0
      %9106 = vmatpush.msra.mxu0 0.0
      %9107 = vmatpush.msra.mxu0 0.0
      %9108 = vmatpush.msra.mxu0 0.0
      %9109 = vmatpush.msra.mxu0 0.0
      %9110 = vmatpush.msra.mxu0 0.0
      %9111 = vmatpush.msra.mxu0 0.0
      %9112 = vmatpush.msra.mxu0 0.0
      %9113 = vmatpush.msra.mxu0 0.0
      %9114 = vmatpush.msra.mxu0 0.0
      %9115 = vmatpush.msra.mxu0 0.0
      %9116 = vmatpush.msra.mxu0 0.0
      %v9117 = vand.u32 %v8011, 4294901760
      %9118 = vmatpush.msra.mxu0 %v9117
      %v9119 = vand.u32 %v8010, 4294901760
      %9120 = vmatpush.msra.mxu0 %v9119
      %v9121 = vand.u32 %v8009, 4294901760
      %9122 = vmatpush.msra.mxu0 %v9121
      %v9123 = vand.u32 %v8008, 4294901760
      %9124 = vmatpush.msra.mxu0 %v9123
      %v9125 = vand.u32 %v8013, 4294901760
      %9126 = vmatmul.f32.gmra.mxu0 %v9125
      %v9127 = vpop.f32.mrf.mxu0
      %v9128 = vadd.f32 %v8979, %v9127
      %v9129 = vand.u32 %v8016, 4294901760
      %9130 = vmatmul.f32.gmra.mxu0 %v9129
      %v9131 = vpop.f32.mrf.mxu0
      %v9132 = vadd.f32 %v8983, %v9131
      %v9133 = vand.u32 %v8019, 4294901760
      %9134 = vmatmul.f32.gmra.mxu0 %v9133
      %v9135 = vpop.f32.mrf.mxu0
      %v9136 = vadd.f32 %v8987, %v9135
      %v9137 = vand.u32 %v8022, 4294901760
      %9138 = vmatmul.f32.gmra.mxu0 %v9137
      %v9139 = vpop.f32.mrf.mxu0
      %v9140 = vadd.f32 %v8991, %v9139
      %v9141 = vand.u32 %v8025, 4294901760
      %9142 = vmatmul.f32.gmra.mxu0 %v9141
      %v9143 = vpop.f32.mrf.mxu0
      %v9144 = vadd.f32 %v8995, %v9143
      %v9145 = vand.u32 %v8028, 4294901760
      %9146 = vmatmul.f32.gmra.mxu0 %v9145
      %v9147 = vpop.f32.mrf.mxu0
      %v9148 = vadd.f32 %v8999, %v9147
      %v9149 = vand.u32 %v8031, 4294901760
      %9150 = vmatmul.f32.gmra.mxu0 %v9149
      %v9151 = vpop.f32.mrf.mxu0
      %v9152 = vadd.f32 %v9003, %v9151
      %v9153 = vand.u32 %v8034, 4294901760
      %9154 = vmatmul.f32.gmra.mxu0 %v9153
      %v9155 = vpop.f32.mrf.mxu0
      %v9156 = vadd.f32 %v9007, %v9155
      %v9157 = vand.u32 %v8037, 4294901760
      %9158 = vmatmul.f32.gmra.mxu0 %v9157
      %v9159 = vpop.f32.mrf.mxu0
      %v9160 = vadd.f32 %v9011, %v9159
      %v9161 = vand.u32 %v8040, 4294901760
      %9162 = vmatmul.f32.gmra.mxu0 %v9161
      %v9163 = vpop.f32.mrf.mxu0
      %v9164 = vadd.f32 %v9015, %v9163
      %v9165 = vand.u32 %v8043, 4294901760
      %9166 = vmatmul.f32.gmra.mxu0 %v9165
      %v9167 = vpop.f32.mrf.mxu0
      %v9168 = vadd.f32 %v9019, %v9167
      %v9169 = vand.u32 %v8046, 4294901760
      %9170 = vmatmul.f32.gmra.mxu0 %v9169
      %v9171 = vpop.f32.mrf.mxu0
      %v9172 = vadd.f32 %v9023, %v9171
      %v9173 = vand.u32 %v8049, 4294901760
      %9174 = vmatmul.f32.gmra.mxu0 %v9173
      %v9175 = vpop.f32.mrf.mxu0
      %v9176 = vadd.f32 %v9027, %v9175
      %v9177 = vand.u32 %v8052, 4294901760
      %9178 = vmatmul.f32.gmra.mxu0 %v9177
      %v9179 = vpop.f32.mrf.mxu0
      %v9180 = vadd.f32 %v9031, %v9179
      %v9181 = vand.u32 %v8055, 4294901760
      %9182 = vmatmul.f32.gmra.mxu0 %v9181
      %v9183 = vpop.f32.mrf.mxu0
      %v9184 = vadd.f32 %v9035, %v9183
      %v9185 = vand.u32 %v8058, 4294901760
      %9186 = vmatmul.f32.gmra.mxu0 %v9185
      %v9187 = vpop.f32.mrf.mxu0
      %v9188 = vadd.f32 %v9039, %v9187
      %v9189 = vand.u32 %v8061, 4294901760
      %9190 = vmatmul.f32.gmra.mxu0 %v9189
      %v9191 = vpop.f32.mrf.mxu0
      %v9192 = vadd.f32 %v9043, %v9191
      %v9193 = vand.u32 %v8064, 4294901760
      %9194 = vmatmul.f32.gmra.mxu0 %v9193
      %v9195 = vpop.f32.mrf.mxu0
      %v9196 = vadd.f32 %v9047, %v9195
      %v9197 = vand.u32 %v8067, 4294901760
      %9198 = vmatmul.f32.gmra.mxu0 %v9197
      %v9199 = vpop.f32.mrf.mxu0
      %v9200 = vadd.f32 %v9051, %v9199
      %v9201 = vand.u32 %v8070, 4294901760
      %9202 = vmatmul.f32.gmra.mxu0 %v9201
      %v9203 = vpop.f32.mrf.mxu0
      %v9204 = vadd.f32 %v9055, %v9203
      %v9205 = vand.u32 %v8073, 4294901760
      %9206 = vmatmul.f32.gmra.mxu0 %v9205
      %v9207 = vpop.f32.mrf.mxu0
      %v9208 = vadd.f32 %v9059, %v9207
      %v9209 = vand.u32 %v8076, 4294901760
      %9210 = vmatmul.f32.gmra.mxu0 %v9209
      %v9211 = vpop.f32.mrf.mxu0
      %v9212 = vadd.f32 %v9063, %v9211
      %v9213 = vand.u32 %v8079, 4294901760
      %9214 = vmatmul.f32.gmra.mxu0 %v9213
      %v9215 = vpop.f32.mrf.mxu0
      %v9216 = vadd.f32 %v9067, %v9215
      %v9217 = vand.u32 %v8082, 4294901760
      %9218 = vmatmul.f32.gmra.mxu0 %v9217
      %v9219 = vpop.f32.mrf.mxu0
      %v9220 = vadd.f32 %v9071, %v9219
      %v9221 = vand.u32 %v8085, 4294901760
      %9222 = vmatmul.f32.gmra.mxu0 %v9221
      %v9223 = vpop.f32.mrf.mxu0
      %v9224 = vadd.f32 %v9075, %v9223
      %v9225 = vand.u32 %v8088, 4294901760
      %9226 = vmatmul.f32.gmra.mxu0 %v9225
      %v9227 = vpop.f32.mrf.mxu0
      %v9228 = vadd.f32 %v9079, %v9227
      %v9229 = vand.u32 %v8091, 4294901760
      %9230 = vmatmul.f32.gmra.mxu0 %v9229
      %v9231 = vpop.f32.mrf.mxu0
      %v9232 = vadd.f32 %v9083, %v9231
      %v9233 = vand.u32 %v8094, 4294901760
      %9234 = vmatmul.f32.gmra.mxu0 %v9233
      %v9235 = vpop.f32.mrf.mxu0
      %v9236 = vadd.f32 %v9087, %v9235
      %v9237 = vand.u32 %v8097, 4294901760
      %9238 = vmatmul.f32.gmra.mxu0 %v9237
      %v9239 = vpop.f32.mrf.mxu0
      %v9240 = vadd.f32 %v9091, %v9239
      %v9241 = vand.u32 %v8100, 4294901760
      %9242 = vmatmul.f32.gmra.mxu0 %v9241
      %v9243 = vpop.f32.mrf.mxu0
      %v9244 = vadd.f32 %v9095, %v9243
      %v9245 = vand.u32 %v8103, 4294901760
      %9246 = vmatmul.f32.gmra.mxu0 %v9245
      %v9247 = vpop.f32.mrf.mxu0
      %v9248 = vadd.f32 %v9099, %v9247
      %v9249 = vand.u32 %v8106, 4294901760
      %9250 = vmatmul.f32.gmra.mxu0 %v9249
      %v9251 = vpop.f32.mrf.mxu0
      %v9252 = vadd.f32 %v9103, %v9251
      %9253 = vdwg.mxu0
      %v9254 = vadd.f32 %v7942, %v9128
      %v9255 = vadd.f32 %v7943, %v9132
      %v9256 = vadd.f32 %v7944, %v9136
      %v9257 = vadd.f32 %v7945, %v9140
      %v9258 = vadd.f32 %v7946, %v9144
      %v9259 = vadd.f32 %v7947, %v9148
      %v9260 = vadd.f32 %v7948, %v9152
      %v9261 = vadd.f32 %v7949, %v9156
      %v9262 = vadd.f32 %v7950, %v9160
      %v9263 = vadd.f32 %v7951, %v9164
      %v9264 = vadd.f32 %v7952, %v9168
      %v9265 = vadd.f32 %v7953, %v9172
      %v9266 = vadd.f32 %v7954, %v9176
      %v9267 = vadd.f32 %v7955, %v9180
      %v9268 = vadd.f32 %v7956, %v9184
      %v9269 = vadd.f32 %v7957, %v9188
      %v9270 = vadd.f32 %v7958, %v9192
      %v9271 = vadd.f32 %v7959, %v9196
      %v9272 = vadd.f32 %v7960, %v9200
      %v9273 = vadd.f32 %v7961, %v9204
      %v9274 = vadd.f32 %v7962, %v9208
      %v9275 = vadd.f32 %v7963, %v9212
      %v9276 = vadd.f32 %v7964, %v9216
      %v9277 = vadd.f32 %v7965, %v9220
      %v9278 = vadd.f32 %v7966, %v9224
      %v9279 = vadd.f32 %v7967, %v9228
      %v9280 = vadd.f32 %v7968, %v9232
      %v9281 = vadd.f32 %v7969, %v9236
      %v9282 = vadd.f32 %v7970, %v9240
      %v9283 = vadd.f32 %v7971, %v9244
      %v9284 = vadd.f32 %v7972, %v9248
      %v9285 = vadd.f32 %v7973, %v9252
      %v9286 = vld [vmem:[%s7974 + $0x1] sm:$0xff]
      %v9287 = vld [vmem:[%s7974 + $0x9] sm:$0xff]
      %v9288 = vld [vmem:[%s7974 + $0x19] sm:$0xff]
      %v9289 = vld [vmem:[%s7974 + $0x21] sm:$0xff]
      %v9290 = vld [vmem:[%s7974 + $0x31] sm:$0xff]
      %v9291 = vld [vmem:[%s7974 + $0x39] sm:$0xff]
      %v9292 = vld [vmem:[%s7974 + $0x49] sm:$0xff]
      %v9293 = vld [vmem:[%s7974 + $0x51] sm:$0xff]
      %v9294 = vld [vmem:[%s7974 + $0x61] sm:$0xff]
      %v9295 = vld [vmem:[%s7974 + $0x69] sm:$0xff]
      %v9296 = vld [vmem:[%s7974 + $0x79] sm:$0xff]
      %v9297 = vld [vmem:[%s7974 + $0x81] sm:$0xff]
      %v9298 = vld [vmem:[%s7974 + $0x91] sm:$0xff]
      %v9299 = vld [vmem:[%s7974 + $0x99] sm:$0xff]
      %v9300 = vld [vmem:[%s7974 + $0xa9] sm:$0xff]
      %v9301 = vld [vmem:[%s7974 + $0xb1] sm:$0xff]
      %v9302 = vld [vmem:[%s7974 + $0xc1] sm:$0xff]
      %v9303 = vld [vmem:[%s7974 + $0xc9] sm:$0xff]
      %v9304 = vld [vmem:[%s7974 + $0xd9] sm:$0xff]
      %v9305 = vld [vmem:[%s7974 + $0xe1] sm:$0xff]
      %v9306 = vld [vmem:[%s7974 + $0xf1] sm:$0xff]
      %v9307 = vld [vmem:[%s7974 + $0xf9] sm:$0xff]
      %v9308 = vld [vmem:[%s7974 + $0x109] sm:$0xff]
      %v9309 = vld [vmem:[%s7974 + $0x111] sm:$0xff]
      %v9310 = vld [vmem:[%s7974 + $0x121] sm:$0xff]
      %v9311 = vld [vmem:[%s7974 + $0x129] sm:$0xff]
      %v9312 = vld [vmem:[%s7974 + $0x139] sm:$0xff]
      %v9313 = vld [vmem:[%s7974 + $0x141] sm:$0xff]
      %v9314 = vld [vmem:[%s7974 + $0x151] sm:$0xff]
      %v9315 = vld [vmem:[%s7974 + $0x159] sm:$0xff]
      %v9316 = vld [vmem:[%s7974 + $0x169] sm:$0xff]
      %v9317 = vld [vmem:[%s7974 + $0x171] sm:$0xff]
      %s9318 = scalar_lea.vmem %s1, 224
      %v9319 = vld [vmem:[%s9318] sm:$0xff]
      %v9320 = vld [vmem:[%s9318 + $0x8] sm:$0xff]
      %v9321 = vld [vmem:[%s9318 + $0x10] sm:$0xff]
      %v9322 = vld [vmem:[%s9318 + $0x18] sm:$0xff]
      %v9324 = vsel %vm244, %v9286, 0
      %v9327 = vsel %vm244, %v9287, 0
      %v9330 = vsel %vm244, %v9288, 0
      %v9333 = vsel %vm244, %v9289, 0
      %v9336 = vsel %vm244, %v9290, 0
      %v9339 = vsel %vm244, %v9291, 0
      %v9342 = vsel %vm244, %v9292, 0
      %v9345 = vsel %vm244, %v9293, 0
      %v9348 = vsel %vm244, %v9294, 0
      %v9351 = vsel %vm244, %v9295, 0
      %v9354 = vsel %vm244, %v9296, 0
      %v9357 = vsel %vm244, %v9297, 0
      %v9360 = vsel %vm244, %v9298, 0
      %v9363 = vsel %vm244, %v9299, 0
      %v9366 = vsel %vm244, %v9300, 0
      %v9369 = vsel %vm244, %v9301, 0
      %v9372 = vsel %vm244, %v9302, 0
      %v9375 = vsel %vm244, %v9303, 0
      %v9378 = vsel %vm244, %v9304, 0
      %v9381 = vsel %vm244, %v9305, 0
      %v9384 = vsel %vm244, %v9306, 0
      %v9387 = vsel %vm244, %v9307, 0
      %v9390 = vsel %vm244, %v9308, 0
      %v9393 = vsel %vm244, %v9309, 0
      %v9396 = vsel %vm244, %v9310, 0
      %v9399 = vsel %vm244, %v9311, 0
      %v9402 = vsel %vm244, %v9312, 0
      %v9405 = vsel %vm244, %v9313, 0
      %v9408 = vsel %vm244, %v9314, 0
      %v9411 = vsel %vm244, %v9315, 0
      %v9414 = vsel %vm244, %v9316, 0
      %v9417 = vsel %vm244, %v9317, 0
      %9419 = vmatpush.msra.mxu0 0.0
      %9420 = vmatpush.msra.mxu0 0.0
      %9421 = vmatpush.msra.mxu0 0.0
      %9422 = vmatpush.msra.mxu0 0.0
      %9423 = vmatpush.msra.mxu0 0.0
      %9424 = vmatpush.msra.mxu0 0.0
      %9425 = vmatpush.msra.mxu0 0.0
      %9426 = vmatpush.msra.mxu0 0.0
      %9427 = vmatpush.msra.mxu0 0.0
      %9428 = vmatpush.msra.mxu0 0.0
      %9429 = vmatpush.msra.mxu0 0.0
      %9430 = vmatpush.msra.mxu0 0.0
      %v9431 = vand.u32 %v9322, 4294901760
      %9432 = vmatpush.msra.mxu0 %v9431
      %v9433 = vand.u32 %v9321, 4294901760
      %9434 = vmatpush.msra.mxu0 %v9433
      %v9435 = vand.u32 %v9320, 4294901760
      %9436 = vmatpush.msra.mxu0 %v9435
      %v9437 = vand.u32 %v9319, 4294901760
      %9438 = vmatpush.msra.mxu0 %v9437
      %v9439 = vand.u32 %v9324, 4294901760
      %v9440 = vsub.f32 %v9324, %v9439
      %v9441 = vand.u32 %v9440, 4294901760
      %v9442 = vsub.f32 %v9440, %v9441
      %v9443 = vand.u32 %v9442, 4294901760
      %9444 = vmatmul.f32.gmra.mxu0 %v9443
      %v9445 = vpop.f32.mrf.mxu0
      %v9446 = vadd.f32 0.0, %v9445
      %v9447 = vand.u32 %v9327, 4294901760
      %v9448 = vsub.f32 %v9327, %v9447
      %v9449 = vand.u32 %v9448, 4294901760
      %v9450 = vsub.f32 %v9448, %v9449
      %v9451 = vand.u32 %v9450, 4294901760
      %9452 = vmatmul.f32.gmra.mxu0 %v9451
      %v9453 = vpop.f32.mrf.mxu0
      %v9454 = vadd.f32 0.0, %v9453
      %v9455 = vand.u32 %v9330, 4294901760
      %v9456 = vsub.f32 %v9330, %v9455
      %v9457 = vand.u32 %v9456, 4294901760
      %v9458 = vsub.f32 %v9456, %v9457
      %v9459 = vand.u32 %v9458, 4294901760
      %9460 = vmatmul.f32.gmra.mxu0 %v9459
      %v9461 = vpop.f32.mrf.mxu0
      %v9462 = vadd.f32 0.0, %v9461
      %v9463 = vand.u32 %v9333, 4294901760
      %v9464 = vsub.f32 %v9333, %v9463
      %v9465 = vand.u32 %v9464, 4294901760
      %v9466 = vsub.f32 %v9464, %v9465
      %v9467 = vand.u32 %v9466, 4294901760
      %9468 = vmatmul.f32.gmra.mxu0 %v9467
      %v9469 = vpop.f32.mrf.mxu0
      %v9470 = vadd.f32 0.0, %v9469
      %v9471 = vand.u32 %v9336, 4294901760
      %v9472 = vsub.f32 %v9336, %v9471
      %v9473 = vand.u32 %v9472, 4294901760
      %v9474 = vsub.f32 %v9472, %v9473
      %v9475 = vand.u32 %v9474, 4294901760
      %9476 = vmatmul.f32.gmra.mxu0 %v9475
      %v9477 = vpop.f32.mrf.mxu0
      %v9478 = vadd.f32 0.0, %v9477
      %v9479 = vand.u32 %v9339, 4294901760
      %v9480 = vsub.f32 %v9339, %v9479
      %v9481 = vand.u32 %v9480, 4294901760
      %v9482 = vsub.f32 %v9480, %v9481
      %v9483 = vand.u32 %v9482, 4294901760
      %9484 = vmatmul.f32.gmra.mxu0 %v9483
      %v9485 = vpop.f32.mrf.mxu0
      %v9486 = vadd.f32 0.0, %v9485
      %v9487 = vand.u32 %v9342, 4294901760
      %v9488 = vsub.f32 %v9342, %v9487
      %v9489 = vand.u32 %v9488, 4294901760
      %v9490 = vsub.f32 %v9488, %v9489
      %v9491 = vand.u32 %v9490, 4294901760
      %9492 = vmatmul.f32.gmra.mxu0 %v9491
      %v9493 = vpop.f32.mrf.mxu0
      %v9494 = vadd.f32 0.0, %v9493
      %v9495 = vand.u32 %v9345, 4294901760
      %v9496 = vsub.f32 %v9345, %v9495
      %v9497 = vand.u32 %v9496, 4294901760
      %v9498 = vsub.f32 %v9496, %v9497
      %v9499 = vand.u32 %v9498, 4294901760
      %9500 = vmatmul.f32.gmra.mxu0 %v9499
      %v9501 = vpop.f32.mrf.mxu0
      %v9502 = vadd.f32 0.0, %v9501
      %v9503 = vand.u32 %v9348, 4294901760
      %v9504 = vsub.f32 %v9348, %v9503
      %v9505 = vand.u32 %v9504, 4294901760
      %v9506 = vsub.f32 %v9504, %v9505
      %v9507 = vand.u32 %v9506, 4294901760
      %9508 = vmatmul.f32.gmra.mxu0 %v9507
      %v9509 = vpop.f32.mrf.mxu0
      %v9510 = vadd.f32 0.0, %v9509
      %v9511 = vand.u32 %v9351, 4294901760
      %v9512 = vsub.f32 %v9351, %v9511
      %v9513 = vand.u32 %v9512, 4294901760
      %v9514 = vsub.f32 %v9512, %v9513
      %v9515 = vand.u32 %v9514, 4294901760
      %9516 = vmatmul.f32.gmra.mxu0 %v9515
      %v9517 = vpop.f32.mrf.mxu0
      %v9518 = vadd.f32 0.0, %v9517
      %v9519 = vand.u32 %v9354, 4294901760
      %v9520 = vsub.f32 %v9354, %v9519
      %v9521 = vand.u32 %v9520, 4294901760
      %v9522 = vsub.f32 %v9520, %v9521
      %v9523 = vand.u32 %v9522, 4294901760
      %9524 = vmatmul.f32.gmra.mxu0 %v9523
      %v9525 = vpop.f32.mrf.mxu0
      %v9526 = vadd.f32 0.0, %v9525
      %v9527 = vand.u32 %v9357, 4294901760
      %v9528 = vsub.f32 %v9357, %v9527
      %v9529 = vand.u32 %v9528, 4294901760
      %v9530 = vsub.f32 %v9528, %v9529
      %v9531 = vand.u32 %v9530, 4294901760
      %9532 = vmatmul.f32.gmra.mxu0 %v9531
      %v9533 = vpop.f32.mrf.mxu0
      %v9534 = vadd.f32 0.0, %v9533
      %v9535 = vand.u32 %v9360, 4294901760
      %v9536 = vsub.f32 %v9360, %v9535
      %v9537 = vand.u32 %v9536, 4294901760
      %v9538 = vsub.f32 %v9536, %v9537
      %v9539 = vand.u32 %v9538, 4294901760
      %9540 = vmatmul.f32.gmra.mxu0 %v9539
      %v9541 = vpop.f32.mrf.mxu0
      %v9542 = vadd.f32 0.0, %v9541
      %v9543 = vand.u32 %v9363, 4294901760
      %v9544 = vsub.f32 %v9363, %v9543
      %v9545 = vand.u32 %v9544, 4294901760
      %v9546 = vsub.f32 %v9544, %v9545
      %v9547 = vand.u32 %v9546, 4294901760
      %9548 = vmatmul.f32.gmra.mxu0 %v9547
      %v9549 = vpop.f32.mrf.mxu0
      %v9550 = vadd.f32 0.0, %v9549
      %v9551 = vand.u32 %v9366, 4294901760
      %v9552 = vsub.f32 %v9366, %v9551
      %v9553 = vand.u32 %v9552, 4294901760
      %v9554 = vsub.f32 %v9552, %v9553
      %v9555 = vand.u32 %v9554, 4294901760
      %9556 = vmatmul.f32.gmra.mxu0 %v9555
      %v9557 = vpop.f32.mrf.mxu0
      %v9558 = vadd.f32 0.0, %v9557
      %v9559 = vand.u32 %v9369, 4294901760
      %v9560 = vsub.f32 %v9369, %v9559
      %v9561 = vand.u32 %v9560, 4294901760
      %v9562 = vsub.f32 %v9560, %v9561
      %v9563 = vand.u32 %v9562, 4294901760
      %9564 = vmatmul.f32.gmra.mxu0 %v9563
      %v9565 = vpop.f32.mrf.mxu0
      %v9566 = vadd.f32 0.0, %v9565
      %v9567 = vand.u32 %v9372, 4294901760
      %v9568 = vsub.f32 %v9372, %v9567
      %v9569 = vand.u32 %v9568, 4294901760
      %v9570 = vsub.f32 %v9568, %v9569
      %v9571 = vand.u32 %v9570, 4294901760
      %9572 = vmatmul.f32.gmra.mxu0 %v9571
      %v9573 = vpop.f32.mrf.mxu0
      %v9574 = vadd.f32 0.0, %v9573
      %v9575 = vand.u32 %v9375, 4294901760
      %v9576 = vsub.f32 %v9375, %v9575
      %v9577 = vand.u32 %v9576, 4294901760
      %v9578 = vsub.f32 %v9576, %v9577
      %v9579 = vand.u32 %v9578, 4294901760
      %9580 = vmatmul.f32.gmra.mxu0 %v9579
      %v9581 = vpop.f32.mrf.mxu0
      %v9582 = vadd.f32 0.0, %v9581
      %v9583 = vand.u32 %v9378, 4294901760
      %v9584 = vsub.f32 %v9378, %v9583
      %v9585 = vand.u32 %v9584, 4294901760
      %v9586 = vsub.f32 %v9584, %v9585
      %v9587 = vand.u32 %v9586, 4294901760
      %9588 = vmatmul.f32.gmra.mxu0 %v9587
      %v9589 = vpop.f32.mrf.mxu0
      %v9590 = vadd.f32 0.0, %v9589
      %v9591 = vand.u32 %v9381, 4294901760
      %v9592 = vsub.f32 %v9381, %v9591
      %v9593 = vand.u32 %v9592, 4294901760
      %v9594 = vsub.f32 %v9592, %v9593
      %v9595 = vand.u32 %v9594, 4294901760
      %9596 = vmatmul.f32.gmra.mxu0 %v9595
      %v9597 = vpop.f32.mrf.mxu0
      %v9598 = vadd.f32 0.0, %v9597
      %v9599 = vand.u32 %v9384, 4294901760
      %v9600 = vsub.f32 %v9384, %v9599
      %v9601 = vand.u32 %v9600, 4294901760
      %v9602 = vsub.f32 %v9600, %v9601
      %v9603 = vand.u32 %v9602, 4294901760
      %9604 = vmatmul.f32.gmra.mxu0 %v9603
      %v9605 = vpop.f32.mrf.mxu0
      %v9606 = vadd.f32 0.0, %v9605
      %v9607 = vand.u32 %v9387, 4294901760
      %v9608 = vsub.f32 %v9387, %v9607
      %v9609 = vand.u32 %v9608, 4294901760
      %v9610 = vsub.f32 %v9608, %v9609
      %v9611 = vand.u32 %v9610, 4294901760
      %9612 = vmatmul.f32.gmra.mxu0 %v9611
      %v9613 = vpop.f32.mrf.mxu0
      %v9614 = vadd.f32 0.0, %v9613
      %v9615 = vand.u32 %v9390, 4294901760
      %v9616 = vsub.f32 %v9390, %v9615
      %v9617 = vand.u32 %v9616, 4294901760
      %v9618 = vsub.f32 %v9616, %v9617
      %v9619 = vand.u32 %v9618, 4294901760
      %9620 = vmatmul.f32.gmra.mxu0 %v9619
      %v9621 = vpop.f32.mrf.mxu0
      %v9622 = vadd.f32 0.0, %v9621
      %v9623 = vand.u32 %v9393, 4294901760
      %v9624 = vsub.f32 %v9393, %v9623
      %v9625 = vand.u32 %v9624, 4294901760
      %v9626 = vsub.f32 %v9624, %v9625
      %v9627 = vand.u32 %v9626, 4294901760
      %9628 = vmatmul.f32.gmra.mxu0 %v9627
      %v9629 = vpop.f32.mrf.mxu0
      %v9630 = vadd.f32 0.0, %v9629
      %v9631 = vand.u32 %v9396, 4294901760
      %v9632 = vsub.f32 %v9396, %v9631
      %v9633 = vand.u32 %v9632, 4294901760
      %v9634 = vsub.f32 %v9632, %v9633
      %v9635 = vand.u32 %v9634, 4294901760
      %9636 = vmatmul.f32.gmra.mxu0 %v9635
      %v9637 = vpop.f32.mrf.mxu0
      %v9638 = vadd.f32 0.0, %v9637
      %v9639 = vand.u32 %v9399, 4294901760
      %v9640 = vsub.f32 %v9399, %v9639
      %v9641 = vand.u32 %v9640, 4294901760
      %v9642 = vsub.f32 %v9640, %v9641
      %v9643 = vand.u32 %v9642, 4294901760
      %9644 = vmatmul.f32.gmra.mxu0 %v9643
      %v9645 = vpop.f32.mrf.mxu0
      %v9646 = vadd.f32 0.0, %v9645
      %v9647 = vand.u32 %v9402, 4294901760
      %v9648 = vsub.f32 %v9402, %v9647
      %v9649 = vand.u32 %v9648, 4294901760
      %v9650 = vsub.f32 %v9648, %v9649
      %v9651 = vand.u32 %v9650, 4294901760
      %9652 = vmatmul.f32.gmra.mxu0 %v9651
      %v9653 = vpop.f32.mrf.mxu0
      %v9654 = vadd.f32 0.0, %v9653
      %v9655 = vand.u32 %v9405, 4294901760
      %v9656 = vsub.f32 %v9405, %v9655
      %v9657 = vand.u32 %v9656, 4294901760
      %v9658 = vsub.f32 %v9656, %v9657
      %v9659 = vand.u32 %v9658, 4294901760
      %9660 = vmatmul.f32.gmra.mxu0 %v9659
      %v9661 = vpop.f32.mrf.mxu0
      %v9662 = vadd.f32 0.0, %v9661
      %v9663 = vand.u32 %v9408, 4294901760
      %v9664 = vsub.f32 %v9408, %v9663
      %v9665 = vand.u32 %v9664, 4294901760
      %v9666 = vsub.f32 %v9664, %v9665
      %v9667 = vand.u32 %v9666, 4294901760
      %9668 = vmatmul.f32.gmra.mxu0 %v9667
      %v9669 = vpop.f32.mrf.mxu0
      %v9670 = vadd.f32 0.0, %v9669
      %v9671 = vand.u32 %v9411, 4294901760
      %v9672 = vsub.f32 %v9411, %v9671
      %v9673 = vand.u32 %v9672, 4294901760
      %v9674 = vsub.f32 %v9672, %v9673
      %v9675 = vand.u32 %v9674, 4294901760
      %9676 = vmatmul.f32.gmra.mxu0 %v9675
      %v9677 = vpop.f32.mrf.mxu0
      %v9678 = vadd.f32 0.0, %v9677
      %v9679 = vand.u32 %v9414, 4294901760
      %v9680 = vsub.f32 %v9414, %v9679
      %v9681 = vand.u32 %v9680, 4294901760
      %v9682 = vsub.f32 %v9680, %v9681
      %v9683 = vand.u32 %v9682, 4294901760
      %9684 = vmatmul.f32.gmra.mxu0 %v9683
      %v9685 = vpop.f32.mrf.mxu0
      %v9686 = vadd.f32 0.0, %v9685
      %v9687 = vand.u32 %v9417, 4294901760
      %v9688 = vsub.f32 %v9417, %v9687
      %v9689 = vand.u32 %v9688, 4294901760
      %v9690 = vsub.f32 %v9688, %v9689
      %v9691 = vand.u32 %v9690, 4294901760
      %9692 = vmatmul.f32.gmra.mxu0 %v9691
      %v9693 = vpop.f32.mrf.mxu0
      %v9694 = vadd.f32 0.0, %v9693
      %9695 = vdwg.mxu0
      %9696 = vmatpush.msra.mxu0 0.0
      %9697 = vmatpush.msra.mxu0 0.0
      %9698 = vmatpush.msra.mxu0 0.0
      %9699 = vmatpush.msra.mxu0 0.0
      %9700 = vmatpush.msra.mxu0 0.0
      %9701 = vmatpush.msra.mxu0 0.0
      %9702 = vmatpush.msra.mxu0 0.0
      %9703 = vmatpush.msra.mxu0 0.0
      %9704 = vmatpush.msra.mxu0 0.0
      %9705 = vmatpush.msra.mxu0 0.0
      %9706 = vmatpush.msra.mxu0 0.0
      %9707 = vmatpush.msra.mxu0 0.0
      %v9708 = vand.u32 %v9322, 4294901760
      %v9709 = vsub.f32 %v9322, %v9708
      %v9710 = vand.u32 %v9709, 4294901760
      %v9711 = vsub.f32 %v9709, %v9710
      %v9712 = vand.u32 %v9711, 4294901760
      %9713 = vmatpush.msra.mxu0 %v9712
      %v9714 = vand.u32 %v9321, 4294901760
      %v9715 = vsub.f32 %v9321, %v9714
      %v9716 = vand.u32 %v9715, 4294901760
      %v9717 = vsub.f32 %v9715, %v9716
      %v9718 = vand.u32 %v9717, 4294901760
      %9719 = vmatpush.msra.mxu0 %v9718
      %v9720 = vand.u32 %v9320, 4294901760
      %v9721 = vsub.f32 %v9320, %v9720
      %v9722 = vand.u32 %v9721, 4294901760
      %v9723 = vsub.f32 %v9721, %v9722
      %v9724 = vand.u32 %v9723, 4294901760
      %9725 = vmatpush.msra.mxu0 %v9724
      %v9726 = vand.u32 %v9319, 4294901760
      %v9727 = vsub.f32 %v9319, %v9726
      %v9728 = vand.u32 %v9727, 4294901760
      %v9729 = vsub.f32 %v9727, %v9728
      %v9730 = vand.u32 %v9729, 4294901760
      %9731 = vmatpush.msra.mxu0 %v9730
      %v9732 = vand.u32 %v9324, 4294901760
      %9733 = vmatmul.f32.gmra.mxu0 %v9732
      %v9734 = vpop.f32.mrf.mxu0
      %v9735 = vadd.f32 %v9446, %v9734
      %v9736 = vand.u32 %v9327, 4294901760
      %9737 = vmatmul.f32.gmra.mxu0 %v9736
      %v9738 = vpop.f32.mrf.mxu0
      %v9739 = vadd.f32 %v9454, %v9738
      %v9740 = vand.u32 %v9330, 4294901760
      %9741 = vmatmul.f32.gmra.mxu0 %v9740
      %v9742 = vpop.f32.mrf.mxu0
      %v9743 = vadd.f32 %v9462, %v9742
      %v9744 = vand.u32 %v9333, 4294901760
      %9745 = vmatmul.f32.gmra.mxu0 %v9744
      %v9746 = vpop.f32.mrf.mxu0
      %v9747 = vadd.f32 %v9470, %v9746
      %v9748 = vand.u32 %v9336, 4294901760
      %9749 = vmatmul.f32.gmra.mxu0 %v9748
      %v9750 = vpop.f32.mrf.mxu0
      %v9751 = vadd.f32 %v9478, %v9750
      %v9752 = vand.u32 %v9339, 4294901760
      %9753 = vmatmul.f32.gmra.mxu0 %v9752
      %v9754 = vpop.f32.mrf.mxu0
      %v9755 = vadd.f32 %v9486, %v9754
      %v9756 = vand.u32 %v9342, 4294901760
      %9757 = vmatmul.f32.gmra.mxu0 %v9756
      %v9758 = vpop.f32.mrf.mxu0
      %v9759 = vadd.f32 %v9494, %v9758
      %v9760 = vand.u32 %v9345, 4294901760
      %9761 = vmatmul.f32.gmra.mxu0 %v9760
      %v9762 = vpop.f32.mrf.mxu0
      %v9763 = vadd.f32 %v9502, %v9762
      %v9764 = vand.u32 %v9348, 4294901760
      %9765 = vmatmul.f32.gmra.mxu0 %v9764
      %v9766 = vpop.f32.mrf.mxu0
      %v9767 = vadd.f32 %v9510, %v9766
      %v9768 = vand.u32 %v9351, 4294901760
      %9769 = vmatmul.f32.gmra.mxu0 %v9768
      %v9770 = vpop.f32.mrf.mxu0
      %v9771 = vadd.f32 %v9518, %v9770
      %v9772 = vand.u32 %v9354, 4294901760
      %9773 = vmatmul.f32.gmra.mxu0 %v9772
      %v9774 = vpop.f32.mrf.mxu0
      %v9775 = vadd.f32 %v9526, %v9774
      %v9776 = vand.u32 %v9357, 4294901760
      %9777 = vmatmul.f32.gmra.mxu0 %v9776
      %v9778 = vpop.f32.mrf.mxu0
      %v9779 = vadd.f32 %v9534, %v9778
      %v9780 = vand.u32 %v9360, 4294901760
      %9781 = vmatmul.f32.gmra.mxu0 %v9780
      %v9782 = vpop.f32.mrf.mxu0
      %v9783 = vadd.f32 %v9542, %v9782
      %v9784 = vand.u32 %v9363, 4294901760
      %9785 = vmatmul.f32.gmra.mxu0 %v9784
      %v9786 = vpop.f32.mrf.mxu0
      %v9787 = vadd.f32 %v9550, %v9786
      %v9788 = vand.u32 %v9366, 4294901760
      %9789 = vmatmul.f32.gmra.mxu0 %v9788
      %v9790 = vpop.f32.mrf.mxu0
      %v9791 = vadd.f32 %v9558, %v9790
      %v9792 = vand.u32 %v9369, 4294901760
      %9793 = vmatmul.f32.gmra.mxu0 %v9792
      %v9794 = vpop.f32.mrf.mxu0
      %v9795 = vadd.f32 %v9566, %v9794
      %v9796 = vand.u32 %v9372, 4294901760
      %9797 = vmatmul.f32.gmra.mxu0 %v9796
      %v9798 = vpop.f32.mrf.mxu0
      %v9799 = vadd.f32 %v9574, %v9798
      %v9800 = vand.u32 %v9375, 4294901760
      %9801 = vmatmul.f32.gmra.mxu0 %v9800
      %v9802 = vpop.f32.mrf.mxu0
      %v9803 = vadd.f32 %v9582, %v9802
      %v9804 = vand.u32 %v9378, 4294901760
      %9805 = vmatmul.f32.gmra.mxu0 %v9804
      %v9806 = vpop.f32.mrf.mxu0
      %v9807 = vadd.f32 %v9590, %v9806
      %v9808 = vand.u32 %v9381, 4294901760
      %9809 = vmatmul.f32.gmra.mxu0 %v9808
      %v9810 = vpop.f32.mrf.mxu0
      %v9811 = vadd.f32 %v9598, %v9810
      %v9812 = vand.u32 %v9384, 4294901760
      %9813 = vmatmul.f32.gmra.mxu0 %v9812
      %v9814 = vpop.f32.mrf.mxu0
      %v9815 = vadd.f32 %v9606, %v9814
      %v9816 = vand.u32 %v9387, 4294901760
      %9817 = vmatmul.f32.gmra.mxu0 %v9816
      %v9818 = vpop.f32.mrf.mxu0
      %v9819 = vadd.f32 %v9614, %v9818
      %v9820 = vand.u32 %v9390, 4294901760
      %9821 = vmatmul.f32.gmra.mxu0 %v9820
      %v9822 = vpop.f32.mrf.mxu0
      %v9823 = vadd.f32 %v9622, %v9822
      %v9824 = vand.u32 %v9393, 4294901760
      %9825 = vmatmul.f32.gmra.mxu0 %v9824
      %v9826 = vpop.f32.mrf.mxu0
      %v9827 = vadd.f32 %v9630, %v9826
      %v9828 = vand.u32 %v9396, 4294901760
      %9829 = vmatmul.f32.gmra.mxu0 %v9828
      %v9830 = vpop.f32.mrf.mxu0
      %v9831 = vadd.f32 %v9638, %v9830
      %v9832 = vand.u32 %v9399, 4294901760
      %9833 = vmatmul.f32.gmra.mxu0 %v9832
      %v9834 = vpop.f32.mrf.mxu0
      %v9835 = vadd.f32 %v9646, %v9834
      %v9836 = vand.u32 %v9402, 4294901760
      %9837 = vmatmul.f32.gmra.mxu0 %v9836
      %v9838 = vpop.f32.mrf.mxu0
      %v9839 = vadd.f32 %v9654, %v9838
      %v9840 = vand.u32 %v9405, 4294901760
      %9841 = vmatmul.f32.gmra.mxu0 %v9840
      %v9842 = vpop.f32.mrf.mxu0
      %v9843 = vadd.f32 %v9662, %v9842
      %v9844 = vand.u32 %v9408, 4294901760
      %9845 = vmatmul.f32.gmra.mxu0 %v9844
      %v9846 = vpop.f32.mrf.mxu0
      %v9847 = vadd.f32 %v9670, %v9846
      %v9848 = vand.u32 %v9411, 4294901760
      %9849 = vmatmul.f32.gmra.mxu0 %v9848
      %v9850 = vpop.f32.mrf.mxu0
      %v9851 = vadd.f32 %v9678, %v9850
      %v9852 = vand.u32 %v9414, 4294901760
      %9853 = vmatmul.f32.gmra.mxu0 %v9852
      %v9854 = vpop.f32.mrf.mxu0
      %v9855 = vadd.f32 %v9686, %v9854
      %v9856 = vand.u32 %v9417, 4294901760
      %9857 = vmatmul.f32.gmra.mxu0 %v9856
      %v9858 = vpop.f32.mrf.mxu0
      %v9859 = vadd.f32 %v9694, %v9858
      %9860 = vdwg.mxu0
      %9861 = vmatpush.msra.mxu0 0.0
      %9862 = vmatpush.msra.mxu0 0.0
      %9863 = vmatpush.msra.mxu0 0.0
      %9864 = vmatpush.msra.mxu0 0.0
      %9865 = vmatpush.msra.mxu0 0.0
      %9866 = vmatpush.msra.mxu0 0.0
      %9867 = vmatpush.msra.mxu0 0.0
      %9868 = vmatpush.msra.mxu0 0.0
      %9869 = vmatpush.msra.mxu0 0.0
      %9870 = vmatpush.msra.mxu0 0.0
      %9871 = vmatpush.msra.mxu0 0.0
      %9872 = vmatpush.msra.mxu0 0.0
      %v9873 = vand.u32 %v9322, 4294901760
      %v9874 = vsub.f32 %v9322, %v9873
      %9875 = vmatpush.msra.mxu0 %v9874
      %v9876 = vand.u32 %v9321, 4294901760
      %v9877 = vsub.f32 %v9321, %v9876
      %9878 = vmatpush.msra.mxu0 %v9877
      %v9879 = vand.u32 %v9320, 4294901760
      %v9880 = vsub.f32 %v9320, %v9879
      %9881 = vmatpush.msra.mxu0 %v9880
      %v9882 = vand.u32 %v9319, 4294901760
      %v9883 = vsub.f32 %v9319, %v9882
      %9884 = vmatpush.msra.mxu0 %v9883
      %v9885 = vand.u32 %v9324, 4294901760
      %v9886 = vsub.f32 %v9324, %v9885
      %9887 = vmatmul.f32.gmra.mxu0 %v9886
      %v9888 = vpop.f32.mrf.mxu0
      %v9889 = vadd.f32 %v9735, %v9888
      %v9890 = vand.u32 %v9327, 4294901760
      %v9891 = vsub.f32 %v9327, %v9890
      %9892 = vmatmul.f32.gmra.mxu0 %v9891
      %v9893 = vpop.f32.mrf.mxu0
      %v9894 = vadd.f32 %v9739, %v9893
      %v9895 = vand.u32 %v9330, 4294901760
      %v9896 = vsub.f32 %v9330, %v9895
      %9897 = vmatmul.f32.gmra.mxu0 %v9896
      %v9898 = vpop.f32.mrf.mxu0
      %v9899 = vadd.f32 %v9743, %v9898
      %v9900 = vand.u32 %v9333, 4294901760
      %v9901 = vsub.f32 %v9333, %v9900
      %9902 = vmatmul.f32.gmra.mxu0 %v9901
      %v9903 = vpop.f32.mrf.mxu0
      %v9904 = vadd.f32 %v9747, %v9903
      %v9905 = vand.u32 %v9336, 4294901760
      %v9906 = vsub.f32 %v9336, %v9905
      %9907 = vmatmul.f32.gmra.mxu0 %v9906
      %v9908 = vpop.f32.mrf.mxu0
      %v9909 = vadd.f32 %v9751, %v9908
      %v9910 = vand.u32 %v9339, 4294901760
      %v9911 = vsub.f32 %v9339, %v9910
      %9912 = vmatmul.f32.gmra.mxu0 %v9911
      %v9913 = vpop.f32.mrf.mxu0
      %v9914 = vadd.f32 %v9755, %v9913
      %v9915 = vand.u32 %v9342, 4294901760
      %v9916 = vsub.f32 %v9342, %v9915
      %9917 = vmatmul.f32.gmra.mxu0 %v9916
      %v9918 = vpop.f32.mrf.mxu0
      %v9919 = vadd.f32 %v9759, %v9918
      %v9920 = vand.u32 %v9345, 4294901760
      %v9921 = vsub.f32 %v9345, %v9920
      %9922 = vmatmul.f32.gmra.mxu0 %v9921
      %v9923 = vpop.f32.mrf.mxu0
      %v9924 = vadd.f32 %v9763, %v9923
      %v9925 = vand.u32 %v9348, 4294901760
      %v9926 = vsub.f32 %v9348, %v9925
      %9927 = vmatmul.f32.gmra.mxu0 %v9926
      %v9928 = vpop.f32.mrf.mxu0
      %v9929 = vadd.f32 %v9767, %v9928
      %v9930 = vand.u32 %v9351, 4294901760
      %v9931 = vsub.f32 %v9351, %v9930
      %9932 = vmatmul.f32.gmra.mxu0 %v9931
      %v9933 = vpop.f32.mrf.mxu0
      %v9934 = vadd.f32 %v9771, %v9933
      %v9935 = vand.u32 %v9354, 4294901760
      %v9936 = vsub.f32 %v9354, %v9935
      %9937 = vmatmul.f32.gmra.mxu0 %v9936
      %v9938 = vpop.f32.mrf.mxu0
      %v9939 = vadd.f32 %v9775, %v9938
      %v9940 = vand.u32 %v9357, 4294901760
      %v9941 = vsub.f32 %v9357, %v9940
      %9942 = vmatmul.f32.gmra.mxu0 %v9941
      %v9943 = vpop.f32.mrf.mxu0
      %v9944 = vadd.f32 %v9779, %v9943
      %v9945 = vand.u32 %v9360, 4294901760
      %v9946 = vsub.f32 %v9360, %v9945
      %9947 = vmatmul.f32.gmra.mxu0 %v9946
      %v9948 = vpop.f32.mrf.mxu0
      %v9949 = vadd.f32 %v9783, %v9948
      %v9950 = vand.u32 %v9363, 4294901760
      %v9951 = vsub.f32 %v9363, %v9950
      %9952 = vmatmul.f32.gmra.mxu0 %v9951
      %v9953 = vpop.f32.mrf.mxu0
      %v9954 = vadd.f32 %v9787, %v9953
      %v9955 = vand.u32 %v9366, 4294901760
      %v9956 = vsub.f32 %v9366, %v9955
      %9957 = vmatmul.f32.gmra.mxu0 %v9956
      %v9958 = vpop.f32.mrf.mxu0
      %v9959 = vadd.f32 %v9791, %v9958
      %v9960 = vand.u32 %v9369, 4294901760
      %v9961 = vsub.f32 %v9369, %v9960
      %9962 = vmatmul.f32.gmra.mxu0 %v9961
      %v9963 = vpop.f32.mrf.mxu0
      %v9964 = vadd.f32 %v9795, %v9963
      %v9965 = vand.u32 %v9372, 4294901760
      %v9966 = vsub.f32 %v9372, %v9965
      %9967 = vmatmul.f32.gmra.mxu0 %v9966
      %v9968 = vpop.f32.mrf.mxu0
      %v9969 = vadd.f32 %v9799, %v9968
      %v9970 = vand.u32 %v9375, 4294901760
      %v9971 = vsub.f32 %v9375, %v9970
      %9972 = vmatmul.f32.gmra.mxu0 %v9971
      %v9973 = vpop.f32.mrf.mxu0
      %v9974 = vadd.f32 %v9803, %v9973
      %v9975 = vand.u32 %v9378, 4294901760
      %v9976 = vsub.f32 %v9378, %v9975
      %9977 = vmatmul.f32.gmra.mxu0 %v9976
      %v9978 = vpop.f32.mrf.mxu0
      %v9979 = vadd.f32 %v9807, %v9978
      %v9980 = vand.u32 %v9381, 4294901760
      %v9981 = vsub.f32 %v9381, %v9980
      %9982 = vmatmul.f32.gmra.mxu0 %v9981
      %v9983 = vpop.f32.mrf.mxu0
      %v9984 = vadd.f32 %v9811, %v9983
      %v9985 = vand.u32 %v9384, 4294901760
      %v9986 = vsub.f32 %v9384, %v9985
      %9987 = vmatmul.f32.gmra.mxu0 %v9986
      %v9988 = vpop.f32.mrf.mxu0
      %v9989 = vadd.f32 %v9815, %v9988
      %v9990 = vand.u32 %v9387, 4294901760
      %v9991 = vsub.f32 %v9387, %v9990
      %9992 = vmatmul.f32.gmra.mxu0 %v9991
      %v9993 = vpop.f32.mrf.mxu0
      %v9994 = vadd.f32 %v9819, %v9993
      %v9995 = vand.u32 %v9390, 4294901760
      %v9996 = vsub.f32 %v9390, %v9995
      %9997 = vmatmul.f32.gmra.mxu0 %v9996
      %v9998 = vpop.f32.mrf.mxu0
      %v9999 = vadd.f32 %v9823, %v9998
      %v10000 = vand.u32 %v9393, 4294901760
      %v10001 = vsub.f32 %v9393, %v10000
      %10002 = vmatmul.f32.gmra.mxu0 %v10001
      %v10003 = vpop.f32.mrf.mxu0
      %v10004 = vadd.f32 %v9827, %v10003
      %v10005 = vand.u32 %v9396, 4294901760
      %v10006 = vsub.f32 %v9396, %v10005
      %10007 = vmatmul.f32.gmra.mxu0 %v10006
      %v10008 = vpop.f32.mrf.mxu0
      %v10009 = vadd.f32 %v9831, %v10008
      %v10010 = vand.u32 %v9399, 4294901760
      %v10011 = vsub.f32 %v9399, %v10010
      %10012 = vmatmul.f32.gmra.mxu0 %v10011
      %v10013 = vpop.f32.mrf.mxu0
      %v10014 = vadd.f32 %v9835, %v10013
      %v10015 = vand.u32 %v9402, 4294901760
      %v10016 = vsub.f32 %v9402, %v10015
      %10017 = vmatmul.f32.gmra.mxu0 %v10016
      %v10018 = vpop.f32.mrf.mxu0
      %v10019 = vadd.f32 %v9839, %v10018
      %v10020 = vand.u32 %v9405, 4294901760
      %v10021 = vsub.f32 %v9405, %v10020
      %10022 = vmatmul.f32.gmra.mxu0 %v10021
      %v10023 = vpop.f32.mrf.mxu0
      %v10024 = vadd.f32 %v9843, %v10023
      %v10025 = vand.u32 %v9408, 4294901760
      %v10026 = vsub.f32 %v9408, %v10025
      %10027 = vmatmul.f32.gmra.mxu0 %v10026
      %v10028 = vpop.f32.mrf.mxu0
      %v10029 = vadd.f32 %v9847, %v10028
      %v10030 = vand.u32 %v9411, 4294901760
      %v10031 = vsub.f32 %v9411, %v10030
      %10032 = vmatmul.f32.gmra.mxu0 %v10031
      %v10033 = vpop.f32.mrf.mxu0
      %v10034 = vadd.f32 %v9851, %v10033
      %v10035 = vand.u32 %v9414, 4294901760
      %v10036 = vsub.f32 %v9414, %v10035
      %10037 = vmatmul.f32.gmra.mxu0 %v10036
      %v10038 = vpop.f32.mrf.mxu0
      %v10039 = vadd.f32 %v9855, %v10038
      %v10040 = vand.u32 %v9417, 4294901760
      %v10041 = vsub.f32 %v9417, %v10040
      %10042 = vmatmul.f32.gmra.mxu0 %v10041
      %v10043 = vpop.f32.mrf.mxu0
      %v10044 = vadd.f32 %v9859, %v10043
      %10045 = vdwg.mxu0
      %10046 = vmatpush.msra.mxu0 0.0
      %10047 = vmatpush.msra.mxu0 0.0
      %10048 = vmatpush.msra.mxu0 0.0
      %10049 = vmatpush.msra.mxu0 0.0
      %10050 = vmatpush.msra.mxu0 0.0
      %10051 = vmatpush.msra.mxu0 0.0
      %10052 = vmatpush.msra.mxu0 0.0
      %10053 = vmatpush.msra.mxu0 0.0
      %10054 = vmatpush.msra.mxu0 0.0
      %10055 = vmatpush.msra.mxu0 0.0
      %10056 = vmatpush.msra.mxu0 0.0
      %10057 = vmatpush.msra.mxu0 0.0
      %v10058 = vand.u32 %v9322, 4294901760
      %10059 = vmatpush.msra.mxu0 %v10058
      %v10060 = vand.u32 %v9321, 4294901760
      %10061 = vmatpush.msra.mxu0 %v10060
      %v10062 = vand.u32 %v9320, 4294901760
      %10063 = vmatpush.msra.mxu0 %v10062
      %v10064 = vand.u32 %v9319, 4294901760
      %10065 = vmatpush.msra.mxu0 %v10064
      %v10066 = vand.u32 %v9324, 4294901760
      %v10067 = vsub.f32 %v9324, %v10066
      %v10068 = vand.u32 %v10067, 4294901760
      %10069 = vmatmul.f32.gmra.mxu0 %v10068
      %v10070 = vpop.f32.mrf.mxu0
      %v10071 = vadd.f32 %v9889, %v10070
      %v10072 = vand.u32 %v9327, 4294901760
      %v10073 = vsub.f32 %v9327, %v10072
      %v10074 = vand.u32 %v10073, 4294901760
      %10075 = vmatmul.f32.gmra.mxu0 %v10074
      %v10076 = vpop.f32.mrf.mxu0
      %v10077 = vadd.f32 %v9894, %v10076
      %v10078 = vand.u32 %v9330, 4294901760
      %v10079 = vsub.f32 %v9330, %v10078
      %v10080 = vand.u32 %v10079, 4294901760
      %10081 = vmatmul.f32.gmra.mxu0 %v10080
      %v10082 = vpop.f32.mrf.mxu0
      %v10083 = vadd.f32 %v9899, %v10082
      %v10084 = vand.u32 %v9333, 4294901760
      %v10085 = vsub.f32 %v9333, %v10084
      %v10086 = vand.u32 %v10085, 4294901760
      %10087 = vmatmul.f32.gmra.mxu0 %v10086
      %v10088 = vpop.f32.mrf.mxu0
      %v10089 = vadd.f32 %v9904, %v10088
      %v10090 = vand.u32 %v9336, 4294901760
      %v10091 = vsub.f32 %v9336, %v10090
      %v10092 = vand.u32 %v10091, 4294901760
      %10093 = vmatmul.f32.gmra.mxu0 %v10092
      %v10094 = vpop.f32.mrf.mxu0
      %v10095 = vadd.f32 %v9909, %v10094
      %v10096 = vand.u32 %v9339, 4294901760
      %v10097 = vsub.f32 %v9339, %v10096
      %v10098 = vand.u32 %v10097, 4294901760
      %10099 = vmatmul.f32.gmra.mxu0 %v10098
      %v10100 = vpop.f32.mrf.mxu0
      %v10101 = vadd.f32 %v9914, %v10100
      %v10102 = vand.u32 %v9342, 4294901760
      %v10103 = vsub.f32 %v9342, %v10102
      %v10104 = vand.u32 %v10103, 4294901760
      %10105 = vmatmul.f32.gmra.mxu0 %v10104
      %v10106 = vpop.f32.mrf.mxu0
      %v10107 = vadd.f32 %v9919, %v10106
      %v10108 = vand.u32 %v9345, 4294901760
      %v10109 = vsub.f32 %v9345, %v10108
      %v10110 = vand.u32 %v10109, 4294901760
      %10111 = vmatmul.f32.gmra.mxu0 %v10110
      %v10112 = vpop.f32.mrf.mxu0
      %v10113 = vadd.f32 %v9924, %v10112
      %v10114 = vand.u32 %v9348, 4294901760
      %v10115 = vsub.f32 %v9348, %v10114
      %v10116 = vand.u32 %v10115, 4294901760
      %10117 = vmatmul.f32.gmra.mxu0 %v10116
      %v10118 = vpop.f32.mrf.mxu0
      %v10119 = vadd.f32 %v9929, %v10118
      %v10120 = vand.u32 %v9351, 4294901760
      %v10121 = vsub.f32 %v9351, %v10120
      %v10122 = vand.u32 %v10121, 4294901760
      %10123 = vmatmul.f32.gmra.mxu0 %v10122
      %v10124 = vpop.f32.mrf.mxu0
      %v10125 = vadd.f32 %v9934, %v10124
      %v10126 = vand.u32 %v9354, 4294901760
      %v10127 = vsub.f32 %v9354, %v10126
      %v10128 = vand.u32 %v10127, 4294901760
      %10129 = vmatmul.f32.gmra.mxu0 %v10128
      %v10130 = vpop.f32.mrf.mxu0
      %v10131 = vadd.f32 %v9939, %v10130
      %v10132 = vand.u32 %v9357, 4294901760
      %v10133 = vsub.f32 %v9357, %v10132
      %v10134 = vand.u32 %v10133, 4294901760
      %10135 = vmatmul.f32.gmra.mxu0 %v10134
      %v10136 = vpop.f32.mrf.mxu0
      %v10137 = vadd.f32 %v9944, %v10136
      %v10138 = vand.u32 %v9360, 4294901760
      %v10139 = vsub.f32 %v9360, %v10138
      %v10140 = vand.u32 %v10139, 4294901760
      %10141 = vmatmul.f32.gmra.mxu0 %v10140
      %v10142 = vpop.f32.mrf.mxu0
      %v10143 = vadd.f32 %v9949, %v10142
      %v10144 = vand.u32 %v9363, 4294901760
      %v10145 = vsub.f32 %v9363, %v10144
      %v10146 = vand.u32 %v10145, 4294901760
      %10147 = vmatmul.f32.gmra.mxu0 %v10146
      %v10148 = vpop.f32.mrf.mxu0
      %v10149 = vadd.f32 %v9954, %v10148
      %v10150 = vand.u32 %v9366, 4294901760
      %v10151 = vsub.f32 %v9366, %v10150
      %v10152 = vand.u32 %v10151, 4294901760
      %10153 = vmatmul.f32.gmra.mxu0 %v10152
      %v10154 = vpop.f32.mrf.mxu0
      %v10155 = vadd.f32 %v9959, %v10154
      %v10156 = vand.u32 %v9369, 4294901760
      %v10157 = vsub.f32 %v9369, %v10156
      %v10158 = vand.u32 %v10157, 4294901760
      %10159 = vmatmul.f32.gmra.mxu0 %v10158
      %v10160 = vpop.f32.mrf.mxu0
      %v10161 = vadd.f32 %v9964, %v10160
      %v10162 = vand.u32 %v9372, 4294901760
      %v10163 = vsub.f32 %v9372, %v10162
      %v10164 = vand.u32 %v10163, 4294901760
      %10165 = vmatmul.f32.gmra.mxu0 %v10164
      %v10166 = vpop.f32.mrf.mxu0
      %v10167 = vadd.f32 %v9969, %v10166
      %v10168 = vand.u32 %v9375, 4294901760
      %v10169 = vsub.f32 %v9375, %v10168
      %v10170 = vand.u32 %v10169, 4294901760
      %10171 = vmatmul.f32.gmra.mxu0 %v10170
      %v10172 = vpop.f32.mrf.mxu0
      %v10173 = vadd.f32 %v9974, %v10172
      %v10174 = vand.u32 %v9378, 4294901760
      %v10175 = vsub.f32 %v9378, %v10174
      %v10176 = vand.u32 %v10175, 4294901760
      %10177 = vmatmul.f32.gmra.mxu0 %v10176
      %v10178 = vpop.f32.mrf.mxu0
      %v10179 = vadd.f32 %v9979, %v10178
      %v10180 = vand.u32 %v9381, 4294901760
      %v10181 = vsub.f32 %v9381, %v10180
      %v10182 = vand.u32 %v10181, 4294901760
      %10183 = vmatmul.f32.gmra.mxu0 %v10182
      %v10184 = vpop.f32.mrf.mxu0
      %v10185 = vadd.f32 %v9984, %v10184
      %v10186 = vand.u32 %v9384, 4294901760
      %v10187 = vsub.f32 %v9384, %v10186
      %v10188 = vand.u32 %v10187, 4294901760
      %10189 = vmatmul.f32.gmra.mxu0 %v10188
      %v10190 = vpop.f32.mrf.mxu0
      %v10191 = vadd.f32 %v9989, %v10190
      %v10192 = vand.u32 %v9387, 4294901760
      %v10193 = vsub.f32 %v9387, %v10192
      %v10194 = vand.u32 %v10193, 4294901760
      %10195 = vmatmul.f32.gmra.mxu0 %v10194
      %v10196 = vpop.f32.mrf.mxu0
      %v10197 = vadd.f32 %v9994, %v10196
      %v10198 = vand.u32 %v9390, 4294901760
      %v10199 = vsub.f32 %v9390, %v10198
      %v10200 = vand.u32 %v10199, 4294901760
      %10201 = vmatmul.f32.gmra.mxu0 %v10200
      %v10202 = vpop.f32.mrf.mxu0
      %v10203 = vadd.f32 %v9999, %v10202
      %v10204 = vand.u32 %v9393, 4294901760
      %v10205 = vsub.f32 %v9393, %v10204
      %v10206 = vand.u32 %v10205, 4294901760
      %10207 = vmatmul.f32.gmra.mxu0 %v10206
      %v10208 = vpop.f32.mrf.mxu0
      %v10209 = vadd.f32 %v10004, %v10208
      %v10210 = vand.u32 %v9396, 4294901760
      %v10211 = vsub.f32 %v9396, %v10210
      %v10212 = vand.u32 %v10211, 4294901760
      %10213 = vmatmul.f32.gmra.mxu0 %v10212
      %v10214 = vpop.f32.mrf.mxu0
      %v10215 = vadd.f32 %v10009, %v10214
      %v10216 = vand.u32 %v9399, 4294901760
      %v10217 = vsub.f32 %v9399, %v10216
      %v10218 = vand.u32 %v10217, 4294901760
      %10219 = vmatmul.f32.gmra.mxu0 %v10218
      %v10220 = vpop.f32.mrf.mxu0
      %v10221 = vadd.f32 %v10014, %v10220
      %v10222 = vand.u32 %v9402, 4294901760
      %v10223 = vsub.f32 %v9402, %v10222
      %v10224 = vand.u32 %v10223, 4294901760
      %10225 = vmatmul.f32.gmra.mxu0 %v10224
      %v10226 = vpop.f32.mrf.mxu0
      %v10227 = vadd.f32 %v10019, %v10226
      %v10228 = vand.u32 %v9405, 4294901760
      %v10229 = vsub.f32 %v9405, %v10228
      %v10230 = vand.u32 %v10229, 4294901760
      %10231 = vmatmul.f32.gmra.mxu0 %v10230
      %v10232 = vpop.f32.mrf.mxu0
      %v10233 = vadd.f32 %v10024, %v10232
      %v10234 = vand.u32 %v9408, 4294901760
      %v10235 = vsub.f32 %v9408, %v10234
      %v10236 = vand.u32 %v10235, 4294901760
      %10237 = vmatmul.f32.gmra.mxu0 %v10236
      %v10238 = vpop.f32.mrf.mxu0
      %v10239 = vadd.f32 %v10029, %v10238
      %v10240 = vand.u32 %v9411, 4294901760
      %v10241 = vsub.f32 %v9411, %v10240
      %v10242 = vand.u32 %v10241, 4294901760
      %10243 = vmatmul.f32.gmra.mxu0 %v10242
      %v10244 = vpop.f32.mrf.mxu0
      %v10245 = vadd.f32 %v10034, %v10244
      %v10246 = vand.u32 %v9414, 4294901760
      %v10247 = vsub.f32 %v9414, %v10246
      %v10248 = vand.u32 %v10247, 4294901760
      %10249 = vmatmul.f32.gmra.mxu0 %v10248
      %v10250 = vpop.f32.mrf.mxu0
      %v10251 = vadd.f32 %v10039, %v10250
      %v10252 = vand.u32 %v9417, 4294901760
      %v10253 = vsub.f32 %v9417, %v10252
      %v10254 = vand.u32 %v10253, 4294901760
      %10255 = vmatmul.f32.gmra.mxu0 %v10254
      %v10256 = vpop.f32.mrf.mxu0
      %v10257 = vadd.f32 %v10044, %v10256
      %10258 = vdwg.mxu0
      %10259 = vmatpush.msra.mxu0 0.0
      %10260 = vmatpush.msra.mxu0 0.0
      %10261 = vmatpush.msra.mxu0 0.0
      %10262 = vmatpush.msra.mxu0 0.0
      %10263 = vmatpush.msra.mxu0 0.0
      %10264 = vmatpush.msra.mxu0 0.0
      %10265 = vmatpush.msra.mxu0 0.0
      %10266 = vmatpush.msra.mxu0 0.0
      %10267 = vmatpush.msra.mxu0 0.0
      %10268 = vmatpush.msra.mxu0 0.0
      %10269 = vmatpush.msra.mxu0 0.0
      %10270 = vmatpush.msra.mxu0 0.0
      %v10271 = vand.u32 %v9322, 4294901760
      %v10272 = vsub.f32 %v9322, %v10271
      %v10273 = vand.u32 %v10272, 4294901760
      %10274 = vmatpush.msra.mxu0 %v10273
      %v10275 = vand.u32 %v9321, 4294901760
      %v10276 = vsub.f32 %v9321, %v10275
      %v10277 = vand.u32 %v10276, 4294901760
      %10278 = vmatpush.msra.mxu0 %v10277
      %v10279 = vand.u32 %v9320, 4294901760
      %v10280 = vsub.f32 %v9320, %v10279
      %v10281 = vand.u32 %v10280, 4294901760
      %10282 = vmatpush.msra.mxu0 %v10281
      %v10283 = vand.u32 %v9319, 4294901760
      %v10284 = vsub.f32 %v9319, %v10283
      %v10285 = vand.u32 %v10284, 4294901760
      %10286 = vmatpush.msra.mxu0 %v10285
      %v10287 = vand.u32 %v9324, 4294901760
      %10288 = vmatmul.f32.gmra.mxu0 %v10287
      %v10289 = vpop.f32.mrf.mxu0
      %v10290 = vadd.f32 %v10071, %v10289
      %v10291 = vand.u32 %v9327, 4294901760
      %10292 = vmatmul.f32.gmra.mxu0 %v10291
      %v10293 = vpop.f32.mrf.mxu0
      %v10294 = vadd.f32 %v10077, %v10293
      %v10295 = vand.u32 %v9330, 4294901760
      %10296 = vmatmul.f32.gmra.mxu0 %v10295
      %v10297 = vpop.f32.mrf.mxu0
      %v10298 = vadd.f32 %v10083, %v10297
      %v10299 = vand.u32 %v9333, 4294901760
      %10300 = vmatmul.f32.gmra.mxu0 %v10299
      %v10301 = vpop.f32.mrf.mxu0
      %v10302 = vadd.f32 %v10089, %v10301
      %v10303 = vand.u32 %v9336, 4294901760
      %10304 = vmatmul.f32.gmra.mxu0 %v10303
      %v10305 = vpop.f32.mrf.mxu0
      %v10306 = vadd.f32 %v10095, %v10305
      %v10307 = vand.u32 %v9339, 4294901760
      %10308 = vmatmul.f32.gmra.mxu0 %v10307
      %v10309 = vpop.f32.mrf.mxu0
      %v10310 = vadd.f32 %v10101, %v10309
      %v10311 = vand.u32 %v9342, 4294901760
      %10312 = vmatmul.f32.gmra.mxu0 %v10311
      %v10313 = vpop.f32.mrf.mxu0
      %v10314 = vadd.f32 %v10107, %v10313
      %v10315 = vand.u32 %v9345, 4294901760
      %10316 = vmatmul.f32.gmra.mxu0 %v10315
      %v10317 = vpop.f32.mrf.mxu0
      %v10318 = vadd.f32 %v10113, %v10317
      %v10319 = vand.u32 %v9348, 4294901760
      %10320 = vmatmul.f32.gmra.mxu0 %v10319
      %v10321 = vpop.f32.mrf.mxu0
      %v10322 = vadd.f32 %v10119, %v10321
      %v10323 = vand.u32 %v9351, 4294901760
      %10324 = vmatmul.f32.gmra.mxu0 %v10323
      %v10325 = vpop.f32.mrf.mxu0
      %v10326 = vadd.f32 %v10125, %v10325
      %v10327 = vand.u32 %v9354, 4294901760
      %10328 = vmatmul.f32.gmra.mxu0 %v10327
      %v10329 = vpop.f32.mrf.mxu0
      %v10330 = vadd.f32 %v10131, %v10329
      %v10331 = vand.u32 %v9357, 4294901760
      %10332 = vmatmul.f32.gmra.mxu0 %v10331
      %v10333 = vpop.f32.mrf.mxu0
      %v10334 = vadd.f32 %v10137, %v10333
      %v10335 = vand.u32 %v9360, 4294901760
      %10336 = vmatmul.f32.gmra.mxu0 %v10335
      %v10337 = vpop.f32.mrf.mxu0
      %v10338 = vadd.f32 %v10143, %v10337
      %v10339 = vand.u32 %v9363, 4294901760
      %10340 = vmatmul.f32.gmra.mxu0 %v10339
      %v10341 = vpop.f32.mrf.mxu0
      %v10342 = vadd.f32 %v10149, %v10341
      %v10343 = vand.u32 %v9366, 4294901760
      %10344 = vmatmul.f32.gmra.mxu0 %v10343
      %v10345 = vpop.f32.mrf.mxu0
      %v10346 = vadd.f32 %v10155, %v10345
      %v10347 = vand.u32 %v9369, 4294901760
      %10348 = vmatmul.f32.gmra.mxu0 %v10347
      %v10349 = vpop.f32.mrf.mxu0
      %v10350 = vadd.f32 %v10161, %v10349
      %v10351 = vand.u32 %v9372, 4294901760
      %10352 = vmatmul.f32.gmra.mxu0 %v10351
      %v10353 = vpop.f32.mrf.mxu0
      %v10354 = vadd.f32 %v10167, %v10353
      %v10355 = vand.u32 %v9375, 4294901760
      %10356 = vmatmul.f32.gmra.mxu0 %v10355
      %v10357 = vpop.f32.mrf.mxu0
      %v10358 = vadd.f32 %v10173, %v10357
      %v10359 = vand.u32 %v9378, 4294901760
      %10360 = vmatmul.f32.gmra.mxu0 %v10359
      %v10361 = vpop.f32.mrf.mxu0
      %v10362 = vadd.f32 %v10179, %v10361
      %v10363 = vand.u32 %v9381, 4294901760
      %10364 = vmatmul.f32.gmra.mxu0 %v10363
      %v10365 = vpop.f32.mrf.mxu0
      %v10366 = vadd.f32 %v10185, %v10365
      %v10367 = vand.u32 %v9384, 4294901760
      %10368 = vmatmul.f32.gmra.mxu0 %v10367
      %v10369 = vpop.f32.mrf.mxu0
      %v10370 = vadd.f32 %v10191, %v10369
      %v10371 = vand.u32 %v9387, 4294901760
      %10372 = vmatmul.f32.gmra.mxu0 %v10371
      %v10373 = vpop.f32.mrf.mxu0
      %v10374 = vadd.f32 %v10197, %v10373
      %v10375 = vand.u32 %v9390, 4294901760
      %10376 = vmatmul.f32.gmra.mxu0 %v10375
      %v10377 = vpop.f32.mrf.mxu0
      %v10378 = vadd.f32 %v10203, %v10377
      %v10379 = vand.u32 %v9393, 4294901760
      %10380 = vmatmul.f32.gmra.mxu0 %v10379
      %v10381 = vpop.f32.mrf.mxu0
      %v10382 = vadd.f32 %v10209, %v10381
      %v10383 = vand.u32 %v9396, 4294901760
      %10384 = vmatmul.f32.gmra.mxu0 %v10383
      %v10385 = vpop.f32.mrf.mxu0
      %v10386 = vadd.f32 %v10215, %v10385
      %v10387 = vand.u32 %v9399, 4294901760
      %10388 = vmatmul.f32.gmra.mxu0 %v10387
      %v10389 = vpop.f32.mrf.mxu0
      %v10390 = vadd.f32 %v10221, %v10389
      %v10391 = vand.u32 %v9402, 4294901760
      %10392 = vmatmul.f32.gmra.mxu0 %v10391
      %v10393 = vpop.f32.mrf.mxu0
      %v10394 = vadd.f32 %v10227, %v10393
      %v10395 = vand.u32 %v9405, 4294901760
      %10396 = vmatmul.f32.gmra.mxu0 %v10395
      %v10397 = vpop.f32.mrf.mxu0
      %v10398 = vadd.f32 %v10233, %v10397
      %v10399 = vand.u32 %v9408, 4294901760
      %10400 = vmatmul.f32.gmra.mxu0 %v10399
      %v10401 = vpop.f32.mrf.mxu0
      %v10402 = vadd.f32 %v10239, %v10401
      %v10403 = vand.u32 %v9411, 4294901760
      %10404 = vmatmul.f32.gmra.mxu0 %v10403
      %v10405 = vpop.f32.mrf.mxu0
      %v10406 = vadd.f32 %v10245, %v10405
      %v10407 = vand.u32 %v9414, 4294901760
      %10408 = vmatmul.f32.gmra.mxu0 %v10407
      %v10409 = vpop.f32.mrf.mxu0
      %v10410 = vadd.f32 %v10251, %v10409
      %v10411 = vand.u32 %v9417, 4294901760
      %10412 = vmatmul.f32.gmra.mxu0 %v10411
      %v10413 = vpop.f32.mrf.mxu0
      %v10414 = vadd.f32 %v10257, %v10413
      %10415 = vdwg.mxu0
      %10416 = vmatpush.msra.mxu0 0.0
      %10417 = vmatpush.msra.mxu0 0.0
      %10418 = vmatpush.msra.mxu0 0.0
      %10419 = vmatpush.msra.mxu0 0.0
      %10420 = vmatpush.msra.mxu0 0.0
      %10421 = vmatpush.msra.mxu0 0.0
      %10422 = vmatpush.msra.mxu0 0.0
      %10423 = vmatpush.msra.mxu0 0.0
      %10424 = vmatpush.msra.mxu0 0.0
      %10425 = vmatpush.msra.mxu0 0.0
      %10426 = vmatpush.msra.mxu0 0.0
      %10427 = vmatpush.msra.mxu0 0.0
      %v10428 = vand.u32 %v9322, 4294901760
      %10429 = vmatpush.msra.mxu0 %v10428
      %v10430 = vand.u32 %v9321, 4294901760
      %10431 = vmatpush.msra.mxu0 %v10430
      %v10432 = vand.u32 %v9320, 4294901760
      %10433 = vmatpush.msra.mxu0 %v10432
      %v10434 = vand.u32 %v9319, 4294901760
      %10435 = vmatpush.msra.mxu0 %v10434
      %v10436 = vand.u32 %v9324, 4294901760
      %10437 = vmatmul.f32.gmra.mxu0 %v10436
      %v10438 = vpop.f32.mrf.mxu0
      %v10439 = vadd.f32 %v10290, %v10438
      %v10440 = vand.u32 %v9327, 4294901760
      %10441 = vmatmul.f32.gmra.mxu0 %v10440
      %v10442 = vpop.f32.mrf.mxu0
      %v10443 = vadd.f32 %v10294, %v10442
      %v10444 = vand.u32 %v9330, 4294901760
      %10445 = vmatmul.f32.gmra.mxu0 %v10444
      %v10446 = vpop.f32.mrf.mxu0
      %v10447 = vadd.f32 %v10298, %v10446
      %v10448 = vand.u32 %v9333, 4294901760
      %10449 = vmatmul.f32.gmra.mxu0 %v10448
      %v10450 = vpop.f32.mrf.mxu0
      %v10451 = vadd.f32 %v10302, %v10450
      %v10452 = vand.u32 %v9336, 4294901760
      %10453 = vmatmul.f32.gmra.mxu0 %v10452
      %v10454 = vpop.f32.mrf.mxu0
      %v10455 = vadd.f32 %v10306, %v10454
      %v10456 = vand.u32 %v9339, 4294901760
      %10457 = vmatmul.f32.gmra.mxu0 %v10456
      %v10458 = vpop.f32.mrf.mxu0
      %v10459 = vadd.f32 %v10310, %v10458
      %v10460 = vand.u32 %v9342, 4294901760
      %10461 = vmatmul.f32.gmra.mxu0 %v10460
      %v10462 = vpop.f32.mrf.mxu0
      %v10463 = vadd.f32 %v10314, %v10462
      %v10464 = vand.u32 %v9345, 4294901760
      %10465 = vmatmul.f32.gmra.mxu0 %v10464
      %v10466 = vpop.f32.mrf.mxu0
      %v10467 = vadd.f32 %v10318, %v10466
      %v10468 = vand.u32 %v9348, 4294901760
      %10469 = vmatmul.f32.gmra.mxu0 %v10468
      %v10470 = vpop.f32.mrf.mxu0
      %v10471 = vadd.f32 %v10322, %v10470
      %v10472 = vand.u32 %v9351, 4294901760
      %10473 = vmatmul.f32.gmra.mxu0 %v10472
      %v10474 = vpop.f32.mrf.mxu0
      %v10475 = vadd.f32 %v10326, %v10474
      %v10476 = vand.u32 %v9354, 4294901760
      %10477 = vmatmul.f32.gmra.mxu0 %v10476
      %v10478 = vpop.f32.mrf.mxu0
      %v10479 = vadd.f32 %v10330, %v10478
      %v10480 = vand.u32 %v9357, 4294901760
      %10481 = vmatmul.f32.gmra.mxu0 %v10480
      %v10482 = vpop.f32.mrf.mxu0
      %v10483 = vadd.f32 %v10334, %v10482
      %v10484 = vand.u32 %v9360, 4294901760
      %10485 = vmatmul.f32.gmra.mxu0 %v10484
      %v10486 = vpop.f32.mrf.mxu0
      %v10487 = vadd.f32 %v10338, %v10486
      %v10488 = vand.u32 %v9363, 4294901760
      %10489 = vmatmul.f32.gmra.mxu0 %v10488
      %v10490 = vpop.f32.mrf.mxu0
      %v10491 = vadd.f32 %v10342, %v10490
      %v10492 = vand.u32 %v9366, 4294901760
      %10493 = vmatmul.f32.gmra.mxu0 %v10492
      %v10494 = vpop.f32.mrf.mxu0
      %v10495 = vadd.f32 %v10346, %v10494
      %v10496 = vand.u32 %v9369, 4294901760
      %10497 = vmatmul.f32.gmra.mxu0 %v10496
      %v10498 = vpop.f32.mrf.mxu0
      %v10499 = vadd.f32 %v10350, %v10498
      %v10500 = vand.u32 %v9372, 4294901760
      %10501 = vmatmul.f32.gmra.mxu0 %v10500
      %v10502 = vpop.f32.mrf.mxu0
      %v10503 = vadd.f32 %v10354, %v10502
      %v10504 = vand.u32 %v9375, 4294901760
      %10505 = vmatmul.f32.gmra.mxu0 %v10504
      %v10506 = vpop.f32.mrf.mxu0
      %v10507 = vadd.f32 %v10358, %v10506
      %v10508 = vand.u32 %v9378, 4294901760
      %10509 = vmatmul.f32.gmra.mxu0 %v10508
      %v10510 = vpop.f32.mrf.mxu0
      %v10511 = vadd.f32 %v10362, %v10510
      %v10512 = vand.u32 %v9381, 4294901760
      %10513 = vmatmul.f32.gmra.mxu0 %v10512
      %v10514 = vpop.f32.mrf.mxu0
      %v10515 = vadd.f32 %v10366, %v10514
      %v10516 = vand.u32 %v9384, 4294901760
      %10517 = vmatmul.f32.gmra.mxu0 %v10516
      %v10518 = vpop.f32.mrf.mxu0
      %v10519 = vadd.f32 %v10370, %v10518
      %v10520 = vand.u32 %v9387, 4294901760
      %10521 = vmatmul.f32.gmra.mxu0 %v10520
      %v10522 = vpop.f32.mrf.mxu0
      %v10523 = vadd.f32 %v10374, %v10522
      %v10524 = vand.u32 %v9390, 4294901760
      %10525 = vmatmul.f32.gmra.mxu0 %v10524
      %v10526 = vpop.f32.mrf.mxu0
      %v10527 = vadd.f32 %v10378, %v10526
      %v10528 = vand.u32 %v9393, 4294901760
      %10529 = vmatmul.f32.gmra.mxu0 %v10528
      %v10530 = vpop.f32.mrf.mxu0
      %v10531 = vadd.f32 %v10382, %v10530
      %v10532 = vand.u32 %v9396, 4294901760
      %10533 = vmatmul.f32.gmra.mxu0 %v10532
      %v10534 = vpop.f32.mrf.mxu0
      %v10535 = vadd.f32 %v10386, %v10534
      %v10536 = vand.u32 %v9399, 4294901760
      %10537 = vmatmul.f32.gmra.mxu0 %v10536
      %v10538 = vpop.f32.mrf.mxu0
      %v10539 = vadd.f32 %v10390, %v10538
      %v10540 = vand.u32 %v9402, 4294901760
      %10541 = vmatmul.f32.gmra.mxu0 %v10540
      %v10542 = vpop.f32.mrf.mxu0
      %v10543 = vadd.f32 %v10394, %v10542
      %v10544 = vand.u32 %v9405, 4294901760
      %10545 = vmatmul.f32.gmra.mxu0 %v10544
      %v10546 = vpop.f32.mrf.mxu0
      %v10547 = vadd.f32 %v10398, %v10546
      %v10548 = vand.u32 %v9408, 4294901760
      %10549 = vmatmul.f32.gmra.mxu0 %v10548
      %v10550 = vpop.f32.mrf.mxu0
      %v10551 = vadd.f32 %v10402, %v10550
      %v10552 = vand.u32 %v9411, 4294901760
      %10553 = vmatmul.f32.gmra.mxu0 %v10552
      %v10554 = vpop.f32.mrf.mxu0
      %v10555 = vadd.f32 %v10406, %v10554
      %v10556 = vand.u32 %v9414, 4294901760
      %10557 = vmatmul.f32.gmra.mxu0 %v10556
      %v10558 = vpop.f32.mrf.mxu0
      %v10559 = vadd.f32 %v10410, %v10558
      %v10560 = vand.u32 %v9417, 4294901760
      %10561 = vmatmul.f32.gmra.mxu0 %v10560
      %v10562 = vpop.f32.mrf.mxu0
      %v10563 = vadd.f32 %v10414, %v10562
      %10564 = vdwg.mxu0
      %v10565 = vadd.f32 %v9254, %v10439
      %v10566 = vadd.f32 %v9255, %v10443
      %v10567 = vadd.f32 %v9256, %v10447
      %v10568 = vadd.f32 %v9257, %v10451
      %v10569 = vadd.f32 %v9258, %v10455
      %v10570 = vadd.f32 %v9259, %v10459
      %v10571 = vadd.f32 %v9260, %v10463
      %v10572 = vadd.f32 %v9261, %v10467
      %v10573 = vadd.f32 %v9262, %v10471
      %v10574 = vadd.f32 %v9263, %v10475
      %v10575 = vadd.f32 %v9264, %v10479
      %v10576 = vadd.f32 %v9265, %v10483
      %v10577 = vadd.f32 %v9266, %v10487
      %v10578 = vadd.f32 %v9267, %v10491
      %v10579 = vadd.f32 %v9268, %v10495
      %v10580 = vadd.f32 %v9269, %v10499
      %v10581 = vadd.f32 %v9270, %v10503
      %v10582 = vadd.f32 %v9271, %v10507
      %v10583 = vadd.f32 %v9272, %v10511
      %v10584 = vadd.f32 %v9273, %v10515
      %v10585 = vadd.f32 %v9274, %v10519
      %v10586 = vadd.f32 %v9275, %v10523
      %v10587 = vadd.f32 %v9276, %v10527
      %v10588 = vadd.f32 %v9277, %v10531
      %v10589 = vadd.f32 %v9278, %v10535
      %v10590 = vadd.f32 %v9279, %v10539
      %v10591 = vadd.f32 %v9280, %v10543
      %v10592 = vadd.f32 %v9281, %v10547
      %v10593 = vadd.f32 %v9282, %v10551
      %v10594 = vadd.f32 %v9283, %v10555
      %v10595 = vadd.f32 %v9284, %v10559
      %v10596 = vadd.f32 %v9285, %v10563
      %v10597 = vld [vmem:[%s7974 + $0x2] sm:$0xff]
      %v10598 = vld [vmem:[%s7974 + $0xa] sm:$0xff]
      %v10599 = vld [vmem:[%s7974 + $0x1a] sm:$0xff]
      %v10600 = vld [vmem:[%s7974 + $0x22] sm:$0xff]
      %v10601 = vld [vmem:[%s7974 + $0x32] sm:$0xff]
      %v10602 = vld [vmem:[%s7974 + $0x3a] sm:$0xff]
      %v10603 = vld [vmem:[%s7974 + $0x4a] sm:$0xff]
      %v10604 = vld [vmem:[%s7974 + $0x52] sm:$0xff]
      %v10605 = vld [vmem:[%s7974 + $0x62] sm:$0xff]
      %v10606 = vld [vmem:[%s7974 + $0x6a] sm:$0xff]
      %v10607 = vld [vmem:[%s7974 + $0x7a] sm:$0xff]
      %v10608 = vld [vmem:[%s7974 + $0x82] sm:$0xff]
      %v10609 = vld [vmem:[%s7974 + $0x92] sm:$0xff]
      %v10610 = vld [vmem:[%s7974 + $0x9a] sm:$0xff]
      %v10611 = vld [vmem:[%s7974 + $0xaa] sm:$0xff]
      %v10612 = vld [vmem:[%s7974 + $0xb2] sm:$0xff]
      %v10613 = vld [vmem:[%s7974 + $0xc2] sm:$0xff]
      %v10614 = vld [vmem:[%s7974 + $0xca] sm:$0xff]
      %v10615 = vld [vmem:[%s7974 + $0xda] sm:$0xff]
      %v10616 = vld [vmem:[%s7974 + $0xe2] sm:$0xff]
      %v10617 = vld [vmem:[%s7974 + $0xf2] sm:$0xff]
      %v10618 = vld [vmem:[%s7974 + $0xfa] sm:$0xff]
      %v10619 = vld [vmem:[%s7974 + $0x10a] sm:$0xff]
      %v10620 = vld [vmem:[%s7974 + $0x112] sm:$0xff]
      %v10621 = vld [vmem:[%s7974 + $0x122] sm:$0xff]
      %v10622 = vld [vmem:[%s7974 + $0x12a] sm:$0xff]
      %v10623 = vld [vmem:[%s7974 + $0x13a] sm:$0xff]
      %v10624 = vld [vmem:[%s7974 + $0x142] sm:$0xff]
      %v10625 = vld [vmem:[%s7974 + $0x152] sm:$0xff]
      %v10626 = vld [vmem:[%s7974 + $0x15a] sm:$0xff]
      %v10627 = vld [vmem:[%s7974 + $0x16a] sm:$0xff]
      %v10628 = vld [vmem:[%s7974 + $0x172] sm:$0xff]
      %s10629 = scalar_lea.vmem %s1, 256
      %v10630 = vld [vmem:[%s10629] sm:$0xff]
      %v10631 = vld [vmem:[%s10629 + $0x8] sm:$0xff]
      %v10632 = vld [vmem:[%s10629 + $0x10] sm:$0xff]
      %v10633 = vld [vmem:[%s10629 + $0x18] sm:$0xff]
      %v10635 = vsel %vm244, %v10597, 0
      %v10638 = vsel %vm244, %v10598, 0
      %v10641 = vsel %vm244, %v10599, 0
      %v10644 = vsel %vm244, %v10600, 0
      %v10647 = vsel %vm244, %v10601, 0
      %v10650 = vsel %vm244, %v10602, 0
      %v10653 = vsel %vm244, %v10603, 0
      %v10656 = vsel %vm244, %v10604, 0
      %v10659 = vsel %vm244, %v10605, 0
      %v10662 = vsel %vm244, %v10606, 0
      %v10665 = vsel %vm244, %v10607, 0
      %v10668 = vsel %vm244, %v10608, 0
      %v10671 = vsel %vm244, %v10609, 0
      %v10674 = vsel %vm244, %v10610, 0
      %v10677 = vsel %vm244, %v10611, 0
      %v10680 = vsel %vm244, %v10612, 0
      %v10683 = vsel %vm244, %v10613, 0
      %v10686 = vsel %vm244, %v10614, 0
      %v10689 = vsel %vm244, %v10615, 0
      %v10692 = vsel %vm244, %v10616, 0
      %v10695 = vsel %vm244, %v10617, 0
      %v10698 = vsel %vm244, %v10618, 0
      %v10701 = vsel %vm244, %v10619, 0
      %v10704 = vsel %vm244, %v10620, 0
      %v10707 = vsel %vm244, %v10621, 0
      %v10710 = vsel %vm244, %v10622, 0
      %v10713 = vsel %vm244, %v10623, 0
      %v10716 = vsel %vm244, %v10624, 0
      %v10719 = vsel %vm244, %v10625, 0
      %v10722 = vsel %vm244, %v10626, 0
      %v10725 = vsel %vm244, %v10627, 0
      %v10728 = vsel %vm244, %v10628, 0
      %10730 = vmatpush.msra.mxu0 0.0
      %10731 = vmatpush.msra.mxu0 0.0
      %10732 = vmatpush.msra.mxu0 0.0
      %10733 = vmatpush.msra.mxu0 0.0
      %10734 = vmatpush.msra.mxu0 0.0
      %10735 = vmatpush.msra.mxu0 0.0
      %10736 = vmatpush.msra.mxu0 0.0
      %10737 = vmatpush.msra.mxu0 0.0
      %10738 = vmatpush.msra.mxu0 0.0
      %10739 = vmatpush.msra.mxu0 0.0
      %10740 = vmatpush.msra.mxu0 0.0
      %10741 = vmatpush.msra.mxu0 0.0
      %v10742 = vand.u32 %v10633, 4294901760
      %10743 = vmatpush.msra.mxu0 %v10742
      %v10744 = vand.u32 %v10632, 4294901760
      %10745 = vmatpush.msra.mxu0 %v10744
      %v10746 = vand.u32 %v10631, 4294901760
      %10747 = vmatpush.msra.mxu0 %v10746
      %v10748 = vand.u32 %v10630, 4294901760
      %10749 = vmatpush.msra.mxu0 %v10748
      %v10750 = vand.u32 %v10635, 4294901760
      %v10751 = vsub.f32 %v10635, %v10750
      %v10752 = vand.u32 %v10751, 4294901760
      %v10753 = vsub.f32 %v10751, %v10752
      %v10754 = vand.u32 %v10753, 4294901760
      %10755 = vmatmul.f32.gmra.mxu0 %v10754
      %v10756 = vpop.f32.mrf.mxu0
      %v10757 = vadd.f32 0.0, %v10756
      %v10758 = vand.u32 %v10638, 4294901760
      %v10759 = vsub.f32 %v10638, %v10758
      %v10760 = vand.u32 %v10759, 4294901760
      %v10761 = vsub.f32 %v10759, %v10760
      %v10762 = vand.u32 %v10761, 4294901760
      %10763 = vmatmul.f32.gmra.mxu0 %v10762
      %v10764 = vpop.f32.mrf.mxu0
      %v10765 = vadd.f32 0.0, %v10764
      %v10766 = vand.u32 %v10641, 4294901760
      %v10767 = vsub.f32 %v10641, %v10766
      %v10768 = vand.u32 %v10767, 4294901760
      %v10769 = vsub.f32 %v10767, %v10768
      %v10770 = vand.u32 %v10769, 4294901760
      %10771 = vmatmul.f32.gmra.mxu0 %v10770
      %v10772 = vpop.f32.mrf.mxu0
      %v10773 = vadd.f32 0.0, %v10772
      %v10774 = vand.u32 %v10644, 4294901760
      %v10775 = vsub.f32 %v10644, %v10774
      %v10776 = vand.u32 %v10775, 4294901760
      %v10777 = vsub.f32 %v10775, %v10776
      %v10778 = vand.u32 %v10777, 4294901760
      %10779 = vmatmul.f32.gmra.mxu0 %v10778
      %v10780 = vpop.f32.mrf.mxu0
      %v10781 = vadd.f32 0.0, %v10780
      %v10782 = vand.u32 %v10647, 4294901760
      %v10783 = vsub.f32 %v10647, %v10782
      %v10784 = vand.u32 %v10783, 4294901760
      %v10785 = vsub.f32 %v10783, %v10784
      %v10786 = vand.u32 %v10785, 4294901760
      %10787 = vmatmul.f32.gmra.mxu0 %v10786
      %v10788 = vpop.f32.mrf.mxu0
      %v10789 = vadd.f32 0.0, %v10788
      %v10790 = vand.u32 %v10650, 4294901760
      %v10791 = vsub.f32 %v10650, %v10790
      %v10792 = vand.u32 %v10791, 4294901760
      %v10793 = vsub.f32 %v10791, %v10792
      %v10794 = vand.u32 %v10793, 4294901760
      %10795 = vmatmul.f32.gmra.mxu0 %v10794
      %v10796 = vpop.f32.mrf.mxu0
      %v10797 = vadd.f32 0.0, %v10796
      %v10798 = vand.u32 %v10653, 4294901760
      %v10799 = vsub.f32 %v10653, %v10798
      %v10800 = vand.u32 %v10799, 4294901760
      %v10801 = vsub.f32 %v10799, %v10800
      %v10802 = vand.u32 %v10801, 4294901760
      %10803 = vmatmul.f32.gmra.mxu0 %v10802
      %v10804 = vpop.f32.mrf.mxu0
      %v10805 = vadd.f32 0.0, %v10804
      %v10806 = vand.u32 %v10656, 4294901760
      %v10807 = vsub.f32 %v10656, %v10806
      %v10808 = vand.u32 %v10807, 4294901760
      %v10809 = vsub.f32 %v10807, %v10808
      %v10810 = vand.u32 %v10809, 4294901760
      %10811 = vmatmul.f32.gmra.mxu0 %v10810
      %v10812 = vpop.f32.mrf.mxu0
      %v10813 = vadd.f32 0.0, %v10812
      %v10814 = vand.u32 %v10659, 4294901760
      %v10815 = vsub.f32 %v10659, %v10814
      %v10816 = vand.u32 %v10815, 4294901760
      %v10817 = vsub.f32 %v10815, %v10816
      %v10818 = vand.u32 %v10817, 4294901760
      %10819 = vmatmul.f32.gmra.mxu0 %v10818
      %v10820 = vpop.f32.mrf.mxu0
      %v10821 = vadd.f32 0.0, %v10820
      %v10822 = vand.u32 %v10662, 4294901760
      %v10823 = vsub.f32 %v10662, %v10822
      %v10824 = vand.u32 %v10823, 4294901760
      %v10825 = vsub.f32 %v10823, %v10824
      %v10826 = vand.u32 %v10825, 4294901760
      %10827 = vmatmul.f32.gmra.mxu0 %v10826
      %v10828 = vpop.f32.mrf.mxu0
      %v10829 = vadd.f32 0.0, %v10828
      %v10830 = vand.u32 %v10665, 4294901760
      %v10831 = vsub.f32 %v10665, %v10830
      %v10832 = vand.u32 %v10831, 4294901760
      %v10833 = vsub.f32 %v10831, %v10832
      %v10834 = vand.u32 %v10833, 4294901760
      %10835 = vmatmul.f32.gmra.mxu0 %v10834
      %v10836 = vpop.f32.mrf.mxu0
      %v10837 = vadd.f32 0.0, %v10836
      %v10838 = vand.u32 %v10668, 4294901760
      %v10839 = vsub.f32 %v10668, %v10838
      %v10840 = vand.u32 %v10839, 4294901760
      %v10841 = vsub.f32 %v10839, %v10840
      %v10842 = vand.u32 %v10841, 4294901760
      %10843 = vmatmul.f32.gmra.mxu0 %v10842
      %v10844 = vpop.f32.mrf.mxu0
      %v10845 = vadd.f32 0.0, %v10844
      %v10846 = vand.u32 %v10671, 4294901760
      %v10847 = vsub.f32 %v10671, %v10846
      %v10848 = vand.u32 %v10847, 4294901760
      %v10849 = vsub.f32 %v10847, %v10848
      %v10850 = vand.u32 %v10849, 4294901760
      %10851 = vmatmul.f32.gmra.mxu0 %v10850
      %v10852 = vpop.f32.mrf.mxu0
      %v10853 = vadd.f32 0.0, %v10852
      %v10854 = vand.u32 %v10674, 4294901760
      %v10855 = vsub.f32 %v10674, %v10854
      %v10856 = vand.u32 %v10855, 4294901760
      %v10857 = vsub.f32 %v10855, %v10856
      %v10858 = vand.u32 %v10857, 4294901760
      %10859 = vmatmul.f32.gmra.mxu0 %v10858
      %v10860 = vpop.f32.mrf.mxu0
      %v10861 = vadd.f32 0.0, %v10860
      %v10862 = vand.u32 %v10677, 4294901760
      %v10863 = vsub.f32 %v10677, %v10862
      %v10864 = vand.u32 %v10863, 4294901760
      %v10865 = vsub.f32 %v10863, %v10864
      %v10866 = vand.u32 %v10865, 4294901760
      %10867 = vmatmul.f32.gmra.mxu0 %v10866
      %v10868 = vpop.f32.mrf.mxu0
      %v10869 = vadd.f32 0.0, %v10868
      %v10870 = vand.u32 %v10680, 4294901760
      %v10871 = vsub.f32 %v10680, %v10870
      %v10872 = vand.u32 %v10871, 4294901760
      %v10873 = vsub.f32 %v10871, %v10872
      %v10874 = vand.u32 %v10873, 4294901760
      %10875 = vmatmul.f32.gmra.mxu0 %v10874
      %v10876 = vpop.f32.mrf.mxu0
      %v10877 = vadd.f32 0.0, %v10876
      %v10878 = vand.u32 %v10683, 4294901760
      %v10879 = vsub.f32 %v10683, %v10878
      %v10880 = vand.u32 %v10879, 4294901760
      %v10881 = vsub.f32 %v10879, %v10880
      %v10882 = vand.u32 %v10881, 4294901760
      %10883 = vmatmul.f32.gmra.mxu0 %v10882
      %v10884 = vpop.f32.mrf.mxu0
      %v10885 = vadd.f32 0.0, %v10884
      %v10886 = vand.u32 %v10686, 4294901760
      %v10887 = vsub.f32 %v10686, %v10886
      %v10888 = vand.u32 %v10887, 4294901760
      %v10889 = vsub.f32 %v10887, %v10888
      %v10890 = vand.u32 %v10889, 4294901760
      %10891 = vmatmul.f32.gmra.mxu0 %v10890
      %v10892 = vpop.f32.mrf.mxu0
      %v10893 = vadd.f32 0.0, %v10892
      %v10894 = vand.u32 %v10689, 4294901760
      %v10895 = vsub.f32 %v10689, %v10894
      %v10896 = vand.u32 %v10895, 4294901760
      %v10897 = vsub.f32 %v10895, %v10896
      %v10898 = vand.u32 %v10897, 4294901760
      %10899 = vmatmul.f32.gmra.mxu0 %v10898
      %v10900 = vpop.f32.mrf.mxu0
      %v10901 = vadd.f32 0.0, %v10900
      %v10902 = vand.u32 %v10692, 4294901760
      %v10903 = vsub.f32 %v10692, %v10902
      %v10904 = vand.u32 %v10903, 4294901760
      %v10905 = vsub.f32 %v10903, %v10904
      %v10906 = vand.u32 %v10905, 4294901760
      %10907 = vmatmul.f32.gmra.mxu0 %v10906
      %v10908 = vpop.f32.mrf.mxu0
      %v10909 = vadd.f32 0.0, %v10908
      %v10910 = vand.u32 %v10695, 4294901760
      %v10911 = vsub.f32 %v10695, %v10910
      %v10912 = vand.u32 %v10911, 4294901760
      %v10913 = vsub.f32 %v10911, %v10912
      %v10914 = vand.u32 %v10913, 4294901760
      %10915 = vmatmul.f32.gmra.mxu0 %v10914
      %v10916 = vpop.f32.mrf.mxu0
      %v10917 = vadd.f32 0.0, %v10916
      %v10918 = vand.u32 %v10698, 4294901760
      %v10919 = vsub.f32 %v10698, %v10918
      %v10920 = vand.u32 %v10919, 4294901760
      %v10921 = vsub.f32 %v10919, %v10920
      %v10922 = vand.u32 %v10921, 4294901760
      %10923 = vmatmul.f32.gmra.mxu0 %v10922
      %v10924 = vpop.f32.mrf.mxu0
      %v10925 = vadd.f32 0.0, %v10924
      %v10926 = vand.u32 %v10701, 4294901760
      %v10927 = vsub.f32 %v10701, %v10926
      %v10928 = vand.u32 %v10927, 4294901760
      %v10929 = vsub.f32 %v10927, %v10928
      %v10930 = vand.u32 %v10929, 4294901760
      %10931 = vmatmul.f32.gmra.mxu0 %v10930
      %v10932 = vpop.f32.mrf.mxu0
      %v10933 = vadd.f32 0.0, %v10932
      %v10934 = vand.u32 %v10704, 4294901760
      %v10935 = vsub.f32 %v10704, %v10934
      %v10936 = vand.u32 %v10935, 4294901760
      %v10937 = vsub.f32 %v10935, %v10936
      %v10938 = vand.u32 %v10937, 4294901760
      %10939 = vmatmul.f32.gmra.mxu0 %v10938
      %v10940 = vpop.f32.mrf.mxu0
      %v10941 = vadd.f32 0.0, %v10940
      %v10942 = vand.u32 %v10707, 4294901760
      %v10943 = vsub.f32 %v10707, %v10942
      %v10944 = vand.u32 %v10943, 4294901760
      %v10945 = vsub.f32 %v10943, %v10944
      %v10946 = vand.u32 %v10945, 4294901760
      %10947 = vmatmul.f32.gmra.mxu0 %v10946
      %v10948 = vpop.f32.mrf.mxu0
      %v10949 = vadd.f32 0.0, %v10948
      %v10950 = vand.u32 %v10710, 4294901760
      %v10951 = vsub.f32 %v10710, %v10950
      %v10952 = vand.u32 %v10951, 4294901760
      %v10953 = vsub.f32 %v10951, %v10952
      %v10954 = vand.u32 %v10953, 4294901760
      %10955 = vmatmul.f32.gmra.mxu0 %v10954
      %v10956 = vpop.f32.mrf.mxu0
      %v10957 = vadd.f32 0.0, %v10956
      %v10958 = vand.u32 %v10713, 4294901760
      %v10959 = vsub.f32 %v10713, %v10958
      %v10960 = vand.u32 %v10959, 4294901760
      %v10961 = vsub.f32 %v10959, %v10960
      %v10962 = vand.u32 %v10961, 4294901760
      %10963 = vmatmul.f32.gmra.mxu0 %v10962
      %v10964 = vpop.f32.mrf.mxu0
      %v10965 = vadd.f32 0.0, %v10964
      %v10966 = vand.u32 %v10716, 4294901760
      %v10967 = vsub.f32 %v10716, %v10966
      %v10968 = vand.u32 %v10967, 4294901760
      %v10969 = vsub.f32 %v10967, %v10968
      %v10970 = vand.u32 %v10969, 4294901760
      %10971 = vmatmul.f32.gmra.mxu0 %v10970
      %v10972 = vpop.f32.mrf.mxu0
      %v10973 = vadd.f32 0.0, %v10972
      %v10974 = vand.u32 %v10719, 4294901760
      %v10975 = vsub.f32 %v10719, %v10974
      %v10976 = vand.u32 %v10975, 4294901760
      %v10977 = vsub.f32 %v10975, %v10976
      %v10978 = vand.u32 %v10977, 4294901760
      %10979 = vmatmul.f32.gmra.mxu0 %v10978
      %v10980 = vpop.f32.mrf.mxu0
      %v10981 = vadd.f32 0.0, %v10980
      %v10982 = vand.u32 %v10722, 4294901760
      %v10983 = vsub.f32 %v10722, %v10982
      %v10984 = vand.u32 %v10983, 4294901760
      %v10985 = vsub.f32 %v10983, %v10984
      %v10986 = vand.u32 %v10985, 4294901760
      %10987 = vmatmul.f32.gmra.mxu0 %v10986
      %v10988 = vpop.f32.mrf.mxu0
      %v10989 = vadd.f32 0.0, %v10988
      %v10990 = vand.u32 %v10725, 4294901760
      %v10991 = vsub.f32 %v10725, %v10990
      %v10992 = vand.u32 %v10991, 4294901760
      %v10993 = vsub.f32 %v10991, %v10992
      %v10994 = vand.u32 %v10993, 4294901760
      %10995 = vmatmul.f32.gmra.mxu0 %v10994
      %v10996 = vpop.f32.mrf.mxu0
      %v10997 = vadd.f32 0.0, %v10996
      %v10998 = vand.u32 %v10728, 4294901760
      %v10999 = vsub.f32 %v10728, %v10998
      %v11000 = vand.u32 %v10999, 4294901760
      %v11001 = vsub.f32 %v10999, %v11000
      %v11002 = vand.u32 %v11001, 4294901760
      %11003 = vmatmul.f32.gmra.mxu0 %v11002
      %v11004 = vpop.f32.mrf.mxu0
      %v11005 = vadd.f32 0.0, %v11004
      %11006 = vdwg.mxu0
      %11007 = vmatpush.msra.mxu0 0.0
      %11008 = vmatpush.msra.mxu0 0.0
      %11009 = vmatpush.msra.mxu0 0.0
      %11010 = vmatpush.msra.mxu0 0.0
      %11011 = vmatpush.msra.mxu0 0.0
      %11012 = vmatpush.msra.mxu0 0.0
      %11013 = vmatpush.msra.mxu0 0.0
      %11014 = vmatpush.msra.mxu0 0.0
      %11015 = vmatpush.msra.mxu0 0.0
      %11016 = vmatpush.msra.mxu0 0.0
      %11017 = vmatpush.msra.mxu0 0.0
      %11018 = vmatpush.msra.mxu0 0.0
      %v11019 = vand.u32 %v10633, 4294901760
      %v11020 = vsub.f32 %v10633, %v11019
      %v11021 = vand.u32 %v11020, 4294901760
      %v11022 = vsub.f32 %v11020, %v11021
      %v11023 = vand.u32 %v11022, 4294901760
      %11024 = vmatpush.msra.mxu0 %v11023
      %v11025 = vand.u32 %v10632, 4294901760
      %v11026 = vsub.f32 %v10632, %v11025
      %v11027 = vand.u32 %v11026, 4294901760
      %v11028 = vsub.f32 %v11026, %v11027
      %v11029 = vand.u32 %v11028, 4294901760
      %11030 = vmatpush.msra.mxu0 %v11029
      %v11031 = vand.u32 %v10631, 4294901760
      %v11032 = vsub.f32 %v10631, %v11031
      %v11033 = vand.u32 %v11032, 4294901760
      %v11034 = vsub.f32 %v11032, %v11033
      %v11035 = vand.u32 %v11034, 4294901760
      %11036 = vmatpush.msra.mxu0 %v11035
      %v11037 = vand.u32 %v10630, 4294901760
      %v11038 = vsub.f32 %v10630, %v11037
      %v11039 = vand.u32 %v11038, 4294901760
      %v11040 = vsub.f32 %v11038, %v11039
      %v11041 = vand.u32 %v11040, 4294901760
      %11042 = vmatpush.msra.mxu0 %v11041
      %v11043 = vand.u32 %v10635, 4294901760
      %11044 = vmatmul.f32.gmra.mxu0 %v11043
      %v11045 = vpop.f32.mrf.mxu0
      %v11046 = vadd.f32 %v10757, %v11045
      %v11047 = vand.u32 %v10638, 4294901760
      %11048 = vmatmul.f32.gmra.mxu0 %v11047
      %v11049 = vpop.f32.mrf.mxu0
      %v11050 = vadd.f32 %v10765, %v11049
      %v11051 = vand.u32 %v10641, 4294901760
      %11052 = vmatmul.f32.gmra.mxu0 %v11051
      %v11053 = vpop.f32.mrf.mxu0
      %v11054 = vadd.f32 %v10773, %v11053
      %v11055 = vand.u32 %v10644, 4294901760
      %11056 = vmatmul.f32.gmra.mxu0 %v11055
      %v11057 = vpop.f32.mrf.mxu0
      %v11058 = vadd.f32 %v10781, %v11057
      %v11059 = vand.u32 %v10647, 4294901760
      %11060 = vmatmul.f32.gmra.mxu0 %v11059
      %v11061 = vpop.f32.mrf.mxu0
      %v11062 = vadd.f32 %v10789, %v11061
      %v11063 = vand.u32 %v10650, 4294901760
      %11064 = vmatmul.f32.gmra.mxu0 %v11063
      %v11065 = vpop.f32.mrf.mxu0
      %v11066 = vadd.f32 %v10797, %v11065
      %v11067 = vand.u32 %v10653, 4294901760
      %11068 = vmatmul.f32.gmra.mxu0 %v11067
      %v11069 = vpop.f32.mrf.mxu0
      %v11070 = vadd.f32 %v10805, %v11069
      %v11071 = vand.u32 %v10656, 4294901760
      %11072 = vmatmul.f32.gmra.mxu0 %v11071
      %v11073 = vpop.f32.mrf.mxu0
      %v11074 = vadd.f32 %v10813, %v11073
      %v11075 = vand.u32 %v10659, 4294901760
      %11076 = vmatmul.f32.gmra.mxu0 %v11075
      %v11077 = vpop.f32.mrf.mxu0
      %v11078 = vadd.f32 %v10821, %v11077
      %v11079 = vand.u32 %v10662, 4294901760
      %11080 = vmatmul.f32.gmra.mxu0 %v11079
      %v11081 = vpop.f32.mrf.mxu0
      %v11082 = vadd.f32 %v10829, %v11081
      %v11083 = vand.u32 %v10665, 4294901760
      %11084 = vmatmul.f32.gmra.mxu0 %v11083
      %v11085 = vpop.f32.mrf.mxu0
      %v11086 = vadd.f32 %v10837, %v11085
      %v11087 = vand.u32 %v10668, 4294901760
      %11088 = vmatmul.f32.gmra.mxu0 %v11087
      %v11089 = vpop.f32.mrf.mxu0
      %v11090 = vadd.f32 %v10845, %v11089
      %v11091 = vand.u32 %v10671, 4294901760
      %11092 = vmatmul.f32.gmra.mxu0 %v11091
      %v11093 = vpop.f32.mrf.mxu0
      %v11094 = vadd.f32 %v10853, %v11093
      %v11095 = vand.u32 %v10674, 4294901760
      %11096 = vmatmul.f32.gmra.mxu0 %v11095
      %v11097 = vpop.f32.mrf.mxu0
      %v11098 = vadd.f32 %v10861, %v11097
      %v11099 = vand.u32 %v10677, 4294901760
      %11100 = vmatmul.f32.gmra.mxu0 %v11099
      %v11101 = vpop.f32.mrf.mxu0
      %v11102 = vadd.f32 %v10869, %v11101
      %v11103 = vand.u32 %v10680, 4294901760
      %11104 = vmatmul.f32.gmra.mxu0 %v11103
      %v11105 = vpop.f32.mrf.mxu0
      %v11106 = vadd.f32 %v10877, %v11105
      %v11107 = vand.u32 %v10683, 4294901760
      %11108 = vmatmul.f32.gmra.mxu0 %v11107
      %v11109 = vpop.f32.mrf.mxu0
      %v11110 = vadd.f32 %v10885, %v11109
      %v11111 = vand.u32 %v10686, 4294901760
      %11112 = vmatmul.f32.gmra.mxu0 %v11111
      %v11113 = vpop.f32.mrf.mxu0
      %v11114 = vadd.f32 %v10893, %v11113
      %v11115 = vand.u32 %v10689, 4294901760
      %11116 = vmatmul.f32.gmra.mxu0 %v11115
      %v11117 = vpop.f32.mrf.mxu0
      %v11118 = vadd.f32 %v10901, %v11117
      %v11119 = vand.u32 %v10692, 4294901760
      %11120 = vmatmul.f32.gmra.mxu0 %v11119
      %v11121 = vpop.f32.mrf.mxu0
      %v11122 = vadd.f32 %v10909, %v11121
      %v11123 = vand.u32 %v10695, 4294901760
      %11124 = vmatmul.f32.gmra.mxu0 %v11123
      %v11125 = vpop.f32.mrf.mxu0
      %v11126 = vadd.f32 %v10917, %v11125
      %v11127 = vand.u32 %v10698, 4294901760
      %11128 = vmatmul.f32.gmra.mxu0 %v11127
      %v11129 = vpop.f32.mrf.mxu0
      %v11130 = vadd.f32 %v10925, %v11129
      %v11131 = vand.u32 %v10701, 4294901760
      %11132 = vmatmul.f32.gmra.mxu0 %v11131
      %v11133 = vpop.f32.mrf.mxu0
      %v11134 = vadd.f32 %v10933, %v11133
      %v11135 = vand.u32 %v10704, 4294901760
      %11136 = vmatmul.f32.gmra.mxu0 %v11135
      %v11137 = vpop.f32.mrf.mxu0
      %v11138 = vadd.f32 %v10941, %v11137
      %v11139 = vand.u32 %v10707, 4294901760
      %11140 = vmatmul.f32.gmra.mxu0 %v11139
      %v11141 = vpop.f32.mrf.mxu0
      %v11142 = vadd.f32 %v10949, %v11141
      %v11143 = vand.u32 %v10710, 4294901760
      %11144 = vmatmul.f32.gmra.mxu0 %v11143
      %v11145 = vpop.f32.mrf.mxu0
      %v11146 = vadd.f32 %v10957, %v11145
      %v11147 = vand.u32 %v10713, 4294901760
      %11148 = vmatmul.f32.gmra.mxu0 %v11147
      %v11149 = vpop.f32.mrf.mxu0
      %v11150 = vadd.f32 %v10965, %v11149
      %v11151 = vand.u32 %v10716, 4294901760
      %11152 = vmatmul.f32.gmra.mxu0 %v11151
      %v11153 = vpop.f32.mrf.mxu0
      %v11154 = vadd.f32 %v10973, %v11153
      %v11155 = vand.u32 %v10719, 4294901760
      %11156 = vmatmul.f32.gmra.mxu0 %v11155
      %v11157 = vpop.f32.mrf.mxu0
      %v11158 = vadd.f32 %v10981, %v11157
      %v11159 = vand.u32 %v10722, 4294901760
      %11160 = vmatmul.f32.gmra.mxu0 %v11159
      %v11161 = vpop.f32.mrf.mxu0
      %v11162 = vadd.f32 %v10989, %v11161
      %v11163 = vand.u32 %v10725, 4294901760
      %11164 = vmatmul.f32.gmra.mxu0 %v11163
      %v11165 = vpop.f32.mrf.mxu0
      %v11166 = vadd.f32 %v10997, %v11165
      %v11167 = vand.u32 %v10728, 4294901760
      %11168 = vmatmul.f32.gmra.mxu0 %v11167
      %v11169 = vpop.f32.mrf.mxu0
      %v11170 = vadd.f32 %v11005, %v11169
      %11171 = vdwg.mxu0
      %11172 = vmatpush.msra.mxu0 0.0
      %11173 = vmatpush.msra.mxu0 0.0
      %11174 = vmatpush.msra.mxu0 0.0
      %11175 = vmatpush.msra.mxu0 0.0
      %11176 = vmatpush.msra.mxu0 0.0
      %11177 = vmatpush.msra.mxu0 0.0
      %11178 = vmatpush.msra.mxu0 0.0
      %11179 = vmatpush.msra.mxu0 0.0
      %11180 = vmatpush.msra.mxu0 0.0
      %11181 = vmatpush.msra.mxu0 0.0
      %11182 = vmatpush.msra.mxu0 0.0
      %11183 = vmatpush.msra.mxu0 0.0
      %v11184 = vand.u32 %v10633, 4294901760
      %v11185 = vsub.f32 %v10633, %v11184
      %11186 = vmatpush.msra.mxu0 %v11185
      %v11187 = vand.u32 %v10632, 4294901760
      %v11188 = vsub.f32 %v10632, %v11187
      %11189 = vmatpush.msra.mxu0 %v11188
      %v11190 = vand.u32 %v10631, 4294901760
      %v11191 = vsub.f32 %v10631, %v11190
      %11192 = vmatpush.msra.mxu0 %v11191
      %v11193 = vand.u32 %v10630, 4294901760
      %v11194 = vsub.f32 %v10630, %v11193
      %11195 = vmatpush.msra.mxu0 %v11194
      %v11196 = vand.u32 %v10635, 4294901760
      %v11197 = vsub.f32 %v10635, %v11196
      %11198 = vmatmul.f32.gmra.mxu0 %v11197
      %v11199 = vpop.f32.mrf.mxu0
      %v11200 = vadd.f32 %v11046, %v11199
      %v11201 = vand.u32 %v10638, 4294901760
      %v11202 = vsub.f32 %v10638, %v11201
      %11203 = vmatmul.f32.gmra.mxu0 %v11202
      %v11204 = vpop.f32.mrf.mxu0
      %v11205 = vadd.f32 %v11050, %v11204
      %v11206 = vand.u32 %v10641, 4294901760
      %v11207 = vsub.f32 %v10641, %v11206
      %11208 = vmatmul.f32.gmra.mxu0 %v11207
      %v11209 = vpop.f32.mrf.mxu0
      %v11210 = vadd.f32 %v11054, %v11209
      %v11211 = vand.u32 %v10644, 4294901760
      %v11212 = vsub.f32 %v10644, %v11211
      %11213 = vmatmul.f32.gmra.mxu0 %v11212
      %v11214 = vpop.f32.mrf.mxu0
      %v11215 = vadd.f32 %v11058, %v11214
      %v11216 = vand.u32 %v10647, 4294901760
      %v11217 = vsub.f32 %v10647, %v11216
      %11218 = vmatmul.f32.gmra.mxu0 %v11217
      %v11219 = vpop.f32.mrf.mxu0
      %v11220 = vadd.f32 %v11062, %v11219
      %v11221 = vand.u32 %v10650, 4294901760
      %v11222 = vsub.f32 %v10650, %v11221
      %11223 = vmatmul.f32.gmra.mxu0 %v11222
      %v11224 = vpop.f32.mrf.mxu0
      %v11225 = vadd.f32 %v11066, %v11224
      %v11226 = vand.u32 %v10653, 4294901760
      %v11227 = vsub.f32 %v10653, %v11226
      %11228 = vmatmul.f32.gmra.mxu0 %v11227
      %v11229 = vpop.f32.mrf.mxu0
      %v11230 = vadd.f32 %v11070, %v11229
      %v11231 = vand.u32 %v10656, 4294901760
      %v11232 = vsub.f32 %v10656, %v11231
      %11233 = vmatmul.f32.gmra.mxu0 %v11232
      %v11234 = vpop.f32.mrf.mxu0
      %v11235 = vadd.f32 %v11074, %v11234
      %v11236 = vand.u32 %v10659, 4294901760
      %v11237 = vsub.f32 %v10659, %v11236
      %11238 = vmatmul.f32.gmra.mxu0 %v11237
      %v11239 = vpop.f32.mrf.mxu0
      %v11240 = vadd.f32 %v11078, %v11239
      %v11241 = vand.u32 %v10662, 4294901760
      %v11242 = vsub.f32 %v10662, %v11241
      %11243 = vmatmul.f32.gmra.mxu0 %v11242
      %v11244 = vpop.f32.mrf.mxu0
      %v11245 = vadd.f32 %v11082, %v11244
      %v11246 = vand.u32 %v10665, 4294901760
      %v11247 = vsub.f32 %v10665, %v11246
      %11248 = vmatmul.f32.gmra.mxu0 %v11247
      %v11249 = vpop.f32.mrf.mxu0
      %v11250 = vadd.f32 %v11086, %v11249
      %v11251 = vand.u32 %v10668, 4294901760
      %v11252 = vsub.f32 %v10668, %v11251
      %11253 = vmatmul.f32.gmra.mxu0 %v11252
      %v11254 = vpop.f32.mrf.mxu0
      %v11255 = vadd.f32 %v11090, %v11254
      %v11256 = vand.u32 %v10671, 4294901760
      %v11257 = vsub.f32 %v10671, %v11256
      %11258 = vmatmul.f32.gmra.mxu0 %v11257
      %v11259 = vpop.f32.mrf.mxu0
      %v11260 = vadd.f32 %v11094, %v11259
      %v11261 = vand.u32 %v10674, 4294901760
      %v11262 = vsub.f32 %v10674, %v11261
      %11263 = vmatmul.f32.gmra.mxu0 %v11262
      %v11264 = vpop.f32.mrf.mxu0
      %v11265 = vadd.f32 %v11098, %v11264
      %v11266 = vand.u32 %v10677, 4294901760
      %v11267 = vsub.f32 %v10677, %v11266
      %11268 = vmatmul.f32.gmra.mxu0 %v11267
      %v11269 = vpop.f32.mrf.mxu0
      %v11270 = vadd.f32 %v11102, %v11269
      %v11271 = vand.u32 %v10680, 4294901760
      %v11272 = vsub.f32 %v10680, %v11271
      %11273 = vmatmul.f32.gmra.mxu0 %v11272
      %v11274 = vpop.f32.mrf.mxu0
      %v11275 = vadd.f32 %v11106, %v11274
      %v11276 = vand.u32 %v10683, 4294901760
      %v11277 = vsub.f32 %v10683, %v11276
      %11278 = vmatmul.f32.gmra.mxu0 %v11277
      %v11279 = vpop.f32.mrf.mxu0
      %v11280 = vadd.f32 %v11110, %v11279
      %v11281 = vand.u32 %v10686, 4294901760
      %v11282 = vsub.f32 %v10686, %v11281
      %11283 = vmatmul.f32.gmra.mxu0 %v11282
      %v11284 = vpop.f32.mrf.mxu0
      %v11285 = vadd.f32 %v11114, %v11284
      %v11286 = vand.u32 %v10689, 4294901760
      %v11287 = vsub.f32 %v10689, %v11286
      %11288 = vmatmul.f32.gmra.mxu0 %v11287
      %v11289 = vpop.f32.mrf.mxu0
      %v11290 = vadd.f32 %v11118, %v11289
      %v11291 = vand.u32 %v10692, 4294901760
      %v11292 = vsub.f32 %v10692, %v11291
      %11293 = vmatmul.f32.gmra.mxu0 %v11292
      %v11294 = vpop.f32.mrf.mxu0
      %v11295 = vadd.f32 %v11122, %v11294
      %v11296 = vand.u32 %v10695, 4294901760
      %v11297 = vsub.f32 %v10695, %v11296
      %11298 = vmatmul.f32.gmra.mxu0 %v11297
      %v11299 = vpop.f32.mrf.mxu0
      %v11300 = vadd.f32 %v11126, %v11299
      %v11301 = vand.u32 %v10698, 4294901760
      %v11302 = vsub.f32 %v10698, %v11301
      %11303 = vmatmul.f32.gmra.mxu0 %v11302
      %v11304 = vpop.f32.mrf.mxu0
      %v11305 = vadd.f32 %v11130, %v11304
      %v11306 = vand.u32 %v10701, 4294901760
      %v11307 = vsub.f32 %v10701, %v11306
      %11308 = vmatmul.f32.gmra.mxu0 %v11307
      %v11309 = vpop.f32.mrf.mxu0
      %v11310 = vadd.f32 %v11134, %v11309
      %v11311 = vand.u32 %v10704, 4294901760
      %v11312 = vsub.f32 %v10704, %v11311
      %11313 = vmatmul.f32.gmra.mxu0 %v11312
      %v11314 = vpop.f32.mrf.mxu0
      %v11315 = vadd.f32 %v11138, %v11314
      %v11316 = vand.u32 %v10707, 4294901760
      %v11317 = vsub.f32 %v10707, %v11316
      %11318 = vmatmul.f32.gmra.mxu0 %v11317
      %v11319 = vpop.f32.mrf.mxu0
      %v11320 = vadd.f32 %v11142, %v11319
      %v11321 = vand.u32 %v10710, 4294901760
      %v11322 = vsub.f32 %v10710, %v11321
      %11323 = vmatmul.f32.gmra.mxu0 %v11322
      %v11324 = vpop.f32.mrf.mxu0
      %v11325 = vadd.f32 %v11146, %v11324
      %v11326 = vand.u32 %v10713, 4294901760
      %v11327 = vsub.f32 %v10713, %v11326
      %11328 = vmatmul.f32.gmra.mxu0 %v11327
      %v11329 = vpop.f32.mrf.mxu0
      %v11330 = vadd.f32 %v11150, %v11329
      %v11331 = vand.u32 %v10716, 4294901760
      %v11332 = vsub.f32 %v10716, %v11331
      %11333 = vmatmul.f32.gmra.mxu0 %v11332
      %v11334 = vpop.f32.mrf.mxu0
      %v11335 = vadd.f32 %v11154, %v11334
      %v11336 = vand.u32 %v10719, 4294901760
      %v11337 = vsub.f32 %v10719, %v11336
      %11338 = vmatmul.f32.gmra.mxu0 %v11337
      %v11339 = vpop.f32.mrf.mxu0
      %v11340 = vadd.f32 %v11158, %v11339
      %v11341 = vand.u32 %v10722, 4294901760
      %v11342 = vsub.f32 %v10722, %v11341
      %11343 = vmatmul.f32.gmra.mxu0 %v11342
      %v11344 = vpop.f32.mrf.mxu0
      %v11345 = vadd.f32 %v11162, %v11344
      %v11346 = vand.u32 %v10725, 4294901760
      %v11347 = vsub.f32 %v10725, %v11346
      %11348 = vmatmul.f32.gmra.mxu0 %v11347
      %v11349 = vpop.f32.mrf.mxu0
      %v11350 = vadd.f32 %v11166, %v11349
      %v11351 = vand.u32 %v10728, 4294901760
      %v11352 = vsub.f32 %v10728, %v11351
      %11353 = vmatmul.f32.gmra.mxu0 %v11352
      %v11354 = vpop.f32.mrf.mxu0
      %v11355 = vadd.f32 %v11170, %v11354
      %11356 = vdwg.mxu0
      %11357 = vmatpush.msra.mxu0 0.0
      %11358 = vmatpush.msra.mxu0 0.0
      %11359 = vmatpush.msra.mxu0 0.0
      %11360 = vmatpush.msra.mxu0 0.0
      %11361 = vmatpush.msra.mxu0 0.0
      %11362 = vmatpush.msra.mxu0 0.0
      %11363 = vmatpush.msra.mxu0 0.0
      %11364 = vmatpush.msra.mxu0 0.0
      %11365 = vmatpush.msra.mxu0 0.0
      %11366 = vmatpush.msra.mxu0 0.0
      %11367 = vmatpush.msra.mxu0 0.0
      %11368 = vmatpush.msra.mxu0 0.0
      %v11369 = vand.u32 %v10633, 4294901760
      %11370 = vmatpush.msra.mxu0 %v11369
      %v11371 = vand.u32 %v10632, 4294901760
      %11372 = vmatpush.msra.mxu0 %v11371
      %v11373 = vand.u32 %v10631, 4294901760
      %11374 = vmatpush.msra.mxu0 %v11373
      %v11375 = vand.u32 %v10630, 4294901760
      %11376 = vmatpush.msra.mxu0 %v11375
      %v11377 = vand.u32 %v10635, 4294901760
      %v11378 = vsub.f32 %v10635, %v11377
      %v11379 = vand.u32 %v11378, 4294901760
      %11380 = vmatmul.f32.gmra.mxu0 %v11379
      %v11381 = vpop.f32.mrf.mxu0
      %v11382 = vadd.f32 %v11200, %v11381
      %v11383 = vand.u32 %v10638, 4294901760
      %v11384 = vsub.f32 %v10638, %v11383
      %v11385 = vand.u32 %v11384, 4294901760
      %11386 = vmatmul.f32.gmra.mxu0 %v11385
      %v11387 = vpop.f32.mrf.mxu0
      %v11388 = vadd.f32 %v11205, %v11387
      %v11389 = vand.u32 %v10641, 4294901760
      %v11390 = vsub.f32 %v10641, %v11389
      %v11391 = vand.u32 %v11390, 4294901760
      %11392 = vmatmul.f32.gmra.mxu0 %v11391
      %v11393 = vpop.f32.mrf.mxu0
      %v11394 = vadd.f32 %v11210, %v11393
      %v11395 = vand.u32 %v10644, 4294901760
      %v11396 = vsub.f32 %v10644, %v11395
      %v11397 = vand.u32 %v11396, 4294901760
      %11398 = vmatmul.f32.gmra.mxu0 %v11397
      %v11399 = vpop.f32.mrf.mxu0
      %v11400 = vadd.f32 %v11215, %v11399
      %v11401 = vand.u32 %v10647, 4294901760
      %v11402 = vsub.f32 %v10647, %v11401
      %v11403 = vand.u32 %v11402, 4294901760
      %11404 = vmatmul.f32.gmra.mxu0 %v11403
      %v11405 = vpop.f32.mrf.mxu0
      %v11406 = vadd.f32 %v11220, %v11405
      %v11407 = vand.u32 %v10650, 4294901760
      %v11408 = vsub.f32 %v10650, %v11407
      %v11409 = vand.u32 %v11408, 4294901760
      %11410 = vmatmul.f32.gmra.mxu0 %v11409
      %v11411 = vpop.f32.mrf.mxu0
      %v11412 = vadd.f32 %v11225, %v11411
      %v11413 = vand.u32 %v10653, 4294901760
      %v11414 = vsub.f32 %v10653, %v11413
      %v11415 = vand.u32 %v11414, 4294901760
      %11416 = vmatmul.f32.gmra.mxu0 %v11415
      %v11417 = vpop.f32.mrf.mxu0
      %v11418 = vadd.f32 %v11230, %v11417
      %v11419 = vand.u32 %v10656, 4294901760
      %v11420 = vsub.f32 %v10656, %v11419
      %v11421 = vand.u32 %v11420, 4294901760
      %11422 = vmatmul.f32.gmra.mxu0 %v11421
      %v11423 = vpop.f32.mrf.mxu0
      %v11424 = vadd.f32 %v11235, %v11423
      %v11425 = vand.u32 %v10659, 4294901760
      %v11426 = vsub.f32 %v10659, %v11425
      %v11427 = vand.u32 %v11426, 4294901760
      %11428 = vmatmul.f32.gmra.mxu0 %v11427
      %v11429 = vpop.f32.mrf.mxu0
      %v11430 = vadd.f32 %v11240, %v11429
      %v11431 = vand.u32 %v10662, 4294901760
      %v11432 = vsub.f32 %v10662, %v11431
      %v11433 = vand.u32 %v11432, 4294901760
      %11434 = vmatmul.f32.gmra.mxu0 %v11433
      %v11435 = vpop.f32.mrf.mxu0
      %v11436 = vadd.f32 %v11245, %v11435
      %v11437 = vand.u32 %v10665, 4294901760
      %v11438 = vsub.f32 %v10665, %v11437
      %v11439 = vand.u32 %v11438, 4294901760
      %11440 = vmatmul.f32.gmra.mxu0 %v11439
      %v11441 = vpop.f32.mrf.mxu0
      %v11442 = vadd.f32 %v11250, %v11441
      %v11443 = vand.u32 %v10668, 4294901760
      %v11444 = vsub.f32 %v10668, %v11443
      %v11445 = vand.u32 %v11444, 4294901760
      %11446 = vmatmul.f32.gmra.mxu0 %v11445
      %v11447 = vpop.f32.mrf.mxu0
      %v11448 = vadd.f32 %v11255, %v11447
      %v11449 = vand.u32 %v10671, 4294901760
      %v11450 = vsub.f32 %v10671, %v11449
      %v11451 = vand.u32 %v11450, 4294901760
      %11452 = vmatmul.f32.gmra.mxu0 %v11451
      %v11453 = vpop.f32.mrf.mxu0
      %v11454 = vadd.f32 %v11260, %v11453
      %v11455 = vand.u32 %v10674, 4294901760
      %v11456 = vsub.f32 %v10674, %v11455
      %v11457 = vand.u32 %v11456, 4294901760
      %11458 = vmatmul.f32.gmra.mxu0 %v11457
      %v11459 = vpop.f32.mrf.mxu0
      %v11460 = vadd.f32 %v11265, %v11459
      %v11461 = vand.u32 %v10677, 4294901760
      %v11462 = vsub.f32 %v10677, %v11461
      %v11463 = vand.u32 %v11462, 4294901760
      %11464 = vmatmul.f32.gmra.mxu0 %v11463
      %v11465 = vpop.f32.mrf.mxu0
      %v11466 = vadd.f32 %v11270, %v11465
      %v11467 = vand.u32 %v10680, 4294901760
      %v11468 = vsub.f32 %v10680, %v11467
      %v11469 = vand.u32 %v11468, 4294901760
      %11470 = vmatmul.f32.gmra.mxu0 %v11469
      %v11471 = vpop.f32.mrf.mxu0
      %v11472 = vadd.f32 %v11275, %v11471
      %v11473 = vand.u32 %v10683, 4294901760
      %v11474 = vsub.f32 %v10683, %v11473
      %v11475 = vand.u32 %v11474, 4294901760
      %11476 = vmatmul.f32.gmra.mxu0 %v11475
      %v11477 = vpop.f32.mrf.mxu0
      %v11478 = vadd.f32 %v11280, %v11477
      %v11479 = vand.u32 %v10686, 4294901760
      %v11480 = vsub.f32 %v10686, %v11479
      %v11481 = vand.u32 %v11480, 4294901760
      %11482 = vmatmul.f32.gmra.mxu0 %v11481
      %v11483 = vpop.f32.mrf.mxu0
      %v11484 = vadd.f32 %v11285, %v11483
      %v11485 = vand.u32 %v10689, 4294901760
      %v11486 = vsub.f32 %v10689, %v11485
      %v11487 = vand.u32 %v11486, 4294901760
      %11488 = vmatmul.f32.gmra.mxu0 %v11487
      %v11489 = vpop.f32.mrf.mxu0
      %v11490 = vadd.f32 %v11290, %v11489
      %v11491 = vand.u32 %v10692, 4294901760
      %v11492 = vsub.f32 %v10692, %v11491
      %v11493 = vand.u32 %v11492, 4294901760
      %11494 = vmatmul.f32.gmra.mxu0 %v11493
      %v11495 = vpop.f32.mrf.mxu0
      %v11496 = vadd.f32 %v11295, %v11495
      %v11497 = vand.u32 %v10695, 4294901760
      %v11498 = vsub.f32 %v10695, %v11497
      %v11499 = vand.u32 %v11498, 4294901760
      %11500 = vmatmul.f32.gmra.mxu0 %v11499
      %v11501 = vpop.f32.mrf.mxu0
      %v11502 = vadd.f32 %v11300, %v11501
      %v11503 = vand.u32 %v10698, 4294901760
      %v11504 = vsub.f32 %v10698, %v11503
      %v11505 = vand.u32 %v11504, 4294901760
      %11506 = vmatmul.f32.gmra.mxu0 %v11505
      %v11507 = vpop.f32.mrf.mxu0
      %v11508 = vadd.f32 %v11305, %v11507
      %v11509 = vand.u32 %v10701, 4294901760
      %v11510 = vsub.f32 %v10701, %v11509
      %v11511 = vand.u32 %v11510, 4294901760
      %11512 = vmatmul.f32.gmra.mxu0 %v11511
      %v11513 = vpop.f32.mrf.mxu0
      %v11514 = vadd.f32 %v11310, %v11513
      %v11515 = vand.u32 %v10704, 4294901760
      %v11516 = vsub.f32 %v10704, %v11515
      %v11517 = vand.u32 %v11516, 4294901760
      %11518 = vmatmul.f32.gmra.mxu0 %v11517
      %v11519 = vpop.f32.mrf.mxu0
      %v11520 = vadd.f32 %v11315, %v11519
      %v11521 = vand.u32 %v10707, 4294901760
      %v11522 = vsub.f32 %v10707, %v11521
      %v11523 = vand.u32 %v11522, 4294901760
      %11524 = vmatmul.f32.gmra.mxu0 %v11523
      %v11525 = vpop.f32.mrf.mxu0
      %v11526 = vadd.f32 %v11320, %v11525
      %v11527 = vand.u32 %v10710, 4294901760
      %v11528 = vsub.f32 %v10710, %v11527
      %v11529 = vand.u32 %v11528, 4294901760
      %11530 = vmatmul.f32.gmra.mxu0 %v11529
      %v11531 = vpop.f32.mrf.mxu0
      %v11532 = vadd.f32 %v11325, %v11531
      %v11533 = vand.u32 %v10713, 4294901760
      %v11534 = vsub.f32 %v10713, %v11533
      %v11535 = vand.u32 %v11534, 4294901760
      %11536 = vmatmul.f32.gmra.mxu0 %v11535
      %v11537 = vpop.f32.mrf.mxu0
      %v11538 = vadd.f32 %v11330, %v11537
      %v11539 = vand.u32 %v10716, 4294901760
      %v11540 = vsub.f32 %v10716, %v11539
      %v11541 = vand.u32 %v11540, 4294901760
      %11542 = vmatmul.f32.gmra.mxu0 %v11541
      %v11543 = vpop.f32.mrf.mxu0
      %v11544 = vadd.f32 %v11335, %v11543
      %v11545 = vand.u32 %v10719, 4294901760
      %v11546 = vsub.f32 %v10719, %v11545
      %v11547 = vand.u32 %v11546, 4294901760
      %11548 = vmatmul.f32.gmra.mxu0 %v11547
      %v11549 = vpop.f32.mrf.mxu0
      %v11550 = vadd.f32 %v11340, %v11549
      %v11551 = vand.u32 %v10722, 4294901760
      %v11552 = vsub.f32 %v10722, %v11551
      %v11553 = vand.u32 %v11552, 4294901760
      %11554 = vmatmul.f32.gmra.mxu0 %v11553
      %v11555 = vpop.f32.mrf.mxu0
      %v11556 = vadd.f32 %v11345, %v11555
      %v11557 = vand.u32 %v10725, 4294901760
      %v11558 = vsub.f32 %v10725, %v11557
      %v11559 = vand.u32 %v11558, 4294901760
      %11560 = vmatmul.f32.gmra.mxu0 %v11559
      %v11561 = vpop.f32.mrf.mxu0
      %v11562 = vadd.f32 %v11350, %v11561
      %v11563 = vand.u32 %v10728, 4294901760
      %v11564 = vsub.f32 %v10728, %v11563
      %v11565 = vand.u32 %v11564, 4294901760
      %11566 = vmatmul.f32.gmra.mxu0 %v11565
      %v11567 = vpop.f32.mrf.mxu0
      %v11568 = vadd.f32 %v11355, %v11567
      %11569 = vdwg.mxu0
      %11570 = vmatpush.msra.mxu0 0.0
      %11571 = vmatpush.msra.mxu0 0.0
      %11572 = vmatpush.msra.mxu0 0.0
      %11573 = vmatpush.msra.mxu0 0.0
      %11574 = vmatpush.msra.mxu0 0.0
      %11575 = vmatpush.msra.mxu0 0.0
      %11576 = vmatpush.msra.mxu0 0.0
      %11577 = vmatpush.msra.mxu0 0.0
      %11578 = vmatpush.msra.mxu0 0.0
      %11579 = vmatpush.msra.mxu0 0.0
      %11580 = vmatpush.msra.mxu0 0.0
      %11581 = vmatpush.msra.mxu0 0.0
      %v11582 = vand.u32 %v10633, 4294901760
      %v11583 = vsub.f32 %v10633, %v11582
      %v11584 = vand.u32 %v11583, 4294901760
      %11585 = vmatpush.msra.mxu0 %v11584
      %v11586 = vand.u32 %v10632, 4294901760
      %v11587 = vsub.f32 %v10632, %v11586
      %v11588 = vand.u32 %v11587, 4294901760
      %11589 = vmatpush.msra.mxu0 %v11588
      %v11590 = vand.u32 %v10631, 4294901760
      %v11591 = vsub.f32 %v10631, %v11590
      %v11592 = vand.u32 %v11591, 4294901760
      %11593 = vmatpush.msra.mxu0 %v11592
      %v11594 = vand.u32 %v10630, 4294901760
      %v11595 = vsub.f32 %v10630, %v11594
      %v11596 = vand.u32 %v11595, 4294901760
      %11597 = vmatpush.msra.mxu0 %v11596
      %v11598 = vand.u32 %v10635, 4294901760
      %11599 = vmatmul.f32.gmra.mxu0 %v11598
      %v11600 = vpop.f32.mrf.mxu0
      %v11601 = vadd.f32 %v11382, %v11600
      %v11602 = vand.u32 %v10638, 4294901760
      %11603 = vmatmul.f32.gmra.mxu0 %v11602
      %v11604 = vpop.f32.mrf.mxu0
      %v11605 = vadd.f32 %v11388, %v11604
      %v11606 = vand.u32 %v10641, 4294901760
      %11607 = vmatmul.f32.gmra.mxu0 %v11606
      %v11608 = vpop.f32.mrf.mxu0
      %v11609 = vadd.f32 %v11394, %v11608
      %v11610 = vand.u32 %v10644, 4294901760
      %11611 = vmatmul.f32.gmra.mxu0 %v11610
      %v11612 = vpop.f32.mrf.mxu0
      %v11613 = vadd.f32 %v11400, %v11612
      %v11614 = vand.u32 %v10647, 4294901760
      %11615 = vmatmul.f32.gmra.mxu0 %v11614
      %v11616 = vpop.f32.mrf.mxu0
      %v11617 = vadd.f32 %v11406, %v11616
      %v11618 = vand.u32 %v10650, 4294901760
      %11619 = vmatmul.f32.gmra.mxu0 %v11618
      %v11620 = vpop.f32.mrf.mxu0
      %v11621 = vadd.f32 %v11412, %v11620
      %v11622 = vand.u32 %v10653, 4294901760
      %11623 = vmatmul.f32.gmra.mxu0 %v11622
      %v11624 = vpop.f32.mrf.mxu0
      %v11625 = vadd.f32 %v11418, %v11624
      %v11626 = vand.u32 %v10656, 4294901760
      %11627 = vmatmul.f32.gmra.mxu0 %v11626
      %v11628 = vpop.f32.mrf.mxu0
      %v11629 = vadd.f32 %v11424, %v11628
      %v11630 = vand.u32 %v10659, 4294901760
      %11631 = vmatmul.f32.gmra.mxu0 %v11630
      %v11632 = vpop.f32.mrf.mxu0
      %v11633 = vadd.f32 %v11430, %v11632
      %v11634 = vand.u32 %v10662, 4294901760
      %11635 = vmatmul.f32.gmra.mxu0 %v11634
      %v11636 = vpop.f32.mrf.mxu0
      %v11637 = vadd.f32 %v11436, %v11636
      %v11638 = vand.u32 %v10665, 4294901760
      %11639 = vmatmul.f32.gmra.mxu0 %v11638
      %v11640 = vpop.f32.mrf.mxu0
      %v11641 = vadd.f32 %v11442, %v11640
      %v11642 = vand.u32 %v10668, 4294901760
      %11643 = vmatmul.f32.gmra.mxu0 %v11642
      %v11644 = vpop.f32.mrf.mxu0
      %v11645 = vadd.f32 %v11448, %v11644
      %v11646 = vand.u32 %v10671, 4294901760
      %11647 = vmatmul.f32.gmra.mxu0 %v11646
      %v11648 = vpop.f32.mrf.mxu0
      %v11649 = vadd.f32 %v11454, %v11648
      %v11650 = vand.u32 %v10674, 4294901760
      %11651 = vmatmul.f32.gmra.mxu0 %v11650
      %v11652 = vpop.f32.mrf.mxu0
      %v11653 = vadd.f32 %v11460, %v11652
      %v11654 = vand.u32 %v10677, 4294901760
      %11655 = vmatmul.f32.gmra.mxu0 %v11654
      %v11656 = vpop.f32.mrf.mxu0
      %v11657 = vadd.f32 %v11466, %v11656
      %v11658 = vand.u32 %v10680, 4294901760
      %11659 = vmatmul.f32.gmra.mxu0 %v11658
      %v11660 = vpop.f32.mrf.mxu0
      %v11661 = vadd.f32 %v11472, %v11660
      %v11662 = vand.u32 %v10683, 4294901760
      %11663 = vmatmul.f32.gmra.mxu0 %v11662
      %v11664 = vpop.f32.mrf.mxu0
      %v11665 = vadd.f32 %v11478, %v11664
      %v11666 = vand.u32 %v10686, 4294901760
      %11667 = vmatmul.f32.gmra.mxu0 %v11666
      %v11668 = vpop.f32.mrf.mxu0
      %v11669 = vadd.f32 %v11484, %v11668
      %v11670 = vand.u32 %v10689, 4294901760
      %11671 = vmatmul.f32.gmra.mxu0 %v11670
      %v11672 = vpop.f32.mrf.mxu0
      %v11673 = vadd.f32 %v11490, %v11672
      %v11674 = vand.u32 %v10692, 4294901760
      %11675 = vmatmul.f32.gmra.mxu0 %v11674
      %v11676 = vpop.f32.mrf.mxu0
      %v11677 = vadd.f32 %v11496, %v11676
      %v11678 = vand.u32 %v10695, 4294901760
      %11679 = vmatmul.f32.gmra.mxu0 %v11678
      %v11680 = vpop.f32.mrf.mxu0
      %v11681 = vadd.f32 %v11502, %v11680
      %v11682 = vand.u32 %v10698, 4294901760
      %11683 = vmatmul.f32.gmra.mxu0 %v11682
      %v11684 = vpop.f32.mrf.mxu0
      %v11685 = vadd.f32 %v11508, %v11684
      %v11686 = vand.u32 %v10701, 4294901760
      %11687 = vmatmul.f32.gmra.mxu0 %v11686
      %v11688 = vpop.f32.mrf.mxu0
      %v11689 = vadd.f32 %v11514, %v11688
      %v11690 = vand.u32 %v10704, 4294901760
      %11691 = vmatmul.f32.gmra.mxu0 %v11690
      %v11692 = vpop.f32.mrf.mxu0
      %v11693 = vadd.f32 %v11520, %v11692
      %v11694 = vand.u32 %v10707, 4294901760
      %11695 = vmatmul.f32.gmra.mxu0 %v11694
      %v11696 = vpop.f32.mrf.mxu0
      %v11697 = vadd.f32 %v11526, %v11696
      %v11698 = vand.u32 %v10710, 4294901760
      %11699 = vmatmul.f32.gmra.mxu0 %v11698
      %v11700 = vpop.f32.mrf.mxu0
      %v11701 = vadd.f32 %v11532, %v11700
      %v11702 = vand.u32 %v10713, 4294901760
      %11703 = vmatmul.f32.gmra.mxu0 %v11702
      %v11704 = vpop.f32.mrf.mxu0
      %v11705 = vadd.f32 %v11538, %v11704
      %v11706 = vand.u32 %v10716, 4294901760
      %11707 = vmatmul.f32.gmra.mxu0 %v11706
      %v11708 = vpop.f32.mrf.mxu0
      %v11709 = vadd.f32 %v11544, %v11708
      %v11710 = vand.u32 %v10719, 4294901760
      %11711 = vmatmul.f32.gmra.mxu0 %v11710
      %v11712 = vpop.f32.mrf.mxu0
      %v11713 = vadd.f32 %v11550, %v11712
      %v11714 = vand.u32 %v10722, 4294901760
      %11715 = vmatmul.f32.gmra.mxu0 %v11714
      %v11716 = vpop.f32.mrf.mxu0
      %v11717 = vadd.f32 %v11556, %v11716
      %v11718 = vand.u32 %v10725, 4294901760
      %11719 = vmatmul.f32.gmra.mxu0 %v11718
      %v11720 = vpop.f32.mrf.mxu0
      %v11721 = vadd.f32 %v11562, %v11720
      %v11722 = vand.u32 %v10728, 4294901760
      %11723 = vmatmul.f32.gmra.mxu0 %v11722
      %v11724 = vpop.f32.mrf.mxu0
      %v11725 = vadd.f32 %v11568, %v11724
      %11726 = vdwg.mxu0
      %11727 = vmatpush.msra.mxu0 0.0
      %11728 = vmatpush.msra.mxu0 0.0
      %11729 = vmatpush.msra.mxu0 0.0
      %11730 = vmatpush.msra.mxu0 0.0
      %11731 = vmatpush.msra.mxu0 0.0
      %11732 = vmatpush.msra.mxu0 0.0
      %11733 = vmatpush.msra.mxu0 0.0
      %11734 = vmatpush.msra.mxu0 0.0
      %11735 = vmatpush.msra.mxu0 0.0
      %11736 = vmatpush.msra.mxu0 0.0
      %11737 = vmatpush.msra.mxu0 0.0
      %11738 = vmatpush.msra.mxu0 0.0
      %v11739 = vand.u32 %v10633, 4294901760
      %11740 = vmatpush.msra.mxu0 %v11739
      %v11741 = vand.u32 %v10632, 4294901760
      %11742 = vmatpush.msra.mxu0 %v11741
      %v11743 = vand.u32 %v10631, 4294901760
      %11744 = vmatpush.msra.mxu0 %v11743
      %v11745 = vand.u32 %v10630, 4294901760
      %11746 = vmatpush.msra.mxu0 %v11745
      %v11747 = vand.u32 %v10635, 4294901760
      %11748 = vmatmul.f32.gmra.mxu0 %v11747
      %v11749 = vpop.f32.mrf.mxu0
      %v11750 = vadd.f32 %v11601, %v11749
      %v11751 = vand.u32 %v10638, 4294901760
      %11752 = vmatmul.f32.gmra.mxu0 %v11751
      %v11753 = vpop.f32.mrf.mxu0
      %v11754 = vadd.f32 %v11605, %v11753
      %v11755 = vand.u32 %v10641, 4294901760
      %11756 = vmatmul.f32.gmra.mxu0 %v11755
      %v11757 = vpop.f32.mrf.mxu0
      %v11758 = vadd.f32 %v11609, %v11757
      %v11759 = vand.u32 %v10644, 4294901760
      %11760 = vmatmul.f32.gmra.mxu0 %v11759
      %v11761 = vpop.f32.mrf.mxu0
      %v11762 = vadd.f32 %v11613, %v11761
      %v11763 = vand.u32 %v10647, 4294901760
      %11764 = vmatmul.f32.gmra.mxu0 %v11763
      %v11765 = vpop.f32.mrf.mxu0
      %v11766 = vadd.f32 %v11617, %v11765
      %v11767 = vand.u32 %v10650, 4294901760
      %11768 = vmatmul.f32.gmra.mxu0 %v11767
      %v11769 = vpop.f32.mrf.mxu0
      %v11770 = vadd.f32 %v11621, %v11769
      %v11771 = vand.u32 %v10653, 4294901760
      %11772 = vmatmul.f32.gmra.mxu0 %v11771
      %v11773 = vpop.f32.mrf.mxu0
      %v11774 = vadd.f32 %v11625, %v11773
      %v11775 = vand.u32 %v10656, 4294901760
      %11776 = vmatmul.f32.gmra.mxu0 %v11775
      %v11777 = vpop.f32.mrf.mxu0
      %v11778 = vadd.f32 %v11629, %v11777
      %v11779 = vand.u32 %v10659, 4294901760
      %11780 = vmatmul.f32.gmra.mxu0 %v11779
      %v11781 = vpop.f32.mrf.mxu0
      %v11782 = vadd.f32 %v11633, %v11781
      %v11783 = vand.u32 %v10662, 4294901760
      %11784 = vmatmul.f32.gmra.mxu0 %v11783
      %v11785 = vpop.f32.mrf.mxu0
      %v11786 = vadd.f32 %v11637, %v11785
      %v11787 = vand.u32 %v10665, 4294901760
      %11788 = vmatmul.f32.gmra.mxu0 %v11787
      %v11789 = vpop.f32.mrf.mxu0
      %v11790 = vadd.f32 %v11641, %v11789
      %v11791 = vand.u32 %v10668, 4294901760
      %11792 = vmatmul.f32.gmra.mxu0 %v11791
      %v11793 = vpop.f32.mrf.mxu0
      %v11794 = vadd.f32 %v11645, %v11793
      %v11795 = vand.u32 %v10671, 4294901760
      %11796 = vmatmul.f32.gmra.mxu0 %v11795
      %v11797 = vpop.f32.mrf.mxu0
      %v11798 = vadd.f32 %v11649, %v11797
      %v11799 = vand.u32 %v10674, 4294901760
      %11800 = vmatmul.f32.gmra.mxu0 %v11799
      %v11801 = vpop.f32.mrf.mxu0
      %v11802 = vadd.f32 %v11653, %v11801
      %v11803 = vand.u32 %v10677, 4294901760
      %11804 = vmatmul.f32.gmra.mxu0 %v11803
      %v11805 = vpop.f32.mrf.mxu0
      %v11806 = vadd.f32 %v11657, %v11805
      %v11807 = vand.u32 %v10680, 4294901760
      %11808 = vmatmul.f32.gmra.mxu0 %v11807
      %v11809 = vpop.f32.mrf.mxu0
      %v11810 = vadd.f32 %v11661, %v11809
      %v11811 = vand.u32 %v10683, 4294901760
      %11812 = vmatmul.f32.gmra.mxu0 %v11811
      %v11813 = vpop.f32.mrf.mxu0
      %v11814 = vadd.f32 %v11665, %v11813
      %v11815 = vand.u32 %v10686, 4294901760
      %11816 = vmatmul.f32.gmra.mxu0 %v11815
      %v11817 = vpop.f32.mrf.mxu0
      %v11818 = vadd.f32 %v11669, %v11817
      %v11819 = vand.u32 %v10689, 4294901760
      %11820 = vmatmul.f32.gmra.mxu0 %v11819
      %v11821 = vpop.f32.mrf.mxu0
      %v11822 = vadd.f32 %v11673, %v11821
      %v11823 = vand.u32 %v10692, 4294901760
      %11824 = vmatmul.f32.gmra.mxu0 %v11823
      %v11825 = vpop.f32.mrf.mxu0
      %v11826 = vadd.f32 %v11677, %v11825
      %v11827 = vand.u32 %v10695, 4294901760
      %11828 = vmatmul.f32.gmra.mxu0 %v11827
      %v11829 = vpop.f32.mrf.mxu0
      %v11830 = vadd.f32 %v11681, %v11829
      %v11831 = vand.u32 %v10698, 4294901760
      %11832 = vmatmul.f32.gmra.mxu0 %v11831
      %v11833 = vpop.f32.mrf.mxu0
      %v11834 = vadd.f32 %v11685, %v11833
      %v11835 = vand.u32 %v10701, 4294901760
      %11836 = vmatmul.f32.gmra.mxu0 %v11835
      %v11837 = vpop.f32.mrf.mxu0
      %v11838 = vadd.f32 %v11689, %v11837
      %v11839 = vand.u32 %v10704, 4294901760
      %11840 = vmatmul.f32.gmra.mxu0 %v11839
      %v11841 = vpop.f32.mrf.mxu0
      %v11842 = vadd.f32 %v11693, %v11841
      %v11843 = vand.u32 %v10707, 4294901760
      %11844 = vmatmul.f32.gmra.mxu0 %v11843
      %v11845 = vpop.f32.mrf.mxu0
      %v11846 = vadd.f32 %v11697, %v11845
      %v11847 = vand.u32 %v10710, 4294901760
      %11848 = vmatmul.f32.gmra.mxu0 %v11847
      %v11849 = vpop.f32.mrf.mxu0
      %v11850 = vadd.f32 %v11701, %v11849
      %v11851 = vand.u32 %v10713, 4294901760
      %11852 = vmatmul.f32.gmra.mxu0 %v11851
      %v11853 = vpop.f32.mrf.mxu0
      %v11854 = vadd.f32 %v11705, %v11853
      %v11855 = vand.u32 %v10716, 4294901760
      %11856 = vmatmul.f32.gmra.mxu0 %v11855
      %v11857 = vpop.f32.mrf.mxu0
      %v11858 = vadd.f32 %v11709, %v11857
      %v11859 = vand.u32 %v10719, 4294901760
      %11860 = vmatmul.f32.gmra.mxu0 %v11859
      %v11861 = vpop.f32.mrf.mxu0
      %v11862 = vadd.f32 %v11713, %v11861
      %v11863 = vand.u32 %v10722, 4294901760
      %11864 = vmatmul.f32.gmra.mxu0 %v11863
      %v11865 = vpop.f32.mrf.mxu0
      %v11866 = vadd.f32 %v11717, %v11865
      %v11867 = vand.u32 %v10725, 4294901760
      %11868 = vmatmul.f32.gmra.mxu0 %v11867
      %v11869 = vpop.f32.mrf.mxu0
      %v11870 = vadd.f32 %v11721, %v11869
      %v11871 = vand.u32 %v10728, 4294901760
      %11872 = vmatmul.f32.gmra.mxu0 %v11871
      %v11873 = vpop.f32.mrf.mxu0
      %v11874 = vadd.f32 %v11725, %v11873
      %11875 = vdwg.mxu0
      %v11876 = vadd.f32 %v10565, %v11750
      %v11877 = vadd.f32 %v10566, %v11754
      %v11878 = vadd.f32 %v10567, %v11758
      %v11879 = vadd.f32 %v10568, %v11762
      %v11880 = vadd.f32 %v10569, %v11766
      %v11881 = vadd.f32 %v10570, %v11770
      %v11882 = vadd.f32 %v10571, %v11774
      %v11883 = vadd.f32 %v10572, %v11778
      %v11884 = vadd.f32 %v10573, %v11782
      %v11885 = vadd.f32 %v10574, %v11786
      %v11886 = vadd.f32 %v10575, %v11790
      %v11887 = vadd.f32 %v10576, %v11794
      %v11888 = vadd.f32 %v10577, %v11798
      %v11889 = vadd.f32 %v10578, %v11802
      %v11890 = vadd.f32 %v10579, %v11806
      %v11891 = vadd.f32 %v10580, %v11810
      %v11892 = vadd.f32 %v10581, %v11814
      %v11893 = vadd.f32 %v10582, %v11818
      %v11894 = vadd.f32 %v10583, %v11822
      %v11895 = vadd.f32 %v10584, %v11826
      %v11896 = vadd.f32 %v10585, %v11830
      %v11897 = vadd.f32 %v10586, %v11834
      %v11898 = vadd.f32 %v10587, %v11838
      %v11899 = vadd.f32 %v10588, %v11842
      %v11900 = vadd.f32 %v10589, %v11846
      %v11901 = vadd.f32 %v10590, %v11850
      %v11902 = vadd.f32 %v10591, %v11854
      %v11903 = vadd.f32 %v10592, %v11858
      %v11904 = vadd.f32 %v10593, %v11862
      %v11905 = vadd.f32 %v10594, %v11866
      %v11906 = vadd.f32 %v10595, %v11870
      %v11907 = vadd.f32 %v10596, %v11874
      %v11908 = vld [vmem:[%s2] sm:$0x1]
      %v11910 = vperm.slane %v11908, 0
      %v11912 = vadd.f32 %v11876, %v11910
      %v11913 = vadd.f32 %v11877, %v11910
      %v11914 = vadd.f32 %v11878, %v11910
      %v11915 = vadd.f32 %v11879, %v11910
      %v11916 = vadd.f32 %v11880, %v11910
      %v11917 = vadd.f32 %v11881, %v11910
      %v11918 = vadd.f32 %v11882, %v11910
      %v11919 = vadd.f32 %v11883, %v11910
      %v11920 = vadd.f32 %v11884, %v11910
      %v11921 = vadd.f32 %v11885, %v11910
      %v11922 = vadd.f32 %v11886, %v11910
      %v11923 = vadd.f32 %v11887, %v11910
      %v11924 = vadd.f32 %v11888, %v11910
      %v11925 = vadd.f32 %v11889, %v11910
      %v11926 = vadd.f32 %v11890, %v11910
      %v11927 = vadd.f32 %v11891, %v11910
      %v11928 = vadd.f32 %v11892, %v11910
      %v11929 = vadd.f32 %v11893, %v11910
      %v11930 = vadd.f32 %v11894, %v11910
      %v11931 = vadd.f32 %v11895, %v11910
      %v11932 = vadd.f32 %v11896, %v11910
      %v11933 = vadd.f32 %v11897, %v11910
      %v11934 = vadd.f32 %v11898, %v11910
      %v11935 = vadd.f32 %v11899, %v11910
      %v11936 = vadd.f32 %v11900, %v11910
      %v11937 = vadd.f32 %v11901, %v11910
      %v11938 = vadd.f32 %v11902, %v11910
      %v11939 = vadd.f32 %v11903, %v11910
      %v11940 = vadd.f32 %v11904, %v11910
      %v11941 = vadd.f32 %v11905, %v11910
      %v11942 = vadd.f32 %v11906, %v11910
      %v11943 = vadd.f32 %v11907, %v11910
      %11944 = vst [vmem:[%s170] sm:$0xff] %v11912
      %11945 = vst [vmem:[%s170 + $0x8] sm:$0xff] %v11913
      %11946 = vst [vmem:[%s170 + $0x10] sm:$0xff] %v11914
      %11947 = vst [vmem:[%s170 + $0x18] sm:$0xff] %v11915
      %11948 = vst [vmem:[%s170 + $0x20] sm:$0xff] %v11916
      %11949 = vst [vmem:[%s170 + $0x28] sm:$0xff] %v11917
      %11950 = vst [vmem:[%s170 + $0x30] sm:$0xff] %v11918
      %11951 = vst [vmem:[%s170 + $0x38] sm:$0xff] %v11919
      %11952 = vst [vmem:[%s170 + $0x40] sm:$0xff] %v11920
      %11953 = vst [vmem:[%s170 + $0x48] sm:$0xff] %v11921
      %11954 = vst [vmem:[%s170 + $0x50] sm:$0xff] %v11922
      %11955 = vst [vmem:[%s170 + $0x58] sm:$0xff] %v11923
      %11956 = vst [vmem:[%s170 + $0x60] sm:$0xff] %v11924
      %11957 = vst [vmem:[%s170 + $0x68] sm:$0xff] %v11925
      %11958 = vst [vmem:[%s170 + $0x70] sm:$0xff] %v11926
      %11959 = vst [vmem:[%s170 + $0x78] sm:$0xff] %v11927
      %11960 = vst [vmem:[%s170 + $0x80] sm:$0xff] %v11928
      %11961 = vst [vmem:[%s170 + $0x88] sm:$0xff] %v11929
      %11962 = vst [vmem:[%s170 + $0x90] sm:$0xff] %v11930
      %11963 = vst [vmem:[%s170 + $0x98] sm:$0xff] %v11931
      %11964 = vst [vmem:[%s170 + $0xa0] sm:$0xff] %v11932
      %11965 = vst [vmem:[%s170 + $0xa8] sm:$0xff] %v11933
      %11966 = vst [vmem:[%s170 + $0xb0] sm:$0xff] %v11934
      %11967 = vst [vmem:[%s170 + $0xb8] sm:$0xff] %v11935
      %11968 = vst [vmem:[%s170 + $0xc0] sm:$0xff] %v11936
      %11969 = vst [vmem:[%s170 + $0xc8] sm:$0xff] %v11937
      %11970 = vst [vmem:[%s170 + $0xd0] sm:$0xff] %v11938
      %11971 = vst [vmem:[%s170 + $0xd8] sm:$0xff] %v11939
      %11972 = vst [vmem:[%s170 + $0xe0] sm:$0xff] %v11940
      %11973 = vst [vmem:[%s170 + $0xe8] sm:$0xff] %v11941
      %11974 = vst [vmem:[%s170 + $0xf0] sm:$0xff] %v11942
      %11975 = vst [vmem:[%s170 + $0xf8] sm:$0xff] %v11943
      %p11976 = scmp.lt.s32.totalorder %s14, 1
      %s11977 = scalar_select %p11976, %s14, 1
      %s11978 = smul.addr %s11977, 32
      %s11979 = smul.addr %s11978, 8
      %s11980 = scalar_lea.vmem %s3, %s11979
      // Predicated region
      $region33: #{upsample.1} parent=31 // pred_check
        %p11981 = pneg %p100
      $region34: #{upsample.1} parent=31 // pred_check_branch
        %11983 = sbr.rel (%p11981) target = $region36
      $region35: #{upsample.1} parent=31 // pred_region
        _
      $region36: #{upsample.1} parent=31 // pred_fallthru
        _
    $region32: #{upsample.1} parent=5 // pred_fallthru
      _
    %p11984 = scmp.le.s32.totalorder 2, %s9
    // Predicated region
    $region37: #{upsample.1} parent=5 // pred_check
      %p11985 = pneg %p11984
    $region38: #{upsample.1} parent=5 // pred_check_branch
      %11987 = sbr.rel (%p11985) target = $region40
    $region39: #{upsample.1} parent=5 // pred_region
      %s11988 = ssub.s32 %s9, 2
      // Predicated region
      $region41: #{upsample.1} parent=39 // pred_check
        %p11989 = pneg %p106
      $region42: #{upsample.1} parent=39 // pred_check_branch
        %11991 = sbr.rel (%p11989) target = $region44
      $region43: #{upsample.1} parent=39 // pred_region
        %p11992 = scmp.lt.s32.totalorder %s15, 1
        %s11993 = scalar_select %p11992, %s15, 1
        %s11994 = smul.addr %s11993, 32
        %s11995 = smul.addr %s11994, 8
        %s11996 = scalar_lea.vmem %s3, %s11995
      $region44: #{upsample.1} parent=39 // pred_fallthru
        _
    $region40: #{upsample.1} parent=5 // pred_fallthru
      _
  $region6: #{upsample.1} parent=0 // loop_footer
    %s13 = sadd.s32 1, %s9
  $region7: #{upsample.1} parent=0 // loop_footer_branch
    %8 = sbr.rel target = $region3
  $region8: #{upsample.1} parent=0 // loop_exit
    _

</llo_original>
